<compile_context>
chip_gen: v6e
topology: v6e:2x2x1
jax: 0.10.0
libtpu: 0.0.40
codegen_flags: <defaults>
</compile_context>

<pallas_src>
import functools
import numpy as np
import jax
import jax.numpy as jnp
from jax.experimental import pallas as pl
from jax.experimental.pallas import tpu as pltpu


_ACT_DEFAULTS = {
    # act: (def_alpha, def_gain)  -- mirrors activation_funcs in the PyTorch code
    "linear":  (0.0, 1.0),
    "relu":    (0.0, float(np.sqrt(2))),
    "lrelu":   (0.2, float(np.sqrt(2))),
    "tanh":    (0.0, 1.0),
    "sigmoid": (0.0, 1.0),
}


def _round_up(v, m):
    return ((v + m - 1) // m) * m


def _fc_tile_caps():
    """Per-generation GEMM tile caps + scoped-VMEM request (safe defaults)."""
    try:
        kind = jax.devices()[0].device_kind.lower()
    except Exception:
        kind = ""
    if ("v5" in kind) or ("v6" in kind):
        # 128 MiB physical VMEM: larger tiles cut per-step overhead and raise the
        # HBM-roofline fraction on the GEMMs.
        return 512, 1024, 1024, 96 * 1024 * 1024
    # v7x (64 MiB VMEM) / unknown generation: conservative caps, default limit.
    return 256, 512, 512, None


# ---------------------------------------------------------------------------
# F.normalize(x, p=2, dim=-1)  (standalone fallback; normally fused into the
# q/k GEMM prologue below)
# ---------------------------------------------------------------------------
def _l2norm_kernel(x_ref, o_ref, *, eps):
    x = x_ref[...].astype(jnp.float32)
    nrm = jnp.sqrt(jnp.sum(x * x, axis=-1, keepdims=True))
    o_ref[...] = (x / jnp.maximum(nrm, eps)).astype(o_ref.dtype)


def l2_normalize(x, *, eps=1e-12, tm_max=512):
    M, C = x.shape
    tm = min(tm_max, _round_up(M, 8))
    Mp = _round_up(M, tm)
    x_p = jnp.pad(x, ((0, Mp - M), (0, 0))) if Mp != M else x
    out_p = pl.pallas_call(
        functools.partial(_l2norm_kernel, eps=eps),
        out_shape=jax.ShapeDtypeStruct((Mp, C), x.dtype),
        grid_spec=pltpu.PrefetchScalarGridSpec(
            num_scalar_prefetch=0,
            grid=(Mp // tm,),
            in_specs=[pl.BlockSpec((tm, C), lambda i: (i, 0))],
            out_specs=pl.BlockSpec((tm, C), lambda i: (i, 0)),
        ),
        compiler_params=pltpu.CompilerParams(dimension_semantics=("parallel",)),
    )(x_p)
    return out_p[:M] if Mp != M else out_p


# ---------------------------------------------------------------------------
# FullyConnectedLayer:  y = act([norm?](x) @ (w * wg).T + b * bg) * act_gain
# ---------------------------------------------------------------------------
def _fc_kernel(x_ref, w_ref, b_ref, o_ref, *scratch,
               weight_gain, bias_gain, activation, alpha, act_gain,
               normalize_input, norm_eps):
    # f32 outputs accumulate directly in o_ref; non-f32 get an f32 scratch.
    acc_ref = scratch[0] if scratch else o_ref
    k = pl.program_id(2)

    x = x_ref[...]
    if normalize_input:
        # Only valid when the whole K dim lives in this single k-step (checked in
        # the wrapper). Zero-padded K columns contribute nothing to the norm;
        # fully zero (padded) rows stay zero after scaling.
        xf = x.astype(jnp.float32)
        sq = jnp.sum(xf * xf, axis=-1, keepdims=True)
        inv = jax.lax.rsqrt(jnp.maximum(sq, norm_eps * norm_eps))
        x = (xf * inv).astype(x_ref.dtype)

    @pl.when(k == 0)
    def _():
        acc_ref[...] = jnp.zeros_like(acc_ref)

    # Native-dtype operands straight into the MXU; f32 accumulation.
    acc_ref[...] += jnp.dot(x, w_ref[...], preferred_element_type=jnp.float32)

    @pl.when(k == pl.num_programs(2) - 1)
    def _():
        # weight_gain is scalar, so x @ (w*wg).T == (x @ w.T) * wg: fold it into
        # the MxN epilogue instead of scaling the whole weight tile each step.
        y = acc_ref[...] * weight_gain
        y = y + b_ref[...].astype(jnp.float32) * bias_gain
        if activation == "linear":
            pass
        elif activation == "lrelu":
            y = jnp.where(y >= 0, y, alpha * y)
        elif activation == "relu":
            y = jnp.maximum(y, 0.0)
        elif activation == "tanh":
            y = jnp.tanh(y)
        elif activation == "sigmoid":
            y = jax.nn.sigmoid(y)
        else:
            raise NotImplementedError(activation)
        if act_gain != 1.0:
            y = y * act_gain
        o_ref[...] = y.astype(o_ref.dtype)


def fc_forward(x, weight, bias, *, activation="linear", lr_multiplier=1.0,
               normalize_input=False, norm_eps=1e-12,
               tm_max=None, tn_max=None, tk_max=None):
    """x: [M, K]; weight: [N, K] (PyTorch layout); bias: [N] or None.

    normalize_input=True additionally applies F.normalize(x, p=2, dim=-1) as a
    fused prologue (q/k path of WindowAttention).
    """
    M, K = x.shape
    N, Kw = weight.shape
    assert K == Kw
    weight_gain = float(lr_multiplier) / float(np.sqrt(K))
    bias_gain = float(lr_multiplier)
    alpha, act_gain = _ACT_DEFAULTS[activation]

    if bias is None:
        # TODO(synk): bias=False path not exercised; pass zeros instead.
        bias = jnp.zeros((N,), dtype=x.dtype)
        bias_gain = 0.0
    assert bias.shape[0] == N

    cap_m, cap_n, cap_k, vmem_limit = _fc_tile_caps()
    tm_max = cap_m if tm_max is None else tm_max
    tn_max = cap_n if tn_max is None else tn_max
    tk_max = cap_k if tk_max is None else tk_max

    # Tile sizes: sublane axis multiple of 8, lane axes multiples of 128.
    tm = min(tm_max, _round_up(M, 8))
    tn = min(tn_max, _round_up(N, 128))
    tk = min(tk_max, _round_up(K, 128))
    Mp, Np, Kp = _round_up(M, tm), _round_up(N, tn), _round_up(K, tk)

    if normalize_input and (Kp // tk) > 1:
        # The fused norm needs the whole row in one k-step; fall back to the
        # standalone kernel when K does not fit a single K tile.
        x = l2_normalize(x, eps=norm_eps)
        normalize_input = False

    # One-time layout change OUTSIDE the kernel: [N, K] -> lane-dense [K, N] RHS.
    w_t = weight.T
    b2d = bias.reshape(1, N)

    x_p = jnp.pad(x, ((0, Mp - M), (0, Kp - K))) if (Mp, Kp) != (M, K) else x
    w_p = jnp.pad(w_t, ((0, Kp - K), (0, Np - N))) if (Kp, Np) != (K, N) else w_t
    b_p = jnp.pad(b2d, ((0, 0), (0, Np - N))) if Np != N else b2d

    out_dtype = x.dtype
    use_scratch = out_dtype != jnp.float32
    scratch_shapes = [pltpu.VMEM((tm, tn), jnp.float32)] if use_scratch else []

    kernel = functools.partial(
        _fc_kernel, weight_gain=weight_gain, bias_gain=bias_gain,
        activation=activation, alpha=alpha, act_gain=act_gain,
        normalize_input=normalize_input, norm_eps=float(norm_eps))

    cp_kwargs = dict(dimension_semantics=("parallel", "parallel", "arbitrary"))
    if vmem_limit is not None:
        cp_kwargs["vmem_limit_bytes"] = int(vmem_limit)

    out_p = pl.pallas_call(
        kernel,
        out_shape=jax.ShapeDtypeStruct((Mp, Np), out_dtype),
        grid_spec=pltpu.PrefetchScalarGridSpec(
            num_scalar_prefetch=0,
            grid=(Mp // tm, Np // tn, Kp // tk),
            in_specs=[
                pl.BlockSpec((tm, tk), lambda i, j, k: (i, k)),
                pl.BlockSpec((tk, tn), lambda i, j, k: (k, j)),
                pl.BlockSpec((1, tn), lambda i, j, k: (0, j)),
            ],
            out_specs=pl.BlockSpec((tm, tn), lambda i, j, k: (i, j)),
            scratch_shapes=scratch_shapes,
        ),
        compiler_params=pltpu.CompilerParams(**cp_kwargs),
    )(x_p, w_p, b_p)

    if (Mp, Np) != (M, N):
        out_p = out_p[:M, :N]
    return out_p


# ---------------------------------------------------------------------------
# Window attention core: one grid step = one (wi, wj) window position with all
# batch elements and all heads. The BlockSpec index map IS the window
# partition / window reverse (inputs/outputs stay in [B, H, W, C] layout).
# ---------------------------------------------------------------------------
def _win_attn_kernel(q_ref, k_ref, v_ref, o_ref, *, num_heads, scale):
    b, ws_h, ws_w, c = q_ref.shape
    n = ws_h * ws_w
    d = c // num_heads
    q = q_ref[...].reshape(b, n, c)
    k = k_ref[...].reshape(b, n, c)
    v = v_ref[...].reshape(b, n, c)

    head_outs = []
    for h in range(num_heads):                 # static loop; heads live in lanes
        lo = h * d
        qh = q[:, :, lo:lo + d].astype(jnp.float32) * scale   # fold scale into q
        kh = k[:, :, lo:lo + d].astype(jnp.float32)
        vh = v[:, :, lo:lo + d]
        # q @ k.T as a transposed-RHS contraction (no in-kernel transpose of k).
        s = jnp.einsum("bnd,bmd->bnm", qh, kh,
                       preferred_element_type=jnp.float32)
        m = jnp.max(s, axis=-1, keepdims=True)
        p = jnp.exp(s - m)
        l = jnp.sum(p, axis=-1, keepdims=True)
        inv_l = pl.reciprocal(l, approx=True)
        inv_l = inv_l * (2.0 - l * inv_l)      # one Newton step -> f32 accuracy
        oh = jnp.einsum("bnm,bmd->bnd", p.astype(vh.dtype), vh,
                        preferred_element_type=jnp.float32)
        head_outs.append(oh * inv_l)

    o = jnp.concatenate(head_outs, axis=-1)    # [b, n, C] — lane-packed heads
    o_ref[...] = o.reshape(b, ws_h, ws_w, c).astype(o_ref.dtype)


def window_attention_core(q, k, v, *, window_size, num_heads, scale):
    """q, k, v: [B, H, W, C]. Window partition/reverse handled by the BlockSpec."""
    B, H, W, C = q.shape
    ws = window_size
    spec = pl.BlockSpec((B, ws, ws, C), lambda wi, wj: (0, wi, wj, 0))
    return pl.pallas_call(
        functools.partial(_win_attn_kernel, num_heads=num_heads, scale=scale),
        out_shape=jax.ShapeDtypeStruct((B, H, W, C), q.dtype),
        grid_spec=pltpu.PrefetchScalarGridSpec(
            num_scalar_prefetch=0,
            grid=(H // ws, W // ws),
            in_specs=[spec, spec, spec],
            out_specs=spec,
        ),
        compiler_params=pltpu.CompilerParams(
            dimension_semantics=("parallel", "parallel")),
    )(q, k, v)


# ---------------------------------------------------------------------------
# WindowAttention / SwinTransformerBlock wrappers (layout plumbing in JAX)
# ---------------------------------------------------------------------------
def window_attention(x, p, *, num_heads, window_size, H, W):
    """x: [B, L=H*W, C] in raster order. Returns [B, L, C]."""
    B, L, C = x.shape
    d = C // num_heads
    scale = d ** (-0.5)
    xf = x.reshape(B * L, C)

    # q & k share the (normalized) LHS -> fuse into one GEMM with concat weights;
    # the L2 norm is a fused prologue inside that GEMM (no standalone kernel).
    wqk = jnp.concatenate([p["q"]["w"], p["k"]["w"]], axis=0)       # [2C, C]
    bqk = jnp.concatenate([p["q"]["b"], p["k"]["b"]], axis=0)       # [2C]
    qk = fc_forward(xf, wqk, bqk, normalize_input=True)             # [B*L, 2C]
    v = fc_forward(xf, p["v"]["w"], p["v"]["b"])                    # [B*L, C]

    q = qk[:, :C].reshape(B, H, W, C)
    k = qk[:, C:].reshape(B, H, W, C)
    v = v.reshape(B, H, W, C)

    o = window_attention_core(q, k, v, window_size=window_size,
                              num_heads=num_heads, scale=scale)     # [B, H, W, C]
    out = fc_forward(o.reshape(B * L, C), p["proj"]["w"], p["proj"]["b"])
    return out.reshape(B, L, C)


def swin_transformer_block(x, x_size, params, *, num_heads, window_size,
                           shift_size, input_resolution, mask=None):
    H, W = x_size
    B, L, C = x.shape
    assert L == H * W

    if min(input_resolution) <= window_size:
        shift_size = 0
        window_size = min(input_resolution)
    # TODO(synk): shift_size > 0 (attn_mask) and the inpainting `mask` path are
    # not implemented; demo uses the default unmasked, unshifted configuration.
    assert shift_size == 0 and mask is None
    assert H % window_size == 0 and W % window_size == 0

    shortcut = x
    # q/k/v projections are per-token linear maps, so they run directly on the
    # raster-ordered tokens; window grouping happens inside the attention kernel.
    x2 = window_attention(x, params["attn"], num_heads=num_heads,
                          window_size=window_size, H=H, W=W)

    fused_in = jnp.concatenate([shortcut, x2], axis=-1).reshape(B * L, 2 * C)
    x3 = fc_forward(fused_in, params["fuse"]["w"], params["fuse"]["b"],
                    activation="lrelu")
    x4 = fc_forward(x3, params["fc1"]["w"], params["fc1"]["b"], activation="lrelu")
    x5 = fc_forward(x4, params["fc2"]["w"], params["fc2"]["b"], activation="linear")
    return x5.reshape(B, L, C), mask


# ---------------------------------------------------------------------------
# Pure-numpy reference (mirrors the PyTorch forward)
# ---------------------------------------------------------------------------
def _np_fc(x, w, b, activation="linear", lr_multiplier=1.0):
    wg = lr_multiplier / np.sqrt(w.shape[1])
    y = x @ (w * wg).T + (b * lr_multiplier)[None, :]
    alpha, gain = _ACT_DEFAULTS[activation]
    if activation == "lrelu":
        y = np.where(y >= 0, y, alpha * y)
    elif activation == "relu":
        y = np.maximum(y, 0.0)
    if gain != 1.0:
        y = y * gain
    return y


def _np_window_attention(xw, p, num_heads):
    B_, N, C = xw.shape
    d = C // num_heads
    scale = d ** (-0.5)
    xf = xw.reshape(B_ * N, C)
    norm_x = xf / np.maximum(np.linalg.norm(xf, axis=-1, keepdims=True), 1e-12)

    def heads(t):
        return t.reshape(B_, N, num_heads, d).transpose(0, 2, 1, 3)

    q = heads(_np_fc(norm_x, p["q"]["w"], p["q"]["b"]))
    k = heads(_np_fc(norm_x, p["k"]["w"], p["k"]["b"]))
    v = heads(_np_fc(xf, p["v"]["w"], p["v"]["b"]))
    s = np.einsum("bhnd,bhmd->bhnm", q, k) * scale
    s = s - s.max(-1, keepdims=True)
    e = np.exp(s)
    attn = e / e.sum(-1, keepdims=True)
    o = np.einsum("bhnm,bhmd->bhnd", attn, v).transpose(0, 2, 1, 3).reshape(B_ * N, C)
    return _np_fc(o, p["proj"]["w"], p["proj"]["b"]).reshape(B_, N, C)


def _np_swin_block(x, x_size, params, num_heads, window_size):
    H, W = x_size
    B, L, C = x.shape
    ws = window_size
    shortcut = x
    xi = x.reshape(B, H, W, C)
    xw = (xi.reshape(B, H // ws, ws, W // ws, ws, C)
            .transpose(0, 1, 3, 2, 4, 5).reshape(-1, ws * ws, C))
    aw = _np_window_attention(xw, params["attn"], num_heads).reshape(-1, ws, ws, C)
    nB = aw.shape[0] // ((H // ws) * (W // ws))
    x2 = (aw.reshape(nB, H // ws, W // ws, ws, ws, C)
            .transpose(0, 1, 3, 2, 4, 5).reshape(nB, H, W, C)).reshape(B, L, C)
    fused_in = np.concatenate([shortcut, x2], axis=-1).reshape(B * L, 2 * C)
    x3 = _np_fc(fused_in, params["fuse"]["w"], params["fuse"]["b"], "lrelu")
    x4 = _np_fc(x3, params["fc1"]["w"], params["fc1"]["b"], "lrelu")
    x5 = _np_fc(x4, params["fc2"]["w"], params["fc2"]["b"], "linear")
    return x5.reshape(B, L, C)


# ---------------------------------------------------------------------------
def init_fc_params(key, in_f, out_f, lr_multiplier=1.0, bias_init=0.0):
    w = jax.random.normal(key, (out_f, in_f), dtype=jnp.float32) / lr_multiplier
    b = jnp.full((out_f,), np.float32(bias_init), dtype=jnp.float32)
    return {"w": w, "b": b}


if __name__ == "__main__":
    key = jax.random.PRNGKey(0)
    B, H, W = 2, 16, 16
    dim = 32
    num_heads = 4
    window_size = 8
    shift_size = 0
    mlp_hidden = int(dim * 4.0)

    keys = jax.random.split(key, 8)
    params = {
        "attn": {
            "q": init_fc_params(keys[0], dim, dim),
            "k": init_fc_params(keys[1], dim, dim),
            "v": init_fc_params(keys[2], dim, dim),
            "proj": init_fc_params(keys[3], dim, dim),
        },
        "fuse": init_fc_params(keys[4], dim * 2, dim),
        "fc1": init_fc_params(keys[5], dim, mlp_hidden),
        "fc2": init_fc_params(keys[6], mlp_hidden, dim),
    }
    x = jax.random.normal(keys[7], (B, H * W, dim), dtype=jnp.float32)

    @jax.jit
    def fwd(x, params):
        out, _ = swin_transformer_block(
            x, (H, W), params, num_heads=num_heads, window_size=window_size,
            shift_size=shift_size, input_resolution=(H, W))
        return out

    out = jax.block_until_ready(fwd(x, params))

    # Reference check against a pure-numpy implementation of the same math.
    np_params = jax.tree_util.tree_map(np.asarray, params)
    ref = _np_swin_block(np.asarray(x), (H, W), np_params, num_heads, window_size)
    np.testing.assert_allclose(np.asarray(out), ref, rtol=2e-3, atol=2e-3)

    print("KERNEL_OK")
</pallas_src>

<mosaic_0001>
module attributes {stable_mosaic.version = 11 : i64} {
  func.func @_fc_kernel(%arg0: i32, %arg1: i32, %arg2: i32, %arg3: memref<256x128xf32, #tpu.memory_space<vmem>>, %arg4: memref<128x128xf32, #tpu.memory_space<vmem>>, %arg5: memref<1x128xf32, #tpu.memory_space<vmem>>, %arg6: memref<256x128xf32, #tpu.memory_space<vmem>>) attributes {dimension_semantics = [#tpu.dimension_semantics<parallel>, #tpu.dimension_semantics<parallel>, #tpu.dimension_semantics<arbitrary>], iteration_bounds = array<i64: 2, 1, 1>, scalar_prefetch = 0 : i64, scratch_operands = 0 : i64, tpu.core_type = #tpu.core_type<tc>, window_params = [{transform_indices = @transform_0, window_bounds = array<i64: 256, 128>}, {transform_indices = @transform_1, window_bounds = array<i64: 128, 128>}, {transform_indices = @transform_2, window_bounds = array<i64: 1, 128>}, {transform_indices = @transform_3, window_bounds = array<i64: 256, 128>}]} {
    %c0 = arith.constant 0 : index
    %c0_0 = arith.constant 0 : index
    %0 = vector.load %arg3[%c0, %c0_0] : memref<256x128xf32, #tpu.memory_space<vmem>>, vector<256x128xf32>
    %1 = arith.mulf %0, %0 : vector<256x128xf32>
    %cst = arith.constant dense<0.000000e+00> : vector<256xf32>
    %2 = vector.multi_reduction <add>, %1, %cst [1] : vector<256x128xf32> to vector<256xf32>
    %3 = vector.shape_cast %2 : vector<256xf32> to vector<256x1xf32>
    %cst_1 = arith.constant 1.000000e-24 : f32
    %4 = vector.broadcast %cst_1 : f32 to vector<256x1xf32>
    %5 = arith.maximumf %3, %4 : vector<256x1xf32>
    %6 = math.rsqrt %5 : vector<256x1xf32>
    %7 = vector.broadcast %6 : vector<256x1xf32> to vector<256x128xf32>
    %8 = arith.mulf %0, %7 : vector<256x128xf32>
    %c0_i32 = arith.constant 0 : i32
    %9 = arith.cmpi eq, %arg2, %c0_i32 : i32
    %10 = arith.extui %9 : i1 to i32
    %c0_i32_2 = arith.constant 0 : i32
    %11 = arith.cmpi ne, %10, %c0_i32_2 : i32
    scf.if %11 {
      %cst_12 = arith.constant 0.000000e+00 : f32
      %20 = vector.broadcast %cst_12 : f32 to vector<256x128xf32>
      %c0_13 = arith.constant 0 : index
      %c0_14 = arith.constant 0 : index
      %21 = vector.load %arg6[%c0_13, %c0_14] : memref<256x128xf32, #tpu.memory_space<vmem>>, vector<256x128xf32>
      tpu.vector_store %arg6[%c0_13, %c0_14], %20 {strides = array<i32>} : memref<256x128xf32, #tpu.memory_space<vmem>>, vector<256x128xf32>,
    } else {
    }
    %c0_3 = arith.constant 0 : index
    %c0_4 = arith.constant 0 : index
    %12 = vector.load %arg6[%c0_3, %c0_4] : memref<256x128xf32, #tpu.memory_space<vmem>>, vector<256x128xf32>
    %c0_5 = arith.constant 0 : index
    %c0_6 = arith.constant 0 : index
    %13 = vector.load %arg4[%c0_5, %c0_6] : memref<128x128xf32, #tpu.memory_space<vmem>>, vector<128x128xf32>
    %cst_7 = arith.constant dense<0.000000e+00> : vector<256x128xf32>
    %14 = tpu.matmul %8, %13, %cst_7 {dimension_numbers = #tpu.dot_dimension_numbers<[1], [0], [0], [1], [0, 0, 1, 1], [], []>} : vector<256x128xf32>, vector<128x128xf32>, vector<256x128xf32> -> vector<256x128xf32>
    %15 = arith.addf %12, %14 : vector<256x128xf32>
    %c0_8 = arith.constant 0 : index
    %c0_9 = arith.constant 0 : index
    %16 = vector.load %arg6[%c0_8, %c0_9] : memref<256x128xf32, #tpu.memory_space<vmem>>, vector<256x128xf32>
    tpu.vector_store %arg6[%c0_8, %c0_9], %15 {strides = array<i32>} : memref<256x128xf32, #tpu.memory_space<vmem>>, vector<256x128xf32>,
    %c0_i32_10 = arith.constant 0 : i32
    %17 = arith.cmpi eq, %arg2, %c0_i32_10 : i32
    %18 = arith.extui %17 : i1 to i32
    %c0_i32_11 = arith.constant 0 : i32
    %19 = arith.cmpi ne, %18, %c0_i32_11 : i32
    scf.if %19 {
      %c0_12 = arith.constant 0 : index
      %c0_13 = arith.constant 0 : index
      %20 = vector.load %arg6[%c0_12, %c0_13] : memref<256x128xf32, #tpu.memory_space<vmem>>, vector<256x128xf32>
      %cst_14 = arith.constant 0.176776692 : f32
      %21 = vector.broadcast %cst_14 : f32 to vector<256x128xf32>
      %22 = arith.mulf %20, %21 : vector<256x128xf32>
      %c0_15 = arith.constant 0 : index
      %c0_16 = arith.constant 0 : index
      %23 = vector.load %arg5[%c0_15, %c0_16] : memref<1x128xf32, #tpu.memory_space<vmem>>, vector<1x128xf32>
      %cst_17 = arith.constant 1.000000e+00 : f32
      %24 = vector.broadcast %cst_17 : f32 to vector<1x128xf32>
      %25 = arith.mulf %23, %24 : vector<1x128xf32>
      %26 = vector.broadcast %25 : vector<1x128xf32> to vector<256x128xf32>
      %27 = arith.addf %22, %26 : vector<256x128xf32>
      %c0_18 = arith.constant 0 : index
      %c0_19 = arith.constant 0 : index
      %28 = vector.load %arg6[%c0_18, %c0_19] : memref<256x128xf32, #tpu.memory_space<vmem>>, vector<256x128xf32>
      tpu.vector_store %arg6[%c0_18, %c0_19], %27 {strides = array<i32>} : memref<256x128xf32, #tpu.memory_space<vmem>>, vector<256x128xf32>,
    } else {
    }
    return
  }
  func.func @transform_0(%arg0: i32, %arg1: i32, %arg2: i32) -> (i32, i32) {
    %c0_i32 = arith.constant 0 : i32
    return %arg0, %arg2 : i32, i32
  }
  func.func @transform_1(%arg0: i32, %arg1: i32, %arg2: i32) -> (i32, i32) {
    %c0_i32 = arith.constant 0 : i32
    return %arg2, %arg1 : i32, i32
  }
  func.func @transform_2(%arg0: i32, %arg1: i32, %arg2: i32) -> (i32, i32) {
    %c0_i32 = arith.constant 0 : i32
    %c0_i32_0 = arith.constant 0 : i32
    return %c0_i32, %arg1 : i32, i32
  }
  func.func @transform_3(%arg0: i32, %arg1: i32, %arg2: i32) -> (i32, i32) {
    %c0_i32 = arith.constant 0 : i32
    return %arg0, %arg1 : i32, i32
  }
}

module attributes {stable_mosaic.version = 11 : i64} {
  func.func @_win_attn_kernel(%arg0: i32, %arg1: i32, %arg2: memref<2x8x8x32xf32, #tpu.memory_space<vmem>>, %arg3: memref<2x8x8x32xf32, #tpu.memory_space<vmem>>, %arg4: memref<2x8x8x32xf32, #tpu.memory_space<vmem>>, %arg5: memref<2x8x8x32xf32, #tpu.memory_space<vmem>>) attributes {dimension_semantics = [#tpu.dimension_semantics<parallel>, #tpu.dimension_semantics<parallel>], iteration_bounds = array<i64: 2, 2>, scalar_prefetch = 0 : i64, scratch_operands = 0 : i64, tpu.core_type = #tpu.core_type<tc>, window_params = [{transform_indices = @transform_0, window_bounds = array<i64: 2, 8, 8, 32>}, {transform_indices = @transform_1, window_bounds = array<i64: 2, 8, 8, 32>}, {transform_indices = @transform_2, window_bounds = array<i64: 2, 8, 8, 32>}, {transform_indices = @transform_3, window_bounds = array<i64: 2, 8, 8, 32>}]} {
    %c0 = arith.constant 0 : index
    %c0_0 = arith.constant 0 : index
    %c0_1 = arith.constant 0 : index
    %c0_2 = arith.constant 0 : index
    %0 = vector.load %arg2[%c0, %c0_0, %c0_1, %c0_2] : memref<2x8x8x32xf32, #tpu.memory_space<vmem>>, vector<2x8x8x32xf32>
    %1 = vector.shape_cast %0 : vector<2x8x8x32xf32> to vector<2x64x32xf32>
    %c0_3 = arith.constant 0 : index
    %c0_4 = arith.constant 0 : index
    %c0_5 = arith.constant 0 : index
    %c0_6 = arith.constant 0 : index
    %2 = vector.load %arg3[%c0_3, %c0_4, %c0_5, %c0_6] : memref<2x8x8x32xf32, #tpu.memory_space<vmem>>, vector<2x8x8x32xf32>
    %3 = vector.shape_cast %2 : vector<2x8x8x32xf32> to vector<2x64x32xf32>
    %c0_7 = arith.constant 0 : index
    %c0_8 = arith.constant 0 : index
    %c0_9 = arith.constant 0 : index
    %c0_10 = arith.constant 0 : index
    %4 = vector.load %arg4[%c0_7, %c0_8, %c0_9, %c0_10] : memref<2x8x8x32xf32, #tpu.memory_space<vmem>>, vector<2x8x8x32xf32>
    %5 = vector.shape_cast %4 : vector<2x8x8x32xf32> to vector<2x64x32xf32>
    %6 = vector.extract_strided_slice %1 {offsets = [0, 0, 0], sizes = [2, 64, 8], strides = [1, 1, 1]} : vector<2x64x32xf32> to vector<2x64x8xf32>
    %cst = arith.constant 0.353553385 : f32
    %7 = vector.broadcast %cst : f32 to vector<2x64x8xf32>
    %8 = arith.mulf %6, %7 : vector<2x64x8xf32>
    %9 = vector.extract_strided_slice %3 {offsets = [0, 0, 0], sizes = [2, 64, 8], strides = [1, 1, 1]} : vector<2x64x32xf32> to vector<2x64x8xf32>
    %10 = vector.extract_strided_slice %5 {offsets = [0, 0, 0], sizes = [2, 64, 8], strides = [1, 1, 1]} : vector<2x64x32xf32> to vector<2x64x8xf32>
    "tpu.trace_start"() <{level = 10 : i32, message = "bnd,bmd->bnm"}> : () -> ()
    %cst_11 = arith.constant dense<0.000000e+00> : vector<2x64x64xf32>
    %11 = tpu.matmul %8, %9, %cst_11 {dimension_numbers = #tpu.dot_dimension_numbers<[2], [2], [1], [1], [0, 0, 0, 1, 1, 1], [0], [0]>} : vector<2x64x8xf32>, vector<2x64x8xf32>, vector<2x64x64xf32> -> vector<2x64x64xf32>
    "tpu.trace_stop"() : () -> ()
    %cst_12 = arith.constant dense<0xFF800000> : vector<2x64xf32>
    %12 = vector.multi_reduction <maximumf>, %11, %cst_12 [2] : vector<2x64x64xf32> to vector<2x64xf32>
    %13 = vector.shape_cast %12 : vector<2x64xf32> to vector<2x64x1xf32>
    %14 = vector.broadcast %13 : vector<2x64x1xf32> to vector<2x64x64xf32>
    %15 = arith.subf %11, %14 : vector<2x64x64xf32>
    %16 = math.exp %15 : vector<2x64x64xf32>
    %cst_13 = arith.constant dense<0.000000e+00> : vector<2x64xf32>
    %17 = vector.multi_reduction <add>, %16, %cst_13 [2] : vector<2x64x64xf32> to vector<2x64xf32>
    %18 = vector.shape_cast %17 : vector<2x64xf32> to vector<2x64x1xf32>
    %19 = tpu.reciprocal %18 {approx = true} : vector<2x64x1xf32> -> vector<2x64x1xf32>
    %20 = arith.mulf %18, %19 : vector<2x64x1xf32>
    %cst_14 = arith.constant 2.000000e+00 : f32
    %21 = vector.broadcast %cst_14 : f32 to vector<2x64x1xf32>
    %22 = arith.subf %21, %20 : vector<2x64x1xf32>
    %23 = arith.mulf %19, %22 : vector<2x64x1xf32>
    "tpu.trace_start"() <{level = 10 : i32, message = "bnm,bmd->bnd"}> : () -> ()
    %cst_15 = arith.constant dense<0.000000e+00> : vector<2x64x8xf32>
    %24 = tpu.matmul %16, %10, %cst_15 {dimension_numbers = #tpu.dot_dimension_numbers<[2], [1], [1], [2], [0, 0, 0, 1, 1, 2], [0], [0]>} : vector<2x64x64xf32>, vector<2x64x8xf32>, vector<2x64x8xf32> -> vector<2x64x8xf32>
    "tpu.trace_stop"() : () -> ()
    %25 = vector.broadcast %23 : vector<2x64x1xf32> to vector<2x64x8xf32>
    %26 = arith.mulf %24, %25 : vector<2x64x8xf32>
    %27 = vector.extract_strided_slice %1 {offsets = [0, 0, 8], sizes = [2, 64, 8], strides = [1, 1, 1]} : vector<2x64x32xf32> to vector<2x64x8xf32>
    %cst_16 = arith.constant 0.353553385 : f32
    %28 = vector.broadcast %cst_16 : f32 to vector<2x64x8xf32>
    %29 = arith.mulf %27, %28 : vector<2x64x8xf32>
    %30 = vector.extract_strided_slice %3 {offsets = [0, 0, 8], sizes = [2, 64, 8], strides = [1, 1, 1]} : vector<2x64x32xf32> to vector<2x64x8xf32>
    %31 = vector.extract_strided_slice %5 {offsets = [0, 0, 8], sizes = [2, 64, 8], strides = [1, 1, 1]} : vector<2x64x32xf32> to vector<2x64x8xf32>
    "tpu.trace_start"() <{level = 10 : i32, message = "bnd,bmd->bnm"}> : () -> ()
    %cst_17 = arith.constant dense<0.000000e+00> : vector<2x64x64xf32>
    %32 = tpu.matmul %29, %30, %cst_17 {dimension_numbers = #tpu.dot_dimension_numbers<[2], [2], [1], [1], [0, 0, 0, 1, 1, 1], [0], [0]>} : vector<2x64x8xf32>, vector<2x64x8xf32>, vector<2x64x64xf32> -> vector<2x64x64xf32>
    "tpu.trace_stop"() : () -> ()
    %cst_18 = arith.constant dense<0xFF800000> : vector<2x64xf32>
    %33 = vector.multi_reduction <maximumf>, %32, %cst_18 [2] : vector<2x64x64xf32> to vector<2x64xf32>
    %34 = vector.shape_cast %33 : vector<2x64xf32> to vector<2x64x1xf32>
    %35 = vector.broadcast %34 : vector<2x64x1xf32> to vector<2x64x64xf32>
    %36 = arith.subf %32, %35 : vector<2x64x64xf32>
    %37 = math.exp %36 : vector<2x64x64xf32>
    %cst_19 = arith.constant dense<0.000000e+00> : vector<2x64xf32>
    %38 = vector.multi_reduction <add>, %37, %cst_19 [2] : vector<2x64x64xf32> to vector<2x64xf32>
    %39 = vector.shape_cast %38 : vector<2x64xf32> to vector<2x64x1xf32>
    %40 = tpu.reciprocal %39 {approx = true} : vector<2x64x1xf32> -> vector<2x64x1xf32>
    %41 = arith.mulf %39, %40 : vector<2x64x1xf32>
    %cst_20 = arith.constant 2.000000e+00 : f32
    %42 = vector.broadcast %cst_20 : f32 to vector<2x64x1xf32>
    %43 = arith.subf %42, %41 : vector<2x64x1xf32>
    %44 = arith.mulf %40, %43 : vector<2x64x1xf32>
    "tpu.trace_start"() <{level = 10 : i32, message = "bnm,bmd->bnd"}> : () -> ()
    %cst_21 = arith.constant dense<0.000000e+00> : vector<2x64x8xf32>
    %45 = tpu.matmul %37, %31, %cst_21 {dimension_numbers = #tpu.dot_dimension_numbers<[2], [1], [1], [2], [0, 0, 0, 1, 1, 2], [0], [0]>} : vector<2x64x64xf32>, vector<2x64x8xf32>, vector<2x64x8xf32> -> vector<2x64x8xf32>
    "tpu.trace_stop"() : () -> ()
    %46 = vector.broadcast %44 : vector<2x64x1xf32> to vector<2x64x8xf32>
    %47 = arith.mulf %45, %46 : vector<2x64x8xf32>
    %48 = vector.extract_strided_slice %1 {offsets = [0, 0, 16], sizes = [2, 64, 8], strides = [1, 1, 1]} : vector<2x64x32xf32> to vector<2x64x8xf32>
    %cst_22 = arith.constant 0.353553385 : f32
    %49 = vector.broadcast %cst_22 : f32 to vector<2x64x8xf32>
    %50 = arith.mulf %48, %49 : vector<2x64x8xf32>
    %51 = vector.extract_strided_slice %3 {offsets = [0, 0, 16], sizes = [2, 64, 8], strides = [1, 1, 1]} : vector<2x64x32xf32> to vector<2x64x8xf32>
    %52 = vector.extract_strided_slice %5 {offsets = [0, 0, 16], sizes = [2, 64, 8], strides = [1, 1, 1]} : vector<2x64x32xf32> to vector<2x64x8xf32>
    "tpu.trace_start"() <{level = 10 : i32, message = "bnd,bmd->bnm"}> : () -> ()
    %cst_23 = arith.constant dense<0.000000e+00> : vector<2x64x64xf32>
    %53 = tpu.matmul %50, %51, %cst_23 {dimension_numbers = #tpu.dot_dimension_numbers<[2], [2], [1], [1], [0, 0, 0, 1, 1, 1], [0], [0]>} : vector<2x64x8xf32>, vector<2x64x8xf32>, vector<2x64x64xf32> -> vector<2x64x64xf32>
    "tpu.trace_stop"() : () -> ()
    %cst_24 = arith.constant dense<0xFF800000> : vector<2x64xf32>
    %54 = vector.multi_reduction <maximumf>, %53, %cst_24 [2] : vector<2x64x64xf32> to vector<2x64xf32>
    %55 = vector.shape_cast %54 : vector<2x64xf32> to vector<2x64x1xf32>
    %56 = vector.broadcast %55 : vector<2x64x1xf32> to vector<2x64x64xf32>
    %57 = arith.subf %53, %56 : vector<2x64x64xf32>
    %58 = math.exp %57 : vector<2x64x64xf32>
    %cst_25 = arith.constant dense<0.000000e+00> : vector<2x64xf32>
    %59 = vector.multi_reduction <add>, %58, %cst_25 [2] : vector<2x64x64xf32> to vector<2x64xf32>
    %60 = vector.shape_cast %59 : vector<2x64xf32> to vector<2x64x1xf32>
    %61 = tpu.reciprocal %60 {approx = true} : vector<2x64x1xf32> -> vector<2x64x1xf32>
    %62 = arith.mulf %60, %61 : vector<2x64x1xf32>
    %cst_26 = arith.constant 2.000000e+00 : f32
    %63 = vector.broadcast %cst_26 : f32 to vector<2x64x1xf32>
    %64 = arith.subf %63, %62 : vector<2x64x1xf32>
    %65 = arith.mulf %61, %64 : vector<2x64x1xf32>
    "tpu.trace_start"() <{level = 10 : i32, message = "bnm,bmd->bnd"}> : () -> ()
    %cst_27 = arith.constant dense<0.000000e+00> : vector<2x64x8xf32>
    %66 = tpu.matmul %58, %52, %cst_27 {dimension_numbers = #tpu.dot_dimension_numbers<[2], [1], [1], [2], [0, 0, 0, 1, 1, 2], [0], [0]>} : vector<2x64x64xf32>, vector<2x64x8xf32>, vector<2x64x8xf32> -> vector<2x64x8xf32>
    "tpu.trace_stop"() : () -> ()
    %67 = vector.broadcast %65 : vector<2x64x1xf32> to vector<2x64x8xf32>
    %68 = arith.mulf %66, %67 : vector<2x64x8xf32>
    %69 = vector.extract_strided_slice %1 {offsets = [0, 0, 24], sizes = [2, 64, 8], strides = [1, 1, 1]} : vector<2x64x32xf32> to vector<2x64x8xf32>
    %cst_28 = arith.constant 0.353553385 : f32
    %70 = vector.broadcast %cst_28 : f32 to vector<2x64x8xf32>
    %71 = arith.mulf %69, %70 : vector<2x64x8xf32>
    %72 = vector.extract_strided_slice %3 {offsets = [0, 0, 24], sizes = [2, 64, 8], strides = [1, 1, 1]} : vector<2x64x32xf32> to vector<2x64x8xf32>
    %73 = vector.extract_strided_slice %5 {offsets = [0, 0, 24], sizes = [2, 64, 8], strides = [1, 1, 1]} : vector<2x64x32xf32> to vector<2x64x8xf32>
    "tpu.trace_start"() <{level = 10 : i32, message = "bnd,bmd->bnm"}> : () -> ()
    %cst_29 = arith.constant dense<0.000000e+00> : vector<2x64x64xf32>
    %74 = tpu.matmul %71, %72, %cst_29 {dimension_numbers = #tpu.dot_dimension_numbers<[2], [2], [1], [1], [0, 0, 0, 1, 1, 1], [0], [0]>} : vector<2x64x8xf32>, vector<2x64x8xf32>, vector<2x64x64xf32> -> vector<2x64x64xf32>
    "tpu.trace_stop"() : () -> ()
    %cst_30 = arith.constant dense<0xFF800000> : vector<2x64xf32>
    %75 = vector.multi_reduction <maximumf>, %74, %cst_30 [2] : vector<2x64x64xf32> to vector<2x64xf32>
    %76 = vector.shape_cast %75 : vector<2x64xf32> to vector<2x64x1xf32>
    %77 = vector.broadcast %76 : vector<2x64x1xf32> to vector<2x64x64xf32>
    %78 = arith.subf %74, %77 : vector<2x64x64xf32>
    %79 = math.exp %78 : vector<2x64x64xf32>
    %cst_31 = arith.constant dense<0.000000e+00> : vector<2x64xf32>
    %80 = vector.multi_reduction <add>, %79, %cst_31 [2] : vector<2x64x64xf32> to vector<2x64xf32>
    %81 = vector.shape_cast %80 : vector<2x64xf32> to vector<2x64x1xf32>
    %82 = tpu.reciprocal %81 {approx = true} : vector<2x64x1xf32> -> vector<2x64x1xf32>
    %83 = arith.mulf %81, %82 : vector<2x64x1xf32>
    %cst_32 = arith.constant 2.000000e+00 : f32
    %84 = vector.broadcast %cst_32 : f32 to vector<2x64x1xf32>
    %85 = arith.subf %84, %83 : vector<2x64x1xf32>
    %86 = arith.mulf %82, %85 : vector<2x64x1xf32>
    "tpu.trace_start"() <{level = 10 : i32, message = "bnm,bmd->bnd"}> : () -> ()
    %cst_33 = arith.constant dense<0.000000e+00> : vector<2x64x8xf32>
    %87 = tpu.matmul %79, %73, %cst_33 {dimension_numbers = #tpu.dot_dimension_numbers<[2], [1], [1], [2], [0, 0, 0, 1, 1, 2], [0], [0]>} : vector<2x64x64xf32>, vector<2x64x8xf32>, vector<2x64x8xf32> -> vector<2x64x8xf32>
    "tpu.trace_stop"() : () -> ()
    %88 = vector.broadcast %86 : vector<2x64x1xf32> to vector<2x64x8xf32>
    %89 = arith.mulf %87, %88 : vector<2x64x8xf32>
    %90 = tpu.concatenate %26, %47, %68, %89 in 2 : vector<2x64x8xf32>, vector<2x64x8xf32>, vector<2x64x8xf32>, vector<2x64x8xf32> -> vector<2x64x32xf32>
    %91 = vector.shape_cast %90 : vector<2x64x32xf32> to vector<2x8x8x32xf32>
    %c0_34 = arith.constant 0 : index
    %c0_35 = arith.constant 0 : index
    %c0_36 = arith.constant 0 : index
    %c0_37 = arith.constant 0 : index
    %92 = vector.load %arg5[%c0_34, %c0_35, %c0_36, %c0_37] : memref<2x8x8x32xf32, #tpu.memory_space<vmem>>, vector<2x8x8x32xf32>
    tpu.vector_store %arg5[%c0_34, %c0_35, %c0_36, %c0_37], %91 {strides = array<i32>} : memref<2x8x8x32xf32, #tpu.memory_space<vmem>>, vector<2x8x8x32xf32>,
    return
  }
  func.func @transform_0(%arg0: i32, %arg1: i32) -> (i32, i32, i32, i32) {
    %c0_i32 = arith.constant 0 : i32
    %c0_i32_0 = arith.constant 0 : i32
    %c0_i32_1 = arith.constant 0 : i32
    return %c0_i32, %arg0, %arg1, %c0_i32_0 : i32, i32, i32, i32
  }
  func.func @transform_1(%arg0: i32, %arg1: i32) -> (i32, i32, i32, i32) {
    %c0_i32 = arith.constant 0 : i32
    %c0_i32_0 = arith.constant 0 : i32
    %c0_i32_1 = arith.constant 0 : i32
    return %c0_i32, %arg0, %arg1, %c0_i32_0 : i32, i32, i32, i32
  }
  func.func @transform_2(%arg0: i32, %arg1: i32) -> (i32, i32, i32, i32) {
    %c0_i32 = arith.constant 0 : i32
    %c0_i32_0 = arith.constant 0 : i32
    %c0_i32_1 = arith.constant 0 : i32
    return %c0_i32, %arg0, %arg1, %c0_i32_0 : i32, i32, i32, i32
  }
  func.func @transform_3(%arg0: i32, %arg1: i32) -> (i32, i32, i32, i32) {
    %c0_i32 = arith.constant 0 : i32
    %c0_i32_0 = arith.constant 0 : i32
    %c0_i32_1 = arith.constant 0 : i32
    return %c0_i32, %arg0, %arg1, %c0_i32_0 : i32, i32, i32, i32
  }
}

module attributes {stable_mosaic.version = 11 : i64} {
  func.func @_fc_kernel(%arg0: i32, %arg1: i32, %arg2: i32, %arg3: memref<256x128xf32, #tpu.memory_space<vmem>>, %arg4: memref<128x128xf32, #tpu.memory_space<vmem>>, %arg5: memref<1x128xf32, #tpu.memory_space<vmem>>, %arg6: memref<256x128xf32, #tpu.memory_space<vmem>>) attributes {dimension_semantics = [#tpu.dimension_semantics<parallel>, #tpu.dimension_semantics<parallel>, #tpu.dimension_semantics<arbitrary>], iteration_bounds = array<i64: 2, 1, 1>, scalar_prefetch = 0 : i64, scratch_operands = 0 : i64, tpu.core_type = #tpu.core_type<tc>, window_params = [{transform_indices = @transform_0, window_bounds = array<i64: 256, 128>}, {transform_indices = @transform_1, window_bounds = array<i64: 128, 128>}, {transform_indices = @transform_2, window_bounds = array<i64: 1, 128>}, {transform_indices = @transform_3, window_bounds = array<i64: 256, 128>}]} {
    %c0 = arith.constant 0 : index
    %c0_0 = arith.constant 0 : index
    %0 = vector.load %arg3[%c0, %c0_0] : memref<256x128xf32, #tpu.memory_space<vmem>>, vector<256x128xf32>
    %c0_i32 = arith.constant 0 : i32
    %1 = arith.cmpi eq, %arg2, %c0_i32 : i32
    %2 = arith.extui %1 : i1 to i32
    %c0_i32_1 = arith.constant 0 : i32
    %3 = arith.cmpi ne, %2, %c0_i32_1 : i32
    scf.if %3 {
      %cst_10 = arith.constant 0.000000e+00 : f32
      %12 = vector.broadcast %cst_10 : f32 to vector<256x128xf32>
      %c0_11 = arith.constant 0 : index
      %c0_12 = arith.constant 0 : index
      %13 = vector.load %arg6[%c0_11, %c0_12] : memref<256x128xf32, #tpu.memory_space<vmem>>, vector<256x128xf32>
      tpu.vector_store %arg6[%c0_11, %c0_12], %12 {strides = array<i32>} : memref<256x128xf32, #tpu.memory_space<vmem>>, vector<256x128xf32>,
    } else {
    }
    %c0_2 = arith.constant 0 : index
    %c0_3 = arith.constant 0 : index
    %4 = vector.load %arg6[%c0_2, %c0_3] : memref<256x128xf32, #tpu.memory_space<vmem>>, vector<256x128xf32>
    %c0_4 = arith.constant 0 : index
    %c0_5 = arith.constant 0 : index
    %5 = vector.load %arg4[%c0_4, %c0_5] : memref<128x128xf32, #tpu.memory_space<vmem>>, vector<128x128xf32>
    %cst = arith.constant dense<0.000000e+00> : vector<256x128xf32>
    %6 = tpu.matmul %0, %5, %cst {dimension_numbers = #tpu.dot_dimension_numbers<[1], [0], [0], [1], [0, 0, 1, 1], [], []>} : vector<256x128xf32>, vector<128x128xf32>, vector<256x128xf32> -> vector<256x128xf32>
    %7 = arith.addf %4, %6 : vector<256x128xf32>
    %c0_6 = arith.constant 0 : index
    %c0_7 = arith.constant 0 : index
    %8 = vector.load %arg6[%c0_6, %c0_7] : memref<256x128xf32, #tpu.memory_space<vmem>>, vector<256x128xf32>
    tpu.vector_store %arg6[%c0_6, %c0_7], %7 {strides = array<i32>} : memref<256x128xf32, #tpu.memory_space<vmem>>, vector<256x128xf32>,
    %c0_i32_8 = arith.constant 0 : i32
    %9 = arith.cmpi eq, %arg2, %c0_i32_8 : i32
    %10 = arith.extui %9 : i1 to i32
    %c0_i32_9 = arith.constant 0 : i32
    %11 = arith.cmpi ne, %10, %c0_i32_9 : i32
    scf.if %11 {
      %c0_10 = arith.constant 0 : index
      %c0_11 = arith.constant 0 : index
      %12 = vector.load %arg6[%c0_10, %c0_11] : memref<256x128xf32, #tpu.memory_space<vmem>>, vector<256x128xf32>
      %cst_12 = arith.constant 0.176776692 : f32
      %13 = vector.broadcast %cst_12 : f32 to vector<256x128xf32>
      %14 = arith.mulf %12, %13 : vector<256x128xf32>
      %c0_13 = arith.constant 0 : index
      %c0_14 = arith.constant 0 : index
      %15 = vector.load %arg5[%c0_13, %c0_14] : memref<1x128xf32, #tpu.memory_space<vmem>>, vector<1x128xf32>
      %cst_15 = arith.constant 1.000000e+00 : f32
      %16 = vector.broadcast %cst_15 : f32 to vector<1x128xf32>
      %17 = arith.mulf %15, %16 : vector<1x128xf32>
      %18 = vector.broadcast %17 : vector<1x128xf32> to vector<256x128xf32>
      %19 = arith.addf %14, %18 : vector<256x128xf32>
      %c0_16 = arith.constant 0 : index
      %c0_17 = arith.constant 0 : index
      %20 = vector.load %arg6[%c0_16, %c0_17] : memref<256x128xf32, #tpu.memory_space<vmem>>, vector<256x128xf32>
      tpu.vector_store %arg6[%c0_16, %c0_17], %19 {strides = array<i32>} : memref<256x128xf32, #tpu.memory_space<vmem>>, vector<256x128xf32>,
    } else {
    }
    return
  }
  func.func @transform_0(%arg0: i32, %arg1: i32, %arg2: i32) -> (i32, i32) {
    %c0_i32 = arith.constant 0 : i32
    return %arg0, %arg2 : i32, i32
  }
  func.func @transform_1(%arg0: i32, %arg1: i32, %arg2: i32) -> (i32, i32) {
    %c0_i32 = arith.constant 0 : i32
    return %arg2, %arg1 : i32, i32
  }
  func.func @transform_2(%arg0: i32, %arg1: i32, %arg2: i32) -> (i32, i32) {
    %c0_i32 = arith.constant 0 : i32
    %c0_i32_0 = arith.constant 0 : i32
    return %c0_i32, %arg1 : i32, i32
  }
  func.func @transform_3(%arg0: i32, %arg1: i32, %arg2: i32) -> (i32, i32) {
    %c0_i32 = arith.constant 0 : i32
    return %arg0, %arg1 : i32, i32
  }
}

module attributes {stable_mosaic.version = 11 : i64} {
  func.func @_fc_kernel(%arg0: i32, %arg1: i32, %arg2: i32, %arg3: memref<256x128xf32, #tpu.memory_space<vmem>>, %arg4: memref<128x128xf32, #tpu.memory_space<vmem>>, %arg5: memref<1x128xf32, #tpu.memory_space<vmem>>, %arg6: memref<256x128xf32, #tpu.memory_space<vmem>>) attributes {dimension_semantics = [#tpu.dimension_semantics<parallel>, #tpu.dimension_semantics<parallel>, #tpu.dimension_semantics<arbitrary>], iteration_bounds = array<i64: 2, 1, 1>, scalar_prefetch = 0 : i64, scratch_operands = 0 : i64, tpu.core_type = #tpu.core_type<tc>, window_params = [{transform_indices = @transform_0, window_bounds = array<i64: 256, 128>}, {transform_indices = @transform_1, window_bounds = array<i64: 128, 128>}, {transform_indices = @transform_2, window_bounds = array<i64: 1, 128>}, {transform_indices = @transform_3, window_bounds = array<i64: 256, 128>}]} {
    %c0 = arith.constant 0 : index
    %c0_0 = arith.constant 0 : index
    %0 = vector.load %arg3[%c0, %c0_0] : memref<256x128xf32, #tpu.memory_space<vmem>>, vector<256x128xf32>
    %c0_i32 = arith.constant 0 : i32
    %1 = arith.cmpi eq, %arg2, %c0_i32 : i32
    %2 = arith.extui %1 : i1 to i32
    %c0_i32_1 = arith.constant 0 : i32
    %3 = arith.cmpi ne, %2, %c0_i32_1 : i32
    scf.if %3 {
      %cst_10 = arith.constant 0.000000e+00 : f32
      %12 = vector.broadcast %cst_10 : f32 to vector<256x128xf32>
      %c0_11 = arith.constant 0 : index
      %c0_12 = arith.constant 0 : index
      %13 = vector.load %arg6[%c0_11, %c0_12] : memref<256x128xf32, #tpu.memory_space<vmem>>, vector<256x128xf32>
      tpu.vector_store %arg6[%c0_11, %c0_12], %12 {strides = array<i32>} : memref<256x128xf32, #tpu.memory_space<vmem>>, vector<256x128xf32>,
    } else {
    }
    %c0_2 = arith.constant 0 : index
    %c0_3 = arith.constant 0 : index
    %4 = vector.load %arg6[%c0_2, %c0_3] : memref<256x128xf32, #tpu.memory_space<vmem>>, vector<256x128xf32>
    %c0_4 = arith.constant 0 : index
    %c0_5 = arith.constant 0 : index
    %5 = vector.load %arg4[%c0_4, %c0_5] : memref<128x128xf32, #tpu.memory_space<vmem>>, vector<128x128xf32>
    %cst = arith.constant dense<0.000000e+00> : vector<256x128xf32>
    %6 = tpu.matmul %0, %5, %cst {dimension_numbers = #tpu.dot_dimension_numbers<[1], [0], [0], [1], [0, 0, 1, 1], [], []>} : vector<256x128xf32>, vector<128x128xf32>, vector<256x128xf32> -> vector<256x128xf32>
    %7 = arith.addf %4, %6 : vector<256x128xf32>
    %c0_6 = arith.constant 0 : index
    %c0_7 = arith.constant 0 : index
    %8 = vector.load %arg6[%c0_6, %c0_7] : memref<256x128xf32, #tpu.memory_space<vmem>>, vector<256x128xf32>
    tpu.vector_store %arg6[%c0_6, %c0_7], %7 {strides = array<i32>} : memref<256x128xf32, #tpu.memory_space<vmem>>, vector<256x128xf32>,
    %c0_i32_8 = arith.constant 0 : i32
    %9 = arith.cmpi eq, %arg2, %c0_i32_8 : i32
    %10 = arith.extui %9 : i1 to i32
    %c0_i32_9 = arith.constant 0 : i32
    %11 = arith.cmpi ne, %10, %c0_i32_9 : i32
    scf.if %11 {
      %c0_10 = arith.constant 0 : index
      %c0_11 = arith.constant 0 : index
      %12 = vector.load %arg6[%c0_10, %c0_11] : memref<256x128xf32, #tpu.memory_space<vmem>>, vector<256x128xf32>
      %cst_12 = arith.constant 1.250000e-01 : f32
      %13 = vector.broadcast %cst_12 : f32 to vector<256x128xf32>
      %14 = arith.mulf %12, %13 : vector<256x128xf32>
      %c0_13 = arith.constant 0 : index
      %c0_14 = arith.constant 0 : index
      %15 = vector.load %arg5[%c0_13, %c0_14] : memref<1x128xf32, #tpu.memory_space<vmem>>, vector<1x128xf32>
      %cst_15 = arith.constant 1.000000e+00 : f32
      %16 = vector.broadcast %cst_15 : f32 to vector<1x128xf32>
      %17 = arith.mulf %15, %16 : vector<1x128xf32>
      %18 = vector.broadcast %17 : vector<1x128xf32> to vector<256x128xf32>
      %19 = arith.addf %14, %18 : vector<256x128xf32>
      %cst_16 = arith.constant 0.000000e+00 : f32
      %20 = vector.broadcast %cst_16 : f32 to vector<256x128xf32>
      %21 = arith.cmpf oge, %19, %20 : vector<256x128xf32>
      %cst_17 = arith.constant 2.000000e-01 : f32
      %22 = vector.broadcast %cst_17 : f32 to vector<256x128xf32>
      %23 = arith.mulf %22, %19 : vector<256x128xf32>
      %24 = arith.select %21, %19, %23 : vector<256x128xi1>, vector<256x128xf32>
      %cst_18 = arith.constant 1.41421354 : f32
      %25 = vector.broadcast %cst_18 : f32 to vector<256x128xf32>
      %26 = arith.mulf %24, %25 : vector<256x128xf32>
      %c0_19 = arith.constant 0 : index
      %c0_20 = arith.constant 0 : index
      %27 = vector.load %arg6[%c0_19, %c0_20] : memref<256x128xf32, #tpu.memory_space<vmem>>, vector<256x128xf32>
      tpu.vector_store %arg6[%c0_19, %c0_20], %26 {strides = array<i32>} : memref<256x128xf32, #tpu.memory_space<vmem>>, vector<256x128xf32>,
    } else {
    }
    return
  }
  func.func @transform_0(%arg0: i32, %arg1: i32, %arg2: i32) -> (i32, i32) {
    %c0_i32 = arith.constant 0 : i32
    return %arg0, %arg2 : i32, i32
  }
  func.func @transform_1(%arg0: i32, %arg1: i32, %arg2: i32) -> (i32, i32) {
    %c0_i32 = arith.constant 0 : i32
    return %arg2, %arg1 : i32, i32
  }
  func.func @transform_2(%arg0: i32, %arg1: i32, %arg2: i32) -> (i32, i32) {
    %c0_i32 = arith.constant 0 : i32
    %c0_i32_0 = arith.constant 0 : i32
    return %c0_i32, %arg1 : i32, i32
  }
  func.func @transform_3(%arg0: i32, %arg1: i32, %arg2: i32) -> (i32, i32) {
    %c0_i32 = arith.constant 0 : i32
    return %arg0, %arg1 : i32, i32
  }
}

module attributes {stable_mosaic.version = 11 : i64} {
  func.func @_fc_kernel(%arg0: i32, %arg1: i32, %arg2: i32, %arg3: memref<256x128xf32, #tpu.memory_space<vmem>>, %arg4: memref<128x128xf32, #tpu.memory_space<vmem>>, %arg5: memref<1x128xf32, #tpu.memory_space<vmem>>, %arg6: memref<256x128xf32, #tpu.memory_space<vmem>>) attributes {dimension_semantics = [#tpu.dimension_semantics<parallel>, #tpu.dimension_semantics<parallel>, #tpu.dimension_semantics<arbitrary>], iteration_bounds = array<i64: 2, 1, 1>, scalar_prefetch = 0 : i64, scratch_operands = 0 : i64, tpu.core_type = #tpu.core_type<tc>, window_params = [{transform_indices = @transform_0, window_bounds = array<i64: 256, 128>}, {transform_indices = @transform_1, window_bounds = array<i64: 128, 128>}, {transform_indices = @transform_2, window_bounds = array<i64: 1, 128>}, {transform_indices = @transform_3, window_bounds = array<i64: 256, 128>}]} {
    %c0 = arith.constant 0 : index
    %c0_0 = arith.constant 0 : index
    %0 = vector.load %arg3[%c0, %c0_0] : memref<256x128xf32, #tpu.memory_space<vmem>>, vector<256x128xf32>
    %c0_i32 = arith.constant 0 : i32
    %1 = arith.cmpi eq, %arg2, %c0_i32 : i32
    %2 = arith.extui %1 : i1 to i32
    %c0_i32_1 = arith.constant 0 : i32
    %3 = arith.cmpi ne, %2, %c0_i32_1 : i32
    scf.if %3 {
      %cst_10 = arith.constant 0.000000e+00 : f32
      %12 = vector.broadcast %cst_10 : f32 to vector<256x128xf32>
      %c0_11 = arith.constant 0 : index
      %c0_12 = arith.constant 0 : index
      %13 = vector.load %arg6[%c0_11, %c0_12] : memref<256x128xf32, #tpu.memory_space<vmem>>, vector<256x128xf32>
      tpu.vector_store %arg6[%c0_11, %c0_12], %12 {strides = array<i32>} : memref<256x128xf32, #tpu.memory_space<vmem>>, vector<256x128xf32>,
    } else {
    }
    %c0_2 = arith.constant 0 : index
    %c0_3 = arith.constant 0 : index
    %4 = vector.load %arg6[%c0_2, %c0_3] : memref<256x128xf32, #tpu.memory_space<vmem>>, vector<256x128xf32>
    %c0_4 = arith.constant 0 : index
    %c0_5 = arith.constant 0 : index
    %5 = vector.load %arg4[%c0_4, %c0_5] : memref<128x128xf32, #tpu.memory_space<vmem>>, vector<128x128xf32>
    %cst = arith.constant dense<0.000000e+00> : vector<256x128xf32>
    %6 = tpu.matmul %0, %5, %cst {dimension_numbers = #tpu.dot_dimension_numbers<[1], [0], [0], [1], [0, 0, 1, 1], [], []>} : vector<256x128xf32>, vector<128x128xf32>, vector<256x128xf32> -> vector<256x128xf32>
    %7 = arith.addf %4, %6 : vector<256x128xf32>
    %c0_6 = arith.constant 0 : index
    %c0_7 = arith.constant 0 : index
    %8 = vector.load %arg6[%c0_6, %c0_7] : memref<256x128xf32, #tpu.memory_space<vmem>>, vector<256x128xf32>
    tpu.vector_store %arg6[%c0_6, %c0_7], %7 {strides = array<i32>} : memref<256x128xf32, #tpu.memory_space<vmem>>, vector<256x128xf32>,
    %c0_i32_8 = arith.constant 0 : i32
    %9 = arith.cmpi eq, %arg2, %c0_i32_8 : i32
    %10 = arith.extui %9 : i1 to i32
    %c0_i32_9 = arith.constant 0 : i32
    %11 = arith.cmpi ne, %10, %c0_i32_9 : i32
    scf.if %11 {
      %c0_10 = arith.constant 0 : index
      %c0_11 = arith.constant 0 : index
      %12 = vector.load %arg6[%c0_10, %c0_11] : memref<256x128xf32, #tpu.memory_space<vmem>>, vector<256x128xf32>
      %cst_12 = arith.constant 0.176776692 : f32
      %13 = vector.broadcast %cst_12 : f32 to vector<256x128xf32>
      %14 = arith.mulf %12, %13 : vector<256x128xf32>
      %c0_13 = arith.constant 0 : index
      %c0_14 = arith.constant 0 : index
      %15 = vector.load %arg5[%c0_13, %c0_14] : memref<1x128xf32, #tpu.memory_space<vmem>>, vector<1x128xf32>
      %cst_15 = arith.constant 1.000000e+00 : f32
      %16 = vector.broadcast %cst_15 : f32 to vector<1x128xf32>
      %17 = arith.mulf %15, %16 : vector<1x128xf32>
      %18 = vector.broadcast %17 : vector<1x128xf32> to vector<256x128xf32>
      %19 = arith.addf %14, %18 : vector<256x128xf32>
      %cst_16 = arith.constant 0.000000e+00 : f32
      %20 = vector.broadcast %cst_16 : f32 to vector<256x128xf32>
      %21 = arith.cmpf oge, %19, %20 : vector<256x128xf32>
      %cst_17 = arith.constant 2.000000e-01 : f32
      %22 = vector.broadcast %cst_17 : f32 to vector<256x128xf32>
      %23 = arith.mulf %22, %19 : vector<256x128xf32>
      %24 = arith.select %21, %19, %23 : vector<256x128xi1>, vector<256x128xf32>
      %cst_18 = arith.constant 1.41421354 : f32
      %25 = vector.broadcast %cst_18 : f32 to vector<256x128xf32>
      %26 = arith.mulf %24, %25 : vector<256x128xf32>
      %c0_19 = arith.constant 0 : index
      %c0_20 = arith.constant 0 : index
      %27 = vector.load %arg6[%c0_19, %c0_20] : memref<256x128xf32, #tpu.memory_space<vmem>>, vector<256x128xf32>
      tpu.vector_store %arg6[%c0_19, %c0_20], %26 {strides = array<i32>} : memref<256x128xf32, #tpu.memory_space<vmem>>, vector<256x128xf32>,
    } else {
    }
    return
  }
  func.func @transform_0(%arg0: i32, %arg1: i32, %arg2: i32) -> (i32, i32) {
    %c0_i32 = arith.constant 0 : i32
    return %arg0, %arg2 : i32, i32
  }
  func.func @transform_1(%arg0: i32, %arg1: i32, %arg2: i32) -> (i32, i32) {
    %c0_i32 = arith.constant 0 : i32
    return %arg2, %arg1 : i32, i32
  }
  func.func @transform_2(%arg0: i32, %arg1: i32, %arg2: i32) -> (i32, i32) {
    %c0_i32 = arith.constant 0 : i32
    %c0_i32_0 = arith.constant 0 : i32
    return %c0_i32, %arg1 : i32, i32
  }
  func.func @transform_3(%arg0: i32, %arg1: i32, %arg2: i32) -> (i32, i32) {
    %c0_i32 = arith.constant 0 : i32
    return %arg0, %arg1 : i32, i32
  }
}

module attributes {stable_mosaic.version = 11 : i64} {
  func.func @_fc_kernel(%arg0: i32, %arg1: i32, %arg2: i32, %arg3: memref<256x128xf32, #tpu.memory_space<vmem>>, %arg4: memref<128x128xf32, #tpu.memory_space<vmem>>, %arg5: memref<1x128xf32, #tpu.memory_space<vmem>>, %arg6: memref<256x128xf32, #tpu.memory_space<vmem>>) attributes {dimension_semantics = [#tpu.dimension_semantics<parallel>, #tpu.dimension_semantics<parallel>, #tpu.dimension_semantics<arbitrary>], iteration_bounds = array<i64: 2, 1, 1>, scalar_prefetch = 0 : i64, scratch_operands = 0 : i64, tpu.core_type = #tpu.core_type<tc>, window_params = [{transform_indices = @transform_0, window_bounds = array<i64: 256, 128>}, {transform_indices = @transform_1, window_bounds = array<i64: 128, 128>}, {transform_indices = @transform_2, window_bounds = array<i64: 1, 128>}, {transform_indices = @transform_3, window_bounds = array<i64: 256, 128>}]} {
    %c0 = arith.constant 0 : index
    %c0_0 = arith.constant 0 : index
    %0 = vector.load %arg3[%c0, %c0_0] : memref<256x128xf32, #tpu.memory_space<vmem>>, vector<256x128xf32>
    %c0_i32 = arith.constant 0 : i32
    %1 = arith.cmpi eq, %arg2, %c0_i32 : i32
    %2 = arith.extui %1 : i1 to i32
    %c0_i32_1 = arith.constant 0 : i32
    %3 = arith.cmpi ne, %2, %c0_i32_1 : i32
    scf.if %3 {
      %cst_10 = arith.constant 0.000000e+00 : f32
      %12 = vector.broadcast %cst_10 : f32 to vector<256x128xf32>
      %c0_11 = arith.constant 0 : index
      %c0_12 = arith.constant 0 : index
      %13 = vector.load %arg6[%c0_11, %c0_12] : memref<256x128xf32, #tpu.memory_space<vmem>>, vector<256x128xf32>
      tpu.vector_store %arg6[%c0_11, %c0_12], %12 {strides = array<i32>} : memref<256x128xf32, #tpu.memory_space<vmem>>, vector<256x128xf32>,
    } else {
    }
    %c0_2 = arith.constant 0 : index
    %c0_3 = arith.constant 0 : index
    %4 = vector.load %arg6[%c0_2, %c0_3] : memref<256x128xf32, #tpu.memory_space<vmem>>, vector<256x128xf32>
    %c0_4 = arith.constant 0 : index
    %c0_5 = arith.constant 0 : index
    %5 = vector.load %arg4[%c0_4, %c0_5] : memref<128x128xf32, #tpu.memory_space<vmem>>, vector<128x128xf32>
    %cst = arith.constant dense<0.000000e+00> : vector<256x128xf32>
    %6 = tpu.matmul %0, %5, %cst {dimension_numbers = #tpu.dot_dimension_numbers<[1], [0], [0], [1], [0, 0, 1, 1], [], []>} : vector<256x128xf32>, vector<128x128xf32>, vector<256x128xf32> -> vector<256x128xf32>
    %7 = arith.addf %4, %6 : vector<256x128xf32>
    %c0_6 = arith.constant 0 : index
    %c0_7 = arith.constant 0 : index
    %8 = vector.load %arg6[%c0_6, %c0_7] : memref<256x128xf32, #tpu.memory_space<vmem>>, vector<256x128xf32>
    tpu.vector_store %arg6[%c0_6, %c0_7], %7 {strides = array<i32>} : memref<256x128xf32, #tpu.memory_space<vmem>>, vector<256x128xf32>,
    %c0_i32_8 = arith.constant 0 : i32
    %9 = arith.cmpi eq, %arg2, %c0_i32_8 : i32
    %10 = arith.extui %9 : i1 to i32
    %c0_i32_9 = arith.constant 0 : i32
    %11 = arith.cmpi ne, %10, %c0_i32_9 : i32
    scf.if %11 {
      %c0_10 = arith.constant 0 : index
      %c0_11 = arith.constant 0 : index
      %12 = vector.load %arg6[%c0_10, %c0_11] : memref<256x128xf32, #tpu.memory_space<vmem>>, vector<256x128xf32>
      %cst_12 = arith.constant 0.0883883461 : f32
      %13 = vector.broadcast %cst_12 : f32 to vector<256x128xf32>
      %14 = arith.mulf %12, %13 : vector<256x128xf32>
      %c0_13 = arith.constant 0 : index
      %c0_14 = arith.constant 0 : index
      %15 = vector.load %arg5[%c0_13, %c0_14] : memref<1x128xf32, #tpu.memory_space<vmem>>, vector<1x128xf32>
      %cst_15 = arith.constant 1.000000e+00 : f32
      %16 = vector.broadcast %cst_15 : f32 to vector<1x128xf32>
      %17 = arith.mulf %15, %16 : vector<1x128xf32>
      %18 = vector.broadcast %17 : vector<1x128xf32> to vector<256x128xf32>
      %19 = arith.addf %14, %18 : vector<256x128xf32>
      %c0_16 = arith.constant 0 : index
      %c0_17 = arith.constant 0 : index
      %20 = vector.load %arg6[%c0_16, %c0_17] : memref<256x128xf32, #tpu.memory_space<vmem>>, vector<256x128xf32>
      tpu.vector_store %arg6[%c0_16, %c0_17], %19 {strides = array<i32>} : memref<256x128xf32, #tpu.memory_space<vmem>>, vector<256x128xf32>,
    } else {
    }
    return
  }
  func.func @transform_0(%arg0: i32, %arg1: i32, %arg2: i32) -> (i32, i32) {
    %c0_i32 = arith.constant 0 : i32
    return %arg0, %arg2 : i32, i32
  }
  func.func @transform_1(%arg0: i32, %arg1: i32, %arg2: i32) -> (i32, i32) {
    %c0_i32 = arith.constant 0 : i32
    return %arg2, %arg1 : i32, i32
  }
  func.func @transform_2(%arg0: i32, %arg1: i32, %arg2: i32) -> (i32, i32) {
    %c0_i32 = arith.constant 0 : i32
    %c0_i32_0 = arith.constant 0 : i32
    return %c0_i32, %arg1 : i32, i32
  }
  func.func @transform_3(%arg0: i32, %arg1: i32, %arg2: i32) -> (i32, i32) {
    %c0_i32 = arith.constant 0 : i32
    return %arg0, %arg1 : i32, i32
  }
}

</mosaic_0001>

<llo_original>
// kernel: fwd.7
$region0: #{fwd.7}
  #allocation0 [shape = 'u32[]', space=smem, size = 0x4, offset = 0x4, fixed_abs, tag = 'smem constant byte address 0x4 - core index']
  #allocation1 [shape = 'u32[144,128]{1,0:T(1,128)}', space=vmem, size = 0x12000, scoped, tag = 'internal scratch']
  %s0 = inlined_call_operand.vmem [shape: f32[512,128], index: 0, kind: input, shape index: {}]
  %s1 = inlined_call_operand.vmem [shape: f32[128,128], index: 1, kind: input, shape index: {}]
  %s2 = inlined_call_operand.vmem [shape: f32[1,128], index: 2, kind: input, shape index: {}]
  %s3 = inlined_call_operand.vmem [shape: f32[512,128], index: 3, kind: output, shape index: {}]
  %s4 = sld [smem:[#allocation0]]
  $region53: #{fwd.7} parent=0
    _
  %s6 = ssub.s32 1, %s4
  %s7 = scalar_select 0, %s6, %s4
  loop: start=0, step=1, limit=4
  $region2: #{fwd.7} parent=0 // loop_pre_header
    _
  $region3: #{fwd.7} parent=0 // loop_header
    %s9 = sphi 0, %s13
    %p10 = scmp.ge.s32.totalorder %s9, 4
    %s16 = sphi 0, %s35
    %s17 = sphi 0, %s31
    %s18 = sphi 0, %s27
    %s19 = sphi 0, %s16
    %s20 = sphi 0, %s17
    %s21 = sphi 0, %s18
    %s22 = sphi 0, %s19
    %s23 = sphi 0, %s20
    %s24 = sphi 0, %s21
    %s40 = sphi 0, %s42
    %s43 = sphi 0, %s40
    %s44 = sphi 0, %s43
    %s60 = sphi 0, %s44
    %s68 = sphi 0, %s70
    %s71 = sphi 0, %s68
    %s72 = sphi 0, %s71
    %s88 = sphi 0, %s72
    %s94 = sphi 0, %s96
    %s97 = sphi 0, %s94
    %s98 = sphi 0, %s97
    %s114 = sphi 0, %s98
    %s122 = sphi 0, %s124
    %s125 = sphi 0, %s122
    %s126 = sphi 0, %s125
    %s142 = sphi 0, %s126
  $region4: #{fwd.7} parent=0 // loop_header_branch
    %12 = sbr.rel (%p10) target = $region8
  $region5: #{fwd.7} parent=0 // loop_body
    %s14 = ssub.s32 %s9, 1
    %s15 = ssub.s32 %s9, 2
    %s25 = sadd.s32 1, %s18
    %p26 = scmp.ge.s32.totalorder %s25, 1
    %s27 = scalar_select %p26, 0, %s25
    %s28 = sadd.s32 1, %s17
    %s29 = scalar_select %p26, %s28, %s17
    %p30 = scmp.ge.s32.totalorder %s29, 1
    %s31 = scalar_select %p30, 0, %s29
    %s32 = sadd.s32 1, %s16
    %s33 = scalar_select %p30, %s32, %s16
    %p34 = scmp.ge.s32.totalorder %s33, 2
    %s35 = scalar_select %p34, 0, %s33
    %s36 = ssub.s32 %s16, %s35
    %s37 = ssub.s32 %s18, %s27
    %s38 = sor.u32 %s36, %s37
    %p39 = scmp.eq.s32.totalorder %s38, 0
    %s41 = sadd.s32 %s40, 1
    %s42 = scalar_select %p39, %s40, %s41
    %p45 = pneg %p39
    %p46 = scmp.eq.s32.totalorder %s9, 1
    %p47 = por %p45, %p46
    %p48 = scmp.ne.s32.totalorder %s40, %s43
    %p49 = scmp.eq.s32.totalorder %s9, 0
    %p50 = por %p48, %p49
    %p51 = scmp.ne.s32.totalorder %s40, %s43
    %p52 = scmp.eq.s32.totalorder %s14, 1
    %p53 = por %p51, %p52
    %p54 = scmp.ne.s32.totalorder %s43, %s44
    %p55 = scmp.eq.s32.totalorder %s14, 0
    %p56 = por %p54, %p55
    %p57 = scmp.ne.s32.totalorder %s43, %s44
    %p58 = scmp.eq.s32.totalorder %s15, 1
    %p59 = por %p57, %p58
    %p61 = scmp.ne.s32.totalorder %s44, %s60
    %p62 = scmp.eq.s32.totalorder %s15, 0
    %p63 = por %p61, %p62
    %s64 = ssub.s32 %s18, %s27
    %s65 = ssub.s32 %s17, %s31
    %s66 = sor.u32 %s64, %s65
    %p67 = scmp.eq.s32.totalorder %s66, 0
    %s69 = sadd.s32 %s68, 1
    %s70 = scalar_select %p67, %s68, %s69
    %p73 = pneg %p67
    %p74 = scmp.eq.s32.totalorder %s9, 1
    %p75 = por %p73, %p74
    %p76 = scmp.ne.s32.totalorder %s68, %s71
    %p77 = scmp.eq.s32.totalorder %s9, 0
    %p78 = por %p76, %p77
    %p79 = scmp.ne.s32.totalorder %s68, %s71
    %p80 = scmp.eq.s32.totalorder %s14, 1
    %p81 = por %p79, %p80
    %p82 = scmp.ne.s32.totalorder %s71, %s72
    %p83 = scmp.eq.s32.totalorder %s14, 0
    %p84 = por %p82, %p83
    %p85 = scmp.ne.s32.totalorder %s71, %s72
    %p86 = scmp.eq.s32.totalorder %s15, 1
    %p87 = por %p85, %p86
    %p89 = scmp.ne.s32.totalorder %s72, %s88
    %p90 = scmp.eq.s32.totalorder %s15, 0
    %p91 = por %p89, %p90
    %s92 = ssub.s32 %s17, %s31
    %p93 = scmp.eq.s32.totalorder %s92, 0
    %s95 = sadd.s32 %s94, 1
    %s96 = scalar_select %p93, %s94, %s95
    %p99 = pneg %p93
    %p100 = scmp.eq.s32.totalorder %s9, 1
    %p101 = por %p99, %p100
    %p102 = scmp.ne.s32.totalorder %s94, %s97
    %p103 = scmp.eq.s32.totalorder %s9, 0
    %p104 = por %p102, %p103
    %p105 = scmp.ne.s32.totalorder %s94, %s97
    %p106 = scmp.eq.s32.totalorder %s14, 1
    %p107 = por %p105, %p106
    %p108 = scmp.ne.s32.totalorder %s97, %s98
    %p109 = scmp.eq.s32.totalorder %s14, 0
    %p110 = por %p108, %p109
    %p111 = scmp.ne.s32.totalorder %s97, %s98
    %p112 = scmp.eq.s32.totalorder %s15, 1
    %p113 = por %p111, %p112
    %p115 = scmp.ne.s32.totalorder %s98, %s114
    %p116 = scmp.eq.s32.totalorder %s15, 0
    %p117 = por %p115, %p116
    %s118 = ssub.s32 %s16, %s35
    %s119 = ssub.s32 %s17, %s31
    %s120 = sor.u32 %s118, %s119
    %p121 = scmp.eq.s32.totalorder %s120, 0
    %s123 = sadd.s32 %s122, 1
    %s124 = scalar_select %p121, %s122, %s123
    %p127 = pneg %p121
    %p128 = scmp.eq.s32.totalorder %s9, 1
    %p129 = por %p127, %p128
    %p130 = scmp.ne.s32.totalorder %s122, %s125
    %p131 = scmp.eq.s32.totalorder %s9, 0
    %p132 = por %p130, %p131
    %p133 = scmp.ne.s32.totalorder %s122, %s125
    %p134 = scmp.eq.s32.totalorder %s14, 1
    %p135 = por %p133, %p134
    %p136 = scmp.ne.s32.totalorder %s125, %s126
    %p137 = scmp.eq.s32.totalorder %s14, 0
    %p138 = por %p136, %p137
    %p139 = scmp.ne.s32.totalorder %s125, %s126
    %p140 = scmp.eq.s32.totalorder %s15, 1
    %p141 = por %p139, %p140
    %p143 = scmp.ne.s32.totalorder %s126, %s142
    %p144 = scmp.eq.s32.totalorder %s15, 0
    %p145 = por %p143, %p144
    %p146 = scmp.le.s32.totalorder 1, %s9
    %p147 = scmp.lt.s32.totalorder %s9, 3
    %p148 = pnand %p146, %p147
    %p149 = pneg %p148
    // Predicated region
    $region9: #{fwd.7} parent=5 // pred_check
      _
    $region10: #{fwd.7} parent=5 // pred_check_branch
      %151 = sbr.rel (%p148) target = $region12
    $region11: #{fwd.7} parent=5 // pred_region
      %s152 = ssub.s32 %s9, 1
      // Predicated region
      $region13: #{fwd.7} parent=11 // pred_check
        %p153 = pneg %p84
      $region14: #{fwd.7} parent=11 // pred_check_branch
        %155 = sbr.rel (%p153) target = $region16
      $region15: #{fwd.7} parent=11 // pred_region
        %s156 = smul.u32 16, %s21
        %p157 = scmp.lt.s32.totalorder %s156, 15
        %s158 = scalar_select %p157, %s156, 15
        %p159 = scmp.lt.s32.totalorder %s20, 0
        %s160 = scalar_select %p159, %s20, 0
        %s161 = sadd.s32 %s160, %s158
        %s162 = smul.addr %s161, 8
        %s163 = scalar_lea.vmem %s1, %s162
        %s164 = smul.u32 16, %s21
      $region16: #{fwd.7} parent=11 // pred_fallthru
        _
      // Predicated region
      $region17: #{fwd.7} parent=11 // pred_check
        %p165 = pneg %p110
      $region18: #{fwd.7} parent=11 // pred_check_branch
        %167 = sbr.rel (%p165) target = $region20
      $region19: #{fwd.7} parent=11 // pred_region
        %p168 = scmp.lt.s32.totalorder %s20, 0
        %s169 = scalar_select %p168, %s20, 0
        %s170 = scalar_lea.vmem %s2, %s169
      $region20: #{fwd.7} parent=11 // pred_fallthru
        _
    $region12: #{fwd.7} parent=5 // pred_fallthru
      _
    %p171 = scmp.lt.s32.totalorder %s9, 2
    // Predicated region
    $region21: #{fwd.7} parent=5 // pred_check
      %p172 = pneg %p171
    $region22: #{fwd.7} parent=5 // pred_check_branch
      %174 = sbr.rel (%p172) target = $region24
    $region23: #{fwd.7} parent=5 // pred_region
      // Predicated region
      $region25: #{fwd.7} parent=23 // pred_check
        %p175 = pneg %p50
      $region26: #{fwd.7} parent=23 // pred_check_branch
        %177 = sbr.rel (%p175) target = $region28
      $region27: #{fwd.7} parent=23 // pred_region
        %s178 = smul.u32 32, %s16
        %p179 = scmp.lt.s32.totalorder %s178, 63
        %s180 = scalar_select %p179, %s178, 63
        %p181 = scmp.lt.s32.totalorder %s18, 0
        %s182 = scalar_select %p181, %s18, 0
        %s183 = sadd.s32 %s182, %s180
        %s184 = smul.addr %s183, 8
        %s185 = scalar_lea.vmem %s0, %s184
        %s186 = smul.u32 32, %s16
      $region28: #{fwd.7} parent=23 // pred_fallthru
        _
    $region24: #{fwd.7} parent=5 // pred_fallthru
      _
    %p187 = scmp.le.s32.totalorder 1, %s9
    %p188 = scmp.lt.s32.totalorder %s9, 3
    %p189 = pnand %p187, %p188
    %p190 = pneg %p189
    // Predicated region
    $region29: #{fwd.7} parent=5 // pred_check
      _
    $region30: #{fwd.7} parent=5 // pred_check_branch
      %192 = sbr.rel (%p189) target = $region32
    $region31: #{fwd.7} parent=5 // pred_region
      %s193 = ssub.s32 %s9, 1
      %s194 = smul.u32 32, %s19
      %p195 = scmp.lt.s32.totalorder %s194, 63
      %s196 = scalar_select %p195, %s194, 63
      %p197 = scmp.lt.s32.totalorder %s21, 0
      %s198 = scalar_select %p197, %s21, 0
      %s199 = sadd.s32 %s198, %s196
      %s200 = smul.addr %s199, 8
      %s201 = scalar_lea.vmem %s0, %s200
      %p202 = pneg %p56
      %p203 = pneg %p53
      %s204 = smul.u32 16, %s21
      %p205 = scmp.lt.s32.totalorder %s204, 15
      %s206 = scalar_select %p205, %s204, 15
      %p207 = scmp.lt.s32.totalorder %s20, 0
      %s208 = scalar_select %p207, %s20, 0
      %s209 = sadd.s32 %s208, %s206
      %s210 = smul.addr %s209, 8
      %s211 = scalar_lea.vmem %s1, %s210
      %p212 = pneg %p84
      %p213 = pneg %p81
      %p214 = scmp.lt.s32.totalorder %s20, 0
      %s215 = scalar_select %p214, %s20, 0
      %s216 = scalar_lea.vmem %s2, %s215
      %p217 = pneg %p110
      %p218 = pneg %p107
      %p219 = pneg %p138
      %p220 = pneg %p135
      %s221 = smul.u32 32, %s19
      %p222 = scmp.lt.s32.totalorder %s221, 63
      %s223 = scalar_select %p222, %s221, 63
      %p224 = scmp.lt.s32.totalorder %s20, 0
      %s225 = scalar_select %p224, %s20, 0
      %s226 = sadd.s32 %s225, %s223
      %s227 = smul.addr %s226, 8
      %s228 = scalar_lea.vmem %s3, %s227
      %s229 = smul.u32 32, %s19
      %p230 = scmp.lt.s32.totalorder %s229, 63
      %s231 = scalar_select %p230, %s229, 63
      %p232 = scmp.lt.s32.totalorder %s21, 0
      %s233 = scalar_select %p232, %s21, 0
      %s234 = sadd.s32 %s233, %s231
      %s235 = smul.addr %s234, 8
      %s236 = scalar_lea.vmem %s0, %s235
      %s237 = smul.u32 32, %s19
      %s238 = smul.u32 16, %s21
      %p239 = scmp.lt.s32.totalorder %s238, 15
      %s240 = scalar_select %p239, %s238, 15
      %p241 = scmp.lt.s32.totalorder %s20, 0
      %s242 = scalar_select %p241, %s20, 0
      %s243 = sadd.s32 %s242, %s240
      %s244 = smul.addr %s243, 8
      %s245 = scalar_lea.vmem %s1, %s244
      %s246 = smul.u32 16, %s21
      %p247 = scmp.lt.s32.totalorder %s20, 0
      %s248 = scalar_select %p247, %s20, 0
      %s249 = scalar_lea.vmem %s2, %s248
      %s250 = smul.u32 32, %s19
      %p251 = scmp.lt.s32.totalorder %s250, 63
      %s252 = scalar_select %p251, %s250, 63
      %p253 = scmp.lt.s32.totalorder %s20, 0
      %s254 = scalar_select %p253, %s20, 0
      %s255 = sadd.s32 %s254, %s252
      %s256 = smul.addr %s255, 8
      %s257 = scalar_lea.vmem %s3, %s256
      %s258 = smul.u32 32, %s19
      %v259 = vld [vmem:[%s236] sm:$0xff]
      %v260 = vld [vmem:[%s236 + $0x8] sm:$0xff]
      %v261 = vld [vmem:[%s236 + $0x10] sm:$0xff]
      %v262 = vld [vmem:[%s236 + $0x18] sm:$0xff]
      %v263 = vld [vmem:[%s236 + $0x20] sm:$0xff]
      %v264 = vld [vmem:[%s236 + $0x28] sm:$0xff]
      %v265 = vld [vmem:[%s236 + $0x30] sm:$0xff]
      %v266 = vld [vmem:[%s236 + $0x38] sm:$0xff]
      %v267 = vld [vmem:[%s236 + $0x40] sm:$0xff]
      %v268 = vld [vmem:[%s236 + $0x48] sm:$0xff]
      %v269 = vld [vmem:[%s236 + $0x50] sm:$0xff]
      %v270 = vld [vmem:[%s236 + $0x58] sm:$0xff]
      %v271 = vld [vmem:[%s236 + $0x60] sm:$0xff]
      %v272 = vld [vmem:[%s236 + $0x68] sm:$0xff]
      %v273 = vld [vmem:[%s236 + $0x70] sm:$0xff]
      %v274 = vld [vmem:[%s236 + $0x78] sm:$0xff]
      %v275 = vld [vmem:[%s236 + $0x80] sm:$0xff]
      %v276 = vld [vmem:[%s236 + $0x88] sm:$0xff]
      %v277 = vld [vmem:[%s236 + $0x90] sm:$0xff]
      %v278 = vld [vmem:[%s236 + $0x98] sm:$0xff]
      %v279 = vld [vmem:[%s236 + $0xa0] sm:$0xff]
      %v280 = vld [vmem:[%s236 + $0xa8] sm:$0xff]
      %v281 = vld [vmem:[%s236 + $0xb0] sm:$0xff]
      %v282 = vld [vmem:[%s236 + $0xb8] sm:$0xff]
      %v283 = vld [vmem:[%s236 + $0xc0] sm:$0xff]
      %v284 = vld [vmem:[%s236 + $0xc8] sm:$0xff]
      %v285 = vld [vmem:[%s236 + $0xd0] sm:$0xff]
      %v286 = vld [vmem:[%s236 + $0xd8] sm:$0xff]
      %v287 = vld [vmem:[%s236 + $0xe0] sm:$0xff]
      %v288 = vld [vmem:[%s236 + $0xe8] sm:$0xff]
      %v289 = vld [vmem:[%s236 + $0xf0] sm:$0xff]
      %v290 = vld [vmem:[%s236 + $0xf8] sm:$0xff]
      %v291 = vmul.f32 %v259, %v259
      %v292 = vmul.f32 %v260, %v260
      %v293 = vmul.f32 %v261, %v261
      %v294 = vmul.f32 %v262, %v262
      %v295 = vmul.f32 %v263, %v263
      %v296 = vmul.f32 %v264, %v264
      %v297 = vmul.f32 %v265, %v265
      %v298 = vmul.f32 %v266, %v266
      %v299 = vmul.f32 %v267, %v267
      %v300 = vmul.f32 %v268, %v268
      %v301 = vmul.f32 %v269, %v269
      %v302 = vmul.f32 %v270, %v270
      %v303 = vmul.f32 %v271, %v271
      %v304 = vmul.f32 %v272, %v272
      %v305 = vmul.f32 %v273, %v273
      %v306 = vmul.f32 %v274, %v274
      %v307 = vmul.f32 %v275, %v275
      %v308 = vmul.f32 %v276, %v276
      %v309 = vmul.f32 %v277, %v277
      %v310 = vmul.f32 %v278, %v278
      %v311 = vmul.f32 %v279, %v279
      %v312 = vmul.f32 %v280, %v280
      %v313 = vmul.f32 %v281, %v281
      %v314 = vmul.f32 %v282, %v282
      %v315 = vmul.f32 %v283, %v283
      %v316 = vmul.f32 %v284, %v284
      %v317 = vmul.f32 %v285, %v285
      %v318 = vmul.f32 %v286, %v286
      %v319 = vmul.f32 %v287, %v287
      %v320 = vmul.f32 %v288, %v288
      %v321 = vmul.f32 %v289, %v289
      %v322 = vmul.f32 %v290, %v290
      %323 = vadd.xlane.f32.xlu0 %v291
      %v324 = vpop.xlane.xlu0 %323
      %325 = vadd.xlane.f32.xlu0 %v292
      %v326 = vpop.xlane.xlu0 %325
      %327 = vadd.xlane.f32.xlu0 %v293
      %v328 = vpop.xlane.xlu0 %327
      %329 = vadd.xlane.f32.xlu0 %v294
      %v330 = vpop.xlane.xlu0 %329
      %331 = vadd.xlane.f32.xlu0 %v295
      %v332 = vpop.xlane.xlu0 %331
      %333 = vadd.xlane.f32.xlu0 %v296
      %v334 = vpop.xlane.xlu0 %333
      %335 = vadd.xlane.f32.xlu0 %v297
      %v336 = vpop.xlane.xlu0 %335
      %337 = vadd.xlane.f32.xlu0 %v298
      %v338 = vpop.xlane.xlu0 %337
      %339 = vadd.xlane.f32.xlu0 %v299
      %v340 = vpop.xlane.xlu0 %339
      %341 = vadd.xlane.f32.xlu0 %v300
      %v342 = vpop.xlane.xlu0 %341
      %343 = vadd.xlane.f32.xlu0 %v301
      %v344 = vpop.xlane.xlu0 %343
      %345 = vadd.xlane.f32.xlu0 %v302
      %v346 = vpop.xlane.xlu0 %345
      %347 = vadd.xlane.f32.xlu0 %v303
      %v348 = vpop.xlane.xlu0 %347
      %349 = vadd.xlane.f32.xlu0 %v304
      %v350 = vpop.xlane.xlu0 %349
      %351 = vadd.xlane.f32.xlu0 %v305
      %v352 = vpop.xlane.xlu0 %351
      %353 = vadd.xlane.f32.xlu0 %v306
      %v354 = vpop.xlane.xlu0 %353
      %355 = vadd.xlane.f32.xlu0 %v307
      %v356 = vpop.xlane.xlu0 %355
      %357 = vadd.xlane.f32.xlu0 %v308
      %v358 = vpop.xlane.xlu0 %357
      %359 = vadd.xlane.f32.xlu0 %v309
      %v360 = vpop.xlane.xlu0 %359
      %361 = vadd.xlane.f32.xlu0 %v310
      %v362 = vpop.xlane.xlu0 %361
      %363 = vadd.xlane.f32.xlu0 %v311
      %v364 = vpop.xlane.xlu0 %363
      %365 = vadd.xlane.f32.xlu0 %v312
      %v366 = vpop.xlane.xlu0 %365
      %367 = vadd.xlane.f32.xlu0 %v313
      %v368 = vpop.xlane.xlu0 %367
      %369 = vadd.xlane.f32.xlu0 %v314
      %v370 = vpop.xlane.xlu0 %369
      %371 = vadd.xlane.f32.xlu0 %v315
      %v372 = vpop.xlane.xlu0 %371
      %373 = vadd.xlane.f32.xlu0 %v316
      %v374 = vpop.xlane.xlu0 %373
      %375 = vadd.xlane.f32.xlu0 %v317
      %v376 = vpop.xlane.xlu0 %375
      %377 = vadd.xlane.f32.xlu0 %v318
      %v378 = vpop.xlane.xlu0 %377
      %379 = vadd.xlane.f32.xlu0 %v319
      %v380 = vpop.xlane.xlu0 %379
      %381 = vadd.xlane.f32.xlu0 %v320
      %v382 = vpop.xlane.xlu0 %381
      %383 = vadd.xlane.f32.xlu0 %v321
      %v384 = vpop.xlane.xlu0 %383
      %385 = vadd.xlane.f32.xlu0 %v322
      %v386 = vpop.xlane.xlu0 %385
      %v387 = vmax.f32 %v324, 1e-24
      %v388 = vmax.f32 %v326, 1e-24
      %v389 = vmax.f32 %v328, 1e-24
      %v390 = vmax.f32 %v330, 1e-24
      %v391 = vmax.f32 %v332, 1e-24
      %v392 = vmax.f32 %v334, 1e-24
      %v393 = vmax.f32 %v336, 1e-24
      %v394 = vmax.f32 %v338, 1e-24
      %v395 = vmax.f32 %v340, 1e-24
      %v396 = vmax.f32 %v342, 1e-24
      %v397 = vmax.f32 %v344, 1e-24
      %v398 = vmax.f32 %v346, 1e-24
      %v399 = vmax.f32 %v348, 1e-24
      %v400 = vmax.f32 %v350, 1e-24
      %v401 = vmax.f32 %v352, 1e-24
      %v402 = vmax.f32 %v354, 1e-24
      %v403 = vmax.f32 %v356, 1e-24
      %v404 = vmax.f32 %v358, 1e-24
      %v405 = vmax.f32 %v360, 1e-24
      %v406 = vmax.f32 %v362, 1e-24
      %v407 = vmax.f32 %v364, 1e-24
      %v408 = vmax.f32 %v366, 1e-24
      %v409 = vmax.f32 %v368, 1e-24
      %v410 = vmax.f32 %v370, 1e-24
      %v411 = vmax.f32 %v372, 1e-24
      %v412 = vmax.f32 %v374, 1e-24
      %v413 = vmax.f32 %v376, 1e-24
      %v414 = vmax.f32 %v378, 1e-24
      %v415 = vmax.f32 %v380, 1e-24
      %v416 = vmax.f32 %v382, 1e-24
      %v417 = vmax.f32 %v384, 1e-24
      %v418 = vmax.f32 %v386, 1e-24
      %v419 = vrsqrt.pop %v387
      %v420 = vrsqrt.pop %v388
      %v421 = vrsqrt.pop %v389
      %v422 = vrsqrt.pop %v390
      %v423 = vrsqrt.pop %v391
      %v424 = vrsqrt.pop %v392
      %v425 = vrsqrt.pop %v393
      %v426 = vrsqrt.pop %v394
      %v427 = vrsqrt.pop %v395
      %v428 = vrsqrt.pop %v396
      %v429 = vrsqrt.pop %v397
      %v430 = vrsqrt.pop %v398
      %v431 = vrsqrt.pop %v399
      %v432 = vrsqrt.pop %v400
      %v433 = vrsqrt.pop %v401
      %v434 = vrsqrt.pop %v402
      %v435 = vrsqrt.pop %v403
      %v436 = vrsqrt.pop %v404
      %v437 = vrsqrt.pop %v405
      %v438 = vrsqrt.pop %v406
      %v439 = vrsqrt.pop %v407
      %v440 = vrsqrt.pop %v408
      %v441 = vrsqrt.pop %v409
      %v442 = vrsqrt.pop %v410
      %v443 = vrsqrt.pop %v411
      %v444 = vrsqrt.pop %v412
      %v445 = vrsqrt.pop %v413
      %v446 = vrsqrt.pop %v414
      %v447 = vrsqrt.pop %v415
      %v448 = vrsqrt.pop %v416
      %v449 = vrsqrt.pop %v417
      %v450 = vrsqrt.pop %v418
      %v451 = vmul.f32 %v259, %v419
      %v452 = vmul.f32 %v260, %v420
      %v453 = vmul.f32 %v261, %v421
      %v454 = vmul.f32 %v262, %v422
      %v455 = vmul.f32 %v263, %v423
      %v456 = vmul.f32 %v264, %v424
      %v457 = vmul.f32 %v265, %v425
      %v458 = vmul.f32 %v266, %v426
      %v459 = vmul.f32 %v267, %v427
      %v460 = vmul.f32 %v268, %v428
      %v461 = vmul.f32 %v269, %v429
      %v462 = vmul.f32 %v270, %v430
      %v463 = vmul.f32 %v271, %v431
      %v464 = vmul.f32 %v272, %v432
      %v465 = vmul.f32 %v273, %v433
      %v466 = vmul.f32 %v274, %v434
      %v467 = vmul.f32 %v275, %v435
      %v468 = vmul.f32 %v276, %v436
      %v469 = vmul.f32 %v277, %v437
      %v470 = vmul.f32 %v278, %v438
      %v471 = vmul.f32 %v279, %v439
      %v472 = vmul.f32 %v280, %v440
      %v473 = vmul.f32 %v281, %v441
      %v474 = vmul.f32 %v282, %v442
      %v475 = vmul.f32 %v283, %v443
      %v476 = vmul.f32 %v284, %v444
      %v477 = vmul.f32 %v285, %v445
      %v478 = vmul.f32 %v286, %v446
      %v479 = vmul.f32 %v287, %v447
      %v480 = vmul.f32 %v288, %v448
      %v481 = vmul.f32 %v289, %v449
      %v482 = vmul.f32 %v290, %v450
      %p483 = scmp.eq.s32.totalorder %s21, 0
      // Predicated region
      $region33: #{fwd.7} parent=31 // pred_check
        %p484 = pneg %p483
      $region34: #{fwd.7} parent=31 // pred_check_branch
        %486 = sbr.rel (%p484) target = $region36
      $region35: #{fwd.7} parent=31 // pred_region
        %487 = vst [vmem:[%s257] sm:$0xff] 0.0
        %488 = vst [vmem:[%s257 + $0x8] sm:$0xff] 0.0
        %489 = vst [vmem:[%s257 + $0x10] sm:$0xff] 0.0
        %490 = vst [vmem:[%s257 + $0x18] sm:$0xff] 0.0
        %491 = vst [vmem:[%s257 + $0x20] sm:$0xff] 0.0
        %492 = vst [vmem:[%s257 + $0x28] sm:$0xff] 0.0
        %493 = vst [vmem:[%s257 + $0x30] sm:$0xff] 0.0
        %494 = vst [vmem:[%s257 + $0x38] sm:$0xff] 0.0
        %495 = vst [vmem:[%s257 + $0x40] sm:$0xff] 0.0
        %496 = vst [vmem:[%s257 + $0x48] sm:$0xff] 0.0
        %497 = vst [vmem:[%s257 + $0x50] sm:$0xff] 0.0
        %498 = vst [vmem:[%s257 + $0x58] sm:$0xff] 0.0
        %499 = vst [vmem:[%s257 + $0x60] sm:$0xff] 0.0
        %500 = vst [vmem:[%s257 + $0x68] sm:$0xff] 0.0
        %501 = vst [vmem:[%s257 + $0x70] sm:$0xff] 0.0
        %502 = vst [vmem:[%s257 + $0x78] sm:$0xff] 0.0
        %503 = vst [vmem:[%s257 + $0x80] sm:$0xff] 0.0
        %504 = vst [vmem:[%s257 + $0x88] sm:$0xff] 0.0
        %505 = vst [vmem:[%s257 + $0x90] sm:$0xff] 0.0
        %506 = vst [vmem:[%s257 + $0x98] sm:$0xff] 0.0
        %507 = vst [vmem:[%s257 + $0xa0] sm:$0xff] 0.0
        %508 = vst [vmem:[%s257 + $0xa8] sm:$0xff] 0.0
        %509 = vst [vmem:[%s257 + $0xb0] sm:$0xff] 0.0
        %510 = vst [vmem:[%s257 + $0xb8] sm:$0xff] 0.0
        %511 = vst [vmem:[%s257 + $0xc0] sm:$0xff] 0.0
        %512 = vst [vmem:[%s257 + $0xc8] sm:$0xff] 0.0
        %513 = vst [vmem:[%s257 + $0xd0] sm:$0xff] 0.0
        %514 = vst [vmem:[%s257 + $0xd8] sm:$0xff] 0.0
        %515 = vst [vmem:[%s257 + $0xe0] sm:$0xff] 0.0
        %516 = vst [vmem:[%s257 + $0xe8] sm:$0xff] 0.0
        %517 = vst [vmem:[%s257 + $0xf0] sm:$0xff] 0.0
        %518 = vst [vmem:[%s257 + $0xf8] sm:$0xff] 0.0
      $region36: #{fwd.7} parent=31 // pred_fallthru
        _
      %v519 = vld [vmem:[%s257] sm:$0xff]
      %v520 = vld [vmem:[%s257 + $0x8] sm:$0xff]
      %v521 = vld [vmem:[%s257 + $0x10] sm:$0xff]
      %v522 = vld [vmem:[%s257 + $0x18] sm:$0xff]
      %v523 = vld [vmem:[%s257 + $0x20] sm:$0xff]
      %v524 = vld [vmem:[%s257 + $0x28] sm:$0xff]
      %v525 = vld [vmem:[%s257 + $0x30] sm:$0xff]
      %v526 = vld [vmem:[%s257 + $0x38] sm:$0xff]
      %v527 = vld [vmem:[%s257 + $0x40] sm:$0xff]
      %v528 = vld [vmem:[%s257 + $0x48] sm:$0xff]
      %v529 = vld [vmem:[%s257 + $0x50] sm:$0xff]
      %v530 = vld [vmem:[%s257 + $0x58] sm:$0xff]
      %v531 = vld [vmem:[%s257 + $0x60] sm:$0xff]
      %v532 = vld [vmem:[%s257 + $0x68] sm:$0xff]
      %v533 = vld [vmem:[%s257 + $0x70] sm:$0xff]
      %v534 = vld [vmem:[%s257 + $0x78] sm:$0xff]
      %v535 = vld [vmem:[%s257 + $0x80] sm:$0xff]
      %v536 = vld [vmem:[%s257 + $0x88] sm:$0xff]
      %v537 = vld [vmem:[%s257 + $0x90] sm:$0xff]
      %v538 = vld [vmem:[%s257 + $0x98] sm:$0xff]
      %v539 = vld [vmem:[%s257 + $0xa0] sm:$0xff]
      %v540 = vld [vmem:[%s257 + $0xa8] sm:$0xff]
      %v541 = vld [vmem:[%s257 + $0xb0] sm:$0xff]
      %v542 = vld [vmem:[%s257 + $0xb8] sm:$0xff]
      %v543 = vld [vmem:[%s257 + $0xc0] sm:$0xff]
      %v544 = vld [vmem:[%s257 + $0xc8] sm:$0xff]
      %v545 = vld [vmem:[%s257 + $0xd0] sm:$0xff]
      %v546 = vld [vmem:[%s257 + $0xd8] sm:$0xff]
      %v547 = vld [vmem:[%s257 + $0xe0] sm:$0xff]
      %v548 = vld [vmem:[%s257 + $0xe8] sm:$0xff]
      %v549 = vld [vmem:[%s257 + $0xf0] sm:$0xff]
      %v550 = vld [vmem:[%s257 + $0xf8] sm:$0xff]
      %v551 = vld [vmem:[%s245] sm:$0xff]
      %v552 = vld [vmem:[%s245 + $0x8] sm:$0xff]
      %v553 = vld [vmem:[%s245 + $0x10] sm:$0xff]
      %v554 = vld [vmem:[%s245 + $0x18] sm:$0xff]
      %v555 = vld [vmem:[%s245 + $0x20] sm:$0xff]
      %v556 = vld [vmem:[%s245 + $0x28] sm:$0xff]
      %v557 = vld [vmem:[%s245 + $0x30] sm:$0xff]
      %v558 = vld [vmem:[%s245 + $0x38] sm:$0xff]
      %v559 = vld [vmem:[%s245 + $0x40] sm:$0xff]
      %v560 = vld [vmem:[%s245 + $0x48] sm:$0xff]
      %v561 = vld [vmem:[%s245 + $0x50] sm:$0xff]
      %v562 = vld [vmem:[%s245 + $0x58] sm:$0xff]
      %v563 = vld [vmem:[%s245 + $0x60] sm:$0xff]
      %v564 = vld [vmem:[%s245 + $0x68] sm:$0xff]
      %v565 = vld [vmem:[%s245 + $0x70] sm:$0xff]
      %v566 = vld [vmem:[%s245 + $0x78] sm:$0xff]
      %567 = vmatprep.subr.mxu0 0.0
      %568 = vmatpush1.msra.mxu0 %v566
      %569 = vmatprep.subr.mxu0 0.0
      %570 = vmatpush1.msra.mxu0 %v565
      %571 = vmatprep.subr.mxu0 0.0
      %572 = vmatpush1.msra.mxu0 %v564
      %573 = vmatprep.subr.mxu0 0.0
      %574 = vmatpush1.msra.mxu0 %v563
      %575 = vmatprep.subr.mxu0 0.0
      %576 = vmatpush1.msra.mxu0 %v562
      %577 = vmatprep.subr.mxu0 0.0
      %578 = vmatpush1.msra.mxu0 %v561
      %579 = vmatprep.subr.mxu0 0.0
      %580 = vmatpush1.msra.mxu0 %v560
      %581 = vmatprep.subr.mxu0 0.0
      %582 = vmatpush1.msra.mxu0 %v559
      %583 = vmatprep.subr.mxu0 0.0
      %584 = vmatpush1.msra.mxu0 %v558
      %585 = vmatprep.subr.mxu0 0.0
      %586 = vmatpush1.msra.mxu0 %v557
      %587 = vmatprep.subr.mxu0 0.0
      %588 = vmatpush1.msra.mxu0 %v556
      %589 = vmatprep.subr.mxu0 0.0
      %590 = vmatpush1.msra.mxu0 %v555
      %591 = vmatprep.subr.mxu0 0.0
      %592 = vmatpush1.msra.mxu0 %v554
      %593 = vmatprep.subr.mxu0 0.0
      %594 = vmatpush1.msra.mxu0 %v553
      %595 = vmatprep.subr.mxu0 0.0
      %596 = vmatpush1.msra.mxu0 %v552
      %597 = vmatprep.subr.mxu0 0.0
      %598 = vmatpush1.msra.mxu0 %v551
      %599 = vmatprep.subr.mxu0 0.0
      %600 = vmatpush2.msra.mxu0 0.0
      %601 = vmatprep.subr.mxu0 0.0
      %602 = vmatpush2.msra.mxu0 0.0
      %603 = vmatprep.subr.mxu0 0.0
      %604 = vmatpush2.msra.mxu0 0.0
      %605 = vmatprep.subr.mxu0 0.0
      %606 = vmatpush2.msra.mxu0 0.0
      %607 = vmatprep.subr.mxu0 0.0
      %608 = vmatpush2.msra.mxu0 0.0
      %609 = vmatprep.subr.mxu0 0.0
      %610 = vmatpush2.msra.mxu0 0.0
      %611 = vmatprep.subr.mxu0 0.0
      %612 = vmatpush2.msra.mxu0 0.0
      %613 = vmatprep.subr.mxu0 0.0
      %614 = vmatpush2.msra.mxu0 0.0
      %615 = vmatprep.subr.mxu0 0.0
      %616 = vmatpush2.msra.mxu0 0.0
      %617 = vmatprep.subr.mxu0 0.0
      %618 = vmatpush2.msra.mxu0 0.0
      %619 = vmatprep.subr.mxu0 0.0
      %620 = vmatpush2.msra.mxu0 0.0
      %621 = vmatprep.subr.mxu0 0.0
      %622 = vmatpush2.msra.mxu0 0.0
      %623 = vmatprep.subr.mxu0 0.0
      %624 = vmatpush2.msra.mxu0 0.0
      %625 = vmatprep.subr.mxu0 0.0
      %626 = vmatpush2.msra.mxu0 0.0
      %627 = vmatprep.subr.mxu0 0.0
      %628 = vmatpush2.msra.mxu0 0.0
      %629 = vmatprep.subr.mxu0 0.0
      %630 = vmatpush2.msra.mxu0 0.0
      %631 = vmatprep.mubr.f32.mxu0 0.0
      %632 = vmatmul.mubr.f32.gmra.mxu0 %v451
      %v633 = vpop.f32.mrf.mxu0
      %v634 = vadd.f32 0.0, %v633
      %v635 = vpop.f32.mrf.mxu0
      %636 = vmatprep.mubr.f32.mxu0 0.0
      %637 = vmatmul.mubr.f32.gmra.mxu0 %v452
      %v638 = vpop.f32.mrf.mxu0
      %v639 = vadd.f32 0.0, %v638
      %v640 = vpop.f32.mrf.mxu0
      %641 = vmatprep.mubr.f32.mxu0 0.0
      %642 = vmatmul.mubr.f32.gmra.mxu0 %v453
      %v643 = vpop.f32.mrf.mxu0
      %v644 = vadd.f32 0.0, %v643
      %v645 = vpop.f32.mrf.mxu0
      %646 = vmatprep.mubr.f32.mxu0 0.0
      %647 = vmatmul.mubr.f32.gmra.mxu0 %v454
      %v648 = vpop.f32.mrf.mxu0
      %v649 = vadd.f32 0.0, %v648
      %v650 = vpop.f32.mrf.mxu0
      %651 = vmatprep.mubr.f32.mxu0 0.0
      %652 = vmatmul.mubr.f32.gmra.mxu0 %v455
      %v653 = vpop.f32.mrf.mxu0
      %v654 = vadd.f32 0.0, %v653
      %v655 = vpop.f32.mrf.mxu0
      %656 = vmatprep.mubr.f32.mxu0 0.0
      %657 = vmatmul.mubr.f32.gmra.mxu0 %v456
      %v658 = vpop.f32.mrf.mxu0
      %v659 = vadd.f32 0.0, %v658
      %v660 = vpop.f32.mrf.mxu0
      %661 = vmatprep.mubr.f32.mxu0 0.0
      %662 = vmatmul.mubr.f32.gmra.mxu0 %v457
      %v663 = vpop.f32.mrf.mxu0
      %v664 = vadd.f32 0.0, %v663
      %v665 = vpop.f32.mrf.mxu0
      %666 = vmatprep.mubr.f32.mxu0 0.0
      %667 = vmatmul.mubr.f32.gmra.mxu0 %v458
      %v668 = vpop.f32.mrf.mxu0
      %v669 = vadd.f32 0.0, %v668
      %v670 = vpop.f32.mrf.mxu0
      %671 = vmatprep.mubr.f32.mxu0 0.0
      %672 = vmatmul.mubr.f32.gmra.mxu0 %v459
      %v673 = vpop.f32.mrf.mxu0
      %v674 = vadd.f32 0.0, %v673
      %v675 = vpop.f32.mrf.mxu0
      %676 = vmatprep.mubr.f32.mxu0 0.0
      %677 = vmatmul.mubr.f32.gmra.mxu0 %v460
      %v678 = vpop.f32.mrf.mxu0
      %v679 = vadd.f32 0.0, %v678
      %v680 = vpop.f32.mrf.mxu0
      %681 = vmatprep.mubr.f32.mxu0 0.0
      %682 = vmatmul.mubr.f32.gmra.mxu0 %v461
      %v683 = vpop.f32.mrf.mxu0
      %v684 = vadd.f32 0.0, %v683
      %v685 = vpop.f32.mrf.mxu0
      %686 = vmatprep.mubr.f32.mxu0 0.0
      %687 = vmatmul.mubr.f32.gmra.mxu0 %v462
      %v688 = vpop.f32.mrf.mxu0
      %v689 = vadd.f32 0.0, %v688
      %v690 = vpop.f32.mrf.mxu0
      %691 = vmatprep.mubr.f32.mxu0 0.0
      %692 = vmatmul.mubr.f32.gmra.mxu0 %v463
      %v693 = vpop.f32.mrf.mxu0
      %v694 = vadd.f32 0.0, %v693
      %v695 = vpop.f32.mrf.mxu0
      %696 = vmatprep.mubr.f32.mxu0 0.0
      %697 = vmatmul.mubr.f32.gmra.mxu0 %v464
      %v698 = vpop.f32.mrf.mxu0
      %v699 = vadd.f32 0.0, %v698
      %v700 = vpop.f32.mrf.mxu0
      %701 = vmatprep.mubr.f32.mxu0 0.0
      %702 = vmatmul.mubr.f32.gmra.mxu0 %v465
      %v703 = vpop.f32.mrf.mxu0
      %v704 = vadd.f32 0.0, %v703
      %v705 = vpop.f32.mrf.mxu0
      %706 = vmatprep.mubr.f32.mxu0 0.0
      %707 = vmatmul.mubr.f32.gmra.mxu0 %v466
      %v708 = vpop.f32.mrf.mxu0
      %v709 = vadd.f32 0.0, %v708
      %v710 = vpop.f32.mrf.mxu0
      %711 = vmatprep.mubr.f32.mxu0 0.0
      %712 = vmatmul.mubr.f32.gmra.mxu0 %v467
      %v713 = vpop.f32.mrf.mxu0
      %v714 = vadd.f32 0.0, %v713
      %v715 = vpop.f32.mrf.mxu0
      %716 = vmatprep.mubr.f32.mxu0 0.0
      %717 = vmatmul.mubr.f32.gmra.mxu0 %v468
      %v718 = vpop.f32.mrf.mxu0
      %v719 = vadd.f32 0.0, %v718
      %v720 = vpop.f32.mrf.mxu0
      %721 = vmatprep.mubr.f32.mxu0 0.0
      %722 = vmatmul.mubr.f32.gmra.mxu0 %v469
      %v723 = vpop.f32.mrf.mxu0
      %v724 = vadd.f32 0.0, %v723
      %v725 = vpop.f32.mrf.mxu0
      %726 = vmatprep.mubr.f32.mxu0 0.0
      %727 = vmatmul.mubr.f32.gmra.mxu0 %v470
      %v728 = vpop.f32.mrf.mxu0
      %v729 = vadd.f32 0.0, %v728
      %v730 = vpop.f32.mrf.mxu0
      %731 = vmatprep.mubr.f32.mxu0 0.0
      %732 = vmatmul.mubr.f32.gmra.mxu0 %v471
      %v733 = vpop.f32.mrf.mxu0
      %v734 = vadd.f32 0.0, %v733
      %v735 = vpop.f32.mrf.mxu0
      %736 = vmatprep.mubr.f32.mxu0 0.0
      %737 = vmatmul.mubr.f32.gmra.mxu0 %v472
      %v738 = vpop.f32.mrf.mxu0
      %v739 = vadd.f32 0.0, %v738
      %v740 = vpop.f32.mrf.mxu0
      %741 = vmatprep.mubr.f32.mxu0 0.0
      %742 = vmatmul.mubr.f32.gmra.mxu0 %v473
      %v743 = vpop.f32.mrf.mxu0
      %v744 = vadd.f32 0.0, %v743
      %v745 = vpop.f32.mrf.mxu0
      %746 = vmatprep.mubr.f32.mxu0 0.0
      %747 = vmatmul.mubr.f32.gmra.mxu0 %v474
      %v748 = vpop.f32.mrf.mxu0
      %v749 = vadd.f32 0.0, %v748
      %v750 = vpop.f32.mrf.mxu0
      %751 = vmatprep.mubr.f32.mxu0 0.0
      %752 = vmatmul.mubr.f32.gmra.mxu0 %v475
      %v753 = vpop.f32.mrf.mxu0
      %v754 = vadd.f32 0.0, %v753
      %v755 = vpop.f32.mrf.mxu0
      %756 = vmatprep.mubr.f32.mxu0 0.0
      %757 = vmatmul.mubr.f32.gmra.mxu0 %v476
      %v758 = vpop.f32.mrf.mxu0
      %v759 = vadd.f32 0.0, %v758
      %v760 = vpop.f32.mrf.mxu0
      %761 = vmatprep.mubr.f32.mxu0 0.0
      %762 = vmatmul.mubr.f32.gmra.mxu0 %v477
      %v763 = vpop.f32.mrf.mxu0
      %v764 = vadd.f32 0.0, %v763
      %v765 = vpop.f32.mrf.mxu0
      %766 = vmatprep.mubr.f32.mxu0 0.0
      %767 = vmatmul.mubr.f32.gmra.mxu0 %v478
      %v768 = vpop.f32.mrf.mxu0
      %v769 = vadd.f32 0.0, %v768
      %v770 = vpop.f32.mrf.mxu0
      %771 = vmatprep.mubr.f32.mxu0 0.0
      %772 = vmatmul.mubr.f32.gmra.mxu0 %v479
      %v773 = vpop.f32.mrf.mxu0
      %v774 = vadd.f32 0.0, %v773
      %v775 = vpop.f32.mrf.mxu0
      %776 = vmatprep.mubr.f32.mxu0 0.0
      %777 = vmatmul.mubr.f32.gmra.mxu0 %v480
      %v778 = vpop.f32.mrf.mxu0
      %v779 = vadd.f32 0.0, %v778
      %v780 = vpop.f32.mrf.mxu0
      %781 = vmatprep.mubr.f32.mxu0 0.0
      %782 = vmatmul.mubr.f32.gmra.mxu0 %v481
      %v783 = vpop.f32.mrf.mxu0
      %v784 = vadd.f32 0.0, %v783
      %v785 = vpop.f32.mrf.mxu0
      %786 = vmatprep.mubr.f32.mxu0 0.0
      %787 = vmatmul.mubr.f32.gmra.mxu0 %v482
      %v788 = vpop.f32.mrf.mxu0
      %v789 = vadd.f32 0.0, %v788
      %v790 = vpop.f32.mrf.mxu0
      %791 = vdwg.mxu0
      %v792 = vadd.f32 %v519, %v634
      %v793 = vadd.f32 %v520, %v639
      %v794 = vadd.f32 %v521, %v644
      %v795 = vadd.f32 %v522, %v649
      %v796 = vadd.f32 %v523, %v654
      %v797 = vadd.f32 %v524, %v659
      %v798 = vadd.f32 %v525, %v664
      %v799 = vadd.f32 %v526, %v669
      %v800 = vadd.f32 %v527, %v674
      %v801 = vadd.f32 %v528, %v679
      %v802 = vadd.f32 %v529, %v684
      %v803 = vadd.f32 %v530, %v689
      %v804 = vadd.f32 %v531, %v694
      %v805 = vadd.f32 %v532, %v699
      %v806 = vadd.f32 %v533, %v704
      %v807 = vadd.f32 %v534, %v709
      %v808 = vadd.f32 %v535, %v714
      %v809 = vadd.f32 %v536, %v719
      %v810 = vadd.f32 %v537, %v724
      %v811 = vadd.f32 %v538, %v729
      %v812 = vadd.f32 %v539, %v734
      %v813 = vadd.f32 %v540, %v739
      %v814 = vadd.f32 %v541, %v744
      %v815 = vadd.f32 %v542, %v749
      %v816 = vadd.f32 %v543, %v754
      %v817 = vadd.f32 %v544, %v759
      %v818 = vadd.f32 %v545, %v764
      %v819 = vadd.f32 %v546, %v769
      %v820 = vadd.f32 %v547, %v774
      %v821 = vadd.f32 %v548, %v779
      %v822 = vadd.f32 %v549, %v784
      %v823 = vadd.f32 %v550, %v789
      %824 = vst [vmem:[%s257] sm:$0xff] %v792
      %825 = vst [vmem:[%s257 + $0x8] sm:$0xff] %v793
      %826 = vst [vmem:[%s257 + $0x10] sm:$0xff] %v794
      %827 = vst [vmem:[%s257 + $0x18] sm:$0xff] %v795
      %828 = vst [vmem:[%s257 + $0x20] sm:$0xff] %v796
      %829 = vst [vmem:[%s257 + $0x28] sm:$0xff] %v797
      %830 = vst [vmem:[%s257 + $0x30] sm:$0xff] %v798
      %831 = vst [vmem:[%s257 + $0x38] sm:$0xff] %v799
      %832 = vst [vmem:[%s257 + $0x40] sm:$0xff] %v800
      %833 = vst [vmem:[%s257 + $0x48] sm:$0xff] %v801
      %834 = vst [vmem:[%s257 + $0x50] sm:$0xff] %v802
      %835 = vst [vmem:[%s257 + $0x58] sm:$0xff] %v803
      %836 = vst [vmem:[%s257 + $0x60] sm:$0xff] %v804
      %837 = vst [vmem:[%s257 + $0x68] sm:$0xff] %v805
      %838 = vst [vmem:[%s257 + $0x70] sm:$0xff] %v806
      %839 = vst [vmem:[%s257 + $0x78] sm:$0xff] %v807
      %840 = vst [vmem:[%s257 + $0x80] sm:$0xff] %v808
      %841 = vst [vmem:[%s257 + $0x88] sm:$0xff] %v809
      %842 = vst [vmem:[%s257 + $0x90] sm:$0xff] %v810
      %843 = vst [vmem:[%s257 + $0x98] sm:$0xff] %v811
      %844 = vst [vmem:[%s257 + $0xa0] sm:$0xff] %v812
      %845 = vst [vmem:[%s257 + $0xa8] sm:$0xff] %v813
      %846 = vst [vmem:[%s257 + $0xb0] sm:$0xff] %v814
      %847 = vst [vmem:[%s257 + $0xb8] sm:$0xff] %v815
      %848 = vst [vmem:[%s257 + $0xc0] sm:$0xff] %v816
      %849 = vst [vmem:[%s257 + $0xc8] sm:$0xff] %v817
      %850 = vst [vmem:[%s257 + $0xd0] sm:$0xff] %v818
      %851 = vst [vmem:[%s257 + $0xd8] sm:$0xff] %v819
      %852 = vst [vmem:[%s257 + $0xe0] sm:$0xff] %v820
      %853 = vst [vmem:[%s257 + $0xe8] sm:$0xff] %v821
      %854 = vst [vmem:[%s257 + $0xf0] sm:$0xff] %v822
      %855 = vst [vmem:[%s257 + $0xf8] sm:$0xff] %v823
      // Predicated region
      $region37: #{fwd.7} parent=31 // pred_check
        %p856 = pneg %p483
      $region38: #{fwd.7} parent=31 // pred_check_branch
        %858 = sbr.rel (%p856) target = $region40
      $region39: #{fwd.7} parent=31 // pred_region
        %v859 = vld [vmem:[%s257] sm:$0xff]
        %v860 = vld [vmem:[%s257 + $0x8] sm:$0xff]
        %v861 = vld [vmem:[%s257 + $0x10] sm:$0xff]
        %v862 = vld [vmem:[%s257 + $0x18] sm:$0xff]
        %v863 = vld [vmem:[%s257 + $0x20] sm:$0xff]
        %v864 = vld [vmem:[%s257 + $0x28] sm:$0xff]
        %v865 = vld [vmem:[%s257 + $0x30] sm:$0xff]
        %v866 = vld [vmem:[%s257 + $0x38] sm:$0xff]
        %v867 = vld [vmem:[%s257 + $0x40] sm:$0xff]
        %v868 = vld [vmem:[%s257 + $0x48] sm:$0xff]
        %v869 = vld [vmem:[%s257 + $0x50] sm:$0xff]
        %v870 = vld [vmem:[%s257 + $0x58] sm:$0xff]
        %v871 = vld [vmem:[%s257 + $0x60] sm:$0xff]
        %v872 = vld [vmem:[%s257 + $0x68] sm:$0xff]
        %v873 = vld [vmem:[%s257 + $0x70] sm:$0xff]
        %v874 = vld [vmem:[%s257 + $0x78] sm:$0xff]
        %v875 = vld [vmem:[%s257 + $0x80] sm:$0xff]
        %v876 = vld [vmem:[%s257 + $0x88] sm:$0xff]
        %v877 = vld [vmem:[%s257 + $0x90] sm:$0xff]
        %v878 = vld [vmem:[%s257 + $0x98] sm:$0xff]
        %v879 = vld [vmem:[%s257 + $0xa0] sm:$0xff]
        %v880 = vld [vmem:[%s257 + $0xa8] sm:$0xff]
        %v881 = vld [vmem:[%s257 + $0xb0] sm:$0xff]
        %v882 = vld [vmem:[%s257 + $0xb8] sm:$0xff]
        %v883 = vld [vmem:[%s257 + $0xc0] sm:$0xff]
        %v884 = vld [vmem:[%s257 + $0xc8] sm:$0xff]
        %v885 = vld [vmem:[%s257 + $0xd0] sm:$0xff]
        %v886 = vld [vmem:[%s257 + $0xd8] sm:$0xff]
        %v887 = vld [vmem:[%s257 + $0xe0] sm:$0xff]
        %v888 = vld [vmem:[%s257 + $0xe8] sm:$0xff]
        %v889 = vld [vmem:[%s257 + $0xf0] sm:$0xff]
        %v890 = vld [vmem:[%s257 + $0xf8] sm:$0xff]
        %v891 = vmul.f32 %v859, 0.17677669
        %v892 = vmul.f32 %v860, 0.17677669
        %v893 = vmul.f32 %v861, 0.17677669
        %v894 = vmul.f32 %v862, 0.17677669
        %v895 = vmul.f32 %v863, 0.17677669
        %v896 = vmul.f32 %v864, 0.17677669
        %v897 = vmul.f32 %v865, 0.17677669
        %v898 = vmul.f32 %v866, 0.17677669
        %v899 = vmul.f32 %v867, 0.17677669
        %v900 = vmul.f32 %v868, 0.17677669
        %v901 = vmul.f32 %v869, 0.17677669
        %v902 = vmul.f32 %v870, 0.17677669
        %v903 = vmul.f32 %v871, 0.17677669
        %v904 = vmul.f32 %v872, 0.17677669
        %v905 = vmul.f32 %v873, 0.17677669
        %v906 = vmul.f32 %v874, 0.17677669
        %v907 = vmul.f32 %v875, 0.17677669
        %v908 = vmul.f32 %v876, 0.17677669
        %v909 = vmul.f32 %v877, 0.17677669
        %v910 = vmul.f32 %v878, 0.17677669
        %v911 = vmul.f32 %v879, 0.17677669
        %v912 = vmul.f32 %v880, 0.17677669
        %v913 = vmul.f32 %v881, 0.17677669
        %v914 = vmul.f32 %v882, 0.17677669
        %v915 = vmul.f32 %v883, 0.17677669
        %v916 = vmul.f32 %v884, 0.17677669
        %v917 = vmul.f32 %v885, 0.17677669
        %v918 = vmul.f32 %v886, 0.17677669
        %v919 = vmul.f32 %v887, 0.17677669
        %v920 = vmul.f32 %v888, 0.17677669
        %v921 = vmul.f32 %v889, 0.17677669
        %v922 = vmul.f32 %v890, 0.17677669
        %v923 = vld [vmem:[%s249] sm:$0x1]
        %v925 = vlaneseq
        %v926 = vshrl.u32 %v925, 7
        %v927 = vsub.s32 0, %v926
        %v928 = vrot.slane %v923, %v927
        %v930 = vadd.f32 %v891, %v928
        %v931 = vadd.f32 %v892, %v928
        %v932 = vadd.f32 %v893, %v928
        %v933 = vadd.f32 %v894, %v928
        %v934 = vadd.f32 %v895, %v928
        %v935 = vadd.f32 %v896, %v928
        %v936 = vadd.f32 %v897, %v928
        %v937 = vadd.f32 %v898, %v928
        %v938 = vadd.f32 %v899, %v928
        %v939 = vadd.f32 %v900, %v928
        %v940 = vadd.f32 %v901, %v928
        %v941 = vadd.f32 %v902, %v928
        %v942 = vadd.f32 %v903, %v928
        %v943 = vadd.f32 %v904, %v928
        %v944 = vadd.f32 %v905, %v928
        %v945 = vadd.f32 %v906, %v928
        %v946 = vadd.f32 %v907, %v928
        %v947 = vadd.f32 %v908, %v928
        %v948 = vadd.f32 %v909, %v928
        %v949 = vadd.f32 %v910, %v928
        %v950 = vadd.f32 %v911, %v928
        %v951 = vadd.f32 %v912, %v928
        %v952 = vadd.f32 %v913, %v928
        %v953 = vadd.f32 %v914, %v928
        %v954 = vadd.f32 %v915, %v928
        %v955 = vadd.f32 %v916, %v928
        %v956 = vadd.f32 %v917, %v928
        %v957 = vadd.f32 %v918, %v928
        %v958 = vadd.f32 %v919, %v928
        %v959 = vadd.f32 %v920, %v928
        %v960 = vadd.f32 %v921, %v928
        %v961 = vadd.f32 %v922, %v928
        %962 = vst [vmem:[%s257] sm:$0xff] %v930
        %963 = vst [vmem:[%s257 + $0x8] sm:$0xff] %v931
        %964 = vst [vmem:[%s257 + $0x10] sm:$0xff] %v932
        %965 = vst [vmem:[%s257 + $0x18] sm:$0xff] %v933
        %966 = vst [vmem:[%s257 + $0x20] sm:$0xff] %v934
        %967 = vst [vmem:[%s257 + $0x28] sm:$0xff] %v935
        %968 = vst [vmem:[%s257 + $0x30] sm:$0xff] %v936
        %969 = vst [vmem:[%s257 + $0x38] sm:$0xff] %v937
        %970 = vst [vmem:[%s257 + $0x40] sm:$0xff] %v938
        %971 = vst [vmem:[%s257 + $0x48] sm:$0xff] %v939
        %972 = vst [vmem:[%s257 + $0x50] sm:$0xff] %v940
        %973 = vst [vmem:[%s257 + $0x58] sm:$0xff] %v941
        %974 = vst [vmem:[%s257 + $0x60] sm:$0xff] %v942
        %975 = vst [vmem:[%s257 + $0x68] sm:$0xff] %v943
        %976 = vst [vmem:[%s257 + $0x70] sm:$0xff] %v944
        %977 = vst [vmem:[%s257 + $0x78] sm:$0xff] %v945
        %978 = vst [vmem:[%s257 + $0x80] sm:$0xff] %v946
        %979 = vst [vmem:[%s257 + $0x88] sm:$0xff] %v947
        %980 = vst [vmem:[%s257 + $0x90] sm:$0xff] %v948
        %981 = vst [vmem:[%s257 + $0x98] sm:$0xff] %v949
        %982 = vst [vmem:[%s257 + $0xa0] sm:$0xff] %v950
        %983 = vst [vmem:[%s257 + $0xa8] sm:$0xff] %v951
        %984 = vst [vmem:[%s257 + $0xb0] sm:$0xff] %v952
        %985 = vst [vmem:[%s257 + $0xb8] sm:$0xff] %v953
        %986 = vst [vmem:[%s257 + $0xc0] sm:$0xff] %v954
        %987 = vst [vmem:[%s257 + $0xc8] sm:$0xff] %v955
        %988 = vst [vmem:[%s257 + $0xd0] sm:$0xff] %v956
        %989 = vst [vmem:[%s257 + $0xd8] sm:$0xff] %v957
        %990 = vst [vmem:[%s257 + $0xe0] sm:$0xff] %v958
        %991 = vst [vmem:[%s257 + $0xe8] sm:$0xff] %v959
        %992 = vst [vmem:[%s257 + $0xf0] sm:$0xff] %v960
        %993 = vst [vmem:[%s257 + $0xf8] sm:$0xff] %v961
      $region40: #{fwd.7} parent=31 // pred_fallthru
        _
      %s994 = smul.u32 32, %s19
      %p995 = scmp.lt.s32.totalorder %s994, 63
      %s996 = scalar_select %p995, %s994, 63
      %p997 = scmp.lt.s32.totalorder %s20, 0
      %s998 = scalar_select %p997, %s20, 0
      %s999 = sadd.s32 %s998, %s996
      %s1000 = smul.addr %s999, 8
      %s1001 = scalar_lea.vmem %s3, %s1000
      // Predicated region
      $region41: #{fwd.7} parent=31 // pred_check
        %p1002 = pneg %p135
      $region42: #{fwd.7} parent=31 // pred_check_branch
        %1004 = sbr.rel (%p1002) target = $region44
      $region43: #{fwd.7} parent=31 // pred_region
        %s1005 = smul.u32 32, %s19
      $region44: #{fwd.7} parent=31 // pred_fallthru
        _
    $region32: #{fwd.7} parent=5 // pred_fallthru
      _
    %p1006 = scmp.le.s32.totalorder 2, %s9
    // Predicated region
    $region45: #{fwd.7} parent=5 // pred_check
      %p1007 = pneg %p1006
    $region46: #{fwd.7} parent=5 // pred_check_branch
      %1009 = sbr.rel (%p1007) target = $region48
    $region47: #{fwd.7} parent=5 // pred_region
      %s1010 = ssub.s32 %s9, 2
      // Predicated region
      $region49: #{fwd.7} parent=47 // pred_check
        %p1011 = pneg %p141
      $region50: #{fwd.7} parent=47 // pred_check_branch
        %1013 = sbr.rel (%p1011) target = $region52
      $region51: #{fwd.7} parent=47 // pred_region
        %s1014 = smul.u32 32, %s22
        %p1015 = scmp.lt.s32.totalorder %s1014, 63
        %s1016 = scalar_select %p1015, %s1014, 63
        %p1017 = scmp.lt.s32.totalorder %s23, 0
        %s1018 = scalar_select %p1017, %s23, 0
        %s1019 = sadd.s32 %s1018, %s1016
        %s1020 = smul.addr %s1019, 8
        %s1021 = scalar_lea.vmem %s3, %s1020
      $region52: #{fwd.7} parent=47 // pred_fallthru
        _
    $region48: #{fwd.7} parent=5 // pred_fallthru
      _
  $region6: #{fwd.7} parent=0 // loop_footer
    %s13 = sadd.s32 1, %s9
  $region7: #{fwd.7} parent=0 // loop_footer_branch
    %8 = sbr.rel target = $region3
  $region8: #{fwd.7} parent=0 // loop_exit
    _

// kernel: fwd.8
$region0: #{fwd.8}
  #allocation0 [shape = 'u32[]', space=smem, size = 0x4, offset = 0x4, fixed_abs, tag = 'smem constant byte address 0x4 - core index']
  #allocation1 [shape = 'u32[144,128]{1,0:T(1,128)}', space=vmem, size = 0x12000, scoped, tag = 'internal scratch']
  %s0 = inlined_call_operand.vmem [shape: f32[512,128], index: 0, kind: input, shape index: {}]
  %s1 = inlined_call_operand.vmem [shape: f32[128,128], index: 1, kind: input, shape index: {}]
  %s2 = inlined_call_operand.vmem [shape: f32[1,128], index: 2, kind: input, shape index: {}]
  %s3 = inlined_call_operand.vmem [shape: f32[512,128], index: 3, kind: output, shape index: {}]
  %s4 = sld [smem:[#allocation0]]
  $region53: #{fwd.8} parent=0
    _
  %s6 = ssub.s32 1, %s4
  %s7 = scalar_select 0, %s6, %s4
  loop: start=0, step=1, limit=4
  $region2: #{fwd.8} parent=0 // loop_pre_header
    _
  $region3: #{fwd.8} parent=0 // loop_header
    %s9 = sphi 0, %s13
    %p10 = scmp.ge.s32.totalorder %s9, 4
    %s16 = sphi 0, %s35
    %s17 = sphi 0, %s31
    %s18 = sphi 0, %s27
    %s19 = sphi 0, %s16
    %s20 = sphi 0, %s17
    %s21 = sphi 0, %s18
    %s22 = sphi 0, %s19
    %s23 = sphi 0, %s20
    %s24 = sphi 0, %s21
    %s40 = sphi 0, %s42
    %s43 = sphi 0, %s40
    %s44 = sphi 0, %s43
    %s60 = sphi 0, %s44
    %s68 = sphi 0, %s70
    %s71 = sphi 0, %s68
    %s72 = sphi 0, %s71
    %s88 = sphi 0, %s72
    %s94 = sphi 0, %s96
    %s97 = sphi 0, %s94
    %s98 = sphi 0, %s97
    %s114 = sphi 0, %s98
    %s122 = sphi 0, %s124
    %s125 = sphi 0, %s122
    %s126 = sphi 0, %s125
    %s142 = sphi 0, %s126
  $region4: #{fwd.8} parent=0 // loop_header_branch
    %12 = sbr.rel (%p10) target = $region8
  $region5: #{fwd.8} parent=0 // loop_body
    %s14 = ssub.s32 %s9, 1
    %s15 = ssub.s32 %s9, 2
    %s25 = sadd.s32 1, %s18
    %p26 = scmp.ge.s32.totalorder %s25, 1
    %s27 = scalar_select %p26, 0, %s25
    %s28 = sadd.s32 1, %s17
    %s29 = scalar_select %p26, %s28, %s17
    %p30 = scmp.ge.s32.totalorder %s29, 1
    %s31 = scalar_select %p30, 0, %s29
    %s32 = sadd.s32 1, %s16
    %s33 = scalar_select %p30, %s32, %s16
    %p34 = scmp.ge.s32.totalorder %s33, 2
    %s35 = scalar_select %p34, 0, %s33
    %s36 = ssub.s32 %s16, %s35
    %s37 = ssub.s32 %s18, %s27
    %s38 = sor.u32 %s36, %s37
    %p39 = scmp.eq.s32.totalorder %s38, 0
    %s41 = sadd.s32 %s40, 1
    %s42 = scalar_select %p39, %s40, %s41
    %p45 = pneg %p39
    %p46 = scmp.eq.s32.totalorder %s9, 1
    %p47 = por %p45, %p46
    %p48 = scmp.ne.s32.totalorder %s40, %s43
    %p49 = scmp.eq.s32.totalorder %s9, 0
    %p50 = por %p48, %p49
    %p51 = scmp.ne.s32.totalorder %s40, %s43
    %p52 = scmp.eq.s32.totalorder %s14, 1
    %p53 = por %p51, %p52
    %p54 = scmp.ne.s32.totalorder %s43, %s44
    %p55 = scmp.eq.s32.totalorder %s14, 0
    %p56 = por %p54, %p55
    %p57 = scmp.ne.s32.totalorder %s43, %s44
    %p58 = scmp.eq.s32.totalorder %s15, 1
    %p59 = por %p57, %p58
    %p61 = scmp.ne.s32.totalorder %s44, %s60
    %p62 = scmp.eq.s32.totalorder %s15, 0
    %p63 = por %p61, %p62
    %s64 = ssub.s32 %s18, %s27
    %s65 = ssub.s32 %s17, %s31
    %s66 = sor.u32 %s64, %s65
    %p67 = scmp.eq.s32.totalorder %s66, 0
    %s69 = sadd.s32 %s68, 1
    %s70 = scalar_select %p67, %s68, %s69
    %p73 = pneg %p67
    %p74 = scmp.eq.s32.totalorder %s9, 1
    %p75 = por %p73, %p74
    %p76 = scmp.ne.s32.totalorder %s68, %s71
    %p77 = scmp.eq.s32.totalorder %s9, 0
    %p78 = por %p76, %p77
    %p79 = scmp.ne.s32.totalorder %s68, %s71
    %p80 = scmp.eq.s32.totalorder %s14, 1
    %p81 = por %p79, %p80
    %p82 = scmp.ne.s32.totalorder %s71, %s72
    %p83 = scmp.eq.s32.totalorder %s14, 0
    %p84 = por %p82, %p83
    %p85 = scmp.ne.s32.totalorder %s71, %s72
    %p86 = scmp.eq.s32.totalorder %s15, 1
    %p87 = por %p85, %p86
    %p89 = scmp.ne.s32.totalorder %s72, %s88
    %p90 = scmp.eq.s32.totalorder %s15, 0
    %p91 = por %p89, %p90
    %s92 = ssub.s32 %s17, %s31
    %p93 = scmp.eq.s32.totalorder %s92, 0
    %s95 = sadd.s32 %s94, 1
    %s96 = scalar_select %p93, %s94, %s95
    %p99 = pneg %p93
    %p100 = scmp.eq.s32.totalorder %s9, 1
    %p101 = por %p99, %p100
    %p102 = scmp.ne.s32.totalorder %s94, %s97
    %p103 = scmp.eq.s32.totalorder %s9, 0
    %p104 = por %p102, %p103
    %p105 = scmp.ne.s32.totalorder %s94, %s97
    %p106 = scmp.eq.s32.totalorder %s14, 1
    %p107 = por %p105, %p106
    %p108 = scmp.ne.s32.totalorder %s97, %s98
    %p109 = scmp.eq.s32.totalorder %s14, 0
    %p110 = por %p108, %p109
    %p111 = scmp.ne.s32.totalorder %s97, %s98
    %p112 = scmp.eq.s32.totalorder %s15, 1
    %p113 = por %p111, %p112
    %p115 = scmp.ne.s32.totalorder %s98, %s114
    %p116 = scmp.eq.s32.totalorder %s15, 0
    %p117 = por %p115, %p116
    %s118 = ssub.s32 %s16, %s35
    %s119 = ssub.s32 %s17, %s31
    %s120 = sor.u32 %s118, %s119
    %p121 = scmp.eq.s32.totalorder %s120, 0
    %s123 = sadd.s32 %s122, 1
    %s124 = scalar_select %p121, %s122, %s123
    %p127 = pneg %p121
    %p128 = scmp.eq.s32.totalorder %s9, 1
    %p129 = por %p127, %p128
    %p130 = scmp.ne.s32.totalorder %s122, %s125
    %p131 = scmp.eq.s32.totalorder %s9, 0
    %p132 = por %p130, %p131
    %p133 = scmp.ne.s32.totalorder %s122, %s125
    %p134 = scmp.eq.s32.totalorder %s14, 1
    %p135 = por %p133, %p134
    %p136 = scmp.ne.s32.totalorder %s125, %s126
    %p137 = scmp.eq.s32.totalorder %s14, 0
    %p138 = por %p136, %p137
    %p139 = scmp.ne.s32.totalorder %s125, %s126
    %p140 = scmp.eq.s32.totalorder %s15, 1
    %p141 = por %p139, %p140
    %p143 = scmp.ne.s32.totalorder %s126, %s142
    %p144 = scmp.eq.s32.totalorder %s15, 0
    %p145 = por %p143, %p144
    %p146 = scmp.le.s32.totalorder 1, %s9
    %p147 = scmp.lt.s32.totalorder %s9, 3
    %p148 = pnand %p146, %p147
    %p149 = pneg %p148
    // Predicated region
    $region9: #{fwd.8} parent=5 // pred_check
      _
    $region10: #{fwd.8} parent=5 // pred_check_branch
      %151 = sbr.rel (%p148) target = $region12
    $region11: #{fwd.8} parent=5 // pred_region
      %s152 = ssub.s32 %s9, 1
      // Predicated region
      $region13: #{fwd.8} parent=11 // pred_check
        %p153 = pneg %p84
      $region14: #{fwd.8} parent=11 // pred_check_branch
        %155 = sbr.rel (%p153) target = $region16
      $region15: #{fwd.8} parent=11 // pred_region
        %s156 = smul.u32 16, %s21
        %p157 = scmp.lt.s32.totalorder %s156, 15
        %s158 = scalar_select %p157, %s156, 15
        %p159 = scmp.lt.s32.totalorder %s20, 0
        %s160 = scalar_select %p159, %s20, 0
        %s161 = sadd.s32 %s160, %s158
        %s162 = smul.addr %s161, 8
        %s163 = scalar_lea.vmem %s1, %s162
        %s164 = smul.u32 16, %s21
      $region16: #{fwd.8} parent=11 // pred_fallthru
        _
      // Predicated region
      $region17: #{fwd.8} parent=11 // pred_check
        %p165 = pneg %p110
      $region18: #{fwd.8} parent=11 // pred_check_branch
        %167 = sbr.rel (%p165) target = $region20
      $region19: #{fwd.8} parent=11 // pred_region
        %p168 = scmp.lt.s32.totalorder %s20, 0
        %s169 = scalar_select %p168, %s20, 0
        %s170 = scalar_lea.vmem %s2, %s169
      $region20: #{fwd.8} parent=11 // pred_fallthru
        _
    $region12: #{fwd.8} parent=5 // pred_fallthru
      _
    %p171 = scmp.lt.s32.totalorder %s9, 2
    // Predicated region
    $region21: #{fwd.8} parent=5 // pred_check
      %p172 = pneg %p171
    $region22: #{fwd.8} parent=5 // pred_check_branch
      %174 = sbr.rel (%p172) target = $region24
    $region23: #{fwd.8} parent=5 // pred_region
      // Predicated region
      $region25: #{fwd.8} parent=23 // pred_check
        %p175 = pneg %p50
      $region26: #{fwd.8} parent=23 // pred_check_branch
        %177 = sbr.rel (%p175) target = $region28
      $region27: #{fwd.8} parent=23 // pred_region
        %s178 = smul.u32 32, %s16
        %p179 = scmp.lt.s32.totalorder %s178, 63
        %s180 = scalar_select %p179, %s178, 63
        %p181 = scmp.lt.s32.totalorder %s18, 0
        %s182 = scalar_select %p181, %s18, 0
        %s183 = sadd.s32 %s182, %s180
        %s184 = smul.addr %s183, 8
        %s185 = scalar_lea.vmem %s0, %s184
        %s186 = smul.u32 32, %s16
      $region28: #{fwd.8} parent=23 // pred_fallthru
        _
    $region24: #{fwd.8} parent=5 // pred_fallthru
      _
    %p187 = scmp.le.s32.totalorder 1, %s9
    %p188 = scmp.lt.s32.totalorder %s9, 3
    %p189 = pnand %p187, %p188
    %p190 = pneg %p189
    // Predicated region
    $region29: #{fwd.8} parent=5 // pred_check
      _
    $region30: #{fwd.8} parent=5 // pred_check_branch
      %192 = sbr.rel (%p189) target = $region32
    $region31: #{fwd.8} parent=5 // pred_region
      %s193 = ssub.s32 %s9, 1
      %s194 = smul.u32 32, %s19
      %p195 = scmp.lt.s32.totalorder %s194, 63
      %s196 = scalar_select %p195, %s194, 63
      %p197 = scmp.lt.s32.totalorder %s21, 0
      %s198 = scalar_select %p197, %s21, 0
      %s199 = sadd.s32 %s198, %s196
      %s200 = smul.addr %s199, 8
      %s201 = scalar_lea.vmem %s0, %s200
      %p202 = pneg %p56
      %p203 = pneg %p53
      %s204 = smul.u32 16, %s21
      %p205 = scmp.lt.s32.totalorder %s204, 15
      %s206 = scalar_select %p205, %s204, 15
      %p207 = scmp.lt.s32.totalorder %s20, 0
      %s208 = scalar_select %p207, %s20, 0
      %s209 = sadd.s32 %s208, %s206
      %s210 = smul.addr %s209, 8
      %s211 = scalar_lea.vmem %s1, %s210
      %p212 = pneg %p84
      %p213 = pneg %p81
      %p214 = scmp.lt.s32.totalorder %s20, 0
      %s215 = scalar_select %p214, %s20, 0
      %s216 = scalar_lea.vmem %s2, %s215
      %p217 = pneg %p110
      %p218 = pneg %p107
      %p219 = pneg %p138
      %p220 = pneg %p135
      %s221 = smul.u32 32, %s19
      %p222 = scmp.lt.s32.totalorder %s221, 63
      %s223 = scalar_select %p222, %s221, 63
      %p224 = scmp.lt.s32.totalorder %s20, 0
      %s225 = scalar_select %p224, %s20, 0
      %s226 = sadd.s32 %s225, %s223
      %s227 = smul.addr %s226, 8
      %s228 = scalar_lea.vmem %s3, %s227
      %s229 = smul.u32 32, %s19
      %p230 = scmp.lt.s32.totalorder %s229, 63
      %s231 = scalar_select %p230, %s229, 63
      %p232 = scmp.lt.s32.totalorder %s21, 0
      %s233 = scalar_select %p232, %s21, 0
      %s234 = sadd.s32 %s233, %s231
      %s235 = smul.addr %s234, 8
      %s236 = scalar_lea.vmem %s0, %s235
      %s237 = smul.u32 32, %s19
      %s238 = smul.u32 16, %s21
      %p239 = scmp.lt.s32.totalorder %s238, 15
      %s240 = scalar_select %p239, %s238, 15
      %p241 = scmp.lt.s32.totalorder %s20, 0
      %s242 = scalar_select %p241, %s20, 0
      %s243 = sadd.s32 %s242, %s240
      %s244 = smul.addr %s243, 8
      %s245 = scalar_lea.vmem %s1, %s244
      %s246 = smul.u32 16, %s21
      %p247 = scmp.lt.s32.totalorder %s20, 0
      %s248 = scalar_select %p247, %s20, 0
      %s249 = scalar_lea.vmem %s2, %s248
      %s250 = smul.u32 32, %s19
      %p251 = scmp.lt.s32.totalorder %s250, 63
      %s252 = scalar_select %p251, %s250, 63
      %p253 = scmp.lt.s32.totalorder %s20, 0
      %s254 = scalar_select %p253, %s20, 0
      %s255 = sadd.s32 %s254, %s252
      %s256 = smul.addr %s255, 8
      %s257 = scalar_lea.vmem %s3, %s256
      %s258 = smul.u32 32, %s19
      %v259 = vld [vmem:[%s236] sm:$0xff]
      %v260 = vld [vmem:[%s236 + $0x8] sm:$0xff]
      %v261 = vld [vmem:[%s236 + $0x10] sm:$0xff]
      %v262 = vld [vmem:[%s236 + $0x18] sm:$0xff]
      %v263 = vld [vmem:[%s236 + $0x20] sm:$0xff]
      %v264 = vld [vmem:[%s236 + $0x28] sm:$0xff]
      %v265 = vld [vmem:[%s236 + $0x30] sm:$0xff]
      %v266 = vld [vmem:[%s236 + $0x38] sm:$0xff]
      %v267 = vld [vmem:[%s236 + $0x40] sm:$0xff]
      %v268 = vld [vmem:[%s236 + $0x48] sm:$0xff]
      %v269 = vld [vmem:[%s236 + $0x50] sm:$0xff]
      %v270 = vld [vmem:[%s236 + $0x58] sm:$0xff]
      %v271 = vld [vmem:[%s236 + $0x60] sm:$0xff]
      %v272 = vld [vmem:[%s236 + $0x68] sm:$0xff]
      %v273 = vld [vmem:[%s236 + $0x70] sm:$0xff]
      %v274 = vld [vmem:[%s236 + $0x78] sm:$0xff]
      %v275 = vld [vmem:[%s236 + $0x80] sm:$0xff]
      %v276 = vld [vmem:[%s236 + $0x88] sm:$0xff]
      %v277 = vld [vmem:[%s236 + $0x90] sm:$0xff]
      %v278 = vld [vmem:[%s236 + $0x98] sm:$0xff]
      %v279 = vld [vmem:[%s236 + $0xa0] sm:$0xff]
      %v280 = vld [vmem:[%s236 + $0xa8] sm:$0xff]
      %v281 = vld [vmem:[%s236 + $0xb0] sm:$0xff]
      %v282 = vld [vmem:[%s236 + $0xb8] sm:$0xff]
      %v283 = vld [vmem:[%s236 + $0xc0] sm:$0xff]
      %v284 = vld [vmem:[%s236 + $0xc8] sm:$0xff]
      %v285 = vld [vmem:[%s236 + $0xd0] sm:$0xff]
      %v286 = vld [vmem:[%s236 + $0xd8] sm:$0xff]
      %v287 = vld [vmem:[%s236 + $0xe0] sm:$0xff]
      %v288 = vld [vmem:[%s236 + $0xe8] sm:$0xff]
      %v289 = vld [vmem:[%s236 + $0xf0] sm:$0xff]
      %v290 = vld [vmem:[%s236 + $0xf8] sm:$0xff]
      %p291 = scmp.eq.s32.totalorder %s21, 0
      // Predicated region
      $region33: #{fwd.8} parent=31 // pred_check
        %p292 = pneg %p291
      $region34: #{fwd.8} parent=31 // pred_check_branch
        %294 = sbr.rel (%p292) target = $region36
      $region35: #{fwd.8} parent=31 // pred_region
        %295 = vst [vmem:[%s257] sm:$0xff] 0.0
        %296 = vst [vmem:[%s257 + $0x8] sm:$0xff] 0.0
        %297 = vst [vmem:[%s257 + $0x10] sm:$0xff] 0.0
        %298 = vst [vmem:[%s257 + $0x18] sm:$0xff] 0.0
        %299 = vst [vmem:[%s257 + $0x20] sm:$0xff] 0.0
        %300 = vst [vmem:[%s257 + $0x28] sm:$0xff] 0.0
        %301 = vst [vmem:[%s257 + $0x30] sm:$0xff] 0.0
        %302 = vst [vmem:[%s257 + $0x38] sm:$0xff] 0.0
        %303 = vst [vmem:[%s257 + $0x40] sm:$0xff] 0.0
        %304 = vst [vmem:[%s257 + $0x48] sm:$0xff] 0.0
        %305 = vst [vmem:[%s257 + $0x50] sm:$0xff] 0.0
        %306 = vst [vmem:[%s257 + $0x58] sm:$0xff] 0.0
        %307 = vst [vmem:[%s257 + $0x60] sm:$0xff] 0.0
        %308 = vst [vmem:[%s257 + $0x68] sm:$0xff] 0.0
        %309 = vst [vmem:[%s257 + $0x70] sm:$0xff] 0.0
        %310 = vst [vmem:[%s257 + $0x78] sm:$0xff] 0.0
        %311 = vst [vmem:[%s257 + $0x80] sm:$0xff] 0.0
        %312 = vst [vmem:[%s257 + $0x88] sm:$0xff] 0.0
        %313 = vst [vmem:[%s257 + $0x90] sm:$0xff] 0.0
        %314 = vst [vmem:[%s257 + $0x98] sm:$0xff] 0.0
        %315 = vst [vmem:[%s257 + $0xa0] sm:$0xff] 0.0
        %316 = vst [vmem:[%s257 + $0xa8] sm:$0xff] 0.0
        %317 = vst [vmem:[%s257 + $0xb0] sm:$0xff] 0.0
        %318 = vst [vmem:[%s257 + $0xb8] sm:$0xff] 0.0
        %319 = vst [vmem:[%s257 + $0xc0] sm:$0xff] 0.0
        %320 = vst [vmem:[%s257 + $0xc8] sm:$0xff] 0.0
        %321 = vst [vmem:[%s257 + $0xd0] sm:$0xff] 0.0
        %322 = vst [vmem:[%s257 + $0xd8] sm:$0xff] 0.0
        %323 = vst [vmem:[%s257 + $0xe0] sm:$0xff] 0.0
        %324 = vst [vmem:[%s257 + $0xe8] sm:$0xff] 0.0
        %325 = vst [vmem:[%s257 + $0xf0] sm:$0xff] 0.0
        %326 = vst [vmem:[%s257 + $0xf8] sm:$0xff] 0.0
      $region36: #{fwd.8} parent=31 // pred_fallthru
        _
      %v327 = vld [vmem:[%s257] sm:$0xff]
      %v328 = vld [vmem:[%s257 + $0x8] sm:$0xff]
      %v329 = vld [vmem:[%s257 + $0x10] sm:$0xff]
      %v330 = vld [vmem:[%s257 + $0x18] sm:$0xff]
      %v331 = vld [vmem:[%s257 + $0x20] sm:$0xff]
      %v332 = vld [vmem:[%s257 + $0x28] sm:$0xff]
      %v333 = vld [vmem:[%s257 + $0x30] sm:$0xff]
      %v334 = vld [vmem:[%s257 + $0x38] sm:$0xff]
      %v335 = vld [vmem:[%s257 + $0x40] sm:$0xff]
      %v336 = vld [vmem:[%s257 + $0x48] sm:$0xff]
      %v337 = vld [vmem:[%s257 + $0x50] sm:$0xff]
      %v338 = vld [vmem:[%s257 + $0x58] sm:$0xff]
      %v339 = vld [vmem:[%s257 + $0x60] sm:$0xff]
      %v340 = vld [vmem:[%s257 + $0x68] sm:$0xff]
      %v341 = vld [vmem:[%s257 + $0x70] sm:$0xff]
      %v342 = vld [vmem:[%s257 + $0x78] sm:$0xff]
      %v343 = vld [vmem:[%s257 + $0x80] sm:$0xff]
      %v344 = vld [vmem:[%s257 + $0x88] sm:$0xff]
      %v345 = vld [vmem:[%s257 + $0x90] sm:$0xff]
      %v346 = vld [vmem:[%s257 + $0x98] sm:$0xff]
      %v347 = vld [vmem:[%s257 + $0xa0] sm:$0xff]
      %v348 = vld [vmem:[%s257 + $0xa8] sm:$0xff]
      %v349 = vld [vmem:[%s257 + $0xb0] sm:$0xff]
      %v350 = vld [vmem:[%s257 + $0xb8] sm:$0xff]
      %v351 = vld [vmem:[%s257 + $0xc0] sm:$0xff]
      %v352 = vld [vmem:[%s257 + $0xc8] sm:$0xff]
      %v353 = vld [vmem:[%s257 + $0xd0] sm:$0xff]
      %v354 = vld [vmem:[%s257 + $0xd8] sm:$0xff]
      %v355 = vld [vmem:[%s257 + $0xe0] sm:$0xff]
      %v356 = vld [vmem:[%s257 + $0xe8] sm:$0xff]
      %v357 = vld [vmem:[%s257 + $0xf0] sm:$0xff]
      %v358 = vld [vmem:[%s257 + $0xf8] sm:$0xff]
      %v359 = vld [vmem:[%s245] sm:$0xff]
      %v360 = vld [vmem:[%s245 + $0x8] sm:$0xff]
      %v361 = vld [vmem:[%s245 + $0x10] sm:$0xff]
      %v362 = vld [vmem:[%s245 + $0x18] sm:$0xff]
      %v363 = vld [vmem:[%s245 + $0x20] sm:$0xff]
      %v364 = vld [vmem:[%s245 + $0x28] sm:$0xff]
      %v365 = vld [vmem:[%s245 + $0x30] sm:$0xff]
      %v366 = vld [vmem:[%s245 + $0x38] sm:$0xff]
      %v367 = vld [vmem:[%s245 + $0x40] sm:$0xff]
      %v368 = vld [vmem:[%s245 + $0x48] sm:$0xff]
      %v369 = vld [vmem:[%s245 + $0x50] sm:$0xff]
      %v370 = vld [vmem:[%s245 + $0x58] sm:$0xff]
      %v371 = vld [vmem:[%s245 + $0x60] sm:$0xff]
      %v372 = vld [vmem:[%s245 + $0x68] sm:$0xff]
      %v373 = vld [vmem:[%s245 + $0x70] sm:$0xff]
      %v374 = vld [vmem:[%s245 + $0x78] sm:$0xff]
      %375 = vmatprep.subr.mxu0 0.0
      %376 = vmatpush1.msra.mxu0 %v374
      %377 = vmatprep.subr.mxu0 0.0
      %378 = vmatpush1.msra.mxu0 %v373
      %379 = vmatprep.subr.mxu0 0.0
      %380 = vmatpush1.msra.mxu0 %v372
      %381 = vmatprep.subr.mxu0 0.0
      %382 = vmatpush1.msra.mxu0 %v371
      %383 = vmatprep.subr.mxu0 0.0
      %384 = vmatpush1.msra.mxu0 %v370
      %385 = vmatprep.subr.mxu0 0.0
      %386 = vmatpush1.msra.mxu0 %v369
      %387 = vmatprep.subr.mxu0 0.0
      %388 = vmatpush1.msra.mxu0 %v368
      %389 = vmatprep.subr.mxu0 0.0
      %390 = vmatpush1.msra.mxu0 %v367
      %391 = vmatprep.subr.mxu0 0.0
      %392 = vmatpush1.msra.mxu0 %v366
      %393 = vmatprep.subr.mxu0 0.0
      %394 = vmatpush1.msra.mxu0 %v365
      %395 = vmatprep.subr.mxu0 0.0
      %396 = vmatpush1.msra.mxu0 %v364
      %397 = vmatprep.subr.mxu0 0.0
      %398 = vmatpush1.msra.mxu0 %v363
      %399 = vmatprep.subr.mxu0 0.0
      %400 = vmatpush1.msra.mxu0 %v362
      %401 = vmatprep.subr.mxu0 0.0
      %402 = vmatpush1.msra.mxu0 %v361
      %403 = vmatprep.subr.mxu0 0.0
      %404 = vmatpush1.msra.mxu0 %v360
      %405 = vmatprep.subr.mxu0 0.0
      %406 = vmatpush1.msra.mxu0 %v359
      %407 = vmatprep.subr.mxu0 0.0
      %408 = vmatpush2.msra.mxu0 0.0
      %409 = vmatprep.subr.mxu0 0.0
      %410 = vmatpush2.msra.mxu0 0.0
      %411 = vmatprep.subr.mxu0 0.0
      %412 = vmatpush2.msra.mxu0 0.0
      %413 = vmatprep.subr.mxu0 0.0
      %414 = vmatpush2.msra.mxu0 0.0
      %415 = vmatprep.subr.mxu0 0.0
      %416 = vmatpush2.msra.mxu0 0.0
      %417 = vmatprep.subr.mxu0 0.0
      %418 = vmatpush2.msra.mxu0 0.0
      %419 = vmatprep.subr.mxu0 0.0
      %420 = vmatpush2.msra.mxu0 0.0
      %421 = vmatprep.subr.mxu0 0.0
      %422 = vmatpush2.msra.mxu0 0.0
      %423 = vmatprep.subr.mxu0 0.0
      %424 = vmatpush2.msra.mxu0 0.0
      %425 = vmatprep.subr.mxu0 0.0
      %426 = vmatpush2.msra.mxu0 0.0
      %427 = vmatprep.subr.mxu0 0.0
      %428 = vmatpush2.msra.mxu0 0.0
      %429 = vmatprep.subr.mxu0 0.0
      %430 = vmatpush2.msra.mxu0 0.0
      %431 = vmatprep.subr.mxu0 0.0
      %432 = vmatpush2.msra.mxu0 0.0
      %433 = vmatprep.subr.mxu0 0.0
      %434 = vmatpush2.msra.mxu0 0.0
      %435 = vmatprep.subr.mxu0 0.0
      %436 = vmatpush2.msra.mxu0 0.0
      %437 = vmatprep.subr.mxu0 0.0
      %438 = vmatpush2.msra.mxu0 0.0
      %439 = vmatprep.mubr.f32.mxu0 0.0
      %440 = vmatmul.mubr.f32.gmra.mxu0 %v259
      %v441 = vpop.f32.mrf.mxu0
      %v442 = vadd.f32 0.0, %v441
      %v443 = vpop.f32.mrf.mxu0
      %444 = vmatprep.mubr.f32.mxu0 0.0
      %445 = vmatmul.mubr.f32.gmra.mxu0 %v260
      %v446 = vpop.f32.mrf.mxu0
      %v447 = vadd.f32 0.0, %v446
      %v448 = vpop.f32.mrf.mxu0
      %449 = vmatprep.mubr.f32.mxu0 0.0
      %450 = vmatmul.mubr.f32.gmra.mxu0 %v261
      %v451 = vpop.f32.mrf.mxu0
      %v452 = vadd.f32 0.0, %v451
      %v453 = vpop.f32.mrf.mxu0
      %454 = vmatprep.mubr.f32.mxu0 0.0
      %455 = vmatmul.mubr.f32.gmra.mxu0 %v262
      %v456 = vpop.f32.mrf.mxu0
      %v457 = vadd.f32 0.0, %v456
      %v458 = vpop.f32.mrf.mxu0
      %459 = vmatprep.mubr.f32.mxu0 0.0
      %460 = vmatmul.mubr.f32.gmra.mxu0 %v263
      %v461 = vpop.f32.mrf.mxu0
      %v462 = vadd.f32 0.0, %v461
      %v463 = vpop.f32.mrf.mxu0
      %464 = vmatprep.mubr.f32.mxu0 0.0
      %465 = vmatmul.mubr.f32.gmra.mxu0 %v264
      %v466 = vpop.f32.mrf.mxu0
      %v467 = vadd.f32 0.0, %v466
      %v468 = vpop.f32.mrf.mxu0
      %469 = vmatprep.mubr.f32.mxu0 0.0
      %470 = vmatmul.mubr.f32.gmra.mxu0 %v265
      %v471 = vpop.f32.mrf.mxu0
      %v472 = vadd.f32 0.0, %v471
      %v473 = vpop.f32.mrf.mxu0
      %474 = vmatprep.mubr.f32.mxu0 0.0
      %475 = vmatmul.mubr.f32.gmra.mxu0 %v266
      %v476 = vpop.f32.mrf.mxu0
      %v477 = vadd.f32 0.0, %v476
      %v478 = vpop.f32.mrf.mxu0
      %479 = vmatprep.mubr.f32.mxu0 0.0
      %480 = vmatmul.mubr.f32.gmra.mxu0 %v267
      %v481 = vpop.f32.mrf.mxu0
      %v482 = vadd.f32 0.0, %v481
      %v483 = vpop.f32.mrf.mxu0
      %484 = vmatprep.mubr.f32.mxu0 0.0
      %485 = vmatmul.mubr.f32.gmra.mxu0 %v268
      %v486 = vpop.f32.mrf.mxu0
      %v487 = vadd.f32 0.0, %v486
      %v488 = vpop.f32.mrf.mxu0
      %489 = vmatprep.mubr.f32.mxu0 0.0
      %490 = vmatmul.mubr.f32.gmra.mxu0 %v269
      %v491 = vpop.f32.mrf.mxu0
      %v492 = vadd.f32 0.0, %v491
      %v493 = vpop.f32.mrf.mxu0
      %494 = vmatprep.mubr.f32.mxu0 0.0
      %495 = vmatmul.mubr.f32.gmra.mxu0 %v270
      %v496 = vpop.f32.mrf.mxu0
      %v497 = vadd.f32 0.0, %v496
      %v498 = vpop.f32.mrf.mxu0
      %499 = vmatprep.mubr.f32.mxu0 0.0
      %500 = vmatmul.mubr.f32.gmra.mxu0 %v271
      %v501 = vpop.f32.mrf.mxu0
      %v502 = vadd.f32 0.0, %v501
      %v503 = vpop.f32.mrf.mxu0
      %504 = vmatprep.mubr.f32.mxu0 0.0
      %505 = vmatmul.mubr.f32.gmra.mxu0 %v272
      %v506 = vpop.f32.mrf.mxu0
      %v507 = vadd.f32 0.0, %v506
      %v508 = vpop.f32.mrf.mxu0
      %509 = vmatprep.mubr.f32.mxu0 0.0
      %510 = vmatmul.mubr.f32.gmra.mxu0 %v273
      %v511 = vpop.f32.mrf.mxu0
      %v512 = vadd.f32 0.0, %v511
      %v513 = vpop.f32.mrf.mxu0
      %514 = vmatprep.mubr.f32.mxu0 0.0
      %515 = vmatmul.mubr.f32.gmra.mxu0 %v274
      %v516 = vpop.f32.mrf.mxu0
      %v517 = vadd.f32 0.0, %v516
      %v518 = vpop.f32.mrf.mxu0
      %519 = vmatprep.mubr.f32.mxu0 0.0
      %520 = vmatmul.mubr.f32.gmra.mxu0 %v275
      %v521 = vpop.f32.mrf.mxu0
      %v522 = vadd.f32 0.0, %v521
      %v523 = vpop.f32.mrf.mxu0
      %524 = vmatprep.mubr.f32.mxu0 0.0
      %525 = vmatmul.mubr.f32.gmra.mxu0 %v276
      %v526 = vpop.f32.mrf.mxu0
      %v527 = vadd.f32 0.0, %v526
      %v528 = vpop.f32.mrf.mxu0
      %529 = vmatprep.mubr.f32.mxu0 0.0
      %530 = vmatmul.mubr.f32.gmra.mxu0 %v277
      %v531 = vpop.f32.mrf.mxu0
      %v532 = vadd.f32 0.0, %v531
      %v533 = vpop.f32.mrf.mxu0
      %534 = vmatprep.mubr.f32.mxu0 0.0
      %535 = vmatmul.mubr.f32.gmra.mxu0 %v278
      %v536 = vpop.f32.mrf.mxu0
      %v537 = vadd.f32 0.0, %v536
      %v538 = vpop.f32.mrf.mxu0
      %539 = vmatprep.mubr.f32.mxu0 0.0
      %540 = vmatmul.mubr.f32.gmra.mxu0 %v279
      %v541 = vpop.f32.mrf.mxu0
      %v542 = vadd.f32 0.0, %v541
      %v543 = vpop.f32.mrf.mxu0
      %544 = vmatprep.mubr.f32.mxu0 0.0
      %545 = vmatmul.mubr.f32.gmra.mxu0 %v280
      %v546 = vpop.f32.mrf.mxu0
      %v547 = vadd.f32 0.0, %v546
      %v548 = vpop.f32.mrf.mxu0
      %549 = vmatprep.mubr.f32.mxu0 0.0
      %550 = vmatmul.mubr.f32.gmra.mxu0 %v281
      %v551 = vpop.f32.mrf.mxu0
      %v552 = vadd.f32 0.0, %v551
      %v553 = vpop.f32.mrf.mxu0
      %554 = vmatprep.mubr.f32.mxu0 0.0
      %555 = vmatmul.mubr.f32.gmra.mxu0 %v282
      %v556 = vpop.f32.mrf.mxu0
      %v557 = vadd.f32 0.0, %v556
      %v558 = vpop.f32.mrf.mxu0
      %559 = vmatprep.mubr.f32.mxu0 0.0
      %560 = vmatmul.mubr.f32.gmra.mxu0 %v283
      %v561 = vpop.f32.mrf.mxu0
      %v562 = vadd.f32 0.0, %v561
      %v563 = vpop.f32.mrf.mxu0
      %564 = vmatprep.mubr.f32.mxu0 0.0
      %565 = vmatmul.mubr.f32.gmra.mxu0 %v284
      %v566 = vpop.f32.mrf.mxu0
      %v567 = vadd.f32 0.0, %v566
      %v568 = vpop.f32.mrf.mxu0
      %569 = vmatprep.mubr.f32.mxu0 0.0
      %570 = vmatmul.mubr.f32.gmra.mxu0 %v285
      %v571 = vpop.f32.mrf.mxu0
      %v572 = vadd.f32 0.0, %v571
      %v573 = vpop.f32.mrf.mxu0
      %574 = vmatprep.mubr.f32.mxu0 0.0
      %575 = vmatmul.mubr.f32.gmra.mxu0 %v286
      %v576 = vpop.f32.mrf.mxu0
      %v577 = vadd.f32 0.0, %v576
      %v578 = vpop.f32.mrf.mxu0
      %579 = vmatprep.mubr.f32.mxu0 0.0
      %580 = vmatmul.mubr.f32.gmra.mxu0 %v287
      %v581 = vpop.f32.mrf.mxu0
      %v582 = vadd.f32 0.0, %v581
      %v583 = vpop.f32.mrf.mxu0
      %584 = vmatprep.mubr.f32.mxu0 0.0
      %585 = vmatmul.mubr.f32.gmra.mxu0 %v288
      %v586 = vpop.f32.mrf.mxu0
      %v587 = vadd.f32 0.0, %v586
      %v588 = vpop.f32.mrf.mxu0
      %589 = vmatprep.mubr.f32.mxu0 0.0
      %590 = vmatmul.mubr.f32.gmra.mxu0 %v289
      %v591 = vpop.f32.mrf.mxu0
      %v592 = vadd.f32 0.0, %v591
      %v593 = vpop.f32.mrf.mxu0
      %594 = vmatprep.mubr.f32.mxu0 0.0
      %595 = vmatmul.mubr.f32.gmra.mxu0 %v290
      %v596 = vpop.f32.mrf.mxu0
      %v597 = vadd.f32 0.0, %v596
      %v598 = vpop.f32.mrf.mxu0
      %599 = vdwg.mxu0
      %v600 = vadd.f32 %v327, %v442
      %v601 = vadd.f32 %v328, %v447
      %v602 = vadd.f32 %v329, %v452
      %v603 = vadd.f32 %v330, %v457
      %v604 = vadd.f32 %v331, %v462
      %v605 = vadd.f32 %v332, %v467
      %v606 = vadd.f32 %v333, %v472
      %v607 = vadd.f32 %v334, %v477
      %v608 = vadd.f32 %v335, %v482
      %v609 = vadd.f32 %v336, %v487
      %v610 = vadd.f32 %v337, %v492
      %v611 = vadd.f32 %v338, %v497
      %v612 = vadd.f32 %v339, %v502
      %v613 = vadd.f32 %v340, %v507
      %v614 = vadd.f32 %v341, %v512
      %v615 = vadd.f32 %v342, %v517
      %v616 = vadd.f32 %v343, %v522
      %v617 = vadd.f32 %v344, %v527
      %v618 = vadd.f32 %v345, %v532
      %v619 = vadd.f32 %v346, %v537
      %v620 = vadd.f32 %v347, %v542
      %v621 = vadd.f32 %v348, %v547
      %v622 = vadd.f32 %v349, %v552
      %v623 = vadd.f32 %v350, %v557
      %v624 = vadd.f32 %v351, %v562
      %v625 = vadd.f32 %v352, %v567
      %v626 = vadd.f32 %v353, %v572
      %v627 = vadd.f32 %v354, %v577
      %v628 = vadd.f32 %v355, %v582
      %v629 = vadd.f32 %v356, %v587
      %v630 = vadd.f32 %v357, %v592
      %v631 = vadd.f32 %v358, %v597
      %632 = vst [vmem:[%s257] sm:$0xff] %v600
      %633 = vst [vmem:[%s257 + $0x8] sm:$0xff] %v601
      %634 = vst [vmem:[%s257 + $0x10] sm:$0xff] %v602
      %635 = vst [vmem:[%s257 + $0x18] sm:$0xff] %v603
      %636 = vst [vmem:[%s257 + $0x20] sm:$0xff] %v604
      %637 = vst [vmem:[%s257 + $0x28] sm:$0xff] %v605
      %638 = vst [vmem:[%s257 + $0x30] sm:$0xff] %v606
      %639 = vst [vmem:[%s257 + $0x38] sm:$0xff] %v607
      %640 = vst [vmem:[%s257 + $0x40] sm:$0xff] %v608
      %641 = vst [vmem:[%s257 + $0x48] sm:$0xff] %v609
      %642 = vst [vmem:[%s257 + $0x50] sm:$0xff] %v610
      %643 = vst [vmem:[%s257 + $0x58] sm:$0xff] %v611
      %644 = vst [vmem:[%s257 + $0x60] sm:$0xff] %v612
      %645 = vst [vmem:[%s257 + $0x68] sm:$0xff] %v613
      %646 = vst [vmem:[%s257 + $0x70] sm:$0xff] %v614
      %647 = vst [vmem:[%s257 + $0x78] sm:$0xff] %v615
      %648 = vst [vmem:[%s257 + $0x80] sm:$0xff] %v616
      %649 = vst [vmem:[%s257 + $0x88] sm:$0xff] %v617
      %650 = vst [vmem:[%s257 + $0x90] sm:$0xff] %v618
      %651 = vst [vmem:[%s257 + $0x98] sm:$0xff] %v619
      %652 = vst [vmem:[%s257 + $0xa0] sm:$0xff] %v620
      %653 = vst [vmem:[%s257 + $0xa8] sm:$0xff] %v621
      %654 = vst [vmem:[%s257 + $0xb0] sm:$0xff] %v622
      %655 = vst [vmem:[%s257 + $0xb8] sm:$0xff] %v623
      %656 = vst [vmem:[%s257 + $0xc0] sm:$0xff] %v624
      %657 = vst [vmem:[%s257 + $0xc8] sm:$0xff] %v625
      %658 = vst [vmem:[%s257 + $0xd0] sm:$0xff] %v626
      %659 = vst [vmem:[%s257 + $0xd8] sm:$0xff] %v627
      %660 = vst [vmem:[%s257 + $0xe0] sm:$0xff] %v628
      %661 = vst [vmem:[%s257 + $0xe8] sm:$0xff] %v629
      %662 = vst [vmem:[%s257 + $0xf0] sm:$0xff] %v630
      %663 = vst [vmem:[%s257 + $0xf8] sm:$0xff] %v631
      // Predicated region
      $region37: #{fwd.8} parent=31 // pred_check
        %p664 = pneg %p291
      $region38: #{fwd.8} parent=31 // pred_check_branch
        %666 = sbr.rel (%p664) target = $region40
      $region39: #{fwd.8} parent=31 // pred_region
        %v667 = vld [vmem:[%s257] sm:$0xff]
        %v668 = vld [vmem:[%s257 + $0x8] sm:$0xff]
        %v669 = vld [vmem:[%s257 + $0x10] sm:$0xff]
        %v670 = vld [vmem:[%s257 + $0x18] sm:$0xff]
        %v671 = vld [vmem:[%s257 + $0x20] sm:$0xff]
        %v672 = vld [vmem:[%s257 + $0x28] sm:$0xff]
        %v673 = vld [vmem:[%s257 + $0x30] sm:$0xff]
        %v674 = vld [vmem:[%s257 + $0x38] sm:$0xff]
        %v675 = vld [vmem:[%s257 + $0x40] sm:$0xff]
        %v676 = vld [vmem:[%s257 + $0x48] sm:$0xff]
        %v677 = vld [vmem:[%s257 + $0x50] sm:$0xff]
        %v678 = vld [vmem:[%s257 + $0x58] sm:$0xff]
        %v679 = vld [vmem:[%s257 + $0x60] sm:$0xff]
        %v680 = vld [vmem:[%s257 + $0x68] sm:$0xff]
        %v681 = vld [vmem:[%s257 + $0x70] sm:$0xff]
        %v682 = vld [vmem:[%s257 + $0x78] sm:$0xff]
        %v683 = vld [vmem:[%s257 + $0x80] sm:$0xff]
        %v684 = vld [vmem:[%s257 + $0x88] sm:$0xff]
        %v685 = vld [vmem:[%s257 + $0x90] sm:$0xff]
        %v686 = vld [vmem:[%s257 + $0x98] sm:$0xff]
        %v687 = vld [vmem:[%s257 + $0xa0] sm:$0xff]
        %v688 = vld [vmem:[%s257 + $0xa8] sm:$0xff]
        %v689 = vld [vmem:[%s257 + $0xb0] sm:$0xff]
        %v690 = vld [vmem:[%s257 + $0xb8] sm:$0xff]
        %v691 = vld [vmem:[%s257 + $0xc0] sm:$0xff]
        %v692 = vld [vmem:[%s257 + $0xc8] sm:$0xff]
        %v693 = vld [vmem:[%s257 + $0xd0] sm:$0xff]
        %v694 = vld [vmem:[%s257 + $0xd8] sm:$0xff]
        %v695 = vld [vmem:[%s257 + $0xe0] sm:$0xff]
        %v696 = vld [vmem:[%s257 + $0xe8] sm:$0xff]
        %v697 = vld [vmem:[%s257 + $0xf0] sm:$0xff]
        %v698 = vld [vmem:[%s257 + $0xf8] sm:$0xff]
        %v699 = vmul.f32 %v667, 0.17677669
        %v700 = vmul.f32 %v668, 0.17677669
        %v701 = vmul.f32 %v669, 0.17677669
        %v702 = vmul.f32 %v670, 0.17677669
        %v703 = vmul.f32 %v671, 0.17677669
        %v704 = vmul.f32 %v672, 0.17677669
        %v705 = vmul.f32 %v673, 0.17677669
        %v706 = vmul.f32 %v674, 0.17677669
        %v707 = vmul.f32 %v675, 0.17677669
        %v708 = vmul.f32 %v676, 0.17677669
        %v709 = vmul.f32 %v677, 0.17677669
        %v710 = vmul.f32 %v678, 0.17677669
        %v711 = vmul.f32 %v679, 0.17677669
        %v712 = vmul.f32 %v680, 0.17677669
        %v713 = vmul.f32 %v681, 0.17677669
        %v714 = vmul.f32 %v682, 0.17677669
        %v715 = vmul.f32 %v683, 0.17677669
        %v716 = vmul.f32 %v684, 0.17677669
        %v717 = vmul.f32 %v685, 0.17677669
        %v718 = vmul.f32 %v686, 0.17677669
        %v719 = vmul.f32 %v687, 0.17677669
        %v720 = vmul.f32 %v688, 0.17677669
        %v721 = vmul.f32 %v689, 0.17677669
        %v722 = vmul.f32 %v690, 0.17677669
        %v723 = vmul.f32 %v691, 0.17677669
        %v724 = vmul.f32 %v692, 0.17677669
        %v725 = vmul.f32 %v693, 0.17677669
        %v726 = vmul.f32 %v694, 0.17677669
        %v727 = vmul.f32 %v695, 0.17677669
        %v728 = vmul.f32 %v696, 0.17677669
        %v729 = vmul.f32 %v697, 0.17677669
        %v730 = vmul.f32 %v698, 0.17677669
        %v731 = vld [vmem:[%s249] sm:$0x1]
        %v733 = vlaneseq
        %v734 = vshrl.u32 %v733, 7
        %v735 = vsub.s32 0, %v734
        %v736 = vrot.slane %v731, %v735
        %v738 = vadd.f32 %v699, %v736
        %v739 = vadd.f32 %v700, %v736
        %v740 = vadd.f32 %v701, %v736
        %v741 = vadd.f32 %v702, %v736
        %v742 = vadd.f32 %v703, %v736
        %v743 = vadd.f32 %v704, %v736
        %v744 = vadd.f32 %v705, %v736
        %v745 = vadd.f32 %v706, %v736
        %v746 = vadd.f32 %v707, %v736
        %v747 = vadd.f32 %v708, %v736
        %v748 = vadd.f32 %v709, %v736
        %v749 = vadd.f32 %v710, %v736
        %v750 = vadd.f32 %v711, %v736
        %v751 = vadd.f32 %v712, %v736
        %v752 = vadd.f32 %v713, %v736
        %v753 = vadd.f32 %v714, %v736
        %v754 = vadd.f32 %v715, %v736
        %v755 = vadd.f32 %v716, %v736
        %v756 = vadd.f32 %v717, %v736
        %v757 = vadd.f32 %v718, %v736
        %v758 = vadd.f32 %v719, %v736
        %v759 = vadd.f32 %v720, %v736
        %v760 = vadd.f32 %v721, %v736
        %v761 = vadd.f32 %v722, %v736
        %v762 = vadd.f32 %v723, %v736
        %v763 = vadd.f32 %v724, %v736
        %v764 = vadd.f32 %v725, %v736
        %v765 = vadd.f32 %v726, %v736
        %v766 = vadd.f32 %v727, %v736
        %v767 = vadd.f32 %v728, %v736
        %v768 = vadd.f32 %v729, %v736
        %v769 = vadd.f32 %v730, %v736
        %770 = vst [vmem:[%s257] sm:$0xff] %v738
        %771 = vst [vmem:[%s257 + $0x8] sm:$0xff] %v739
        %772 = vst [vmem:[%s257 + $0x10] sm:$0xff] %v740
        %773 = vst [vmem:[%s257 + $0x18] sm:$0xff] %v741
        %774 = vst [vmem:[%s257 + $0x20] sm:$0xff] %v742
        %775 = vst [vmem:[%s257 + $0x28] sm:$0xff] %v743
        %776 = vst [vmem:[%s257 + $0x30] sm:$0xff] %v744
        %777 = vst [vmem:[%s257 + $0x38] sm:$0xff] %v745
        %778 = vst [vmem:[%s257 + $0x40] sm:$0xff] %v746
        %779 = vst [vmem:[%s257 + $0x48] sm:$0xff] %v747
        %780 = vst [vmem:[%s257 + $0x50] sm:$0xff] %v748
        %781 = vst [vmem:[%s257 + $0x58] sm:$0xff] %v749
        %782 = vst [vmem:[%s257 + $0x60] sm:$0xff] %v750
        %783 = vst [vmem:[%s257 + $0x68] sm:$0xff] %v751
        %784 = vst [vmem:[%s257 + $0x70] sm:$0xff] %v752
        %785 = vst [vmem:[%s257 + $0x78] sm:$0xff] %v753
        %786 = vst [vmem:[%s257 + $0x80] sm:$0xff] %v754
        %787 = vst [vmem:[%s257 + $0x88] sm:$0xff] %v755
        %788 = vst [vmem:[%s257 + $0x90] sm:$0xff] %v756
        %789 = vst [vmem:[%s257 + $0x98] sm:$0xff] %v757
        %790 = vst [vmem:[%s257 + $0xa0] sm:$0xff] %v758
        %791 = vst [vmem:[%s257 + $0xa8] sm:$0xff] %v759
        %792 = vst [vmem:[%s257 + $0xb0] sm:$0xff] %v760
        %793 = vst [vmem:[%s257 + $0xb8] sm:$0xff] %v761
        %794 = vst [vmem:[%s257 + $0xc0] sm:$0xff] %v762
        %795 = vst [vmem:[%s257 + $0xc8] sm:$0xff] %v763
        %796 = vst [vmem:[%s257 + $0xd0] sm:$0xff] %v764
        %797 = vst [vmem:[%s257 + $0xd8] sm:$0xff] %v765
        %798 = vst [vmem:[%s257 + $0xe0] sm:$0xff] %v766
        %799 = vst [vmem:[%s257 + $0xe8] sm:$0xff] %v767
        %800 = vst [vmem:[%s257 + $0xf0] sm:$0xff] %v768
        %801 = vst [vmem:[%s257 + $0xf8] sm:$0xff] %v769
      $region40: #{fwd.8} parent=31 // pred_fallthru
        _
      %s802 = smul.u32 32, %s19
      %p803 = scmp.lt.s32.totalorder %s802, 63
      %s804 = scalar_select %p803, %s802, 63
      %p805 = scmp.lt.s32.totalorder %s20, 0
      %s806 = scalar_select %p805, %s20, 0
      %s807 = sadd.s32 %s806, %s804
      %s808 = smul.addr %s807, 8
      %s809 = scalar_lea.vmem %s3, %s808
      // Predicated region
      $region41: #{fwd.8} parent=31 // pred_check
        %p810 = pneg %p135
      $region42: #{fwd.8} parent=31 // pred_check_branch
        %812 = sbr.rel (%p810) target = $region44
      $region43: #{fwd.8} parent=31 // pred_region
        %s813 = smul.u32 32, %s19
      $region44: #{fwd.8} parent=31 // pred_fallthru
        _
    $region32: #{fwd.8} parent=5 // pred_fallthru
      _
    %p814 = scmp.le.s32.totalorder 2, %s9
    // Predicated region
    $region45: #{fwd.8} parent=5 // pred_check
      %p815 = pneg %p814
    $region46: #{fwd.8} parent=5 // pred_check_branch
      %817 = sbr.rel (%p815) target = $region48
    $region47: #{fwd.8} parent=5 // pred_region
      %s818 = ssub.s32 %s9, 2
      // Predicated region
      $region49: #{fwd.8} parent=47 // pred_check
        %p819 = pneg %p141
      $region50: #{fwd.8} parent=47 // pred_check_branch
        %821 = sbr.rel (%p819) target = $region52
      $region51: #{fwd.8} parent=47 // pred_region
        %s822 = smul.u32 32, %s22
        %p823 = scmp.lt.s32.totalorder %s822, 63
        %s824 = scalar_select %p823, %s822, 63
        %p825 = scmp.lt.s32.totalorder %s23, 0
        %s826 = scalar_select %p825, %s23, 0
        %s827 = sadd.s32 %s826, %s824
        %s828 = smul.addr %s827, 8
        %s829 = scalar_lea.vmem %s3, %s828
      $region52: #{fwd.8} parent=47 // pred_fallthru
        _
    $region48: #{fwd.8} parent=5 // pred_fallthru
      _
  $region6: #{fwd.8} parent=0 // loop_footer
    %s13 = sadd.s32 1, %s9
  $region7: #{fwd.8} parent=0 // loop_footer_branch
    %8 = sbr.rel target = $region3
  $region8: #{fwd.8} parent=0 // loop_exit
    _

// kernel: fwd.9
$region0: #{fwd.9}
  #allocation0 [shape = 'u32[]', space=smem, size = 0x4, offset = 0x4, fixed_abs, tag = 'smem constant byte address 0x4 - core index']
  #allocation1 [shape = 'u32[144,128]{1,0:T(1,128)}', space=vmem, size = 0x12000, scoped, tag = 'internal scratch']
  %s0 = inlined_call_operand.vmem [shape: f32[2,16,16,32], index: 0, kind: input, shape index: {}]
  %s1 = inlined_call_operand.vmem [shape: f32[2,16,16,32], index: 1, kind: input, shape index: {}]
  %s2 = inlined_call_operand.vmem [shape: f32[2,16,16,32], index: 2, kind: input, shape index: {}]
  %s3 = inlined_call_operand.vmem [shape: f32[2,16,16,32], index: 3, kind: output, shape index: {}]
  %s4 = sld [smem:[#allocation0]]
  $region193: #{fwd.9} parent=0
    _
  %s6 = ssub.s32 1, %s4
  %s7 = scalar_select 0, %s6, %s4
  $region1: #{fwd.9} parent=0
    #allocation2 [shape = 'u8[131072]{0}', space=vmem, size = 0x20000, scoped, tag = 'input window, operand 0']
    #allocation3 [shape = 'u8[131072]{0}', space=vmem, size = 0x20000, scoped, tag = 'input window, operand 1']
    #allocation4 [shape = 'u8[131072]{0}', space=vmem, size = 0x20000, scoped, tag = 'input window, operand 2']
    #allocation5 [shape = 'u8[131072]{0}', space=vmem, size = 0x20000, scoped, tag = 'output window, operand 0']
    loop: start=0, step=1, limit=6
    $region2: #{fwd.9} parent=1 // loop_pre_header
      _
    $region3: #{fwd.9} parent=1 // loop_header
      %s9 = sphi 0, %s13
      %p10 = scmp.ge.s32.totalorder %s9, 6
      %s16 = sphi 0, %s28
      %s17 = sphi 0, %s24
      %s18 = sphi 0, %s16
      %s19 = sphi 0, %s17
      %s20 = sphi 0, %s18
      %s21 = sphi 0, %s19
      %s33 = sphi 0, %s35
      %s36 = sphi 0, %s33
      %s37 = sphi 0, %s36
      %s53 = sphi 0, %s37
      %s61 = sphi 0, %s63
      %s64 = sphi 0, %s61
      %s65 = sphi 0, %s64
      %s81 = sphi 0, %s65
      %s89 = sphi 0, %s91
      %s92 = sphi 0, %s89
      %s93 = sphi 0, %s92
      %s109 = sphi 0, %s93
      %s117 = sphi 0, %s119
      %s120 = sphi 0, %s117
      %s121 = sphi 0, %s120
      %s137 = sphi 0, %s121
    $region4: #{fwd.9} parent=1 // loop_header_branch
      %12 = sbr.rel (%p10) target = $region8
    $region5: #{fwd.9} parent=1 // loop_body
      %s14 = ssub.s32 %s9, 1
      %s15 = ssub.s32 %s9, 2
      %s22 = sadd.s32 1, %s17
      %p23 = scmp.ge.s32.totalorder %s22, 2
      %s24 = scalar_select %p23, 0, %s22
      %s25 = sadd.s32 1, %s16
      %s26 = scalar_select %p23, %s25, %s16
      %p27 = scmp.ge.s32.totalorder %s26, 2
      %s28 = scalar_select %p27, 0, %s26
      %s29 = ssub.s32 %s16, %s28
      %s30 = ssub.s32 %s17, %s24
      %s31 = sor.u32 %s29, %s30
      %p32 = scmp.eq.s32.totalorder %s31, 0
      %s34 = sadd.s32 %s33, 1
      %s35 = scalar_select %p32, %s33, %s34
      %p38 = pneg %p32
      %p39 = scmp.eq.s32.totalorder %s9, 3
      %p40 = por %p38, %p39
      %p41 = scmp.ne.s32.totalorder %s33, %s36
      %p42 = scmp.eq.s32.totalorder %s9, 0
      %p43 = por %p41, %p42
      %p44 = scmp.ne.s32.totalorder %s33, %s36
      %p45 = scmp.eq.s32.totalorder %s14, 3
      %p46 = por %p44, %p45
      %p47 = scmp.ne.s32.totalorder %s36, %s37
      %p48 = scmp.eq.s32.totalorder %s14, 0
      %p49 = por %p47, %p48
      %p50 = scmp.ne.s32.totalorder %s36, %s37
      %p51 = scmp.eq.s32.totalorder %s15, 3
      %p52 = por %p50, %p51
      %p54 = scmp.ne.s32.totalorder %s37, %s53
      %p55 = scmp.eq.s32.totalorder %s15, 0
      %p56 = por %p54, %p55
      %s57 = ssub.s32 %s16, %s28
      %s58 = ssub.s32 %s17, %s24
      %s59 = sor.u32 %s57, %s58
      %p60 = scmp.eq.s32.totalorder %s59, 0
      %s62 = sadd.s32 %s61, 1
      %s63 = scalar_select %p60, %s61, %s62
      %p66 = pneg %p60
      %p67 = scmp.eq.s32.totalorder %s9, 3
      %p68 = por %p66, %p67
      %p69 = scmp.ne.s32.totalorder %s61, %s64
      %p70 = scmp.eq.s32.totalorder %s9, 0
      %p71 = por %p69, %p70
      %p72 = scmp.ne.s32.totalorder %s61, %s64
      %p73 = scmp.eq.s32.totalorder %s14, 3
      %p74 = por %p72, %p73
      %p75 = scmp.ne.s32.totalorder %s64, %s65
      %p76 = scmp.eq.s32.totalorder %s14, 0
      %p77 = por %p75, %p76
      %p78 = scmp.ne.s32.totalorder %s64, %s65
      %p79 = scmp.eq.s32.totalorder %s15, 3
      %p80 = por %p78, %p79
      %p82 = scmp.ne.s32.totalorder %s65, %s81
      %p83 = scmp.eq.s32.totalorder %s15, 0
      %p84 = por %p82, %p83
      %s85 = ssub.s32 %s16, %s28
      %s86 = ssub.s32 %s17, %s24
      %s87 = sor.u32 %s85, %s86
      %p88 = scmp.eq.s32.totalorder %s87, 0
      %s90 = sadd.s32 %s89, 1
      %s91 = scalar_select %p88, %s89, %s90
      %p94 = pneg %p88
      %p95 = scmp.eq.s32.totalorder %s9, 3
      %p96 = por %p94, %p95
      %p97 = scmp.ne.s32.totalorder %s89, %s92
      %p98 = scmp.eq.s32.totalorder %s9, 0
      %p99 = por %p97, %p98
      %p100 = scmp.ne.s32.totalorder %s89, %s92
      %p101 = scmp.eq.s32.totalorder %s14, 3
      %p102 = por %p100, %p101
      %p103 = scmp.ne.s32.totalorder %s92, %s93
      %p104 = scmp.eq.s32.totalorder %s14, 0
      %p105 = por %p103, %p104
      %p106 = scmp.ne.s32.totalorder %s92, %s93
      %p107 = scmp.eq.s32.totalorder %s15, 3
      %p108 = por %p106, %p107
      %p110 = scmp.ne.s32.totalorder %s93, %s109
      %p111 = scmp.eq.s32.totalorder %s15, 0
      %p112 = por %p110, %p111
      %s113 = ssub.s32 %s16, %s28
      %s114 = ssub.s32 %s17, %s24
      %s115 = sor.u32 %s113, %s114
      %p116 = scmp.eq.s32.totalorder %s115, 0
      %s118 = sadd.s32 %s117, 1
      %s119 = scalar_select %p116, %s117, %s118
      %p122 = pneg %p116
      %p123 = scmp.eq.s32.totalorder %s9, 3
      %p124 = por %p122, %p123
      %p125 = scmp.ne.s32.totalorder %s117, %s120
      %p126 = scmp.eq.s32.totalorder %s9, 0
      %p127 = por %p125, %p126
      %p128 = scmp.ne.s32.totalorder %s117, %s120
      %p129 = scmp.eq.s32.totalorder %s14, 3
      %p130 = por %p128, %p129
      %p131 = scmp.ne.s32.totalorder %s120, %s121
      %p132 = scmp.eq.s32.totalorder %s14, 0
      %p133 = por %p131, %p132
      %p134 = scmp.ne.s32.totalorder %s120, %s121
      %p135 = scmp.eq.s32.totalorder %s15, 3
      %p136 = por %p134, %p135
      %p138 = scmp.ne.s32.totalorder %s121, %s137
      %p139 = scmp.eq.s32.totalorder %s15, 0
      %p140 = por %p138, %p139
      %p141 = scmp.le.s32.totalorder 1, %s9
      %p142 = scmp.lt.s32.totalorder %s9, 5
      %p143 = pnand %p141, %p142
      %p144 = pneg %p143
      // Predicated region
      $region9: #{fwd.9} parent=5 // pred_check
        _
      $region10: #{fwd.9} parent=5 // pred_check_branch
        %146 = sbr.rel (%p143) target = $region12
      $region11: #{fwd.9} parent=5 // pred_region
        %s147 = ssub.s32 %s9, 1
      $region12: #{fwd.9} parent=5 // pred_fallthru
        _
      %p148 = scmp.lt.s32.totalorder %s9, 4
      // Predicated region
      $region13: #{fwd.9} parent=5 // pred_check
        %p149 = pneg %p148
      $region14: #{fwd.9} parent=5 // pred_check_branch
        %151 = sbr.rel (%p149) target = $region16
      $region15: #{fwd.9} parent=5 // pred_region
        // Predicated region
        $region17: #{fwd.9} parent=15 // pred_check
          %p152 = pneg %p43
        $region18: #{fwd.9} parent=15 // pred_check_branch
          %154 = sbr.rel (%p152) target = $region20
        $region19: #{fwd.9} parent=15 // pred_region
          %s155 = sand.u32 %s33, 1
          %s156 = sand.u32 %s33, 1
          %s157 = smul.addr %s156, 128
          %s158 = scalar_lea.vmem [#allocation2], %s157
          %s159 = smul.u32 8, %s16
          %s160 = smul.addr %s159, 2
          %s161 = sadd.s32 %s17, %s160
          %s162 = smul.addr %s161, 8
          %s163 = scalar_lea.vmem %s0, %s162
          // Predicated region
          $region21: #{fwd.9} parent=19 // pred_check
            _
          $region22: #{fwd.9} parent=19 // pred_check_branch
            %165 = sbr.rel (0) target = $region24
          $region23: #{fwd.9} parent=19 // pred_region
            // Predicated region
            $region25: #{fwd.9} parent=23 // pred_check
              _
            $region26: #{fwd.9} parent=23 // pred_check_branch
              %167 = sbr.rel (0) target = $region28
            $region27: #{fwd.9} parent=23 // pred_region
              // Predicated region
              $region40: #{fwd.9} parent=27 // pred_check
                _
              $region41: #{fwd.9} parent=27 // pred_check_branch
                %213 = sbr.rel (0) target = $region43
              $region42: #{fwd.9} parent=27 // pred_region
                loop: start=0, step=1, limit=1
                $region44: #{fwd.9} parent=42 // loop_pre_header
                  _
                $region45: #{fwd.9} parent=42 // loop_header
                  %s215 = sphi 0, %s219
                  %p216 = scmp.ge.s32.totalorder %s215, 1
                  %s220 = sphi %s163, %s163
                  %s221 = sphi %s158, %s158
                $region46: #{fwd.9} parent=42 // loop_header_branch
                  %218 = sbr.rel (%p216) target = $region50
                $region47: #{fwd.9} parent=42 // loop_body
                  %v222 = vld [vmem:[%s220] sm:$0xff]
                  %223 = vst [vmem:[%s221] sm:$0xff] %v222
                  %v224 = vld [vmem:[%s220 + $0x10] sm:$0xff]
                  %225 = vst [vmem:[%s221 + $0x8] sm:$0xff] %v224
                  %v226 = vld [vmem:[%s220 + $0x20] sm:$0xff]
                  %227 = vst [vmem:[%s221 + $0x10] sm:$0xff] %v226
                  %v228 = vld [vmem:[%s220 + $0x30] sm:$0xff]
                  %229 = vst [vmem:[%s221 + $0x18] sm:$0xff] %v228
                  %v230 = vld [vmem:[%s220 + $0x40] sm:$0xff]
                  %231 = vst [vmem:[%s221 + $0x20] sm:$0xff] %v230
                  %v232 = vld [vmem:[%s220 + $0x50] sm:$0xff]
                  %233 = vst [vmem:[%s221 + $0x28] sm:$0xff] %v232
                  %v234 = vld [vmem:[%s220 + $0x60] sm:$0xff]
                  %235 = vst [vmem:[%s221 + $0x30] sm:$0xff] %v234
                  %v236 = vld [vmem:[%s220 + $0x70] sm:$0xff]
                  %237 = vst [vmem:[%s221 + $0x38] sm:$0xff] %v236
                  %v238 = vld [vmem:[%s220 + $0x100] sm:$0xff]
                  %239 = vst [vmem:[%s221 + $0x40] sm:$0xff] %v238
                  %v240 = vld [vmem:[%s220 + $0x110] sm:$0xff]
                  %241 = vst [vmem:[%s221 + $0x48] sm:$0xff] %v240
                  %v242 = vld [vmem:[%s220 + $0x120] sm:$0xff]
                  %243 = vst [vmem:[%s221 + $0x50] sm:$0xff] %v242
                  %v244 = vld [vmem:[%s220 + $0x130] sm:$0xff]
                  %245 = vst [vmem:[%s221 + $0x58] sm:$0xff] %v244
                  %v246 = vld [vmem:[%s220 + $0x140] sm:$0xff]
                  %247 = vst [vmem:[%s221 + $0x60] sm:$0xff] %v246
                  %v248 = vld [vmem:[%s220 + $0x150] sm:$0xff]
                  %249 = vst [vmem:[%s221 + $0x68] sm:$0xff] %v248
                  %v250 = vld [vmem:[%s220 + $0x160] sm:$0xff]
                  %251 = vst [vmem:[%s221 + $0x70] sm:$0xff] %v250
                  %v252 = vld [vmem:[%s220 + $0x170] sm:$0xff]
                  %253 = vst [vmem:[%s221 + $0x78] sm:$0xff] %v252
                $region48: #{fwd.9} parent=42 // loop_footer
                  %s219 = sadd.s32 1, %s215
                $region49: #{fwd.9} parent=42 // loop_footer_branch
                  %214 = sbr.rel target = $region45
                $region50: #{fwd.9} parent=42 // loop_exit
                  _
              $region43: #{fwd.9} parent=27 // pred_fallthru
                _
              // Predicated region
              $region51: #{fwd.9} parent=27 // pred_check
                _
              $region52: #{fwd.9} parent=27 // pred_check_branch
                %255 = sbr.rel target = $region54
              $region53: #{fwd.9} parent=27 // pred_region
                _
              $region54: #{fwd.9} parent=27 // pred_fallthru
                _
            $region28: #{fwd.9} parent=23 // pred_fallthru
              _
            // Predicated region
            $region29: #{fwd.9} parent=23 // pred_check
              _
            $region30: #{fwd.9} parent=23 // pred_check_branch
              %169 = sbr.rel target = $region32
            $region31: #{fwd.9} parent=23 // pred_region
              %s171 = ssub.s32 256, 1
              loop: start=0, step=1, limit=1
              $region33: #{fwd.9} parent=31 // loop_pre_header
                _
              $region34: #{fwd.9} parent=31 // loop_header
                %s173 = sphi 0, %s177
                %p174 = scmp.ge.s32.totalorder %s173, 1
                %s178 = sphi %s163, %s163
                %s179 = sphi %s158, %s158
              $region35: #{fwd.9} parent=31 // loop_header_branch
                %176 = sbr.rel (%p174) target = $region39
              $region36: #{fwd.9} parent=31 // loop_body
                %v180 = vld [vmem:[%s178] sm:%s171]
                %181 = vst [vmem:[%s179] sm:%s171] %v180
                %v182 = vld [vmem:[%s178 + $0x10] sm:%s171]
                %183 = vst [vmem:[%s179 + $0x8] sm:%s171] %v182
                %v184 = vld [vmem:[%s178 + $0x20] sm:%s171]
                %185 = vst [vmem:[%s179 + $0x10] sm:%s171] %v184
                %v186 = vld [vmem:[%s178 + $0x30] sm:%s171]
                %187 = vst [vmem:[%s179 + $0x18] sm:%s171] %v186
                %v188 = vld [vmem:[%s178 + $0x40] sm:%s171]
                %189 = vst [vmem:[%s179 + $0x20] sm:%s171] %v188
                %v190 = vld [vmem:[%s178 + $0x50] sm:%s171]
                %191 = vst [vmem:[%s179 + $0x28] sm:%s171] %v190
                %v192 = vld [vmem:[%s178 + $0x60] sm:%s171]
                %193 = vst [vmem:[%s179 + $0x30] sm:%s171] %v192
                %v194 = vld [vmem:[%s178 + $0x70] sm:%s171]
                %195 = vst [vmem:[%s179 + $0x38] sm:%s171] %v194
                %v196 = vld [vmem:[%s178 + $0x100] sm:%s171]
                %197 = vst [vmem:[%s179 + $0x40] sm:%s171] %v196
                %v198 = vld [vmem:[%s178 + $0x110] sm:%s171]
                %199 = vst [vmem:[%s179 + $0x48] sm:%s171] %v198
                %v200 = vld [vmem:[%s178 + $0x120] sm:%s171]
                %201 = vst [vmem:[%s179 + $0x50] sm:%s171] %v200
                %v202 = vld [vmem:[%s178 + $0x130] sm:%s171]
                %203 = vst [vmem:[%s179 + $0x58] sm:%s171] %v202
                %v204 = vld [vmem:[%s178 + $0x140] sm:%s171]
                %205 = vst [vmem:[%s179 + $0x60] sm:%s171] %v204
                %v206 = vld [vmem:[%s178 + $0x150] sm:%s171]
                %207 = vst [vmem:[%s179 + $0x68] sm:%s171] %v206
                %v208 = vld [vmem:[%s178 + $0x160] sm:%s171]
                %209 = vst [vmem:[%s179 + $0x70] sm:%s171] %v208
                %v210 = vld [vmem:[%s178 + $0x170] sm:%s171]
                %211 = vst [vmem:[%s179 + $0x78] sm:%s171] %v210
              $region37: #{fwd.9} parent=31 // loop_footer
                %s177 = sadd.s32 1, %s173
              $region38: #{fwd.9} parent=31 // loop_footer_branch
                %172 = sbr.rel target = $region34
              $region39: #{fwd.9} parent=31 // loop_exit
                _
            $region32: #{fwd.9} parent=23 // pred_fallthru
              _
          $region24: #{fwd.9} parent=19 // pred_fallthru
            _
          %256 = vnop
        $region20: #{fwd.9} parent=15 // pred_fallthru
          _
        // Predicated region
        $region55: #{fwd.9} parent=15 // pred_check
          %p257 = pneg %p71
        $region56: #{fwd.9} parent=15 // pred_check_branch
          %259 = sbr.rel (%p257) target = $region58
        $region57: #{fwd.9} parent=15 // pred_region
          %s260 = sand.u32 %s61, 1
          %s261 = sand.u32 %s61, 1
          %s262 = smul.addr %s261, 128
          %s263 = scalar_lea.vmem [#allocation3], %s262
          %s264 = smul.u32 8, %s16
          %s265 = smul.addr %s264, 2
          %s266 = sadd.s32 %s17, %s265
          %s267 = smul.addr %s266, 8
          %s268 = scalar_lea.vmem %s1, %s267
          // Predicated region
          $region59: #{fwd.9} parent=57 // pred_check
            _
          $region60: #{fwd.9} parent=57 // pred_check_branch
            %270 = sbr.rel (0) target = $region62
          $region61: #{fwd.9} parent=57 // pred_region
            // Predicated region
            $region63: #{fwd.9} parent=61 // pred_check
              _
            $region64: #{fwd.9} parent=61 // pred_check_branch
              %272 = sbr.rel (0) target = $region66
            $region65: #{fwd.9} parent=61 // pred_region
              // Predicated region
              $region78: #{fwd.9} parent=65 // pred_check
                _
              $region79: #{fwd.9} parent=65 // pred_check_branch
                %318 = sbr.rel (0) target = $region81
              $region80: #{fwd.9} parent=65 // pred_region
                loop: start=0, step=1, limit=1
                $region82: #{fwd.9} parent=80 // loop_pre_header
                  _
                $region83: #{fwd.9} parent=80 // loop_header
                  %s320 = sphi 0, %s324
                  %p321 = scmp.ge.s32.totalorder %s320, 1
                  %s325 = sphi %s268, %s268
                  %s326 = sphi %s263, %s263
                $region84: #{fwd.9} parent=80 // loop_header_branch
                  %323 = sbr.rel (%p321) target = $region88
                $region85: #{fwd.9} parent=80 // loop_body
                  %v327 = vld [vmem:[%s325] sm:$0xff]
                  %328 = vst [vmem:[%s326] sm:$0xff] %v327
                  %v329 = vld [vmem:[%s325 + $0x10] sm:$0xff]
                  %330 = vst [vmem:[%s326 + $0x8] sm:$0xff] %v329
                  %v331 = vld [vmem:[%s325 + $0x20] sm:$0xff]
                  %332 = vst [vmem:[%s326 + $0x10] sm:$0xff] %v331
                  %v333 = vld [vmem:[%s325 + $0x30] sm:$0xff]
                  %334 = vst [vmem:[%s326 + $0x18] sm:$0xff] %v333
                  %v335 = vld [vmem:[%s325 + $0x40] sm:$0xff]
                  %336 = vst [vmem:[%s326 + $0x20] sm:$0xff] %v335
                  %v337 = vld [vmem:[%s325 + $0x50] sm:$0xff]
                  %338 = vst [vmem:[%s326 + $0x28] sm:$0xff] %v337
                  %v339 = vld [vmem:[%s325 + $0x60] sm:$0xff]
                  %340 = vst [vmem:[%s326 + $0x30] sm:$0xff] %v339
                  %v341 = vld [vmem:[%s325 + $0x70] sm:$0xff]
                  %342 = vst [vmem:[%s326 + $0x38] sm:$0xff] %v341
                  %v343 = vld [vmem:[%s325 + $0x100] sm:$0xff]
                  %344 = vst [vmem:[%s326 + $0x40] sm:$0xff] %v343
                  %v345 = vld [vmem:[%s325 + $0x110] sm:$0xff]
                  %346 = vst [vmem:[%s326 + $0x48] sm:$0xff] %v345
                  %v347 = vld [vmem:[%s325 + $0x120] sm:$0xff]
                  %348 = vst [vmem:[%s326 + $0x50] sm:$0xff] %v347
                  %v349 = vld [vmem:[%s325 + $0x130] sm:$0xff]
                  %350 = vst [vmem:[%s326 + $0x58] sm:$0xff] %v349
                  %v351 = vld [vmem:[%s325 + $0x140] sm:$0xff]
                  %352 = vst [vmem:[%s326 + $0x60] sm:$0xff] %v351
                  %v353 = vld [vmem:[%s325 + $0x150] sm:$0xff]
                  %354 = vst [vmem:[%s326 + $0x68] sm:$0xff] %v353
                  %v355 = vld [vmem:[%s325 + $0x160] sm:$0xff]
                  %356 = vst [vmem:[%s326 + $0x70] sm:$0xff] %v355
                  %v357 = vld [vmem:[%s325 + $0x170] sm:$0xff]
                  %358 = vst [vmem:[%s326 + $0x78] sm:$0xff] %v357
                $region86: #{fwd.9} parent=80 // loop_footer
                  %s324 = sadd.s32 1, %s320
                $region87: #{fwd.9} parent=80 // loop_footer_branch
                  %319 = sbr.rel target = $region83
                $region88: #{fwd.9} parent=80 // loop_exit
                  _
              $region81: #{fwd.9} parent=65 // pred_fallthru
                _
              // Predicated region
              $region89: #{fwd.9} parent=65 // pred_check
                _
              $region90: #{fwd.9} parent=65 // pred_check_branch
                %360 = sbr.rel target = $region92
              $region91: #{fwd.9} parent=65 // pred_region
                _
              $region92: #{fwd.9} parent=65 // pred_fallthru
                _
            $region66: #{fwd.9} parent=61 // pred_fallthru
              _
            // Predicated region
            $region67: #{fwd.9} parent=61 // pred_check
              _
            $region68: #{fwd.9} parent=61 // pred_check_branch
              %274 = sbr.rel target = $region70
            $region69: #{fwd.9} parent=61 // pred_region
              %s276 = ssub.s32 256, 1
              loop: start=0, step=1, limit=1
              $region71: #{fwd.9} parent=69 // loop_pre_header
                _
              $region72: #{fwd.9} parent=69 // loop_header
                %s278 = sphi 0, %s282
                %p279 = scmp.ge.s32.totalorder %s278, 1
                %s283 = sphi %s268, %s268
                %s284 = sphi %s263, %s263
              $region73: #{fwd.9} parent=69 // loop_header_branch
                %281 = sbr.rel (%p279) target = $region77
              $region74: #{fwd.9} parent=69 // loop_body
                %v285 = vld [vmem:[%s283] sm:%s276]
                %286 = vst [vmem:[%s284] sm:%s276] %v285
                %v287 = vld [vmem:[%s283 + $0x10] sm:%s276]
                %288 = vst [vmem:[%s284 + $0x8] sm:%s276] %v287
                %v289 = vld [vmem:[%s283 + $0x20] sm:%s276]
                %290 = vst [vmem:[%s284 + $0x10] sm:%s276] %v289
                %v291 = vld [vmem:[%s283 + $0x30] sm:%s276]
                %292 = vst [vmem:[%s284 + $0x18] sm:%s276] %v291
                %v293 = vld [vmem:[%s283 + $0x40] sm:%s276]
                %294 = vst [vmem:[%s284 + $0x20] sm:%s276] %v293
                %v295 = vld [vmem:[%s283 + $0x50] sm:%s276]
                %296 = vst [vmem:[%s284 + $0x28] sm:%s276] %v295
                %v297 = vld [vmem:[%s283 + $0x60] sm:%s276]
                %298 = vst [vmem:[%s284 + $0x30] sm:%s276] %v297
                %v299 = vld [vmem:[%s283 + $0x70] sm:%s276]
                %300 = vst [vmem:[%s284 + $0x38] sm:%s276] %v299
                %v301 = vld [vmem:[%s283 + $0x100] sm:%s276]
                %302 = vst [vmem:[%s284 + $0x40] sm:%s276] %v301
                %v303 = vld [vmem:[%s283 + $0x110] sm:%s276]
                %304 = vst [vmem:[%s284 + $0x48] sm:%s276] %v303
                %v305 = vld [vmem:[%s283 + $0x120] sm:%s276]
                %306 = vst [vmem:[%s284 + $0x50] sm:%s276] %v305
                %v307 = vld [vmem:[%s283 + $0x130] sm:%s276]
                %308 = vst [vmem:[%s284 + $0x58] sm:%s276] %v307
                %v309 = vld [vmem:[%s283 + $0x140] sm:%s276]
                %310 = vst [vmem:[%s284 + $0x60] sm:%s276] %v309
                %v311 = vld [vmem:[%s283 + $0x150] sm:%s276]
                %312 = vst [vmem:[%s284 + $0x68] sm:%s276] %v311
                %v313 = vld [vmem:[%s283 + $0x160] sm:%s276]
                %314 = vst [vmem:[%s284 + $0x70] sm:%s276] %v313
                %v315 = vld [vmem:[%s283 + $0x170] sm:%s276]
                %316 = vst [vmem:[%s284 + $0x78] sm:%s276] %v315
              $region75: #{fwd.9} parent=69 // loop_footer
                %s282 = sadd.s32 1, %s278
              $region76: #{fwd.9} parent=69 // loop_footer_branch
                %277 = sbr.rel target = $region72
              $region77: #{fwd.9} parent=69 // loop_exit
                _
            $region70: #{fwd.9} parent=61 // pred_fallthru
              _
          $region62: #{fwd.9} parent=57 // pred_fallthru
            _
          %361 = vnop
        $region58: #{fwd.9} parent=15 // pred_fallthru
          _
        // Predicated region
        $region93: #{fwd.9} parent=15 // pred_check
          %p362 = pneg %p99
        $region94: #{fwd.9} parent=15 // pred_check_branch
          %364 = sbr.rel (%p362) target = $region96
        $region95: #{fwd.9} parent=15 // pred_region
          %s365 = sand.u32 %s89, 1
          %s366 = sand.u32 %s89, 1
          %s367 = smul.addr %s366, 128
          %s368 = scalar_lea.vmem [#allocation4], %s367
          %s369 = smul.u32 8, %s16
          %s370 = smul.addr %s369, 2
          %s371 = sadd.s32 %s17, %s370
          %s372 = smul.addr %s371, 8
          %s373 = scalar_lea.vmem %s2, %s372
          // Predicated region
          $region97: #{fwd.9} parent=95 // pred_check
            _
          $region98: #{fwd.9} parent=95 // pred_check_branch
            %375 = sbr.rel (0) target = $region100
          $region99: #{fwd.9} parent=95 // pred_region
            // Predicated region
            $region101: #{fwd.9} parent=99 // pred_check
              _
            $region102: #{fwd.9} parent=99 // pred_check_branch
              %377 = sbr.rel (0) target = $region104
            $region103: #{fwd.9} parent=99 // pred_region
              // Predicated region
              $region116: #{fwd.9} parent=103 // pred_check
                _
              $region117: #{fwd.9} parent=103 // pred_check_branch
                %423 = sbr.rel (0) target = $region119
              $region118: #{fwd.9} parent=103 // pred_region
                loop: start=0, step=1, limit=1
                $region120: #{fwd.9} parent=118 // loop_pre_header
                  _
                $region121: #{fwd.9} parent=118 // loop_header
                  %s425 = sphi 0, %s429
                  %p426 = scmp.ge.s32.totalorder %s425, 1
                  %s430 = sphi %s373, %s373
                  %s431 = sphi %s368, %s368
                $region122: #{fwd.9} parent=118 // loop_header_branch
                  %428 = sbr.rel (%p426) target = $region126
                $region123: #{fwd.9} parent=118 // loop_body
                  %v432 = vld [vmem:[%s430] sm:$0xff]
                  %433 = vst [vmem:[%s431] sm:$0xff] %v432
                  %v434 = vld [vmem:[%s430 + $0x10] sm:$0xff]
                  %435 = vst [vmem:[%s431 + $0x8] sm:$0xff] %v434
                  %v436 = vld [vmem:[%s430 + $0x20] sm:$0xff]
                  %437 = vst [vmem:[%s431 + $0x10] sm:$0xff] %v436
                  %v438 = vld [vmem:[%s430 + $0x30] sm:$0xff]
                  %439 = vst [vmem:[%s431 + $0x18] sm:$0xff] %v438
                  %v440 = vld [vmem:[%s430 + $0x40] sm:$0xff]
                  %441 = vst [vmem:[%s431 + $0x20] sm:$0xff] %v440
                  %v442 = vld [vmem:[%s430 + $0x50] sm:$0xff]
                  %443 = vst [vmem:[%s431 + $0x28] sm:$0xff] %v442
                  %v444 = vld [vmem:[%s430 + $0x60] sm:$0xff]
                  %445 = vst [vmem:[%s431 + $0x30] sm:$0xff] %v444
                  %v446 = vld [vmem:[%s430 + $0x70] sm:$0xff]
                  %447 = vst [vmem:[%s431 + $0x38] sm:$0xff] %v446
                  %v448 = vld [vmem:[%s430 + $0x100] sm:$0xff]
                  %449 = vst [vmem:[%s431 + $0x40] sm:$0xff] %v448
                  %v450 = vld [vmem:[%s430 + $0x110] sm:$0xff]
                  %451 = vst [vmem:[%s431 + $0x48] sm:$0xff] %v450
                  %v452 = vld [vmem:[%s430 + $0x120] sm:$0xff]
                  %453 = vst [vmem:[%s431 + $0x50] sm:$0xff] %v452
                  %v454 = vld [vmem:[%s430 + $0x130] sm:$0xff]
                  %455 = vst [vmem:[%s431 + $0x58] sm:$0xff] %v454
                  %v456 = vld [vmem:[%s430 + $0x140] sm:$0xff]
                  %457 = vst [vmem:[%s431 + $0x60] sm:$0xff] %v456
                  %v458 = vld [vmem:[%s430 + $0x150] sm:$0xff]
                  %459 = vst [vmem:[%s431 + $0x68] sm:$0xff] %v458
                  %v460 = vld [vmem:[%s430 + $0x160] sm:$0xff]
                  %461 = vst [vmem:[%s431 + $0x70] sm:$0xff] %v460
                  %v462 = vld [vmem:[%s430 + $0x170] sm:$0xff]
                  %463 = vst [vmem:[%s431 + $0x78] sm:$0xff] %v462
                $region124: #{fwd.9} parent=118 // loop_footer
                  %s429 = sadd.s32 1, %s425
                $region125: #{fwd.9} parent=118 // loop_footer_branch
                  %424 = sbr.rel target = $region121
                $region126: #{fwd.9} parent=118 // loop_exit
                  _
              $region119: #{fwd.9} parent=103 // pred_fallthru
                _
              // Predicated region
              $region127: #{fwd.9} parent=103 // pred_check
                _
              $region128: #{fwd.9} parent=103 // pred_check_branch
                %465 = sbr.rel target = $region130
              $region129: #{fwd.9} parent=103 // pred_region
                _
              $region130: #{fwd.9} parent=103 // pred_fallthru
                _
            $region104: #{fwd.9} parent=99 // pred_fallthru
              _
            // Predicated region
            $region105: #{fwd.9} parent=99 // pred_check
              _
            $region106: #{fwd.9} parent=99 // pred_check_branch
              %379 = sbr.rel target = $region108
            $region107: #{fwd.9} parent=99 // pred_region
              %s381 = ssub.s32 256, 1
              loop: start=0, step=1, limit=1
              $region109: #{fwd.9} parent=107 // loop_pre_header
                _
              $region110: #{fwd.9} parent=107 // loop_header
                %s383 = sphi 0, %s387
                %p384 = scmp.ge.s32.totalorder %s383, 1
                %s388 = sphi %s373, %s373
                %s389 = sphi %s368, %s368
              $region111: #{fwd.9} parent=107 // loop_header_branch
                %386 = sbr.rel (%p384) target = $region115
              $region112: #{fwd.9} parent=107 // loop_body
                %v390 = vld [vmem:[%s388] sm:%s381]
                %391 = vst [vmem:[%s389] sm:%s381] %v390
                %v392 = vld [vmem:[%s388 + $0x10] sm:%s381]
                %393 = vst [vmem:[%s389 + $0x8] sm:%s381] %v392
                %v394 = vld [vmem:[%s388 + $0x20] sm:%s381]
                %395 = vst [vmem:[%s389 + $0x10] sm:%s381] %v394
                %v396 = vld [vmem:[%s388 + $0x30] sm:%s381]
                %397 = vst [vmem:[%s389 + $0x18] sm:%s381] %v396
                %v398 = vld [vmem:[%s388 + $0x40] sm:%s381]
                %399 = vst [vmem:[%s389 + $0x20] sm:%s381] %v398
                %v400 = vld [vmem:[%s388 + $0x50] sm:%s381]
                %401 = vst [vmem:[%s389 + $0x28] sm:%s381] %v400
                %v402 = vld [vmem:[%s388 + $0x60] sm:%s381]
                %403 = vst [vmem:[%s389 + $0x30] sm:%s381] %v402
                %v404 = vld [vmem:[%s388 + $0x70] sm:%s381]
                %405 = vst [vmem:[%s389 + $0x38] sm:%s381] %v404
                %v406 = vld [vmem:[%s388 + $0x100] sm:%s381]
                %407 = vst [vmem:[%s389 + $0x40] sm:%s381] %v406
                %v408 = vld [vmem:[%s388 + $0x110] sm:%s381]
                %409 = vst [vmem:[%s389 + $0x48] sm:%s381] %v408
                %v410 = vld [vmem:[%s388 + $0x120] sm:%s381]
                %411 = vst [vmem:[%s389 + $0x50] sm:%s381] %v410
                %v412 = vld [vmem:[%s388 + $0x130] sm:%s381]
                %413 = vst [vmem:[%s389 + $0x58] sm:%s381] %v412
                %v414 = vld [vmem:[%s388 + $0x140] sm:%s381]
                %415 = vst [vmem:[%s389 + $0x60] sm:%s381] %v414
                %v416 = vld [vmem:[%s388 + $0x150] sm:%s381]
                %417 = vst [vmem:[%s389 + $0x68] sm:%s381] %v416
                %v418 = vld [vmem:[%s388 + $0x160] sm:%s381]
                %419 = vst [vmem:[%s389 + $0x70] sm:%s381] %v418
                %v420 = vld [vmem:[%s388 + $0x170] sm:%s381]
                %421 = vst [vmem:[%s389 + $0x78] sm:%s381] %v420
              $region113: #{fwd.9} parent=107 // loop_footer
                %s387 = sadd.s32 1, %s383
              $region114: #{fwd.9} parent=107 // loop_footer_branch
                %382 = sbr.rel target = $region110
              $region115: #{fwd.9} parent=107 // loop_exit
                _
            $region108: #{fwd.9} parent=99 // pred_fallthru
              _
          $region100: #{fwd.9} parent=95 // pred_fallthru
            _
          %466 = vnop
        $region96: #{fwd.9} parent=15 // pred_fallthru
          _
      $region16: #{fwd.9} parent=5 // pred_fallthru
        _
      %p467 = scmp.le.s32.totalorder 1, %s9
      %p468 = scmp.lt.s32.totalorder %s9, 5
      %p469 = pnand %p467, %p468
      %p470 = pneg %p469
      // Predicated region
      $region131: #{fwd.9} parent=5 // pred_check
        _
      $region132: #{fwd.9} parent=5 // pred_check_branch
        %472 = sbr.rel (%p469) target = $region134
      $region133: #{fwd.9} parent=5 // pred_region
        %s473 = ssub.s32 %s9, 1
        %s474 = sand.u32 %s36, 1
        %s475 = sand.u32 %s36, 1
        %s476 = smul.addr %s475, 128
        %s477 = scalar_lea.vmem [#allocation2], %s476
        // Predicated region
        $region135: #{fwd.9} parent=133 // pred_check
          %p478 = pneg %p49
        $region136: #{fwd.9} parent=133 // pred_check_branch
          %480 = sbr.rel (%p478) target = $region138
        $region137: #{fwd.9} parent=133 // pred_region
          _
        $region138: #{fwd.9} parent=133 // pred_fallthru
          _
        %s481 = sand.u32 %s64, 1
        %s482 = sand.u32 %s64, 1
        %s483 = smul.addr %s482, 128
        %s484 = scalar_lea.vmem [#allocation3], %s483
        // Predicated region
        $region139: #{fwd.9} parent=133 // pred_check
          %p485 = pneg %p77
        $region140: #{fwd.9} parent=133 // pred_check_branch
          %487 = sbr.rel (%p485) target = $region142
        $region141: #{fwd.9} parent=133 // pred_region
          _
        $region142: #{fwd.9} parent=133 // pred_fallthru
          _
        %s488 = sand.u32 %s92, 1
        %s489 = sand.u32 %s92, 1
        %s490 = smul.addr %s489, 128
        %s491 = scalar_lea.vmem [#allocation4], %s490
        // Predicated region
        $region143: #{fwd.9} parent=133 // pred_check
          %p492 = pneg %p105
        $region144: #{fwd.9} parent=133 // pred_check_branch
          %494 = sbr.rel (%p492) target = $region146
        $region145: #{fwd.9} parent=133 // pred_region
          _
        $region146: #{fwd.9} parent=133 // pred_fallthru
          _
        %s495 = sand.u32 %s36, 1
        %s496 = sand.u32 %s36, 1
        %s497 = smul.addr %s496, 128
        %s498 = scalar_lea.vmem [#allocation2], %s497
        %p499 = pneg %p49
        %p500 = pneg %p46
        %s501 = sand.u32 %s64, 1
        %s502 = sand.u32 %s64, 1
        %s503 = smul.addr %s502, 128
        %s504 = scalar_lea.vmem [#allocation3], %s503
        %p505 = pneg %p77
        %p506 = pneg %p74
        %s507 = sand.u32 %s92, 1
        %s508 = sand.u32 %s92, 1
        %s509 = smul.addr %s508, 128
        %s510 = scalar_lea.vmem [#allocation4], %s509
        %p511 = pneg %p105
        %p512 = pneg %p102
        %p513 = pneg %p133
        %p514 = pneg %p130
        %s515 = sand.u32 %s120, 1
        %s516 = sand.u32 %s120, 1
        %s517 = smul.addr %s516, 128
        %s518 = scalar_lea.vmem [#allocation5], %s517
        %s519 = smul.u32 8, %s18
        %s520 = smul.u32 8, %s18
        %s521 = smul.u32 8, %s18
        %s522 = smul.u32 8, %s18
        %v523 = vld [vmem:[%s477] sm:$0xff]
        %v524 = vld [vmem:[%s477 + $0x8] sm:$0xff]
        %v525 = vld [vmem:[%s477 + $0x10] sm:$0xff]
        %v526 = vld [vmem:[%s477 + $0x18] sm:$0xff]
        %v527 = vld [vmem:[%s477 + $0x20] sm:$0xff]
        %v528 = vld [vmem:[%s477 + $0x28] sm:$0xff]
        %v529 = vld [vmem:[%s477 + $0x30] sm:$0xff]
        %v530 = vld [vmem:[%s477 + $0x38] sm:$0xff]
        %v531 = vld [vmem:[%s477 + $0x40] sm:$0xff]
        %v532 = vld [vmem:[%s477 + $0x48] sm:$0xff]
        %v533 = vld [vmem:[%s477 + $0x50] sm:$0xff]
        %v534 = vld [vmem:[%s477 + $0x58] sm:$0xff]
        %v535 = vld [vmem:[%s477 + $0x60] sm:$0xff]
        %v536 = vld [vmem:[%s477 + $0x68] sm:$0xff]
        %v537 = vld [vmem:[%s477 + $0x70] sm:$0xff]
        %v538 = vld [vmem:[%s477 + $0x78] sm:$0xff]
        %v539 = vld [vmem:[%s484] sm:$0xff]
        %v540 = vld [vmem:[%s484 + $0x8] sm:$0xff]
        %v541 = vld [vmem:[%s484 + $0x10] sm:$0xff]
        %v542 = vld [vmem:[%s484 + $0x18] sm:$0xff]
        %v543 = vld [vmem:[%s484 + $0x20] sm:$0xff]
        %v544 = vld [vmem:[%s484 + $0x28] sm:$0xff]
        %v545 = vld [vmem:[%s484 + $0x30] sm:$0xff]
        %v546 = vld [vmem:[%s484 + $0x38] sm:$0xff]
        %v547 = vld [vmem:[%s484 + $0x40] sm:$0xff]
        %v548 = vld [vmem:[%s484 + $0x48] sm:$0xff]
        %v549 = vld [vmem:[%s484 + $0x50] sm:$0xff]
        %v550 = vld [vmem:[%s484 + $0x58] sm:$0xff]
        %v551 = vld [vmem:[%s484 + $0x60] sm:$0xff]
        %v552 = vld [vmem:[%s484 + $0x68] sm:$0xff]
        %v553 = vld [vmem:[%s484 + $0x70] sm:$0xff]
        %v554 = vld [vmem:[%s484 + $0x78] sm:$0xff]
        %v555 = vld [vmem:[%s491] sm:$0xff]
        %v556 = vld [vmem:[%s491 + $0x8] sm:$0xff]
        %v557 = vld [vmem:[%s491 + $0x10] sm:$0xff]
        %v558 = vld [vmem:[%s491 + $0x18] sm:$0xff]
        %v559 = vld [vmem:[%s491 + $0x20] sm:$0xff]
        %v560 = vld [vmem:[%s491 + $0x28] sm:$0xff]
        %v561 = vld [vmem:[%s491 + $0x30] sm:$0xff]
        %v562 = vld [vmem:[%s491 + $0x38] sm:$0xff]
        %v563 = vld [vmem:[%s491 + $0x40] sm:$0xff]
        %v564 = vld [vmem:[%s491 + $0x48] sm:$0xff]
        %v565 = vld [vmem:[%s491 + $0x50] sm:$0xff]
        %v566 = vld [vmem:[%s491 + $0x58] sm:$0xff]
        %v567 = vld [vmem:[%s491 + $0x60] sm:$0xff]
        %v568 = vld [vmem:[%s491 + $0x68] sm:$0xff]
        %v569 = vld [vmem:[%s491 + $0x70] sm:$0xff]
        %v570 = vld [vmem:[%s491 + $0x78] sm:$0xff]
        %v571 = vmul.f32 %v523, 0.35355338
        %v572 = vmul.f32 %v524, 0.35355338
        %v573 = vmul.f32 %v525, 0.35355338
        %v574 = vmul.f32 %v526, 0.35355338
        %v575 = vmul.f32 %v527, 0.35355338
        %v576 = vmul.f32 %v528, 0.35355338
        %v577 = vmul.f32 %v529, 0.35355338
        %v578 = vmul.f32 %v530, 0.35355338
        %v579 = vmul.f32 %v531, 0.35355338
        %v580 = vmul.f32 %v532, 0.35355338
        %v581 = vmul.f32 %v533, 0.35355338
        %v582 = vmul.f32 %v534, 0.35355338
        %v583 = vmul.f32 %v535, 0.35355338
        %v584 = vmul.f32 %v536, 0.35355338
        %v585 = vmul.f32 %v537, 0.35355338
        %v586 = vmul.f32 %v538, 0.35355338
        %vm587 = vcmask 64512
        %v589 = vsel %vm587, %v571, 0
        %v592 = vsel %vm587, %v572, 0
        %v595 = vsel %vm587, %v573, 0
        %v598 = vsel %vm587, %v574, 0
        %v601 = vsel %vm587, %v575, 0
        %v604 = vsel %vm587, %v576, 0
        %v607 = vsel %vm587, %v577, 0
        %v610 = vsel %vm587, %v578, 0
        %v613 = vsel %vm587, %v539, 0
        %v616 = vsel %vm587, %v540, 0
        %v619 = vsel %vm587, %v541, 0
        %v622 = vsel %vm587, %v542, 0
        %v625 = vsel %vm587, %v543, 0
        %v628 = vsel %vm587, %v544, 0
        %v631 = vsel %vm587, %v545, 0
        %v634 = vsel %vm587, %v546, 0
        %636 = vmatprep.subr.mxu0 0.0
        %637 = vmatpush1.xpose.msra.mxu0 0.0
        %638 = vmatprep.subr.mxu0 0.0
        %639 = vmatpush1.xpose.msra.mxu0 0.0
        %640 = vmatprep.subr.mxu0 0.0
        %641 = vmatpush1.xpose.msra.mxu0 0.0
        %642 = vmatprep.subr.mxu0 0.0
        %643 = vmatpush1.xpose.msra.mxu0 0.0
        %644 = vmatprep.subr.mxu0 0.0
        %645 = vmatpush1.xpose.msra.mxu0 0.0
        %646 = vmatprep.subr.mxu0 0.0
        %647 = vmatpush1.xpose.msra.mxu0 0.0
        %648 = vmatprep.subr.mxu0 0.0
        %649 = vmatpush1.xpose.msra.mxu0 0.0
        %650 = vmatprep.subr.mxu0 0.0
        %651 = vmatpush1.xpose.msra.mxu0 0.0
        %652 = vmatprep.subr.mxu0 0.0
        %653 = vmatpush1.xpose.msra.mxu0 %v634
        %654 = vmatprep.subr.mxu0 0.0
        %655 = vmatpush1.xpose.msra.mxu0 %v631
        %656 = vmatprep.subr.mxu0 0.0
        %657 = vmatpush1.xpose.msra.mxu0 %v628
        %658 = vmatprep.subr.mxu0 0.0
        %659 = vmatpush1.xpose.msra.mxu0 %v625
        %660 = vmatprep.subr.mxu0 0.0
        %661 = vmatpush1.xpose.msra.mxu0 %v622
        %662 = vmatprep.subr.mxu0 0.0
        %663 = vmatpush1.xpose.msra.mxu0 %v619
        %664 = vmatprep.subr.mxu0 0.0
        %665 = vmatpush1.xpose.msra.mxu0 %v616
        %666 = vmatprep.subr.mxu0 0.0
        %667 = vmatpush1.xpose.msra.mxu0 %v613
        %668 = vmatprep.subr.mxu0 0.0
        %669 = vmatpush2.xpose.msra.mxu0 0.0
        %670 = vmatprep.subr.mxu0 0.0
        %671 = vmatpush2.xpose.msra.mxu0 0.0
        %672 = vmatprep.subr.mxu0 0.0
        %673 = vmatpush2.xpose.msra.mxu0 0.0
        %674 = vmatprep.subr.mxu0 0.0
        %675 = vmatpush2.xpose.msra.mxu0 0.0
        %676 = vmatprep.subr.mxu0 0.0
        %677 = vmatpush2.xpose.msra.mxu0 0.0
        %678 = vmatprep.subr.mxu0 0.0
        %679 = vmatpush2.xpose.msra.mxu0 0.0
        %680 = vmatprep.subr.mxu0 0.0
        %681 = vmatpush2.xpose.msra.mxu0 0.0
        %682 = vmatprep.subr.mxu0 0.0
        %683 = vmatpush2.xpose.msra.mxu0 0.0
        %684 = vmatprep.subr.mxu0 0.0
        %685 = vmatpush2.xpose.msra.mxu0 0.0
        %686 = vmatprep.subr.mxu0 0.0
        %687 = vmatpush2.xpose.msra.mxu0 0.0
        %688 = vmatprep.subr.mxu0 0.0
        %689 = vmatpush2.xpose.msra.mxu0 0.0
        %690 = vmatprep.subr.mxu0 0.0
        %691 = vmatpush2.xpose.msra.mxu0 0.0
        %692 = vmatprep.subr.mxu0 0.0
        %693 = vmatpush2.xpose.msra.mxu0 0.0
        %694 = vmatprep.subr.mxu0 0.0
        %695 = vmatpush2.xpose.msra.mxu0 0.0
        %696 = vmatprep.subr.mxu0 0.0
        %697 = vmatpush2.xpose.msra.mxu0 0.0
        %698 = vmatprep.subr.mxu0 0.0
        %699 = vmatpush2.xpose.msra.mxu0 0.0
        %700 = vmatprep.mubr.f32.mxu0 0.0
        %701 = vmatmul.mubr.f32.gmra.mxu0 %v589
        %v702 = vpop.f32.mrf.mxu0
        %v703 = vadd.f32 0.0, %v702
        %v704 = vpop.f32.mrf.mxu0
        %705 = vmatprep.mubr.f32.mxu0 0.0
        %706 = vmatmul.mubr.f32.gmra.mxu0 %v592
        %v707 = vpop.f32.mrf.mxu0
        %v708 = vadd.f32 0.0, %v707
        %v709 = vpop.f32.mrf.mxu0
        %710 = vmatprep.mubr.f32.mxu0 0.0
        %711 = vmatmul.mubr.f32.gmra.mxu0 %v595
        %v712 = vpop.f32.mrf.mxu0
        %v713 = vadd.f32 0.0, %v712
        %v714 = vpop.f32.mrf.mxu0
        %715 = vmatprep.mubr.f32.mxu0 0.0
        %716 = vmatmul.mubr.f32.gmra.mxu0 %v598
        %v717 = vpop.f32.mrf.mxu0
        %v718 = vadd.f32 0.0, %v717
        %v719 = vpop.f32.mrf.mxu0
        %720 = vmatprep.mubr.f32.mxu0 0.0
        %721 = vmatmul.mubr.f32.gmra.mxu0 %v601
        %v722 = vpop.f32.mrf.mxu0
        %v723 = vadd.f32 0.0, %v722
        %v724 = vpop.f32.mrf.mxu0
        %725 = vmatprep.mubr.f32.mxu0 0.0
        %726 = vmatmul.mubr.f32.gmra.mxu0 %v604
        %v727 = vpop.f32.mrf.mxu0
        %v728 = vadd.f32 0.0, %v727
        %v729 = vpop.f32.mrf.mxu0
        %730 = vmatprep.mubr.f32.mxu0 0.0
        %731 = vmatmul.mubr.f32.gmra.mxu0 %v607
        %v732 = vpop.f32.mrf.mxu0
        %v733 = vadd.f32 0.0, %v732
        %v734 = vpop.f32.mrf.mxu0
        %735 = vmatprep.mubr.f32.mxu0 0.0
        %736 = vmatmul.mubr.f32.gmra.mxu0 %v610
        %v737 = vpop.f32.mrf.mxu0
        %v738 = vadd.f32 0.0, %v737
        %v739 = vpop.f32.mrf.mxu0
        %740 = vdwg.mxu0
        %v742 = vsel %vm587, %v579, 0
        %v745 = vsel %vm587, %v580, 0
        %v748 = vsel %vm587, %v581, 0
        %v751 = vsel %vm587, %v582, 0
        %v754 = vsel %vm587, %v583, 0
        %v757 = vsel %vm587, %v584, 0
        %v760 = vsel %vm587, %v585, 0
        %v763 = vsel %vm587, %v586, 0
        %v766 = vsel %vm587, %v547, 0
        %v769 = vsel %vm587, %v548, 0
        %v772 = vsel %vm587, %v549, 0
        %v775 = vsel %vm587, %v550, 0
        %v778 = vsel %vm587, %v551, 0
        %v781 = vsel %vm587, %v552, 0
        %v784 = vsel %vm587, %v553, 0
        %v787 = vsel %vm587, %v554, 0
        %789 = vmatprep.subr.mxu0 0.0
        %790 = vmatpush1.xpose.msra.mxu0 0.0
        %791 = vmatprep.subr.mxu0 0.0
        %792 = vmatpush1.xpose.msra.mxu0 0.0
        %793 = vmatprep.subr.mxu0 0.0
        %794 = vmatpush1.xpose.msra.mxu0 0.0
        %795 = vmatprep.subr.mxu0 0.0
        %796 = vmatpush1.xpose.msra.mxu0 0.0
        %797 = vmatprep.subr.mxu0 0.0
        %798 = vmatpush1.xpose.msra.mxu0 0.0
        %799 = vmatprep.subr.mxu0 0.0
        %800 = vmatpush1.xpose.msra.mxu0 0.0
        %801 = vmatprep.subr.mxu0 0.0
        %802 = vmatpush1.xpose.msra.mxu0 0.0
        %803 = vmatprep.subr.mxu0 0.0
        %804 = vmatpush1.xpose.msra.mxu0 0.0
        %805 = vmatprep.subr.mxu0 0.0
        %806 = vmatpush1.xpose.msra.mxu0 %v787
        %807 = vmatprep.subr.mxu0 0.0
        %808 = vmatpush1.xpose.msra.mxu0 %v784
        %809 = vmatprep.subr.mxu0 0.0
        %810 = vmatpush1.xpose.msra.mxu0 %v781
        %811 = vmatprep.subr.mxu0 0.0
        %812 = vmatpush1.xpose.msra.mxu0 %v778
        %813 = vmatprep.subr.mxu0 0.0
        %814 = vmatpush1.xpose.msra.mxu0 %v775
        %815 = vmatprep.subr.mxu0 0.0
        %816 = vmatpush1.xpose.msra.mxu0 %v772
        %817 = vmatprep.subr.mxu0 0.0
        %818 = vmatpush1.xpose.msra.mxu0 %v769
        %819 = vmatprep.subr.mxu0 0.0
        %820 = vmatpush1.xpose.msra.mxu0 %v766
        %821 = vmatprep.subr.mxu0 0.0
        %822 = vmatpush2.xpose.msra.mxu0 0.0
        %823 = vmatprep.subr.mxu0 0.0
        %824 = vmatpush2.xpose.msra.mxu0 0.0
        %825 = vmatprep.subr.mxu0 0.0
        %826 = vmatpush2.xpose.msra.mxu0 0.0
        %827 = vmatprep.subr.mxu0 0.0
        %828 = vmatpush2.xpose.msra.mxu0 0.0
        %829 = vmatprep.subr.mxu0 0.0
        %830 = vmatpush2.xpose.msra.mxu0 0.0
        %831 = vmatprep.subr.mxu0 0.0
        %832 = vmatpush2.xpose.msra.mxu0 0.0
        %833 = vmatprep.subr.mxu0 0.0
        %834 = vmatpush2.xpose.msra.mxu0 0.0
        %835 = vmatprep.subr.mxu0 0.0
        %836 = vmatpush2.xpose.msra.mxu0 0.0
        %837 = vmatprep.subr.mxu0 0.0
        %838 = vmatpush2.xpose.msra.mxu0 0.0
        %839 = vmatprep.subr.mxu0 0.0
        %840 = vmatpush2.xpose.msra.mxu0 0.0
        %841 = vmatprep.subr.mxu0 0.0
        %842 = vmatpush2.xpose.msra.mxu0 0.0
        %843 = vmatprep.subr.mxu0 0.0
        %844 = vmatpush2.xpose.msra.mxu0 0.0
        %845 = vmatprep.subr.mxu0 0.0
        %846 = vmatpush2.xpose.msra.mxu0 0.0
        %847 = vmatprep.subr.mxu0 0.0
        %848 = vmatpush2.xpose.msra.mxu0 0.0
        %849 = vmatprep.subr.mxu0 0.0
        %850 = vmatpush2.xpose.msra.mxu0 0.0
        %851 = vmatprep.subr.mxu0 0.0
        %852 = vmatpush2.xpose.msra.mxu0 0.0
        %853 = vmatprep.mubr.f32.mxu0 0.0
        %854 = vmatmul.mubr.f32.gmra.mxu0 %v742
        %v855 = vpop.f32.mrf.mxu0
        %v856 = vadd.f32 0.0, %v855
        %v857 = vpop.f32.mrf.mxu0
        %858 = vmatprep.mubr.f32.mxu0 0.0
        %859 = vmatmul.mubr.f32.gmra.mxu0 %v745
        %v860 = vpop.f32.mrf.mxu0
        %v861 = vadd.f32 0.0, %v860
        %v862 = vpop.f32.mrf.mxu0
        %863 = vmatprep.mubr.f32.mxu0 0.0
        %864 = vmatmul.mubr.f32.gmra.mxu0 %v748
        %v865 = vpop.f32.mrf.mxu0
        %v866 = vadd.f32 0.0, %v865
        %v867 = vpop.f32.mrf.mxu0
        %868 = vmatprep.mubr.f32.mxu0 0.0
        %869 = vmatmul.mubr.f32.gmra.mxu0 %v751
        %v870 = vpop.f32.mrf.mxu0
        %v871 = vadd.f32 0.0, %v870
        %v872 = vpop.f32.mrf.mxu0
        %873 = vmatprep.mubr.f32.mxu0 0.0
        %874 = vmatmul.mubr.f32.gmra.mxu0 %v754
        %v875 = vpop.f32.mrf.mxu0
        %v876 = vadd.f32 0.0, %v875
        %v877 = vpop.f32.mrf.mxu0
        %878 = vmatprep.mubr.f32.mxu0 0.0
        %879 = vmatmul.mubr.f32.gmra.mxu0 %v757
        %v880 = vpop.f32.mrf.mxu0
        %v881 = vadd.f32 0.0, %v880
        %v882 = vpop.f32.mrf.mxu0
        %883 = vmatprep.mubr.f32.mxu0 0.0
        %884 = vmatmul.mubr.f32.gmra.mxu0 %v760
        %v885 = vpop.f32.mrf.mxu0
        %v886 = vadd.f32 0.0, %v885
        %v887 = vpop.f32.mrf.mxu0
        %888 = vmatprep.mubr.f32.mxu0 0.0
        %889 = vmatmul.mubr.f32.gmra.mxu0 %v763
        %v890 = vpop.f32.mrf.mxu0
        %v891 = vadd.f32 0.0, %v890
        %v892 = vpop.f32.mrf.mxu0
        %893 = vdwg.mxu0
        %vm894 = vcmask 523264
        %v895 = vsel %vm894, %v703, -inf
        %896 = vmax.xlane.f32.xlu0 %v895
        %v897 = vpop.xlane.xlu0 %896
        %v898 = vsel %vm894, %v708, -inf
        %899 = vmax.xlane.f32.xlu0 %v898
        %v900 = vpop.xlane.xlu0 %899
        %v901 = vsel %vm894, %v713, -inf
        %902 = vmax.xlane.f32.xlu0 %v901
        %v903 = vpop.xlane.xlu0 %902
        %v904 = vsel %vm894, %v718, -inf
        %905 = vmax.xlane.f32.xlu0 %v904
        %v906 = vpop.xlane.xlu0 %905
        %v907 = vsel %vm894, %v723, -inf
        %908 = vmax.xlane.f32.xlu0 %v907
        %v909 = vpop.xlane.xlu0 %908
        %v910 = vsel %vm894, %v728, -inf
        %911 = vmax.xlane.f32.xlu0 %v910
        %v912 = vpop.xlane.xlu0 %911
        %v913 = vsel %vm894, %v733, -inf
        %914 = vmax.xlane.f32.xlu0 %v913
        %v915 = vpop.xlane.xlu0 %914
        %v916 = vsel %vm894, %v738, -inf
        %917 = vmax.xlane.f32.xlu0 %v916
        %v918 = vpop.xlane.xlu0 %917
        %v919 = vsel %vm894, %v856, -inf
        %920 = vmax.xlane.f32.xlu0 %v919
        %v921 = vpop.xlane.xlu0 %920
        %v922 = vsel %vm894, %v861, -inf
        %923 = vmax.xlane.f32.xlu0 %v922
        %v924 = vpop.xlane.xlu0 %923
        %v925 = vsel %vm894, %v866, -inf
        %926 = vmax.xlane.f32.xlu0 %v925
        %v927 = vpop.xlane.xlu0 %926
        %v928 = vsel %vm894, %v871, -inf
        %929 = vmax.xlane.f32.xlu0 %v928
        %v930 = vpop.xlane.xlu0 %929
        %v931 = vsel %vm894, %v876, -inf
        %932 = vmax.xlane.f32.xlu0 %v931
        %v933 = vpop.xlane.xlu0 %932
        %v934 = vsel %vm894, %v881, -inf
        %935 = vmax.xlane.f32.xlu0 %v934
        %v936 = vpop.xlane.xlu0 %935
        %v937 = vsel %vm894, %v886, -inf
        %938 = vmax.xlane.f32.xlu0 %v937
        %v939 = vpop.xlane.xlu0 %938
        %v940 = vsel %vm894, %v891, -inf
        %941 = vmax.xlane.f32.xlu0 %v940
        %v942 = vpop.xlane.xlu0 %941
        %v943 = vsub.f32 %v703, %v897
        %v944 = vsub.f32 %v708, %v900
        %v945 = vsub.f32 %v713, %v903
        %v946 = vsub.f32 %v718, %v906
        %v947 = vsub.f32 %v723, %v909
        %v948 = vsub.f32 %v728, %v912
        %v949 = vsub.f32 %v733, %v915
        %v950 = vsub.f32 %v738, %v918
        %v951 = vsub.f32 %v856, %v921
        %v952 = vsub.f32 %v861, %v924
        %v953 = vsub.f32 %v866, %v927
        %v954 = vsub.f32 %v871, %v930
        %v955 = vsub.f32 %v876, %v933
        %v956 = vsub.f32 %v881, %v936
        %v957 = vsub.f32 %v886, %v939
        %v958 = vsub.f32 %v891, %v942
        %v959 = vmul.f32 %v943, 1.442695
        %v960 = vpow.pop %v959
        %v961 = vmul.f32 %v944, 1.442695
        %v962 = vpow.pop %v961
        %v963 = vmul.f32 %v945, 1.442695
        %v964 = vpow.pop %v963
        %v965 = vmul.f32 %v946, 1.442695
        %v966 = vpow.pop %v965
        %v967 = vmul.f32 %v947, 1.442695
        %v968 = vpow.pop %v967
        %v969 = vmul.f32 %v948, 1.442695
        %v970 = vpow.pop %v969
        %v971 = vmul.f32 %v949, 1.442695
        %v972 = vpow.pop %v971
        %v973 = vmul.f32 %v950, 1.442695
        %v974 = vpow.pop %v973
        %v975 = vmul.f32 %v951, 1.442695
        %v976 = vpow.pop %v975
        %v977 = vmul.f32 %v952, 1.442695
        %v978 = vpow.pop %v977
        %v979 = vmul.f32 %v953, 1.442695
        %v980 = vpow.pop %v979
        %v981 = vmul.f32 %v954, 1.442695
        %v982 = vpow.pop %v981
        %v983 = vmul.f32 %v955, 1.442695
        %v984 = vpow.pop %v983
        %v985 = vmul.f32 %v956, 1.442695
        %v986 = vpow.pop %v985
        %v987 = vmul.f32 %v957, 1.442695
        %v988 = vpow.pop %v987
        %v989 = vmul.f32 %v958, 1.442695
        %v990 = vpow.pop %v989
        %v991 = vsel %vm894, %v960, 0.0
        %992 = vadd.xlane.f32.xlu0 %v991
        %v993 = vpop.xlane.xlu0 %992
        %v994 = vsel %vm894, %v962, 0.0
        %995 = vadd.xlane.f32.xlu0 %v994
        %v996 = vpop.xlane.xlu0 %995
        %v997 = vsel %vm894, %v964, 0.0
        %998 = vadd.xlane.f32.xlu0 %v997
        %v999 = vpop.xlane.xlu0 %998
        %v1000 = vsel %vm894, %v966, 0.0
        %1001 = vadd.xlane.f32.xlu0 %v1000
        %v1002 = vpop.xlane.xlu0 %1001
        %v1003 = vsel %vm894, %v968, 0.0
        %1004 = vadd.xlane.f32.xlu0 %v1003
        %v1005 = vpop.xlane.xlu0 %1004
        %v1006 = vsel %vm894, %v970, 0.0
        %1007 = vadd.xlane.f32.xlu0 %v1006
        %v1008 = vpop.xlane.xlu0 %1007
        %v1009 = vsel %vm894, %v972, 0.0
        %1010 = vadd.xlane.f32.xlu0 %v1009
        %v1011 = vpop.xlane.xlu0 %1010
        %v1012 = vsel %vm894, %v974, 0.0
        %1013 = vadd.xlane.f32.xlu0 %v1012
        %v1014 = vpop.xlane.xlu0 %1013
        %v1015 = vsel %vm894, %v976, 0.0
        %1016 = vadd.xlane.f32.xlu0 %v1015
        %v1017 = vpop.xlane.xlu0 %1016
        %v1018 = vsel %vm894, %v978, 0.0
        %1019 = vadd.xlane.f32.xlu0 %v1018
        %v1020 = vpop.xlane.xlu0 %1019
        %v1021 = vsel %vm894, %v980, 0.0
        %1022 = vadd.xlane.f32.xlu0 %v1021
        %v1023 = vpop.xlane.xlu0 %1022
        %v1024 = vsel %vm894, %v982, 0.0
        %1025 = vadd.xlane.f32.xlu0 %v1024
        %v1026 = vpop.xlane.xlu0 %1025
        %v1027 = vsel %vm894, %v984, 0.0
        %1028 = vadd.xlane.f32.xlu0 %v1027
        %v1029 = vpop.xlane.xlu0 %1028
        %v1030 = vsel %vm894, %v986, 0.0
        %1031 = vadd.xlane.f32.xlu0 %v1030
        %v1032 = vpop.xlane.xlu0 %1031
        %v1033 = vsel %vm894, %v988, 0.0
        %1034 = vadd.xlane.f32.xlu0 %v1033
        %v1035 = vpop.xlane.xlu0 %1034
        %v1036 = vsel %vm894, %v990, 0.0
        %1037 = vadd.xlane.f32.xlu0 %v1036
        %v1038 = vpop.xlane.xlu0 %1037
        %v1039 = vrcp.pop %v993
        %v1040 = vrcp.pop %v996
        %v1041 = vrcp.pop %v999
        %v1042 = vrcp.pop %v1002
        %v1043 = vrcp.pop %v1005
        %v1044 = vrcp.pop %v1008
        %v1045 = vrcp.pop %v1011
        %v1046 = vrcp.pop %v1014
        %v1047 = vrcp.pop %v1017
        %v1048 = vrcp.pop %v1020
        %v1049 = vrcp.pop %v1023
        %v1050 = vrcp.pop %v1026
        %v1051 = vrcp.pop %v1029
        %v1052 = vrcp.pop %v1032
        %v1053 = vrcp.pop %v1035
        %v1054 = vrcp.pop %v1038
        %v1055 = vmul.f32 %v993, %v1039
        %v1056 = vmul.f32 %v996, %v1040
        %v1057 = vmul.f32 %v999, %v1041
        %v1058 = vmul.f32 %v1002, %v1042
        %v1059 = vmul.f32 %v1005, %v1043
        %v1060 = vmul.f32 %v1008, %v1044
        %v1061 = vmul.f32 %v1011, %v1045
        %v1062 = vmul.f32 %v1014, %v1046
        %v1063 = vmul.f32 %v1017, %v1047
        %v1064 = vmul.f32 %v1020, %v1048
        %v1065 = vmul.f32 %v1023, %v1049
        %v1066 = vmul.f32 %v1026, %v1050
        %v1067 = vmul.f32 %v1029, %v1051
        %v1068 = vmul.f32 %v1032, %v1052
        %v1069 = vmul.f32 %v1035, %v1053
        %v1070 = vmul.f32 %v1038, %v1054
        %v1071 = vsub.f32 2.0, %v1055
        %v1072 = vsub.f32 2.0, %v1056
        %v1073 = vsub.f32 2.0, %v1057
        %v1074 = vsub.f32 2.0, %v1058
        %v1075 = vsub.f32 2.0, %v1059
        %v1076 = vsub.f32 2.0, %v1060
        %v1077 = vsub.f32 2.0, %v1061
        %v1078 = vsub.f32 2.0, %v1062
        %v1079 = vsub.f32 2.0, %v1063
        %v1080 = vsub.f32 2.0, %v1064
        %v1081 = vsub.f32 2.0, %v1065
        %v1082 = vsub.f32 2.0, %v1066
        %v1083 = vsub.f32 2.0, %v1067
        %v1084 = vsub.f32 2.0, %v1068
        %v1085 = vsub.f32 2.0, %v1069
        %v1086 = vsub.f32 2.0, %v1070
        %v1087 = vmul.f32 %v1039, %v1071
        %v1088 = vmul.f32 %v1040, %v1072
        %v1089 = vmul.f32 %v1041, %v1073
        %v1090 = vmul.f32 %v1042, %v1074
        %v1091 = vmul.f32 %v1043, %v1075
        %v1092 = vmul.f32 %v1044, %v1076
        %v1093 = vmul.f32 %v1045, %v1077
        %v1094 = vmul.f32 %v1046, %v1078
        %v1095 = vmul.f32 %v1047, %v1079
        %v1096 = vmul.f32 %v1048, %v1080
        %v1097 = vmul.f32 %v1049, %v1081
        %v1098 = vmul.f32 %v1050, %v1082
        %v1099 = vmul.f32 %v1051, %v1083
        %v1100 = vmul.f32 %v1052, %v1084
        %v1101 = vmul.f32 %v1053, %v1085
        %v1102 = vmul.f32 %v1054, %v1086
        %v1104 = vsel %vm894, %v960, 0
        %v1107 = vsel %vm894, %v962, 0
        %v1110 = vsel %vm894, %v964, 0
        %v1113 = vsel %vm894, %v966, 0
        %v1116 = vsel %vm894, %v968, 0
        %v1119 = vsel %vm894, %v970, 0
        %v1122 = vsel %vm894, %v972, 0
        %v1125 = vsel %vm894, %v974, 0
        %1127 = vmatprep.subr.mxu0 0.0
        %1128 = vmatpush1.msra.mxu0 0.0
        %1129 = vmatprep.subr.mxu0 0.0
        %1130 = vmatpush1.msra.mxu0 0.0
        %1131 = vmatprep.subr.mxu0 0.0
        %1132 = vmatpush1.msra.mxu0 0.0
        %1133 = vmatprep.subr.mxu0 0.0
        %1134 = vmatpush1.msra.mxu0 0.0
        %1135 = vmatprep.subr.mxu0 0.0
        %1136 = vmatpush1.msra.mxu0 0.0
        %1137 = vmatprep.subr.mxu0 0.0
        %1138 = vmatpush1.msra.mxu0 0.0
        %1139 = vmatprep.subr.mxu0 0.0
        %1140 = vmatpush1.msra.mxu0 0.0
        %1141 = vmatprep.subr.mxu0 0.0
        %1142 = vmatpush1.msra.mxu0 0.0
        %1143 = vmatprep.subr.mxu0 0.0
        %1144 = vmatpush1.msra.mxu0 %v562
        %1145 = vmatprep.subr.mxu0 0.0
        %1146 = vmatpush1.msra.mxu0 %v561
        %1147 = vmatprep.subr.mxu0 0.0
        %1148 = vmatpush1.msra.mxu0 %v560
        %1149 = vmatprep.subr.mxu0 0.0
        %1150 = vmatpush1.msra.mxu0 %v559
        %1151 = vmatprep.subr.mxu0 0.0
        %1152 = vmatpush1.msra.mxu0 %v558
        %1153 = vmatprep.subr.mxu0 0.0
        %1154 = vmatpush1.msra.mxu0 %v557
        %1155 = vmatprep.subr.mxu0 0.0
        %1156 = vmatpush1.msra.mxu0 %v556
        %1157 = vmatprep.subr.mxu0 0.0
        %1158 = vmatpush1.msra.mxu0 %v555
        %1159 = vmatprep.subr.mxu0 0.0
        %1160 = vmatpush2.msra.mxu0 0.0
        %1161 = vmatprep.subr.mxu0 0.0
        %1162 = vmatpush2.msra.mxu0 0.0
        %1163 = vmatprep.subr.mxu0 0.0
        %1164 = vmatpush2.msra.mxu0 0.0
        %1165 = vmatprep.subr.mxu0 0.0
        %1166 = vmatpush2.msra.mxu0 0.0
        %1167 = vmatprep.subr.mxu0 0.0
        %1168 = vmatpush2.msra.mxu0 0.0
        %1169 = vmatprep.subr.mxu0 0.0
        %1170 = vmatpush2.msra.mxu0 0.0
        %1171 = vmatprep.subr.mxu0 0.0
        %1172 = vmatpush2.msra.mxu0 0.0
        %1173 = vmatprep.subr.mxu0 0.0
        %1174 = vmatpush2.msra.mxu0 0.0
        %1175 = vmatprep.subr.mxu0 0.0
        %1176 = vmatpush2.msra.mxu0 0.0
        %1177 = vmatprep.subr.mxu0 0.0
        %1178 = vmatpush2.msra.mxu0 0.0
        %1179 = vmatprep.subr.mxu0 0.0
        %1180 = vmatpush2.msra.mxu0 0.0
        %1181 = vmatprep.subr.mxu0 0.0
        %1182 = vmatpush2.msra.mxu0 0.0
        %1183 = vmatprep.subr.mxu0 0.0
        %1184 = vmatpush2.msra.mxu0 0.0
        %1185 = vmatprep.subr.mxu0 0.0
        %1186 = vmatpush2.msra.mxu0 0.0
        %1187 = vmatprep.subr.mxu0 0.0
        %1188 = vmatpush2.msra.mxu0 0.0
        %1189 = vmatprep.subr.mxu0 0.0
        %1190 = vmatpush2.msra.mxu0 0.0
        %1191 = vmatprep.mubr.f32.mxu0 0.0
        %1192 = vmatmul.mubr.f32.gmra.mxu0 %v1104
        %v1193 = vpop.f32.mrf.mxu0
        %v1194 = vadd.f32 0.0, %v1193
        %v1195 = vpop.f32.mrf.mxu0
        %1196 = vmatprep.mubr.f32.mxu0 0.0
        %1197 = vmatmul.mubr.f32.gmra.mxu0 %v1107
        %v1198 = vpop.f32.mrf.mxu0
        %v1199 = vadd.f32 0.0, %v1198
        %v1200 = vpop.f32.mrf.mxu0
        %1201 = vmatprep.mubr.f32.mxu0 0.0
        %1202 = vmatmul.mubr.f32.gmra.mxu0 %v1110
        %v1203 = vpop.f32.mrf.mxu0
        %v1204 = vadd.f32 0.0, %v1203
        %v1205 = vpop.f32.mrf.mxu0
        %1206 = vmatprep.mubr.f32.mxu0 0.0
        %1207 = vmatmul.mubr.f32.gmra.mxu0 %v1113
        %v1208 = vpop.f32.mrf.mxu0
        %v1209 = vadd.f32 0.0, %v1208
        %v1210 = vpop.f32.mrf.mxu0
        %1211 = vmatprep.mubr.f32.mxu0 0.0
        %1212 = vmatmul.mubr.f32.gmra.mxu0 %v1116
        %v1213 = vpop.f32.mrf.mxu0
        %v1214 = vadd.f32 0.0, %v1213
        %v1215 = vpop.f32.mrf.mxu0
        %1216 = vmatprep.mubr.f32.mxu0 0.0
        %1217 = vmatmul.mubr.f32.gmra.mxu0 %v1119
        %v1218 = vpop.f32.mrf.mxu0
        %v1219 = vadd.f32 0.0, %v1218
        %v1220 = vpop.f32.mrf.mxu0
        %1221 = vmatprep.mubr.f32.mxu0 0.0
        %1222 = vmatmul.mubr.f32.gmra.mxu0 %v1122
        %v1223 = vpop.f32.mrf.mxu0
        %v1224 = vadd.f32 0.0, %v1223
        %v1225 = vpop.f32.mrf.mxu0
        %1226 = vmatprep.mubr.f32.mxu0 0.0
        %1227 = vmatmul.mubr.f32.gmra.mxu0 %v1125
        %v1228 = vpop.f32.mrf.mxu0
        %v1229 = vadd.f32 0.0, %v1228
        %v1230 = vpop.f32.mrf.mxu0
        %1231 = vdwg.mxu0
        %v1233 = vsel %vm894, %v976, 0
        %v1236 = vsel %vm894, %v978, 0
        %v1239 = vsel %vm894, %v980, 0
        %v1242 = vsel %vm894, %v982, 0
        %v1245 = vsel %vm894, %v984, 0
        %v1248 = vsel %vm894, %v986, 0
        %v1251 = vsel %vm894, %v988, 0
        %v1254 = vsel %vm894, %v990, 0
        %1256 = vmatprep.subr.mxu0 0.0
        %1257 = vmatpush1.msra.mxu0 0.0
        %1258 = vmatprep.subr.mxu0 0.0
        %1259 = vmatpush1.msra.mxu0 0.0
        %1260 = vmatprep.subr.mxu0 0.0
        %1261 = vmatpush1.msra.mxu0 0.0
        %1262 = vmatprep.subr.mxu0 0.0
        %1263 = vmatpush1.msra.mxu0 0.0
        %1264 = vmatprep.subr.mxu0 0.0
        %1265 = vmatpush1.msra.mxu0 0.0
        %1266 = vmatprep.subr.mxu0 0.0
        %1267 = vmatpush1.msra.mxu0 0.0
        %1268 = vmatprep.subr.mxu0 0.0
        %1269 = vmatpush1.msra.mxu0 0.0
        %1270 = vmatprep.subr.mxu0 0.0
        %1271 = vmatpush1.msra.mxu0 0.0
        %1272 = vmatprep.subr.mxu0 0.0
        %1273 = vmatpush1.msra.mxu0 %v570
        %1274 = vmatprep.subr.mxu0 0.0
        %1275 = vmatpush1.msra.mxu0 %v569
        %1276 = vmatprep.subr.mxu0 0.0
        %1277 = vmatpush1.msra.mxu0 %v568
        %1278 = vmatprep.subr.mxu0 0.0
        %1279 = vmatpush1.msra.mxu0 %v567
        %1280 = vmatprep.subr.mxu0 0.0
        %1281 = vmatpush1.msra.mxu0 %v566
        %1282 = vmatprep.subr.mxu0 0.0
        %1283 = vmatpush1.msra.mxu0 %v565
        %1284 = vmatprep.subr.mxu0 0.0
        %1285 = vmatpush1.msra.mxu0 %v564
        %1286 = vmatprep.subr.mxu0 0.0
        %1287 = vmatpush1.msra.mxu0 %v563
        %1288 = vmatprep.subr.mxu0 0.0
        %1289 = vmatpush2.msra.mxu0 0.0
        %1290 = vmatprep.subr.mxu0 0.0
        %1291 = vmatpush2.msra.mxu0 0.0
        %1292 = vmatprep.subr.mxu0 0.0
        %1293 = vmatpush2.msra.mxu0 0.0
        %1294 = vmatprep.subr.mxu0 0.0
        %1295 = vmatpush2.msra.mxu0 0.0
        %1296 = vmatprep.subr.mxu0 0.0
        %1297 = vmatpush2.msra.mxu0 0.0
        %1298 = vmatprep.subr.mxu0 0.0
        %1299 = vmatpush2.msra.mxu0 0.0
        %1300 = vmatprep.subr.mxu0 0.0
        %1301 = vmatpush2.msra.mxu0 0.0
        %1302 = vmatprep.subr.mxu0 0.0
        %1303 = vmatpush2.msra.mxu0 0.0
        %1304 = vmatprep.subr.mxu0 0.0
        %1305 = vmatpush2.msra.mxu0 0.0
        %1306 = vmatprep.subr.mxu0 0.0
        %1307 = vmatpush2.msra.mxu0 0.0
        %1308 = vmatprep.subr.mxu0 0.0
        %1309 = vmatpush2.msra.mxu0 0.0
        %1310 = vmatprep.subr.mxu0 0.0
        %1311 = vmatpush2.msra.mxu0 0.0
        %1312 = vmatprep.subr.mxu0 0.0
        %1313 = vmatpush2.msra.mxu0 0.0
        %1314 = vmatprep.subr.mxu0 0.0
        %1315 = vmatpush2.msra.mxu0 0.0
        %1316 = vmatprep.subr.mxu0 0.0
        %1317 = vmatpush2.msra.mxu0 0.0
        %1318 = vmatprep.subr.mxu0 0.0
        %1319 = vmatpush2.msra.mxu0 0.0
        %1320 = vmatprep.mubr.f32.mxu0 0.0
        %1321 = vmatmul.mubr.f32.gmra.mxu0 %v1233
        %v1322 = vpop.f32.mrf.mxu0
        %v1323 = vadd.f32 0.0, %v1322
        %v1324 = vpop.f32.mrf.mxu0
        %1325 = vmatprep.mubr.f32.mxu0 0.0
        %1326 = vmatmul.mubr.f32.gmra.mxu0 %v1236
        %v1327 = vpop.f32.mrf.mxu0
        %v1328 = vadd.f32 0.0, %v1327
        %v1329 = vpop.f32.mrf.mxu0
        %1330 = vmatprep.mubr.f32.mxu0 0.0
        %1331 = vmatmul.mubr.f32.gmra.mxu0 %v1239
        %v1332 = vpop.f32.mrf.mxu0
        %v1333 = vadd.f32 0.0, %v1332
        %v1334 = vpop.f32.mrf.mxu0
        %1335 = vmatprep.mubr.f32.mxu0 0.0
        %1336 = vmatmul.mubr.f32.gmra.mxu0 %v1242
        %v1337 = vpop.f32.mrf.mxu0
        %v1338 = vadd.f32 0.0, %v1337
        %v1339 = vpop.f32.mrf.mxu0
        %1340 = vmatprep.mubr.f32.mxu0 0.0
        %1341 = vmatmul.mubr.f32.gmra.mxu0 %v1245
        %v1342 = vpop.f32.mrf.mxu0
        %v1343 = vadd.f32 0.0, %v1342
        %v1344 = vpop.f32.mrf.mxu0
        %1345 = vmatprep.mubr.f32.mxu0 0.0
        %1346 = vmatmul.mubr.f32.gmra.mxu0 %v1248
        %v1347 = vpop.f32.mrf.mxu0
        %v1348 = vadd.f32 0.0, %v1347
        %v1349 = vpop.f32.mrf.mxu0
        %1350 = vmatprep.mubr.f32.mxu0 0.0
        %1351 = vmatmul.mubr.f32.gmra.mxu0 %v1251
        %v1352 = vpop.f32.mrf.mxu0
        %v1353 = vadd.f32 0.0, %v1352
        %v1354 = vpop.f32.mrf.mxu0
        %1355 = vmatprep.mubr.f32.mxu0 0.0
        %1356 = vmatmul.mubr.f32.gmra.mxu0 %v1254
        %v1357 = vpop.f32.mrf.mxu0
        %v1358 = vadd.f32 0.0, %v1357
        %v1359 = vpop.f32.mrf.mxu0
        %1360 = vdwg.mxu0
        %v1361 = vmul.f32 %v1194, %v1087
        %v1362 = vmul.f32 %v1199, %v1088
        %v1363 = vmul.f32 %v1204, %v1089
        %v1364 = vmul.f32 %v1209, %v1090
        %v1365 = vmul.f32 %v1214, %v1091
        %v1366 = vmul.f32 %v1219, %v1092
        %v1367 = vmul.f32 %v1224, %v1093
        %v1368 = vmul.f32 %v1229, %v1094
        %v1369 = vmul.f32 %v1323, %v1095
        %v1370 = vmul.f32 %v1328, %v1096
        %v1371 = vmul.f32 %v1333, %v1097
        %v1372 = vmul.f32 %v1338, %v1098
        %v1373 = vmul.f32 %v1343, %v1099
        %v1374 = vmul.f32 %v1348, %v1100
        %v1375 = vmul.f32 %v1353, %v1101
        %v1376 = vmul.f32 %v1358, %v1102
        %1377 = vrot.lane.b32.xlu0 %v571, 120
        %v1378 = vpop.permute.xlu0 %1377
        %1379 = vrot.lane.b32.xlu0 %v572, 120
        %v1380 = vpop.permute.xlu0 %1379
        %1381 = vrot.lane.b32.xlu0 %v573, 120
        %v1382 = vpop.permute.xlu0 %1381
        %1383 = vrot.lane.b32.xlu0 %v574, 120
        %v1384 = vpop.permute.xlu0 %1383
        %1385 = vrot.lane.b32.xlu0 %v575, 120
        %v1386 = vpop.permute.xlu0 %1385
        %1387 = vrot.lane.b32.xlu0 %v576, 120
        %v1388 = vpop.permute.xlu0 %1387
        %1389 = vrot.lane.b32.xlu0 %v577, 120
        %v1390 = vpop.permute.xlu0 %1389
        %1391 = vrot.lane.b32.xlu0 %v578, 120
        %v1392 = vpop.permute.xlu0 %1391
        %1393 = vrot.lane.b32.xlu0 %v539, 120
        %v1394 = vpop.permute.xlu0 %1393
        %1395 = vrot.lane.b32.xlu0 %v540, 120
        %v1396 = vpop.permute.xlu0 %1395
        %1397 = vrot.lane.b32.xlu0 %v541, 120
        %v1398 = vpop.permute.xlu0 %1397
        %1399 = vrot.lane.b32.xlu0 %v542, 120
        %v1400 = vpop.permute.xlu0 %1399
        %1401 = vrot.lane.b32.xlu0 %v543, 120
        %v1402 = vpop.permute.xlu0 %1401
        %1403 = vrot.lane.b32.xlu0 %v544, 120
        %v1404 = vpop.permute.xlu0 %1403
        %1405 = vrot.lane.b32.xlu0 %v545, 120
        %v1406 = vpop.permute.xlu0 %1405
        %1407 = vrot.lane.b32.xlu0 %v546, 120
        %v1408 = vpop.permute.xlu0 %1407
        %v1409 = vsel %vm587, %v1378, 0
        %v1411 = vsel %vm587, %v1380, 0
        %v1413 = vsel %vm587, %v1382, 0
        %v1415 = vsel %vm587, %v1384, 0
        %v1417 = vsel %vm587, %v1386, 0
        %v1419 = vsel %vm587, %v1388, 0
        %v1421 = vsel %vm587, %v1390, 0
        %v1423 = vsel %vm587, %v1392, 0
        %v1425 = vsel %vm587, %v1394, 0
        %v1427 = vsel %vm587, %v1396, 0
        %v1429 = vsel %vm587, %v1398, 0
        %v1431 = vsel %vm587, %v1400, 0
        %v1433 = vsel %vm587, %v1402, 0
        %v1435 = vsel %vm587, %v1404, 0
        %v1437 = vsel %vm587, %v1406, 0
        %v1439 = vsel %vm587, %v1408, 0
        %1441 = vmatprep.subr.mxu0 0.0
        %1442 = vmatpush1.xpose.msra.mxu0 0.0
        %1443 = vmatprep.subr.mxu0 0.0
        %1444 = vmatpush1.xpose.msra.mxu0 0.0
        %1445 = vmatprep.subr.mxu0 0.0
        %1446 = vmatpush1.xpose.msra.mxu0 0.0
        %1447 = vmatprep.subr.mxu0 0.0
        %1448 = vmatpush1.xpose.msra.mxu0 0.0
        %1449 = vmatprep.subr.mxu0 0.0
        %1450 = vmatpush1.xpose.msra.mxu0 0.0
        %1451 = vmatprep.subr.mxu0 0.0
        %1452 = vmatpush1.xpose.msra.mxu0 0.0
        %1453 = vmatprep.subr.mxu0 0.0
        %1454 = vmatpush1.xpose.msra.mxu0 0.0
        %1455 = vmatprep.subr.mxu0 0.0
        %1456 = vmatpush1.xpose.msra.mxu0 0.0
        %1457 = vmatprep.subr.mxu0 0.0
        %1458 = vmatpush1.xpose.msra.mxu0 %v1439
        %1459 = vmatprep.subr.mxu0 0.0
        %1460 = vmatpush1.xpose.msra.mxu0 %v1437
        %1461 = vmatprep.subr.mxu0 0.0
        %1462 = vmatpush1.xpose.msra.mxu0 %v1435
        %1463 = vmatprep.subr.mxu0 0.0
        %1464 = vmatpush1.xpose.msra.mxu0 %v1433
        %1465 = vmatprep.subr.mxu0 0.0
        %1466 = vmatpush1.xpose.msra.mxu0 %v1431
        %1467 = vmatprep.subr.mxu0 0.0
        %1468 = vmatpush1.xpose.msra.mxu0 %v1429
        %1469 = vmatprep.subr.mxu0 0.0
        %1470 = vmatpush1.xpose.msra.mxu0 %v1427
        %1471 = vmatprep.subr.mxu0 0.0
        %1472 = vmatpush1.xpose.msra.mxu0 %v1425
        %1473 = vmatprep.subr.mxu0 0.0
        %1474 = vmatpush2.xpose.msra.mxu0 0.0
        %1475 = vmatprep.subr.mxu0 0.0
        %1476 = vmatpush2.xpose.msra.mxu0 0.0
        %1477 = vmatprep.subr.mxu0 0.0
        %1478 = vmatpush2.xpose.msra.mxu0 0.0
        %1479 = vmatprep.subr.mxu0 0.0
        %1480 = vmatpush2.xpose.msra.mxu0 0.0
        %1481 = vmatprep.subr.mxu0 0.0
        %1482 = vmatpush2.xpose.msra.mxu0 0.0
        %1483 = vmatprep.subr.mxu0 0.0
        %1484 = vmatpush2.xpose.msra.mxu0 0.0
        %1485 = vmatprep.subr.mxu0 0.0
        %1486 = vmatpush2.xpose.msra.mxu0 0.0
        %1487 = vmatprep.subr.mxu0 0.0
        %1488 = vmatpush2.xpose.msra.mxu0 0.0
        %1489 = vmatprep.subr.mxu0 0.0
        %1490 = vmatpush2.xpose.msra.mxu0 0.0
        %1491 = vmatprep.subr.mxu0 0.0
        %1492 = vmatpush2.xpose.msra.mxu0 0.0
        %1493 = vmatprep.subr.mxu0 0.0
        %1494 = vmatpush2.xpose.msra.mxu0 0.0
        %1495 = vmatprep.subr.mxu0 0.0
        %1496 = vmatpush2.xpose.msra.mxu0 0.0
        %1497 = vmatprep.subr.mxu0 0.0
        %1498 = vmatpush2.xpose.msra.mxu0 0.0
        %1499 = vmatprep.subr.mxu0 0.0
        %1500 = vmatpush2.xpose.msra.mxu0 0.0
        %1501 = vmatprep.subr.mxu0 0.0
        %1502 = vmatpush2.xpose.msra.mxu0 0.0
        %1503 = vmatprep.subr.mxu0 0.0
        %1504 = vmatpush2.xpose.msra.mxu0 0.0
        %1505 = vmatprep.mubr.f32.mxu0 0.0
        %1506 = vmatmul.mubr.f32.gmra.mxu0 %v1409
        %v1507 = vpop.f32.mrf.mxu0
        %v1508 = vadd.f32 0.0, %v1507
        %v1509 = vpop.f32.mrf.mxu0
        %1510 = vmatprep.mubr.f32.mxu0 0.0
        %1511 = vmatmul.mubr.f32.gmra.mxu0 %v1411
        %v1512 = vpop.f32.mrf.mxu0
        %v1513 = vadd.f32 0.0, %v1512
        %v1514 = vpop.f32.mrf.mxu0
        %1515 = vmatprep.mubr.f32.mxu0 0.0
        %1516 = vmatmul.mubr.f32.gmra.mxu0 %v1413
        %v1517 = vpop.f32.mrf.mxu0
        %v1518 = vadd.f32 0.0, %v1517
        %v1519 = vpop.f32.mrf.mxu0
        %1520 = vmatprep.mubr.f32.mxu0 0.0
        %1521 = vmatmul.mubr.f32.gmra.mxu0 %v1415
        %v1522 = vpop.f32.mrf.mxu0
        %v1523 = vadd.f32 0.0, %v1522
        %v1524 = vpop.f32.mrf.mxu0
        %1525 = vmatprep.mubr.f32.mxu0 0.0
        %1526 = vmatmul.mubr.f32.gmra.mxu0 %v1417
        %v1527 = vpop.f32.mrf.mxu0
        %v1528 = vadd.f32 0.0, %v1527
        %v1529 = vpop.f32.mrf.mxu0
        %1530 = vmatprep.mubr.f32.mxu0 0.0
        %1531 = vmatmul.mubr.f32.gmra.mxu0 %v1419
        %v1532 = vpop.f32.mrf.mxu0
        %v1533 = vadd.f32 0.0, %v1532
        %v1534 = vpop.f32.mrf.mxu0
        %1535 = vmatprep.mubr.f32.mxu0 0.0
        %1536 = vmatmul.mubr.f32.gmra.mxu0 %v1421
        %v1537 = vpop.f32.mrf.mxu0
        %v1538 = vadd.f32 0.0, %v1537
        %v1539 = vpop.f32.mrf.mxu0
        %1540 = vmatprep.mubr.f32.mxu0 0.0
        %1541 = vmatmul.mubr.f32.gmra.mxu0 %v1423
        %v1542 = vpop.f32.mrf.mxu0
        %v1543 = vadd.f32 0.0, %v1542
        %v1544 = vpop.f32.mrf.mxu0
        %1545 = vdwg.mxu0
        %1546 = vrot.lane.b32.xlu0 %v579, 120
        %v1547 = vpop.permute.xlu0 %1546
        %1548 = vrot.lane.b32.xlu0 %v580, 120
        %v1549 = vpop.permute.xlu0 %1548
        %1550 = vrot.lane.b32.xlu0 %v581, 120
        %v1551 = vpop.permute.xlu0 %1550
        %1552 = vrot.lane.b32.xlu0 %v582, 120
        %v1553 = vpop.permute.xlu0 %1552
        %1554 = vrot.lane.b32.xlu0 %v583, 120
        %v1555 = vpop.permute.xlu0 %1554
        %1556 = vrot.lane.b32.xlu0 %v584, 120
        %v1557 = vpop.permute.xlu0 %1556
        %1558 = vrot.lane.b32.xlu0 %v585, 120
        %v1559 = vpop.permute.xlu0 %1558
        %1560 = vrot.lane.b32.xlu0 %v586, 120
        %v1561 = vpop.permute.xlu0 %1560
        %1562 = vrot.lane.b32.xlu0 %v547, 120
        %v1563 = vpop.permute.xlu0 %1562
        %1564 = vrot.lane.b32.xlu0 %v548, 120
        %v1565 = vpop.permute.xlu0 %1564
        %1566 = vrot.lane.b32.xlu0 %v549, 120
        %v1567 = vpop.permute.xlu0 %1566
        %1568 = vrot.lane.b32.xlu0 %v550, 120
        %v1569 = vpop.permute.xlu0 %1568
        %1570 = vrot.lane.b32.xlu0 %v551, 120
        %v1571 = vpop.permute.xlu0 %1570
        %1572 = vrot.lane.b32.xlu0 %v552, 120
        %v1573 = vpop.permute.xlu0 %1572
        %1574 = vrot.lane.b32.xlu0 %v553, 120
        %v1575 = vpop.permute.xlu0 %1574
        %1576 = vrot.lane.b32.xlu0 %v554, 120
        %v1577 = vpop.permute.xlu0 %1576
        %v1578 = vsel %vm587, %v1547, 0
        %v1580 = vsel %vm587, %v1549, 0
        %v1582 = vsel %vm587, %v1551, 0
        %v1584 = vsel %vm587, %v1553, 0
        %v1586 = vsel %vm587, %v1555, 0
        %v1588 = vsel %vm587, %v1557, 0
        %v1590 = vsel %vm587, %v1559, 0
        %v1592 = vsel %vm587, %v1561, 0
        %v1594 = vsel %vm587, %v1563, 0
        %v1596 = vsel %vm587, %v1565, 0
        %v1598 = vsel %vm587, %v1567, 0
        %v1600 = vsel %vm587, %v1569, 0
        %v1602 = vsel %vm587, %v1571, 0
        %v1604 = vsel %vm587, %v1573, 0
        %v1606 = vsel %vm587, %v1575, 0
        %v1608 = vsel %vm587, %v1577, 0
        %1610 = vmatprep.subr.mxu0 0.0
        %1611 = vmatpush1.xpose.msra.mxu0 0.0
        %1612 = vmatprep.subr.mxu0 0.0
        %1613 = vmatpush1.xpose.msra.mxu0 0.0
        %1614 = vmatprep.subr.mxu0 0.0
        %1615 = vmatpush1.xpose.msra.mxu0 0.0
        %1616 = vmatprep.subr.mxu0 0.0
        %1617 = vmatpush1.xpose.msra.mxu0 0.0
        %1618 = vmatprep.subr.mxu0 0.0
        %1619 = vmatpush1.xpose.msra.mxu0 0.0
        %1620 = vmatprep.subr.mxu0 0.0
        %1621 = vmatpush1.xpose.msra.mxu0 0.0
        %1622 = vmatprep.subr.mxu0 0.0
        %1623 = vmatpush1.xpose.msra.mxu0 0.0
        %1624 = vmatprep.subr.mxu0 0.0
        %1625 = vmatpush1.xpose.msra.mxu0 0.0
        %1626 = vmatprep.subr.mxu0 0.0
        %1627 = vmatpush1.xpose.msra.mxu0 %v1608
        %1628 = vmatprep.subr.mxu0 0.0
        %1629 = vmatpush1.xpose.msra.mxu0 %v1606
        %1630 = vmatprep.subr.mxu0 0.0
        %1631 = vmatpush1.xpose.msra.mxu0 %v1604
        %1632 = vmatprep.subr.mxu0 0.0
        %1633 = vmatpush1.xpose.msra.mxu0 %v1602
        %1634 = vmatprep.subr.mxu0 0.0
        %1635 = vmatpush1.xpose.msra.mxu0 %v1600
        %1636 = vmatprep.subr.mxu0 0.0
        %1637 = vmatpush1.xpose.msra.mxu0 %v1598
        %1638 = vmatprep.subr.mxu0 0.0
        %1639 = vmatpush1.xpose.msra.mxu0 %v1596
        %1640 = vmatprep.subr.mxu0 0.0
        %1641 = vmatpush1.xpose.msra.mxu0 %v1594
        %1642 = vmatprep.subr.mxu0 0.0
        %1643 = vmatpush2.xpose.msra.mxu0 0.0
        %1644 = vmatprep.subr.mxu0 0.0
        %1645 = vmatpush2.xpose.msra.mxu0 0.0
        %1646 = vmatprep.subr.mxu0 0.0
        %1647 = vmatpush2.xpose.msra.mxu0 0.0
        %1648 = vmatprep.subr.mxu0 0.0
        %1649 = vmatpush2.xpose.msra.mxu0 0.0
        %1650 = vmatprep.subr.mxu0 0.0
        %1651 = vmatpush2.xpose.msra.mxu0 0.0
        %1652 = vmatprep.subr.mxu0 0.0
        %1653 = vmatpush2.xpose.msra.mxu0 0.0
        %1654 = vmatprep.subr.mxu0 0.0
        %1655 = vmatpush2.xpose.msra.mxu0 0.0
        %1656 = vmatprep.subr.mxu0 0.0
        %1657 = vmatpush2.xpose.msra.mxu0 0.0
        %1658 = vmatprep.subr.mxu0 0.0
        %1659 = vmatpush2.xpose.msra.mxu0 0.0
        %1660 = vmatprep.subr.mxu0 0.0
        %1661 = vmatpush2.xpose.msra.mxu0 0.0
        %1662 = vmatprep.subr.mxu0 0.0
        %1663 = vmatpush2.xpose.msra.mxu0 0.0
        %1664 = vmatprep.subr.mxu0 0.0
        %1665 = vmatpush2.xpose.msra.mxu0 0.0
        %1666 = vmatprep.subr.mxu0 0.0
        %1667 = vmatpush2.xpose.msra.mxu0 0.0
        %1668 = vmatprep.subr.mxu0 0.0
        %1669 = vmatpush2.xpose.msra.mxu0 0.0
        %1670 = vmatprep.subr.mxu0 0.0
        %1671 = vmatpush2.xpose.msra.mxu0 0.0
        %1672 = vmatprep.subr.mxu0 0.0
        %1673 = vmatpush2.xpose.msra.mxu0 0.0
        %1674 = vmatprep.mubr.f32.mxu0 0.0
        %1675 = vmatmul.mubr.f32.gmra.mxu0 %v1578
        %v1676 = vpop.f32.mrf.mxu0
        %v1677 = vadd.f32 0.0, %v1676
        %v1678 = vpop.f32.mrf.mxu0
        %1679 = vmatprep.mubr.f32.mxu0 0.0
        %1680 = vmatmul.mubr.f32.gmra.mxu0 %v1580
        %v1681 = vpop.f32.mrf.mxu0
        %v1682 = vadd.f32 0.0, %v1681
        %v1683 = vpop.f32.mrf.mxu0
        %1684 = vmatprep.mubr.f32.mxu0 0.0
        %1685 = vmatmul.mubr.f32.gmra.mxu0 %v1582
        %v1686 = vpop.f32.mrf.mxu0
        %v1687 = vadd.f32 0.0, %v1686
        %v1688 = vpop.f32.mrf.mxu0
        %1689 = vmatprep.mubr.f32.mxu0 0.0
        %1690 = vmatmul.mubr.f32.gmra.mxu0 %v1584
        %v1691 = vpop.f32.mrf.mxu0
        %v1692 = vadd.f32 0.0, %v1691
        %v1693 = vpop.f32.mrf.mxu0
        %1694 = vmatprep.mubr.f32.mxu0 0.0
        %1695 = vmatmul.mubr.f32.gmra.mxu0 %v1586
        %v1696 = vpop.f32.mrf.mxu0
        %v1697 = vadd.f32 0.0, %v1696
        %v1698 = vpop.f32.mrf.mxu0
        %1699 = vmatprep.mubr.f32.mxu0 0.0
        %1700 = vmatmul.mubr.f32.gmra.mxu0 %v1588
        %v1701 = vpop.f32.mrf.mxu0
        %v1702 = vadd.f32 0.0, %v1701
        %v1703 = vpop.f32.mrf.mxu0
        %1704 = vmatprep.mubr.f32.mxu0 0.0
        %1705 = vmatmul.mubr.f32.gmra.mxu0 %v1590
        %v1706 = vpop.f32.mrf.mxu0
        %v1707 = vadd.f32 0.0, %v1706
        %v1708 = vpop.f32.mrf.mxu0
        %1709 = vmatprep.mubr.f32.mxu0 0.0
        %1710 = vmatmul.mubr.f32.gmra.mxu0 %v1592
        %v1711 = vpop.f32.mrf.mxu0
        %v1712 = vadd.f32 0.0, %v1711
        %v1713 = vpop.f32.mrf.mxu0
        %1714 = vdwg.mxu0
        %v1715 = vsel %vm894, %v1508, -inf
        %1716 = vmax.xlane.f32.xlu0 %v1715
        %v1717 = vpop.xlane.xlu0 %1716
        %v1718 = vsel %vm894, %v1513, -inf
        %1719 = vmax.xlane.f32.xlu0 %v1718
        %v1720 = vpop.xlane.xlu0 %1719
        %v1721 = vsel %vm894, %v1518, -inf
        %1722 = vmax.xlane.f32.xlu0 %v1721
        %v1723 = vpop.xlane.xlu0 %1722
        %v1724 = vsel %vm894, %v1523, -inf
        %1725 = vmax.xlane.f32.xlu0 %v1724
        %v1726 = vpop.xlane.xlu0 %1725
        %v1727 = vsel %vm894, %v1528, -inf
        %1728 = vmax.xlane.f32.xlu0 %v1727
        %v1729 = vpop.xlane.xlu0 %1728
        %v1730 = vsel %vm894, %v1533, -inf
        %1731 = vmax.xlane.f32.xlu0 %v1730
        %v1732 = vpop.xlane.xlu0 %1731
        %v1733 = vsel %vm894, %v1538, -inf
        %1734 = vmax.xlane.f32.xlu0 %v1733
        %v1735 = vpop.xlane.xlu0 %1734
        %v1736 = vsel %vm894, %v1543, -inf
        %1737 = vmax.xlane.f32.xlu0 %v1736
        %v1738 = vpop.xlane.xlu0 %1737
        %v1739 = vsel %vm894, %v1677, -inf
        %1740 = vmax.xlane.f32.xlu0 %v1739
        %v1741 = vpop.xlane.xlu0 %1740
        %v1742 = vsel %vm894, %v1682, -inf
        %1743 = vmax.xlane.f32.xlu0 %v1742
        %v1744 = vpop.xlane.xlu0 %1743
        %v1745 = vsel %vm894, %v1687, -inf
        %1746 = vmax.xlane.f32.xlu0 %v1745
        %v1747 = vpop.xlane.xlu0 %1746
        %v1748 = vsel %vm894, %v1692, -inf
        %1749 = vmax.xlane.f32.xlu0 %v1748
        %v1750 = vpop.xlane.xlu0 %1749
        %v1751 = vsel %vm894, %v1697, -inf
        %1752 = vmax.xlane.f32.xlu0 %v1751
        %v1753 = vpop.xlane.xlu0 %1752
        %v1754 = vsel %vm894, %v1702, -inf
        %1755 = vmax.xlane.f32.xlu0 %v1754
        %v1756 = vpop.xlane.xlu0 %1755
        %v1757 = vsel %vm894, %v1707, -inf
        %1758 = vmax.xlane.f32.xlu0 %v1757
        %v1759 = vpop.xlane.xlu0 %1758
        %v1760 = vsel %vm894, %v1712, -inf
        %1761 = vmax.xlane.f32.xlu0 %v1760
        %v1762 = vpop.xlane.xlu0 %1761
        %v1763 = vsub.f32 %v1508, %v1717
        %v1764 = vsub.f32 %v1513, %v1720
        %v1765 = vsub.f32 %v1518, %v1723
        %v1766 = vsub.f32 %v1523, %v1726
        %v1767 = vsub.f32 %v1528, %v1729
        %v1768 = vsub.f32 %v1533, %v1732
        %v1769 = vsub.f32 %v1538, %v1735
        %v1770 = vsub.f32 %v1543, %v1738
        %v1771 = vsub.f32 %v1677, %v1741
        %v1772 = vsub.f32 %v1682, %v1744
        %v1773 = vsub.f32 %v1687, %v1747
        %v1774 = vsub.f32 %v1692, %v1750
        %v1775 = vsub.f32 %v1697, %v1753
        %v1776 = vsub.f32 %v1702, %v1756
        %v1777 = vsub.f32 %v1707, %v1759
        %v1778 = vsub.f32 %v1712, %v1762
        %v1779 = vmul.f32 %v1763, 1.442695
        %v1780 = vpow.pop %v1779
        %v1781 = vmul.f32 %v1764, 1.442695
        %v1782 = vpow.pop %v1781
        %v1783 = vmul.f32 %v1765, 1.442695
        %v1784 = vpow.pop %v1783
        %v1785 = vmul.f32 %v1766, 1.442695
        %v1786 = vpow.pop %v1785
        %v1787 = vmul.f32 %v1767, 1.442695
        %v1788 = vpow.pop %v1787
        %v1789 = vmul.f32 %v1768, 1.442695
        %v1790 = vpow.pop %v1789
        %v1791 = vmul.f32 %v1769, 1.442695
        %v1792 = vpow.pop %v1791
        %v1793 = vmul.f32 %v1770, 1.442695
        %v1794 = vpow.pop %v1793
        %v1795 = vmul.f32 %v1771, 1.442695
        %v1796 = vpow.pop %v1795
        %v1797 = vmul.f32 %v1772, 1.442695
        %v1798 = vpow.pop %v1797
        %v1799 = vmul.f32 %v1773, 1.442695
        %v1800 = vpow.pop %v1799
        %v1801 = vmul.f32 %v1774, 1.442695
        %v1802 = vpow.pop %v1801
        %v1803 = vmul.f32 %v1775, 1.442695
        %v1804 = vpow.pop %v1803
        %v1805 = vmul.f32 %v1776, 1.442695
        %v1806 = vpow.pop %v1805
        %v1807 = vmul.f32 %v1777, 1.442695
        %v1808 = vpow.pop %v1807
        %v1809 = vmul.f32 %v1778, 1.442695
        %v1810 = vpow.pop %v1809
        %v1811 = vsel %vm894, %v1780, 0.0
        %1812 = vadd.xlane.f32.xlu0 %v1811
        %v1813 = vpop.xlane.xlu0 %1812
        %v1814 = vsel %vm894, %v1782, 0.0
        %1815 = vadd.xlane.f32.xlu0 %v1814
        %v1816 = vpop.xlane.xlu0 %1815
        %v1817 = vsel %vm894, %v1784, 0.0
        %1818 = vadd.xlane.f32.xlu0 %v1817
        %v1819 = vpop.xlane.xlu0 %1818
        %v1820 = vsel %vm894, %v1786, 0.0
        %1821 = vadd.xlane.f32.xlu0 %v1820
        %v1822 = vpop.xlane.xlu0 %1821
        %v1823 = vsel %vm894, %v1788, 0.0
        %1824 = vadd.xlane.f32.xlu0 %v1823
        %v1825 = vpop.xlane.xlu0 %1824
        %v1826 = vsel %vm894, %v1790, 0.0
        %1827 = vadd.xlane.f32.xlu0 %v1826
        %v1828 = vpop.xlane.xlu0 %1827
        %v1829 = vsel %vm894, %v1792, 0.0
        %1830 = vadd.xlane.f32.xlu0 %v1829
        %v1831 = vpop.xlane.xlu0 %1830
        %v1832 = vsel %vm894, %v1794, 0.0
        %1833 = vadd.xlane.f32.xlu0 %v1832
        %v1834 = vpop.xlane.xlu0 %1833
        %v1835 = vsel %vm894, %v1796, 0.0
        %1836 = vadd.xlane.f32.xlu0 %v1835
        %v1837 = vpop.xlane.xlu0 %1836
        %v1838 = vsel %vm894, %v1798, 0.0
        %1839 = vadd.xlane.f32.xlu0 %v1838
        %v1840 = vpop.xlane.xlu0 %1839
        %v1841 = vsel %vm894, %v1800, 0.0
        %1842 = vadd.xlane.f32.xlu0 %v1841
        %v1843 = vpop.xlane.xlu0 %1842
        %v1844 = vsel %vm894, %v1802, 0.0
        %1845 = vadd.xlane.f32.xlu0 %v1844
        %v1846 = vpop.xlane.xlu0 %1845
        %v1847 = vsel %vm894, %v1804, 0.0
        %1848 = vadd.xlane.f32.xlu0 %v1847
        %v1849 = vpop.xlane.xlu0 %1848
        %v1850 = vsel %vm894, %v1806, 0.0
        %1851 = vadd.xlane.f32.xlu0 %v1850
        %v1852 = vpop.xlane.xlu0 %1851
        %v1853 = vsel %vm894, %v1808, 0.0
        %1854 = vadd.xlane.f32.xlu0 %v1853
        %v1855 = vpop.xlane.xlu0 %1854
        %v1856 = vsel %vm894, %v1810, 0.0
        %1857 = vadd.xlane.f32.xlu0 %v1856
        %v1858 = vpop.xlane.xlu0 %1857
        %v1859 = vrcp.pop %v1813
        %v1860 = vrcp.pop %v1816
        %v1861 = vrcp.pop %v1819
        %v1862 = vrcp.pop %v1822
        %v1863 = vrcp.pop %v1825
        %v1864 = vrcp.pop %v1828
        %v1865 = vrcp.pop %v1831
        %v1866 = vrcp.pop %v1834
        %v1867 = vrcp.pop %v1837
        %v1868 = vrcp.pop %v1840
        %v1869 = vrcp.pop %v1843
        %v1870 = vrcp.pop %v1846
        %v1871 = vrcp.pop %v1849
        %v1872 = vrcp.pop %v1852
        %v1873 = vrcp.pop %v1855
        %v1874 = vrcp.pop %v1858
        %v1875 = vmul.f32 %v1813, %v1859
        %v1876 = vmul.f32 %v1816, %v1860
        %v1877 = vmul.f32 %v1819, %v1861
        %v1878 = vmul.f32 %v1822, %v1862
        %v1879 = vmul.f32 %v1825, %v1863
        %v1880 = vmul.f32 %v1828, %v1864
        %v1881 = vmul.f32 %v1831, %v1865
        %v1882 = vmul.f32 %v1834, %v1866
        %v1883 = vmul.f32 %v1837, %v1867
        %v1884 = vmul.f32 %v1840, %v1868
        %v1885 = vmul.f32 %v1843, %v1869
        %v1886 = vmul.f32 %v1846, %v1870
        %v1887 = vmul.f32 %v1849, %v1871
        %v1888 = vmul.f32 %v1852, %v1872
        %v1889 = vmul.f32 %v1855, %v1873
        %v1890 = vmul.f32 %v1858, %v1874
        %v1891 = vsub.f32 2.0, %v1875
        %v1892 = vsub.f32 2.0, %v1876
        %v1893 = vsub.f32 2.0, %v1877
        %v1894 = vsub.f32 2.0, %v1878
        %v1895 = vsub.f32 2.0, %v1879
        %v1896 = vsub.f32 2.0, %v1880
        %v1897 = vsub.f32 2.0, %v1881
        %v1898 = vsub.f32 2.0, %v1882
        %v1899 = vsub.f32 2.0, %v1883
        %v1900 = vsub.f32 2.0, %v1884
        %v1901 = vsub.f32 2.0, %v1885
        %v1902 = vsub.f32 2.0, %v1886
        %v1903 = vsub.f32 2.0, %v1887
        %v1904 = vsub.f32 2.0, %v1888
        %v1905 = vsub.f32 2.0, %v1889
        %v1906 = vsub.f32 2.0, %v1890
        %v1907 = vmul.f32 %v1859, %v1891
        %v1908 = vmul.f32 %v1860, %v1892
        %v1909 = vmul.f32 %v1861, %v1893
        %v1910 = vmul.f32 %v1862, %v1894
        %v1911 = vmul.f32 %v1863, %v1895
        %v1912 = vmul.f32 %v1864, %v1896
        %v1913 = vmul.f32 %v1865, %v1897
        %v1914 = vmul.f32 %v1866, %v1898
        %v1915 = vmul.f32 %v1867, %v1899
        %v1916 = vmul.f32 %v1868, %v1900
        %v1917 = vmul.f32 %v1869, %v1901
        %v1918 = vmul.f32 %v1870, %v1902
        %v1919 = vmul.f32 %v1871, %v1903
        %v1920 = vmul.f32 %v1872, %v1904
        %v1921 = vmul.f32 %v1873, %v1905
        %v1922 = vmul.f32 %v1874, %v1906
        %1931 = vrot.lane.b32.xlu0 %v555, 120
        %v1932 = vpop.permute.xlu0 %1931
        %1933 = vrot.lane.b32.xlu0 %v556, 120
        %v1934 = vpop.permute.xlu0 %1933
        %1935 = vrot.lane.b32.xlu0 %v557, 120
        %v1936 = vpop.permute.xlu0 %1935
        %1937 = vrot.lane.b32.xlu0 %v558, 120
        %v1938 = vpop.permute.xlu0 %1937
        %1939 = vrot.lane.b32.xlu0 %v559, 120
        %v1940 = vpop.permute.xlu0 %1939
        %1941 = vrot.lane.b32.xlu0 %v560, 120
        %v1942 = vpop.permute.xlu0 %1941
        %1943 = vrot.lane.b32.xlu0 %v561, 120
        %v1944 = vpop.permute.xlu0 %1943
        %1945 = vrot.lane.b32.xlu0 %v562, 120
        %v1946 = vpop.permute.xlu0 %1945
        %v1956 = vsel %vm894, %v1780, 0
        %v1959 = vsel %vm894, %v1782, 0
        %v1962 = vsel %vm894, %v1784, 0
        %v1965 = vsel %vm894, %v1786, 0
        %v1968 = vsel %vm894, %v1788, 0
        %v1971 = vsel %vm894, %v1790, 0
        %v1974 = vsel %vm894, %v1792, 0
        %v1977 = vsel %vm894, %v1794, 0
        %1979 = vmatprep.subr.mxu0 0.0
        %1980 = vmatpush1.msra.mxu0 0.0
        %1981 = vmatprep.subr.mxu0 0.0
        %1982 = vmatpush1.msra.mxu0 0.0
        %1983 = vmatprep.subr.mxu0 0.0
        %1984 = vmatpush1.msra.mxu0 0.0
        %1985 = vmatprep.subr.mxu0 0.0
        %1986 = vmatpush1.msra.mxu0 0.0
        %1987 = vmatprep.subr.mxu0 0.0
        %1988 = vmatpush1.msra.mxu0 0.0
        %1989 = vmatprep.subr.mxu0 0.0
        %1990 = vmatpush1.msra.mxu0 0.0
        %1991 = vmatprep.subr.mxu0 0.0
        %1992 = vmatpush1.msra.mxu0 0.0
        %1993 = vmatprep.subr.mxu0 0.0
        %1994 = vmatpush1.msra.mxu0 0.0
        %1995 = vmatprep.subr.mxu0 0.0
        %1996 = vmatpush1.msra.mxu0 %v1946
        %1997 = vmatprep.subr.mxu0 0.0
        %1998 = vmatpush1.msra.mxu0 %v1944
        %1999 = vmatprep.subr.mxu0 0.0
        %2000 = vmatpush1.msra.mxu0 %v1942
        %2001 = vmatprep.subr.mxu0 0.0
        %2002 = vmatpush1.msra.mxu0 %v1940
        %2003 = vmatprep.subr.mxu0 0.0
        %2004 = vmatpush1.msra.mxu0 %v1938
        %2005 = vmatprep.subr.mxu0 0.0
        %2006 = vmatpush1.msra.mxu0 %v1936
        %2007 = vmatprep.subr.mxu0 0.0
        %2008 = vmatpush1.msra.mxu0 %v1934
        %2009 = vmatprep.subr.mxu0 0.0
        %2010 = vmatpush1.msra.mxu0 %v1932
        %2011 = vmatprep.subr.mxu0 0.0
        %2012 = vmatpush2.msra.mxu0 0.0
        %2013 = vmatprep.subr.mxu0 0.0
        %2014 = vmatpush2.msra.mxu0 0.0
        %2015 = vmatprep.subr.mxu0 0.0
        %2016 = vmatpush2.msra.mxu0 0.0
        %2017 = vmatprep.subr.mxu0 0.0
        %2018 = vmatpush2.msra.mxu0 0.0
        %2019 = vmatprep.subr.mxu0 0.0
        %2020 = vmatpush2.msra.mxu0 0.0
        %2021 = vmatprep.subr.mxu0 0.0
        %2022 = vmatpush2.msra.mxu0 0.0
        %2023 = vmatprep.subr.mxu0 0.0
        %2024 = vmatpush2.msra.mxu0 0.0
        %2025 = vmatprep.subr.mxu0 0.0
        %2026 = vmatpush2.msra.mxu0 0.0
        %2027 = vmatprep.subr.mxu0 0.0
        %2028 = vmatpush2.msra.mxu0 0.0
        %2029 = vmatprep.subr.mxu0 0.0
        %2030 = vmatpush2.msra.mxu0 0.0
        %2031 = vmatprep.subr.mxu0 0.0
        %2032 = vmatpush2.msra.mxu0 0.0
        %2033 = vmatprep.subr.mxu0 0.0
        %2034 = vmatpush2.msra.mxu0 0.0
        %2035 = vmatprep.subr.mxu0 0.0
        %2036 = vmatpush2.msra.mxu0 0.0
        %2037 = vmatprep.subr.mxu0 0.0
        %2038 = vmatpush2.msra.mxu0 0.0
        %2039 = vmatprep.subr.mxu0 0.0
        %2040 = vmatpush2.msra.mxu0 0.0
        %2041 = vmatprep.subr.mxu0 0.0
        %2042 = vmatpush2.msra.mxu0 0.0
        %2043 = vmatprep.mubr.f32.mxu0 0.0
        %2044 = vmatmul.mubr.f32.gmra.mxu0 %v1956
        %v2045 = vpop.f32.mrf.mxu0
        %v2046 = vadd.f32 0.0, %v2045
        %v2047 = vpop.f32.mrf.mxu0
        %2048 = vmatprep.mubr.f32.mxu0 0.0
        %2049 = vmatmul.mubr.f32.gmra.mxu0 %v1959
        %v2050 = vpop.f32.mrf.mxu0
        %v2051 = vadd.f32 0.0, %v2050
        %v2052 = vpop.f32.mrf.mxu0
        %2053 = vmatprep.mubr.f32.mxu0 0.0
        %2054 = vmatmul.mubr.f32.gmra.mxu0 %v1962
        %v2055 = vpop.f32.mrf.mxu0
        %v2056 = vadd.f32 0.0, %v2055
        %v2057 = vpop.f32.mrf.mxu0
        %2058 = vmatprep.mubr.f32.mxu0 0.0
        %2059 = vmatmul.mubr.f32.gmra.mxu0 %v1965
        %v2060 = vpop.f32.mrf.mxu0
        %v2061 = vadd.f32 0.0, %v2060
        %v2062 = vpop.f32.mrf.mxu0
        %2063 = vmatprep.mubr.f32.mxu0 0.0
        %2064 = vmatmul.mubr.f32.gmra.mxu0 %v1968
        %v2065 = vpop.f32.mrf.mxu0
        %v2066 = vadd.f32 0.0, %v2065
        %v2067 = vpop.f32.mrf.mxu0
        %2068 = vmatprep.mubr.f32.mxu0 0.0
        %2069 = vmatmul.mubr.f32.gmra.mxu0 %v1971
        %v2070 = vpop.f32.mrf.mxu0
        %v2071 = vadd.f32 0.0, %v2070
        %v2072 = vpop.f32.mrf.mxu0
        %2073 = vmatprep.mubr.f32.mxu0 0.0
        %2074 = vmatmul.mubr.f32.gmra.mxu0 %v1974
        %v2075 = vpop.f32.mrf.mxu0
        %v2076 = vadd.f32 0.0, %v2075
        %v2077 = vpop.f32.mrf.mxu0
        %2078 = vmatprep.mubr.f32.mxu0 0.0
        %2079 = vmatmul.mubr.f32.gmra.mxu0 %v1977
        %v2080 = vpop.f32.mrf.mxu0
        %v2081 = vadd.f32 0.0, %v2080
        %v2082 = vpop.f32.mrf.mxu0
        %2083 = vdwg.mxu0
        %2092 = vrot.lane.b32.xlu0 %v563, 120
        %v2093 = vpop.permute.xlu0 %2092
        %2094 = vrot.lane.b32.xlu0 %v564, 120
        %v2095 = vpop.permute.xlu0 %2094
        %2096 = vrot.lane.b32.xlu0 %v565, 120
        %v2097 = vpop.permute.xlu0 %2096
        %2098 = vrot.lane.b32.xlu0 %v566, 120
        %v2099 = vpop.permute.xlu0 %2098
        %2100 = vrot.lane.b32.xlu0 %v567, 120
        %v2101 = vpop.permute.xlu0 %2100
        %2102 = vrot.lane.b32.xlu0 %v568, 120
        %v2103 = vpop.permute.xlu0 %2102
        %2104 = vrot.lane.b32.xlu0 %v569, 120
        %v2105 = vpop.permute.xlu0 %2104
        %2106 = vrot.lane.b32.xlu0 %v570, 120
        %v2107 = vpop.permute.xlu0 %2106
        %v2117 = vsel %vm894, %v1796, 0
        %v2120 = vsel %vm894, %v1798, 0
        %v2123 = vsel %vm894, %v1800, 0
        %v2126 = vsel %vm894, %v1802, 0
        %v2129 = vsel %vm894, %v1804, 0
        %v2132 = vsel %vm894, %v1806, 0
        %v2135 = vsel %vm894, %v1808, 0
        %v2138 = vsel %vm894, %v1810, 0
        %2140 = vmatprep.subr.mxu0 0.0
        %2141 = vmatpush1.msra.mxu0 0.0
        %2142 = vmatprep.subr.mxu0 0.0
        %2143 = vmatpush1.msra.mxu0 0.0
        %2144 = vmatprep.subr.mxu0 0.0
        %2145 = vmatpush1.msra.mxu0 0.0
        %2146 = vmatprep.subr.mxu0 0.0
        %2147 = vmatpush1.msra.mxu0 0.0
        %2148 = vmatprep.subr.mxu0 0.0
        %2149 = vmatpush1.msra.mxu0 0.0
        %2150 = vmatprep.subr.mxu0 0.0
        %2151 = vmatpush1.msra.mxu0 0.0
        %2152 = vmatprep.subr.mxu0 0.0
        %2153 = vmatpush1.msra.mxu0 0.0
        %2154 = vmatprep.subr.mxu0 0.0
        %2155 = vmatpush1.msra.mxu0 0.0
        %2156 = vmatprep.subr.mxu0 0.0
        %2157 = vmatpush1.msra.mxu0 %v2107
        %2158 = vmatprep.subr.mxu0 0.0
        %2159 = vmatpush1.msra.mxu0 %v2105
        %2160 = vmatprep.subr.mxu0 0.0
        %2161 = vmatpush1.msra.mxu0 %v2103
        %2162 = vmatprep.subr.mxu0 0.0
        %2163 = vmatpush1.msra.mxu0 %v2101
        %2164 = vmatprep.subr.mxu0 0.0
        %2165 = vmatpush1.msra.mxu0 %v2099
        %2166 = vmatprep.subr.mxu0 0.0
        %2167 = vmatpush1.msra.mxu0 %v2097
        %2168 = vmatprep.subr.mxu0 0.0
        %2169 = vmatpush1.msra.mxu0 %v2095
        %2170 = vmatprep.subr.mxu0 0.0
        %2171 = vmatpush1.msra.mxu0 %v2093
        %2172 = vmatprep.subr.mxu0 0.0
        %2173 = vmatpush2.msra.mxu0 0.0
        %2174 = vmatprep.subr.mxu0 0.0
        %2175 = vmatpush2.msra.mxu0 0.0
        %2176 = vmatprep.subr.mxu0 0.0
        %2177 = vmatpush2.msra.mxu0 0.0
        %2178 = vmatprep.subr.mxu0 0.0
        %2179 = vmatpush2.msra.mxu0 0.0
        %2180 = vmatprep.subr.mxu0 0.0
        %2181 = vmatpush2.msra.mxu0 0.0
        %2182 = vmatprep.subr.mxu0 0.0
        %2183 = vmatpush2.msra.mxu0 0.0
        %2184 = vmatprep.subr.mxu0 0.0
        %2185 = vmatpush2.msra.mxu0 0.0
        %2186 = vmatprep.subr.mxu0 0.0
        %2187 = vmatpush2.msra.mxu0 0.0
        %2188 = vmatprep.subr.mxu0 0.0
        %2189 = vmatpush2.msra.mxu0 0.0
        %2190 = vmatprep.subr.mxu0 0.0
        %2191 = vmatpush2.msra.mxu0 0.0
        %2192 = vmatprep.subr.mxu0 0.0
        %2193 = vmatpush2.msra.mxu0 0.0
        %2194 = vmatprep.subr.mxu0 0.0
        %2195 = vmatpush2.msra.mxu0 0.0
        %2196 = vmatprep.subr.mxu0 0.0
        %2197 = vmatpush2.msra.mxu0 0.0
        %2198 = vmatprep.subr.mxu0 0.0
        %2199 = vmatpush2.msra.mxu0 0.0
        %2200 = vmatprep.subr.mxu0 0.0
        %2201 = vmatpush2.msra.mxu0 0.0
        %2202 = vmatprep.subr.mxu0 0.0
        %2203 = vmatpush2.msra.mxu0 0.0
        %2204 = vmatprep.mubr.f32.mxu0 0.0
        %2205 = vmatmul.mubr.f32.gmra.mxu0 %v2117
        %v2206 = vpop.f32.mrf.mxu0
        %v2207 = vadd.f32 0.0, %v2206
        %v2208 = vpop.f32.mrf.mxu0
        %2209 = vmatprep.mubr.f32.mxu0 0.0
        %2210 = vmatmul.mubr.f32.gmra.mxu0 %v2120
        %v2211 = vpop.f32.mrf.mxu0
        %v2212 = vadd.f32 0.0, %v2211
        %v2213 = vpop.f32.mrf.mxu0
        %2214 = vmatprep.mubr.f32.mxu0 0.0
        %2215 = vmatmul.mubr.f32.gmra.mxu0 %v2123
        %v2216 = vpop.f32.mrf.mxu0
        %v2217 = vadd.f32 0.0, %v2216
        %v2218 = vpop.f32.mrf.mxu0
        %2219 = vmatprep.mubr.f32.mxu0 0.0
        %2220 = vmatmul.mubr.f32.gmra.mxu0 %v2126
        %v2221 = vpop.f32.mrf.mxu0
        %v2222 = vadd.f32 0.0, %v2221
        %v2223 = vpop.f32.mrf.mxu0
        %2224 = vmatprep.mubr.f32.mxu0 0.0
        %2225 = vmatmul.mubr.f32.gmra.mxu0 %v2129
        %v2226 = vpop.f32.mrf.mxu0
        %v2227 = vadd.f32 0.0, %v2226
        %v2228 = vpop.f32.mrf.mxu0
        %2229 = vmatprep.mubr.f32.mxu0 0.0
        %2230 = vmatmul.mubr.f32.gmra.mxu0 %v2132
        %v2231 = vpop.f32.mrf.mxu0
        %v2232 = vadd.f32 0.0, %v2231
        %v2233 = vpop.f32.mrf.mxu0
        %2234 = vmatprep.mubr.f32.mxu0 0.0
        %2235 = vmatmul.mubr.f32.gmra.mxu0 %v2135
        %v2236 = vpop.f32.mrf.mxu0
        %v2237 = vadd.f32 0.0, %v2236
        %v2238 = vpop.f32.mrf.mxu0
        %2239 = vmatprep.mubr.f32.mxu0 0.0
        %2240 = vmatmul.mubr.f32.gmra.mxu0 %v2138
        %v2241 = vpop.f32.mrf.mxu0
        %v2242 = vadd.f32 0.0, %v2241
        %v2243 = vpop.f32.mrf.mxu0
        %2244 = vdwg.mxu0
        %v2245 = vmul.f32 %v2046, %v1907
        %v2246 = vmul.f32 %v2051, %v1908
        %v2247 = vmul.f32 %v2056, %v1909
        %v2248 = vmul.f32 %v2061, %v1910
        %v2249 = vmul.f32 %v2066, %v1911
        %v2250 = vmul.f32 %v2071, %v1912
        %v2251 = vmul.f32 %v2076, %v1913
        %v2252 = vmul.f32 %v2081, %v1914
        %v2253 = vmul.f32 %v2207, %v1915
        %v2254 = vmul.f32 %v2212, %v1916
        %v2255 = vmul.f32 %v2217, %v1917
        %v2256 = vmul.f32 %v2222, %v1918
        %v2257 = vmul.f32 %v2227, %v1919
        %v2258 = vmul.f32 %v2232, %v1920
        %v2259 = vmul.f32 %v2237, %v1921
        %v2260 = vmul.f32 %v2242, %v1922
        %2261 = vrot.lane.b32.xlu0 %v571, 112
        %v2262 = vpop.permute.xlu0 %2261
        %2263 = vrot.lane.b32.xlu0 %v572, 112
        %v2264 = vpop.permute.xlu0 %2263
        %2265 = vrot.lane.b32.xlu0 %v573, 112
        %v2266 = vpop.permute.xlu0 %2265
        %2267 = vrot.lane.b32.xlu0 %v574, 112
        %v2268 = vpop.permute.xlu0 %2267
        %2269 = vrot.lane.b32.xlu0 %v575, 112
        %v2270 = vpop.permute.xlu0 %2269
        %2271 = vrot.lane.b32.xlu0 %v576, 112
        %v2272 = vpop.permute.xlu0 %2271
        %2273 = vrot.lane.b32.xlu0 %v577, 112
        %v2274 = vpop.permute.xlu0 %2273
        %2275 = vrot.lane.b32.xlu0 %v578, 112
        %v2276 = vpop.permute.xlu0 %2275
        %2277 = vrot.lane.b32.xlu0 %v539, 112
        %v2278 = vpop.permute.xlu0 %2277
        %2279 = vrot.lane.b32.xlu0 %v540, 112
        %v2280 = vpop.permute.xlu0 %2279
        %2281 = vrot.lane.b32.xlu0 %v541, 112
        %v2282 = vpop.permute.xlu0 %2281
        %2283 = vrot.lane.b32.xlu0 %v542, 112
        %v2284 = vpop.permute.xlu0 %2283
        %2285 = vrot.lane.b32.xlu0 %v543, 112
        %v2286 = vpop.permute.xlu0 %2285
        %2287 = vrot.lane.b32.xlu0 %v544, 112
        %v2288 = vpop.permute.xlu0 %2287
        %2289 = vrot.lane.b32.xlu0 %v545, 112
        %v2290 = vpop.permute.xlu0 %2289
        %2291 = vrot.lane.b32.xlu0 %v546, 112
        %v2292 = vpop.permute.xlu0 %2291
        %v2293 = vsel %vm587, %v2262, 0
        %v2295 = vsel %vm587, %v2264, 0
        %v2297 = vsel %vm587, %v2266, 0
        %v2299 = vsel %vm587, %v2268, 0
        %v2301 = vsel %vm587, %v2270, 0
        %v2303 = vsel %vm587, %v2272, 0
        %v2305 = vsel %vm587, %v2274, 0
        %v2307 = vsel %vm587, %v2276, 0
        %v2309 = vsel %vm587, %v2278, 0
        %v2311 = vsel %vm587, %v2280, 0
        %v2313 = vsel %vm587, %v2282, 0
        %v2315 = vsel %vm587, %v2284, 0
        %v2317 = vsel %vm587, %v2286, 0
        %v2319 = vsel %vm587, %v2288, 0
        %v2321 = vsel %vm587, %v2290, 0
        %v2323 = vsel %vm587, %v2292, 0
        %2325 = vmatprep.subr.mxu0 0.0
        %2326 = vmatpush1.xpose.msra.mxu0 0.0
        %2327 = vmatprep.subr.mxu0 0.0
        %2328 = vmatpush1.xpose.msra.mxu0 0.0
        %2329 = vmatprep.subr.mxu0 0.0
        %2330 = vmatpush1.xpose.msra.mxu0 0.0
        %2331 = vmatprep.subr.mxu0 0.0
        %2332 = vmatpush1.xpose.msra.mxu0 0.0
        %2333 = vmatprep.subr.mxu0 0.0
        %2334 = vmatpush1.xpose.msra.mxu0 0.0
        %2335 = vmatprep.subr.mxu0 0.0
        %2336 = vmatpush1.xpose.msra.mxu0 0.0
        %2337 = vmatprep.subr.mxu0 0.0
        %2338 = vmatpush1.xpose.msra.mxu0 0.0
        %2339 = vmatprep.subr.mxu0 0.0
        %2340 = vmatpush1.xpose.msra.mxu0 0.0
        %2341 = vmatprep.subr.mxu0 0.0
        %2342 = vmatpush1.xpose.msra.mxu0 %v2323
        %2343 = vmatprep.subr.mxu0 0.0
        %2344 = vmatpush1.xpose.msra.mxu0 %v2321
        %2345 = vmatprep.subr.mxu0 0.0
        %2346 = vmatpush1.xpose.msra.mxu0 %v2319
        %2347 = vmatprep.subr.mxu0 0.0
        %2348 = vmatpush1.xpose.msra.mxu0 %v2317
        %2349 = vmatprep.subr.mxu0 0.0
        %2350 = vmatpush1.xpose.msra.mxu0 %v2315
        %2351 = vmatprep.subr.mxu0 0.0
        %2352 = vmatpush1.xpose.msra.mxu0 %v2313
        %2353 = vmatprep.subr.mxu0 0.0
        %2354 = vmatpush1.xpose.msra.mxu0 %v2311
        %2355 = vmatprep.subr.mxu0 0.0
        %2356 = vmatpush1.xpose.msra.mxu0 %v2309
        %2357 = vmatprep.subr.mxu0 0.0
        %2358 = vmatpush2.xpose.msra.mxu0 0.0
        %2359 = vmatprep.subr.mxu0 0.0
        %2360 = vmatpush2.xpose.msra.mxu0 0.0
        %2361 = vmatprep.subr.mxu0 0.0
        %2362 = vmatpush2.xpose.msra.mxu0 0.0
        %2363 = vmatprep.subr.mxu0 0.0
        %2364 = vmatpush2.xpose.msra.mxu0 0.0
        %2365 = vmatprep.subr.mxu0 0.0
        %2366 = vmatpush2.xpose.msra.mxu0 0.0
        %2367 = vmatprep.subr.mxu0 0.0
        %2368 = vmatpush2.xpose.msra.mxu0 0.0
        %2369 = vmatprep.subr.mxu0 0.0
        %2370 = vmatpush2.xpose.msra.mxu0 0.0
        %2371 = vmatprep.subr.mxu0 0.0
        %2372 = vmatpush2.xpose.msra.mxu0 0.0
        %2373 = vmatprep.subr.mxu0 0.0
        %2374 = vmatpush2.xpose.msra.mxu0 0.0
        %2375 = vmatprep.subr.mxu0 0.0
        %2376 = vmatpush2.xpose.msra.mxu0 0.0
        %2377 = vmatprep.subr.mxu0 0.0
        %2378 = vmatpush2.xpose.msra.mxu0 0.0
        %2379 = vmatprep.subr.mxu0 0.0
        %2380 = vmatpush2.xpose.msra.mxu0 0.0
        %2381 = vmatprep.subr.mxu0 0.0
        %2382 = vmatpush2.xpose.msra.mxu0 0.0
        %2383 = vmatprep.subr.mxu0 0.0
        %2384 = vmatpush2.xpose.msra.mxu0 0.0
        %2385 = vmatprep.subr.mxu0 0.0
        %2386 = vmatpush2.xpose.msra.mxu0 0.0
        %2387 = vmatprep.subr.mxu0 0.0
        %2388 = vmatpush2.xpose.msra.mxu0 0.0
        %2389 = vmatprep.mubr.f32.mxu0 0.0
        %2390 = vmatmul.mubr.f32.gmra.mxu0 %v2293
        %v2391 = vpop.f32.mrf.mxu0
        %v2392 = vadd.f32 0.0, %v2391
        %v2393 = vpop.f32.mrf.mxu0
        %2394 = vmatprep.mubr.f32.mxu0 0.0
        %2395 = vmatmul.mubr.f32.gmra.mxu0 %v2295
        %v2396 = vpop.f32.mrf.mxu0
        %v2397 = vadd.f32 0.0, %v2396
        %v2398 = vpop.f32.mrf.mxu0
        %2399 = vmatprep.mubr.f32.mxu0 0.0
        %2400 = vmatmul.mubr.f32.gmra.mxu0 %v2297
        %v2401 = vpop.f32.mrf.mxu0
        %v2402 = vadd.f32 0.0, %v2401
        %v2403 = vpop.f32.mrf.mxu0
        %2404 = vmatprep.mubr.f32.mxu0 0.0
        %2405 = vmatmul.mubr.f32.gmra.mxu0 %v2299
        %v2406 = vpop.f32.mrf.mxu0
        %v2407 = vadd.f32 0.0, %v2406
        %v2408 = vpop.f32.mrf.mxu0
        %2409 = vmatprep.mubr.f32.mxu0 0.0
        %2410 = vmatmul.mubr.f32.gmra.mxu0 %v2301
        %v2411 = vpop.f32.mrf.mxu0
        %v2412 = vadd.f32 0.0, %v2411
        %v2413 = vpop.f32.mrf.mxu0
        %2414 = vmatprep.mubr.f32.mxu0 0.0
        %2415 = vmatmul.mubr.f32.gmra.mxu0 %v2303
        %v2416 = vpop.f32.mrf.mxu0
        %v2417 = vadd.f32 0.0, %v2416
        %v2418 = vpop.f32.mrf.mxu0
        %2419 = vmatprep.mubr.f32.mxu0 0.0
        %2420 = vmatmul.mubr.f32.gmra.mxu0 %v2305
        %v2421 = vpop.f32.mrf.mxu0
        %v2422 = vadd.f32 0.0, %v2421
        %v2423 = vpop.f32.mrf.mxu0
        %2424 = vmatprep.mubr.f32.mxu0 0.0
        %2425 = vmatmul.mubr.f32.gmra.mxu0 %v2307
        %v2426 = vpop.f32.mrf.mxu0
        %v2427 = vadd.f32 0.0, %v2426
        %v2428 = vpop.f32.mrf.mxu0
        %2429 = vdwg.mxu0
        %2430 = vrot.lane.b32.xlu0 %v579, 112
        %v2431 = vpop.permute.xlu0 %2430
        %2432 = vrot.lane.b32.xlu0 %v580, 112
        %v2433 = vpop.permute.xlu0 %2432
        %2434 = vrot.lane.b32.xlu0 %v581, 112
        %v2435 = vpop.permute.xlu0 %2434
        %2436 = vrot.lane.b32.xlu0 %v582, 112
        %v2437 = vpop.permute.xlu0 %2436
        %2438 = vrot.lane.b32.xlu0 %v583, 112
        %v2439 = vpop.permute.xlu0 %2438
        %2440 = vrot.lane.b32.xlu0 %v584, 112
        %v2441 = vpop.permute.xlu0 %2440
        %2442 = vrot.lane.b32.xlu0 %v585, 112
        %v2443 = vpop.permute.xlu0 %2442
        %2444 = vrot.lane.b32.xlu0 %v586, 112
        %v2445 = vpop.permute.xlu0 %2444
        %2446 = vrot.lane.b32.xlu0 %v547, 112
        %v2447 = vpop.permute.xlu0 %2446
        %2448 = vrot.lane.b32.xlu0 %v548, 112
        %v2449 = vpop.permute.xlu0 %2448
        %2450 = vrot.lane.b32.xlu0 %v549, 112
        %v2451 = vpop.permute.xlu0 %2450
        %2452 = vrot.lane.b32.xlu0 %v550, 112
        %v2453 = vpop.permute.xlu0 %2452
        %2454 = vrot.lane.b32.xlu0 %v551, 112
        %v2455 = vpop.permute.xlu0 %2454
        %2456 = vrot.lane.b32.xlu0 %v552, 112
        %v2457 = vpop.permute.xlu0 %2456
        %2458 = vrot.lane.b32.xlu0 %v553, 112
        %v2459 = vpop.permute.xlu0 %2458
        %2460 = vrot.lane.b32.xlu0 %v554, 112
        %v2461 = vpop.permute.xlu0 %2460
        %v2462 = vsel %vm587, %v2431, 0
        %v2464 = vsel %vm587, %v2433, 0
        %v2466 = vsel %vm587, %v2435, 0
        %v2468 = vsel %vm587, %v2437, 0
        %v2470 = vsel %vm587, %v2439, 0
        %v2472 = vsel %vm587, %v2441, 0
        %v2474 = vsel %vm587, %v2443, 0
        %v2476 = vsel %vm587, %v2445, 0
        %v2478 = vsel %vm587, %v2447, 0
        %v2480 = vsel %vm587, %v2449, 0
        %v2482 = vsel %vm587, %v2451, 0
        %v2484 = vsel %vm587, %v2453, 0
        %v2486 = vsel %vm587, %v2455, 0
        %v2488 = vsel %vm587, %v2457, 0
        %v2490 = vsel %vm587, %v2459, 0
        %v2492 = vsel %vm587, %v2461, 0
        %2494 = vmatprep.subr.mxu0 0.0
        %2495 = vmatpush1.xpose.msra.mxu0 0.0
        %2496 = vmatprep.subr.mxu0 0.0
        %2497 = vmatpush1.xpose.msra.mxu0 0.0
        %2498 = vmatprep.subr.mxu0 0.0
        %2499 = vmatpush1.xpose.msra.mxu0 0.0
        %2500 = vmatprep.subr.mxu0 0.0
        %2501 = vmatpush1.xpose.msra.mxu0 0.0
        %2502 = vmatprep.subr.mxu0 0.0
        %2503 = vmatpush1.xpose.msra.mxu0 0.0
        %2504 = vmatprep.subr.mxu0 0.0
        %2505 = vmatpush1.xpose.msra.mxu0 0.0
        %2506 = vmatprep.subr.mxu0 0.0
        %2507 = vmatpush1.xpose.msra.mxu0 0.0
        %2508 = vmatprep.subr.mxu0 0.0
        %2509 = vmatpush1.xpose.msra.mxu0 0.0
        %2510 = vmatprep.subr.mxu0 0.0
        %2511 = vmatpush1.xpose.msra.mxu0 %v2492
        %2512 = vmatprep.subr.mxu0 0.0
        %2513 = vmatpush1.xpose.msra.mxu0 %v2490
        %2514 = vmatprep.subr.mxu0 0.0
        %2515 = vmatpush1.xpose.msra.mxu0 %v2488
        %2516 = vmatprep.subr.mxu0 0.0
        %2517 = vmatpush1.xpose.msra.mxu0 %v2486
        %2518 = vmatprep.subr.mxu0 0.0
        %2519 = vmatpush1.xpose.msra.mxu0 %v2484
        %2520 = vmatprep.subr.mxu0 0.0
        %2521 = vmatpush1.xpose.msra.mxu0 %v2482
        %2522 = vmatprep.subr.mxu0 0.0
        %2523 = vmatpush1.xpose.msra.mxu0 %v2480
        %2524 = vmatprep.subr.mxu0 0.0
        %2525 = vmatpush1.xpose.msra.mxu0 %v2478
        %2526 = vmatprep.subr.mxu0 0.0
        %2527 = vmatpush2.xpose.msra.mxu0 0.0
        %2528 = vmatprep.subr.mxu0 0.0
        %2529 = vmatpush2.xpose.msra.mxu0 0.0
        %2530 = vmatprep.subr.mxu0 0.0
        %2531 = vmatpush2.xpose.msra.mxu0 0.0
        %2532 = vmatprep.subr.mxu0 0.0
        %2533 = vmatpush2.xpose.msra.mxu0 0.0
        %2534 = vmatprep.subr.mxu0 0.0
        %2535 = vmatpush2.xpose.msra.mxu0 0.0
        %2536 = vmatprep.subr.mxu0 0.0
        %2537 = vmatpush2.xpose.msra.mxu0 0.0
        %2538 = vmatprep.subr.mxu0 0.0
        %2539 = vmatpush2.xpose.msra.mxu0 0.0
        %2540 = vmatprep.subr.mxu0 0.0
        %2541 = vmatpush2.xpose.msra.mxu0 0.0
        %2542 = vmatprep.subr.mxu0 0.0
        %2543 = vmatpush2.xpose.msra.mxu0 0.0
        %2544 = vmatprep.subr.mxu0 0.0
        %2545 = vmatpush2.xpose.msra.mxu0 0.0
        %2546 = vmatprep.subr.mxu0 0.0
        %2547 = vmatpush2.xpose.msra.mxu0 0.0
        %2548 = vmatprep.subr.mxu0 0.0
        %2549 = vmatpush2.xpose.msra.mxu0 0.0
        %2550 = vmatprep.subr.mxu0 0.0
        %2551 = vmatpush2.xpose.msra.mxu0 0.0
        %2552 = vmatprep.subr.mxu0 0.0
        %2553 = vmatpush2.xpose.msra.mxu0 0.0
        %2554 = vmatprep.subr.mxu0 0.0
        %2555 = vmatpush2.xpose.msra.mxu0 0.0
        %2556 = vmatprep.subr.mxu0 0.0
        %2557 = vmatpush2.xpose.msra.mxu0 0.0
        %2558 = vmatprep.mubr.f32.mxu0 0.0
        %2559 = vmatmul.mubr.f32.gmra.mxu0 %v2462
        %v2560 = vpop.f32.mrf.mxu0
        %v2561 = vadd.f32 0.0, %v2560
        %v2562 = vpop.f32.mrf.mxu0
        %2563 = vmatprep.mubr.f32.mxu0 0.0
        %2564 = vmatmul.mubr.f32.gmra.mxu0 %v2464
        %v2565 = vpop.f32.mrf.mxu0
        %v2566 = vadd.f32 0.0, %v2565
        %v2567 = vpop.f32.mrf.mxu0
        %2568 = vmatprep.mubr.f32.mxu0 0.0
        %2569 = vmatmul.mubr.f32.gmra.mxu0 %v2466
        %v2570 = vpop.f32.mrf.mxu0
        %v2571 = vadd.f32 0.0, %v2570
        %v2572 = vpop.f32.mrf.mxu0
        %2573 = vmatprep.mubr.f32.mxu0 0.0
        %2574 = vmatmul.mubr.f32.gmra.mxu0 %v2468
        %v2575 = vpop.f32.mrf.mxu0
        %v2576 = vadd.f32 0.0, %v2575
        %v2577 = vpop.f32.mrf.mxu0
        %2578 = vmatprep.mubr.f32.mxu0 0.0
        %2579 = vmatmul.mubr.f32.gmra.mxu0 %v2470
        %v2580 = vpop.f32.mrf.mxu0
        %v2581 = vadd.f32 0.0, %v2580
        %v2582 = vpop.f32.mrf.mxu0
        %2583 = vmatprep.mubr.f32.mxu0 0.0
        %2584 = vmatmul.mubr.f32.gmra.mxu0 %v2472
        %v2585 = vpop.f32.mrf.mxu0
        %v2586 = vadd.f32 0.0, %v2585
        %v2587 = vpop.f32.mrf.mxu0
        %2588 = vmatprep.mubr.f32.mxu0 0.0
        %2589 = vmatmul.mubr.f32.gmra.mxu0 %v2474
        %v2590 = vpop.f32.mrf.mxu0
        %v2591 = vadd.f32 0.0, %v2590
        %v2592 = vpop.f32.mrf.mxu0
        %2593 = vmatprep.mubr.f32.mxu0 0.0
        %2594 = vmatmul.mubr.f32.gmra.mxu0 %v2476
        %v2595 = vpop.f32.mrf.mxu0
        %v2596 = vadd.f32 0.0, %v2595
        %v2597 = vpop.f32.mrf.mxu0
        %2598 = vdwg.mxu0
        %v2599 = vsel %vm894, %v2392, -inf
        %2600 = vmax.xlane.f32.xlu0 %v2599
        %v2601 = vpop.xlane.xlu0 %2600
        %v2602 = vsel %vm894, %v2397, -inf
        %2603 = vmax.xlane.f32.xlu0 %v2602
        %v2604 = vpop.xlane.xlu0 %2603
        %v2605 = vsel %vm894, %v2402, -inf
        %2606 = vmax.xlane.f32.xlu0 %v2605
        %v2607 = vpop.xlane.xlu0 %2606
        %v2608 = vsel %vm894, %v2407, -inf
        %2609 = vmax.xlane.f32.xlu0 %v2608
        %v2610 = vpop.xlane.xlu0 %2609
        %v2611 = vsel %vm894, %v2412, -inf
        %2612 = vmax.xlane.f32.xlu0 %v2611
        %v2613 = vpop.xlane.xlu0 %2612
        %v2614 = vsel %vm894, %v2417, -inf
        %2615 = vmax.xlane.f32.xlu0 %v2614
        %v2616 = vpop.xlane.xlu0 %2615
        %v2617 = vsel %vm894, %v2422, -inf
        %2618 = vmax.xlane.f32.xlu0 %v2617
        %v2619 = vpop.xlane.xlu0 %2618
        %v2620 = vsel %vm894, %v2427, -inf
        %2621 = vmax.xlane.f32.xlu0 %v2620
        %v2622 = vpop.xlane.xlu0 %2621
        %v2623 = vsel %vm894, %v2561, -inf
        %2624 = vmax.xlane.f32.xlu0 %v2623
        %v2625 = vpop.xlane.xlu0 %2624
        %v2626 = vsel %vm894, %v2566, -inf
        %2627 = vmax.xlane.f32.xlu0 %v2626
        %v2628 = vpop.xlane.xlu0 %2627
        %v2629 = vsel %vm894, %v2571, -inf
        %2630 = vmax.xlane.f32.xlu0 %v2629
        %v2631 = vpop.xlane.xlu0 %2630
        %v2632 = vsel %vm894, %v2576, -inf
        %2633 = vmax.xlane.f32.xlu0 %v2632
        %v2634 = vpop.xlane.xlu0 %2633
        %v2635 = vsel %vm894, %v2581, -inf
        %2636 = vmax.xlane.f32.xlu0 %v2635
        %v2637 = vpop.xlane.xlu0 %2636
        %v2638 = vsel %vm894, %v2586, -inf
        %2639 = vmax.xlane.f32.xlu0 %v2638
        %v2640 = vpop.xlane.xlu0 %2639
        %v2641 = vsel %vm894, %v2591, -inf
        %2642 = vmax.xlane.f32.xlu0 %v2641
        %v2643 = vpop.xlane.xlu0 %2642
        %v2644 = vsel %vm894, %v2596, -inf
        %2645 = vmax.xlane.f32.xlu0 %v2644
        %v2646 = vpop.xlane.xlu0 %2645
        %v2647 = vsub.f32 %v2392, %v2601
        %v2648 = vsub.f32 %v2397, %v2604
        %v2649 = vsub.f32 %v2402, %v2607
        %v2650 = vsub.f32 %v2407, %v2610
        %v2651 = vsub.f32 %v2412, %v2613
        %v2652 = vsub.f32 %v2417, %v2616
        %v2653 = vsub.f32 %v2422, %v2619
        %v2654 = vsub.f32 %v2427, %v2622
        %v2655 = vsub.f32 %v2561, %v2625
        %v2656 = vsub.f32 %v2566, %v2628
        %v2657 = vsub.f32 %v2571, %v2631
        %v2658 = vsub.f32 %v2576, %v2634
        %v2659 = vsub.f32 %v2581, %v2637
        %v2660 = vsub.f32 %v2586, %v2640
        %v2661 = vsub.f32 %v2591, %v2643
        %v2662 = vsub.f32 %v2596, %v2646
        %v2663 = vmul.f32 %v2647, 1.442695
        %v2664 = vpow.pop %v2663
        %v2665 = vmul.f32 %v2648, 1.442695
        %v2666 = vpow.pop %v2665
        %v2667 = vmul.f32 %v2649, 1.442695
        %v2668 = vpow.pop %v2667
        %v2669 = vmul.f32 %v2650, 1.442695
        %v2670 = vpow.pop %v2669
        %v2671 = vmul.f32 %v2651, 1.442695
        %v2672 = vpow.pop %v2671
        %v2673 = vmul.f32 %v2652, 1.442695
        %v2674 = vpow.pop %v2673
        %v2675 = vmul.f32 %v2653, 1.442695
        %v2676 = vpow.pop %v2675
        %v2677 = vmul.f32 %v2654, 1.442695
        %v2678 = vpow.pop %v2677
        %v2679 = vmul.f32 %v2655, 1.442695
        %v2680 = vpow.pop %v2679
        %v2681 = vmul.f32 %v2656, 1.442695
        %v2682 = vpow.pop %v2681
        %v2683 = vmul.f32 %v2657, 1.442695
        %v2684 = vpow.pop %v2683
        %v2685 = vmul.f32 %v2658, 1.442695
        %v2686 = vpow.pop %v2685
        %v2687 = vmul.f32 %v2659, 1.442695
        %v2688 = vpow.pop %v2687
        %v2689 = vmul.f32 %v2660, 1.442695
        %v2690 = vpow.pop %v2689
        %v2691 = vmul.f32 %v2661, 1.442695
        %v2692 = vpow.pop %v2691
        %v2693 = vmul.f32 %v2662, 1.442695
        %v2694 = vpow.pop %v2693
        %v2695 = vsel %vm894, %v2664, 0.0
        %2696 = vadd.xlane.f32.xlu0 %v2695
        %v2697 = vpop.xlane.xlu0 %2696
        %v2698 = vsel %vm894, %v2666, 0.0
        %2699 = vadd.xlane.f32.xlu0 %v2698
        %v2700 = vpop.xlane.xlu0 %2699
        %v2701 = vsel %vm894, %v2668, 0.0
        %2702 = vadd.xlane.f32.xlu0 %v2701
        %v2703 = vpop.xlane.xlu0 %2702
        %v2704 = vsel %vm894, %v2670, 0.0
        %2705 = vadd.xlane.f32.xlu0 %v2704
        %v2706 = vpop.xlane.xlu0 %2705
        %v2707 = vsel %vm894, %v2672, 0.0
        %2708 = vadd.xlane.f32.xlu0 %v2707
        %v2709 = vpop.xlane.xlu0 %2708
        %v2710 = vsel %vm894, %v2674, 0.0
        %2711 = vadd.xlane.f32.xlu0 %v2710
        %v2712 = vpop.xlane.xlu0 %2711
        %v2713 = vsel %vm894, %v2676, 0.0
        %2714 = vadd.xlane.f32.xlu0 %v2713
        %v2715 = vpop.xlane.xlu0 %2714
        %v2716 = vsel %vm894, %v2678, 0.0
        %2717 = vadd.xlane.f32.xlu0 %v2716
        %v2718 = vpop.xlane.xlu0 %2717
        %v2719 = vsel %vm894, %v2680, 0.0
        %2720 = vadd.xlane.f32.xlu0 %v2719
        %v2721 = vpop.xlane.xlu0 %2720
        %v2722 = vsel %vm894, %v2682, 0.0
        %2723 = vadd.xlane.f32.xlu0 %v2722
        %v2724 = vpop.xlane.xlu0 %2723
        %v2725 = vsel %vm894, %v2684, 0.0
        %2726 = vadd.xlane.f32.xlu0 %v2725
        %v2727 = vpop.xlane.xlu0 %2726
        %v2728 = vsel %vm894, %v2686, 0.0
        %2729 = vadd.xlane.f32.xlu0 %v2728
        %v2730 = vpop.xlane.xlu0 %2729
        %v2731 = vsel %vm894, %v2688, 0.0
        %2732 = vadd.xlane.f32.xlu0 %v2731
        %v2733 = vpop.xlane.xlu0 %2732
        %v2734 = vsel %vm894, %v2690, 0.0
        %2735 = vadd.xlane.f32.xlu0 %v2734
        %v2736 = vpop.xlane.xlu0 %2735
        %v2737 = vsel %vm894, %v2692, 0.0
        %2738 = vadd.xlane.f32.xlu0 %v2737
        %v2739 = vpop.xlane.xlu0 %2738
        %v2740 = vsel %vm894, %v2694, 0.0
        %2741 = vadd.xlane.f32.xlu0 %v2740
        %v2742 = vpop.xlane.xlu0 %2741
        %v2743 = vrcp.pop %v2697
        %v2744 = vrcp.pop %v2700
        %v2745 = vrcp.pop %v2703
        %v2746 = vrcp.pop %v2706
        %v2747 = vrcp.pop %v2709
        %v2748 = vrcp.pop %v2712
        %v2749 = vrcp.pop %v2715
        %v2750 = vrcp.pop %v2718
        %v2751 = vrcp.pop %v2721
        %v2752 = vrcp.pop %v2724
        %v2753 = vrcp.pop %v2727
        %v2754 = vrcp.pop %v2730
        %v2755 = vrcp.pop %v2733
        %v2756 = vrcp.pop %v2736
        %v2757 = vrcp.pop %v2739
        %v2758 = vrcp.pop %v2742
        %v2759 = vmul.f32 %v2697, %v2743
        %v2760 = vmul.f32 %v2700, %v2744
        %v2761 = vmul.f32 %v2703, %v2745
        %v2762 = vmul.f32 %v2706, %v2746
        %v2763 = vmul.f32 %v2709, %v2747
        %v2764 = vmul.f32 %v2712, %v2748
        %v2765 = vmul.f32 %v2715, %v2749
        %v2766 = vmul.f32 %v2718, %v2750
        %v2767 = vmul.f32 %v2721, %v2751
        %v2768 = vmul.f32 %v2724, %v2752
        %v2769 = vmul.f32 %v2727, %v2753
        %v2770 = vmul.f32 %v2730, %v2754
        %v2771 = vmul.f32 %v2733, %v2755
        %v2772 = vmul.f32 %v2736, %v2756
        %v2773 = vmul.f32 %v2739, %v2757
        %v2774 = vmul.f32 %v2742, %v2758
        %v2775 = vsub.f32 2.0, %v2759
        %v2776 = vsub.f32 2.0, %v2760
        %v2777 = vsub.f32 2.0, %v2761
        %v2778 = vsub.f32 2.0, %v2762
        %v2779 = vsub.f32 2.0, %v2763
        %v2780 = vsub.f32 2.0, %v2764
        %v2781 = vsub.f32 2.0, %v2765
        %v2782 = vsub.f32 2.0, %v2766
        %v2783 = vsub.f32 2.0, %v2767
        %v2784 = vsub.f32 2.0, %v2768
        %v2785 = vsub.f32 2.0, %v2769
        %v2786 = vsub.f32 2.0, %v2770
        %v2787 = vsub.f32 2.0, %v2771
        %v2788 = vsub.f32 2.0, %v2772
        %v2789 = vsub.f32 2.0, %v2773
        %v2790 = vsub.f32 2.0, %v2774
        %v2791 = vmul.f32 %v2743, %v2775
        %v2792 = vmul.f32 %v2744, %v2776
        %v2793 = vmul.f32 %v2745, %v2777
        %v2794 = vmul.f32 %v2746, %v2778
        %v2795 = vmul.f32 %v2747, %v2779
        %v2796 = vmul.f32 %v2748, %v2780
        %v2797 = vmul.f32 %v2749, %v2781
        %v2798 = vmul.f32 %v2750, %v2782
        %v2799 = vmul.f32 %v2751, %v2783
        %v2800 = vmul.f32 %v2752, %v2784
        %v2801 = vmul.f32 %v2753, %v2785
        %v2802 = vmul.f32 %v2754, %v2786
        %v2803 = vmul.f32 %v2755, %v2787
        %v2804 = vmul.f32 %v2756, %v2788
        %v2805 = vmul.f32 %v2757, %v2789
        %v2806 = vmul.f32 %v2758, %v2790
        %2807 = vrot.lane.b32.xlu0 %v555, 112
        %v2808 = vpop.permute.xlu0 %2807
        %2809 = vrot.lane.b32.xlu0 %v556, 112
        %v2810 = vpop.permute.xlu0 %2809
        %2811 = vrot.lane.b32.xlu0 %v557, 112
        %v2812 = vpop.permute.xlu0 %2811
        %2813 = vrot.lane.b32.xlu0 %v558, 112
        %v2814 = vpop.permute.xlu0 %2813
        %2815 = vrot.lane.b32.xlu0 %v559, 112
        %v2816 = vpop.permute.xlu0 %2815
        %2817 = vrot.lane.b32.xlu0 %v560, 112
        %v2818 = vpop.permute.xlu0 %2817
        %2819 = vrot.lane.b32.xlu0 %v561, 112
        %v2820 = vpop.permute.xlu0 %2819
        %2821 = vrot.lane.b32.xlu0 %v562, 112
        %v2822 = vpop.permute.xlu0 %2821
        %v2832 = vsel %vm894, %v2664, 0
        %v2835 = vsel %vm894, %v2666, 0
        %v2838 = vsel %vm894, %v2668, 0
        %v2841 = vsel %vm894, %v2670, 0
        %v2844 = vsel %vm894, %v2672, 0
        %v2847 = vsel %vm894, %v2674, 0
        %v2850 = vsel %vm894, %v2676, 0
        %v2853 = vsel %vm894, %v2678, 0
        %2855 = vmatprep.subr.mxu0 0.0
        %2856 = vmatpush1.msra.mxu0 0.0
        %2857 = vmatprep.subr.mxu0 0.0
        %2858 = vmatpush1.msra.mxu0 0.0
        %2859 = vmatprep.subr.mxu0 0.0
        %2860 = vmatpush1.msra.mxu0 0.0
        %2861 = vmatprep.subr.mxu0 0.0
        %2862 = vmatpush1.msra.mxu0 0.0
        %2863 = vmatprep.subr.mxu0 0.0
        %2864 = vmatpush1.msra.mxu0 0.0
        %2865 = vmatprep.subr.mxu0 0.0
        %2866 = vmatpush1.msra.mxu0 0.0
        %2867 = vmatprep.subr.mxu0 0.0
        %2868 = vmatpush1.msra.mxu0 0.0
        %2869 = vmatprep.subr.mxu0 0.0
        %2870 = vmatpush1.msra.mxu0 0.0
        %2871 = vmatprep.subr.mxu0 0.0
        %2872 = vmatpush1.msra.mxu0 %v2822
        %2873 = vmatprep.subr.mxu0 0.0
        %2874 = vmatpush1.msra.mxu0 %v2820
        %2875 = vmatprep.subr.mxu0 0.0
        %2876 = vmatpush1.msra.mxu0 %v2818
        %2877 = vmatprep.subr.mxu0 0.0
        %2878 = vmatpush1.msra.mxu0 %v2816
        %2879 = vmatprep.subr.mxu0 0.0
        %2880 = vmatpush1.msra.mxu0 %v2814
        %2881 = vmatprep.subr.mxu0 0.0
        %2882 = vmatpush1.msra.mxu0 %v2812
        %2883 = vmatprep.subr.mxu0 0.0
        %2884 = vmatpush1.msra.mxu0 %v2810
        %2885 = vmatprep.subr.mxu0 0.0
        %2886 = vmatpush1.msra.mxu0 %v2808
        %2887 = vmatprep.subr.mxu0 0.0
        %2888 = vmatpush2.msra.mxu0 0.0
        %2889 = vmatprep.subr.mxu0 0.0
        %2890 = vmatpush2.msra.mxu0 0.0
        %2891 = vmatprep.subr.mxu0 0.0
        %2892 = vmatpush2.msra.mxu0 0.0
        %2893 = vmatprep.subr.mxu0 0.0
        %2894 = vmatpush2.msra.mxu0 0.0
        %2895 = vmatprep.subr.mxu0 0.0
        %2896 = vmatpush2.msra.mxu0 0.0
        %2897 = vmatprep.subr.mxu0 0.0
        %2898 = vmatpush2.msra.mxu0 0.0
        %2899 = vmatprep.subr.mxu0 0.0
        %2900 = vmatpush2.msra.mxu0 0.0
        %2901 = vmatprep.subr.mxu0 0.0
        %2902 = vmatpush2.msra.mxu0 0.0
        %2903 = vmatprep.subr.mxu0 0.0
        %2904 = vmatpush2.msra.mxu0 0.0
        %2905 = vmatprep.subr.mxu0 0.0
        %2906 = vmatpush2.msra.mxu0 0.0
        %2907 = vmatprep.subr.mxu0 0.0
        %2908 = vmatpush2.msra.mxu0 0.0
        %2909 = vmatprep.subr.mxu0 0.0
        %2910 = vmatpush2.msra.mxu0 0.0
        %2911 = vmatprep.subr.mxu0 0.0
        %2912 = vmatpush2.msra.mxu0 0.0
        %2913 = vmatprep.subr.mxu0 0.0
        %2914 = vmatpush2.msra.mxu0 0.0
        %2915 = vmatprep.subr.mxu0 0.0
        %2916 = vmatpush2.msra.mxu0 0.0
        %2917 = vmatprep.subr.mxu0 0.0
        %2918 = vmatpush2.msra.mxu0 0.0
        %2919 = vmatprep.mubr.f32.mxu0 0.0
        %2920 = vmatmul.mubr.f32.gmra.mxu0 %v2832
        %v2921 = vpop.f32.mrf.mxu0
        %v2922 = vadd.f32 0.0, %v2921
        %v2923 = vpop.f32.mrf.mxu0
        %2924 = vmatprep.mubr.f32.mxu0 0.0
        %2925 = vmatmul.mubr.f32.gmra.mxu0 %v2835
        %v2926 = vpop.f32.mrf.mxu0
        %v2927 = vadd.f32 0.0, %v2926
        %v2928 = vpop.f32.mrf.mxu0
        %2929 = vmatprep.mubr.f32.mxu0 0.0
        %2930 = vmatmul.mubr.f32.gmra.mxu0 %v2838
        %v2931 = vpop.f32.mrf.mxu0
        %v2932 = vadd.f32 0.0, %v2931
        %v2933 = vpop.f32.mrf.mxu0
        %2934 = vmatprep.mubr.f32.mxu0 0.0
        %2935 = vmatmul.mubr.f32.gmra.mxu0 %v2841
        %v2936 = vpop.f32.mrf.mxu0
        %v2937 = vadd.f32 0.0, %v2936
        %v2938 = vpop.f32.mrf.mxu0
        %2939 = vmatprep.mubr.f32.mxu0 0.0
        %2940 = vmatmul.mubr.f32.gmra.mxu0 %v2844
        %v2941 = vpop.f32.mrf.mxu0
        %v2942 = vadd.f32 0.0, %v2941
        %v2943 = vpop.f32.mrf.mxu0
        %2944 = vmatprep.mubr.f32.mxu0 0.0
        %2945 = vmatmul.mubr.f32.gmra.mxu0 %v2847
        %v2946 = vpop.f32.mrf.mxu0
        %v2947 = vadd.f32 0.0, %v2946
        %v2948 = vpop.f32.mrf.mxu0
        %2949 = vmatprep.mubr.f32.mxu0 0.0
        %2950 = vmatmul.mubr.f32.gmra.mxu0 %v2850
        %v2951 = vpop.f32.mrf.mxu0
        %v2952 = vadd.f32 0.0, %v2951
        %v2953 = vpop.f32.mrf.mxu0
        %2954 = vmatprep.mubr.f32.mxu0 0.0
        %2955 = vmatmul.mubr.f32.gmra.mxu0 %v2853
        %v2956 = vpop.f32.mrf.mxu0
        %v2957 = vadd.f32 0.0, %v2956
        %v2958 = vpop.f32.mrf.mxu0
        %2959 = vdwg.mxu0
        %2960 = vrot.lane.b32.xlu0 %v563, 112
        %v2961 = vpop.permute.xlu0 %2960
        %2962 = vrot.lane.b32.xlu0 %v564, 112
        %v2963 = vpop.permute.xlu0 %2962
        %2964 = vrot.lane.b32.xlu0 %v565, 112
        %v2965 = vpop.permute.xlu0 %2964
        %2966 = vrot.lane.b32.xlu0 %v566, 112
        %v2967 = vpop.permute.xlu0 %2966
        %2968 = vrot.lane.b32.xlu0 %v567, 112
        %v2969 = vpop.permute.xlu0 %2968
        %2970 = vrot.lane.b32.xlu0 %v568, 112
        %v2971 = vpop.permute.xlu0 %2970
        %2972 = vrot.lane.b32.xlu0 %v569, 112
        %v2973 = vpop.permute.xlu0 %2972
        %2974 = vrot.lane.b32.xlu0 %v570, 112
        %v2975 = vpop.permute.xlu0 %2974
        %v2985 = vsel %vm894, %v2680, 0
        %v2988 = vsel %vm894, %v2682, 0
        %v2991 = vsel %vm894, %v2684, 0
        %v2994 = vsel %vm894, %v2686, 0
        %v2997 = vsel %vm894, %v2688, 0
        %v3000 = vsel %vm894, %v2690, 0
        %v3003 = vsel %vm894, %v2692, 0
        %v3006 = vsel %vm894, %v2694, 0
        %3008 = vmatprep.subr.mxu0 0.0
        %3009 = vmatpush1.msra.mxu0 0.0
        %3010 = vmatprep.subr.mxu0 0.0
        %3011 = vmatpush1.msra.mxu0 0.0
        %3012 = vmatprep.subr.mxu0 0.0
        %3013 = vmatpush1.msra.mxu0 0.0
        %3014 = vmatprep.subr.mxu0 0.0
        %3015 = vmatpush1.msra.mxu0 0.0
        %3016 = vmatprep.subr.mxu0 0.0
        %3017 = vmatpush1.msra.mxu0 0.0
        %3018 = vmatprep.subr.mxu0 0.0
        %3019 = vmatpush1.msra.mxu0 0.0
        %3020 = vmatprep.subr.mxu0 0.0
        %3021 = vmatpush1.msra.mxu0 0.0
        %3022 = vmatprep.subr.mxu0 0.0
        %3023 = vmatpush1.msra.mxu0 0.0
        %3024 = vmatprep.subr.mxu0 0.0
        %3025 = vmatpush1.msra.mxu0 %v2975
        %3026 = vmatprep.subr.mxu0 0.0
        %3027 = vmatpush1.msra.mxu0 %v2973
        %3028 = vmatprep.subr.mxu0 0.0
        %3029 = vmatpush1.msra.mxu0 %v2971
        %3030 = vmatprep.subr.mxu0 0.0
        %3031 = vmatpush1.msra.mxu0 %v2969
        %3032 = vmatprep.subr.mxu0 0.0
        %3033 = vmatpush1.msra.mxu0 %v2967
        %3034 = vmatprep.subr.mxu0 0.0
        %3035 = vmatpush1.msra.mxu0 %v2965
        %3036 = vmatprep.subr.mxu0 0.0
        %3037 = vmatpush1.msra.mxu0 %v2963
        %3038 = vmatprep.subr.mxu0 0.0
        %3039 = vmatpush1.msra.mxu0 %v2961
        %3040 = vmatprep.subr.mxu0 0.0
        %3041 = vmatpush2.msra.mxu0 0.0
        %3042 = vmatprep.subr.mxu0 0.0
        %3043 = vmatpush2.msra.mxu0 0.0
        %3044 = vmatprep.subr.mxu0 0.0
        %3045 = vmatpush2.msra.mxu0 0.0
        %3046 = vmatprep.subr.mxu0 0.0
        %3047 = vmatpush2.msra.mxu0 0.0
        %3048 = vmatprep.subr.mxu0 0.0
        %3049 = vmatpush2.msra.mxu0 0.0
        %3050 = vmatprep.subr.mxu0 0.0
        %3051 = vmatpush2.msra.mxu0 0.0
        %3052 = vmatprep.subr.mxu0 0.0
        %3053 = vmatpush2.msra.mxu0 0.0
        %3054 = vmatprep.subr.mxu0 0.0
        %3055 = vmatpush2.msra.mxu0 0.0
        %3056 = vmatprep.subr.mxu0 0.0
        %3057 = vmatpush2.msra.mxu0 0.0
        %3058 = vmatprep.subr.mxu0 0.0
        %3059 = vmatpush2.msra.mxu0 0.0
        %3060 = vmatprep.subr.mxu0 0.0
        %3061 = vmatpush2.msra.mxu0 0.0
        %3062 = vmatprep.subr.mxu0 0.0
        %3063 = vmatpush2.msra.mxu0 0.0
        %3064 = vmatprep.subr.mxu0 0.0
        %3065 = vmatpush2.msra.mxu0 0.0
        %3066 = vmatprep.subr.mxu0 0.0
        %3067 = vmatpush2.msra.mxu0 0.0
        %3068 = vmatprep.subr.mxu0 0.0
        %3069 = vmatpush2.msra.mxu0 0.0
        %3070 = vmatprep.subr.mxu0 0.0
        %3071 = vmatpush2.msra.mxu0 0.0
        %3072 = vmatprep.mubr.f32.mxu0 0.0
        %3073 = vmatmul.mubr.f32.gmra.mxu0 %v2985
        %v3074 = vpop.f32.mrf.mxu0
        %v3075 = vadd.f32 0.0, %v3074
        %v3076 = vpop.f32.mrf.mxu0
        %3077 = vmatprep.mubr.f32.mxu0 0.0
        %3078 = vmatmul.mubr.f32.gmra.mxu0 %v2988
        %v3079 = vpop.f32.mrf.mxu0
        %v3080 = vadd.f32 0.0, %v3079
        %v3081 = vpop.f32.mrf.mxu0
        %3082 = vmatprep.mubr.f32.mxu0 0.0
        %3083 = vmatmul.mubr.f32.gmra.mxu0 %v2991
        %v3084 = vpop.f32.mrf.mxu0
        %v3085 = vadd.f32 0.0, %v3084
        %v3086 = vpop.f32.mrf.mxu0
        %3087 = vmatprep.mubr.f32.mxu0 0.0
        %3088 = vmatmul.mubr.f32.gmra.mxu0 %v2994
        %v3089 = vpop.f32.mrf.mxu0
        %v3090 = vadd.f32 0.0, %v3089
        %v3091 = vpop.f32.mrf.mxu0
        %3092 = vmatprep.mubr.f32.mxu0 0.0
        %3093 = vmatmul.mubr.f32.gmra.mxu0 %v2997
        %v3094 = vpop.f32.mrf.mxu0
        %v3095 = vadd.f32 0.0, %v3094
        %v3096 = vpop.f32.mrf.mxu0
        %3097 = vmatprep.mubr.f32.mxu0 0.0
        %3098 = vmatmul.mubr.f32.gmra.mxu0 %v3000
        %v3099 = vpop.f32.mrf.mxu0
        %v3100 = vadd.f32 0.0, %v3099
        %v3101 = vpop.f32.mrf.mxu0
        %3102 = vmatprep.mubr.f32.mxu0 0.0
        %3103 = vmatmul.mubr.f32.gmra.mxu0 %v3003
        %v3104 = vpop.f32.mrf.mxu0
        %v3105 = vadd.f32 0.0, %v3104
        %v3106 = vpop.f32.mrf.mxu0
        %3107 = vmatprep.mubr.f32.mxu0 0.0
        %3108 = vmatmul.mubr.f32.gmra.mxu0 %v3006
        %v3109 = vpop.f32.mrf.mxu0
        %v3110 = vadd.f32 0.0, %v3109
        %v3111 = vpop.f32.mrf.mxu0
        %3112 = vdwg.mxu0
        %v3113 = vmul.f32 %v2922, %v2791
        %v3114 = vmul.f32 %v2927, %v2792
        %v3115 = vmul.f32 %v2932, %v2793
        %v3116 = vmul.f32 %v2937, %v2794
        %v3117 = vmul.f32 %v2942, %v2795
        %v3118 = vmul.f32 %v2947, %v2796
        %v3119 = vmul.f32 %v2952, %v2797
        %v3120 = vmul.f32 %v2957, %v2798
        %v3121 = vmul.f32 %v3075, %v2799
        %v3122 = vmul.f32 %v3080, %v2800
        %v3123 = vmul.f32 %v3085, %v2801
        %v3124 = vmul.f32 %v3090, %v2802
        %v3125 = vmul.f32 %v3095, %v2803
        %v3126 = vmul.f32 %v3100, %v2804
        %v3127 = vmul.f32 %v3105, %v2805
        %v3128 = vmul.f32 %v3110, %v2806
        %3129 = vrot.lane.b32.xlu0 %v571, 104
        %v3130 = vpop.permute.xlu0 %3129
        %3131 = vrot.lane.b32.xlu0 %v572, 104
        %v3132 = vpop.permute.xlu0 %3131
        %3133 = vrot.lane.b32.xlu0 %v573, 104
        %v3134 = vpop.permute.xlu0 %3133
        %3135 = vrot.lane.b32.xlu0 %v574, 104
        %v3136 = vpop.permute.xlu0 %3135
        %3137 = vrot.lane.b32.xlu0 %v575, 104
        %v3138 = vpop.permute.xlu0 %3137
        %3139 = vrot.lane.b32.xlu0 %v576, 104
        %v3140 = vpop.permute.xlu0 %3139
        %3141 = vrot.lane.b32.xlu0 %v577, 104
        %v3142 = vpop.permute.xlu0 %3141
        %3143 = vrot.lane.b32.xlu0 %v578, 104
        %v3144 = vpop.permute.xlu0 %3143
        %3145 = vrot.lane.b32.xlu0 %v539, 104
        %v3146 = vpop.permute.xlu0 %3145
        %3147 = vrot.lane.b32.xlu0 %v540, 104
        %v3148 = vpop.permute.xlu0 %3147
        %3149 = vrot.lane.b32.xlu0 %v541, 104
        %v3150 = vpop.permute.xlu0 %3149
        %3151 = vrot.lane.b32.xlu0 %v542, 104
        %v3152 = vpop.permute.xlu0 %3151
        %3153 = vrot.lane.b32.xlu0 %v543, 104
        %v3154 = vpop.permute.xlu0 %3153
        %3155 = vrot.lane.b32.xlu0 %v544, 104
        %v3156 = vpop.permute.xlu0 %3155
        %3157 = vrot.lane.b32.xlu0 %v545, 104
        %v3158 = vpop.permute.xlu0 %3157
        %3159 = vrot.lane.b32.xlu0 %v546, 104
        %v3160 = vpop.permute.xlu0 %3159
        %v3161 = vsel %vm587, %v3130, 0
        %v3163 = vsel %vm587, %v3132, 0
        %v3165 = vsel %vm587, %v3134, 0
        %v3167 = vsel %vm587, %v3136, 0
        %v3169 = vsel %vm587, %v3138, 0
        %v3171 = vsel %vm587, %v3140, 0
        %v3173 = vsel %vm587, %v3142, 0
        %v3175 = vsel %vm587, %v3144, 0
        %v3177 = vsel %vm587, %v3146, 0
        %v3179 = vsel %vm587, %v3148, 0
        %v3181 = vsel %vm587, %v3150, 0
        %v3183 = vsel %vm587, %v3152, 0
        %v3185 = vsel %vm587, %v3154, 0
        %v3187 = vsel %vm587, %v3156, 0
        %v3189 = vsel %vm587, %v3158, 0
        %v3191 = vsel %vm587, %v3160, 0
        %3193 = vmatprep.subr.mxu0 0.0
        %3194 = vmatpush1.xpose.msra.mxu0 0.0
        %3195 = vmatprep.subr.mxu0 0.0
        %3196 = vmatpush1.xpose.msra.mxu0 0.0
        %3197 = vmatprep.subr.mxu0 0.0
        %3198 = vmatpush1.xpose.msra.mxu0 0.0
        %3199 = vmatprep.subr.mxu0 0.0
        %3200 = vmatpush1.xpose.msra.mxu0 0.0
        %3201 = vmatprep.subr.mxu0 0.0
        %3202 = vmatpush1.xpose.msra.mxu0 0.0
        %3203 = vmatprep.subr.mxu0 0.0
        %3204 = vmatpush1.xpose.msra.mxu0 0.0
        %3205 = vmatprep.subr.mxu0 0.0
        %3206 = vmatpush1.xpose.msra.mxu0 0.0
        %3207 = vmatprep.subr.mxu0 0.0
        %3208 = vmatpush1.xpose.msra.mxu0 0.0
        %3209 = vmatprep.subr.mxu0 0.0
        %3210 = vmatpush1.xpose.msra.mxu0 %v3191
        %3211 = vmatprep.subr.mxu0 0.0
        %3212 = vmatpush1.xpose.msra.mxu0 %v3189
        %3213 = vmatprep.subr.mxu0 0.0
        %3214 = vmatpush1.xpose.msra.mxu0 %v3187
        %3215 = vmatprep.subr.mxu0 0.0
        %3216 = vmatpush1.xpose.msra.mxu0 %v3185
        %3217 = vmatprep.subr.mxu0 0.0
        %3218 = vmatpush1.xpose.msra.mxu0 %v3183
        %3219 = vmatprep.subr.mxu0 0.0
        %3220 = vmatpush1.xpose.msra.mxu0 %v3181
        %3221 = vmatprep.subr.mxu0 0.0
        %3222 = vmatpush1.xpose.msra.mxu0 %v3179
        %3223 = vmatprep.subr.mxu0 0.0
        %3224 = vmatpush1.xpose.msra.mxu0 %v3177
        %3225 = vmatprep.subr.mxu0 0.0
        %3226 = vmatpush2.xpose.msra.mxu0 0.0
        %3227 = vmatprep.subr.mxu0 0.0
        %3228 = vmatpush2.xpose.msra.mxu0 0.0
        %3229 = vmatprep.subr.mxu0 0.0
        %3230 = vmatpush2.xpose.msra.mxu0 0.0
        %3231 = vmatprep.subr.mxu0 0.0
        %3232 = vmatpush2.xpose.msra.mxu0 0.0
        %3233 = vmatprep.subr.mxu0 0.0
        %3234 = vmatpush2.xpose.msra.mxu0 0.0
        %3235 = vmatprep.subr.mxu0 0.0
        %3236 = vmatpush2.xpose.msra.mxu0 0.0
        %3237 = vmatprep.subr.mxu0 0.0
        %3238 = vmatpush2.xpose.msra.mxu0 0.0
        %3239 = vmatprep.subr.mxu0 0.0
        %3240 = vmatpush2.xpose.msra.mxu0 0.0
        %3241 = vmatprep.subr.mxu0 0.0
        %3242 = vmatpush2.xpose.msra.mxu0 0.0
        %3243 = vmatprep.subr.mxu0 0.0
        %3244 = vmatpush2.xpose.msra.mxu0 0.0
        %3245 = vmatprep.subr.mxu0 0.0
        %3246 = vmatpush2.xpose.msra.mxu0 0.0
        %3247 = vmatprep.subr.mxu0 0.0
        %3248 = vmatpush2.xpose.msra.mxu0 0.0
        %3249 = vmatprep.subr.mxu0 0.0
        %3250 = vmatpush2.xpose.msra.mxu0 0.0
        %3251 = vmatprep.subr.mxu0 0.0
        %3252 = vmatpush2.xpose.msra.mxu0 0.0
        %3253 = vmatprep.subr.mxu0 0.0
        %3254 = vmatpush2.xpose.msra.mxu0 0.0
        %3255 = vmatprep.subr.mxu0 0.0
        %3256 = vmatpush2.xpose.msra.mxu0 0.0
        %3257 = vmatprep.mubr.f32.mxu0 0.0
        %3258 = vmatmul.mubr.f32.gmra.mxu0 %v3161
        %v3259 = vpop.f32.mrf.mxu0
        %v3260 = vadd.f32 0.0, %v3259
        %v3261 = vpop.f32.mrf.mxu0
        %3262 = vmatprep.mubr.f32.mxu0 0.0
        %3263 = vmatmul.mubr.f32.gmra.mxu0 %v3163
        %v3264 = vpop.f32.mrf.mxu0
        %v3265 = vadd.f32 0.0, %v3264
        %v3266 = vpop.f32.mrf.mxu0
        %3267 = vmatprep.mubr.f32.mxu0 0.0
        %3268 = vmatmul.mubr.f32.gmra.mxu0 %v3165
        %v3269 = vpop.f32.mrf.mxu0
        %v3270 = vadd.f32 0.0, %v3269
        %v3271 = vpop.f32.mrf.mxu0
        %3272 = vmatprep.mubr.f32.mxu0 0.0
        %3273 = vmatmul.mubr.f32.gmra.mxu0 %v3167
        %v3274 = vpop.f32.mrf.mxu0
        %v3275 = vadd.f32 0.0, %v3274
        %v3276 = vpop.f32.mrf.mxu0
        %3277 = vmatprep.mubr.f32.mxu0 0.0
        %3278 = vmatmul.mubr.f32.gmra.mxu0 %v3169
        %v3279 = vpop.f32.mrf.mxu0
        %v3280 = vadd.f32 0.0, %v3279
        %v3281 = vpop.f32.mrf.mxu0
        %3282 = vmatprep.mubr.f32.mxu0 0.0
        %3283 = vmatmul.mubr.f32.gmra.mxu0 %v3171
        %v3284 = vpop.f32.mrf.mxu0
        %v3285 = vadd.f32 0.0, %v3284
        %v3286 = vpop.f32.mrf.mxu0
        %3287 = vmatprep.mubr.f32.mxu0 0.0
        %3288 = vmatmul.mubr.f32.gmra.mxu0 %v3173
        %v3289 = vpop.f32.mrf.mxu0
        %v3290 = vadd.f32 0.0, %v3289
        %v3291 = vpop.f32.mrf.mxu0
        %3292 = vmatprep.mubr.f32.mxu0 0.0
        %3293 = vmatmul.mubr.f32.gmra.mxu0 %v3175
        %v3294 = vpop.f32.mrf.mxu0
        %v3295 = vadd.f32 0.0, %v3294
        %v3296 = vpop.f32.mrf.mxu0
        %3297 = vdwg.mxu0
        %3298 = vrot.lane.b32.xlu0 %v579, 104
        %v3299 = vpop.permute.xlu0 %3298
        %3300 = vrot.lane.b32.xlu0 %v580, 104
        %v3301 = vpop.permute.xlu0 %3300
        %3302 = vrot.lane.b32.xlu0 %v581, 104
        %v3303 = vpop.permute.xlu0 %3302
        %3304 = vrot.lane.b32.xlu0 %v582, 104
        %v3305 = vpop.permute.xlu0 %3304
        %3306 = vrot.lane.b32.xlu0 %v583, 104
        %v3307 = vpop.permute.xlu0 %3306
        %3308 = vrot.lane.b32.xlu0 %v584, 104
        %v3309 = vpop.permute.xlu0 %3308
        %3310 = vrot.lane.b32.xlu0 %v585, 104
        %v3311 = vpop.permute.xlu0 %3310
        %3312 = vrot.lane.b32.xlu0 %v586, 104
        %v3313 = vpop.permute.xlu0 %3312
        %3314 = vrot.lane.b32.xlu0 %v547, 104
        %v3315 = vpop.permute.xlu0 %3314
        %3316 = vrot.lane.b32.xlu0 %v548, 104
        %v3317 = vpop.permute.xlu0 %3316
        %3318 = vrot.lane.b32.xlu0 %v549, 104
        %v3319 = vpop.permute.xlu0 %3318
        %3320 = vrot.lane.b32.xlu0 %v550, 104
        %v3321 = vpop.permute.xlu0 %3320
        %3322 = vrot.lane.b32.xlu0 %v551, 104
        %v3323 = vpop.permute.xlu0 %3322
        %3324 = vrot.lane.b32.xlu0 %v552, 104
        %v3325 = vpop.permute.xlu0 %3324
        %3326 = vrot.lane.b32.xlu0 %v553, 104
        %v3327 = vpop.permute.xlu0 %3326
        %3328 = vrot.lane.b32.xlu0 %v554, 104
        %v3329 = vpop.permute.xlu0 %3328
        %v3330 = vsel %vm587, %v3299, 0
        %v3332 = vsel %vm587, %v3301, 0
        %v3334 = vsel %vm587, %v3303, 0
        %v3336 = vsel %vm587, %v3305, 0
        %v3338 = vsel %vm587, %v3307, 0
        %v3340 = vsel %vm587, %v3309, 0
        %v3342 = vsel %vm587, %v3311, 0
        %v3344 = vsel %vm587, %v3313, 0
        %v3346 = vsel %vm587, %v3315, 0
        %v3348 = vsel %vm587, %v3317, 0
        %v3350 = vsel %vm587, %v3319, 0
        %v3352 = vsel %vm587, %v3321, 0
        %v3354 = vsel %vm587, %v3323, 0
        %v3356 = vsel %vm587, %v3325, 0
        %v3358 = vsel %vm587, %v3327, 0
        %v3360 = vsel %vm587, %v3329, 0
        %3362 = vmatprep.subr.mxu0 0.0
        %3363 = vmatpush1.xpose.msra.mxu0 0.0
        %3364 = vmatprep.subr.mxu0 0.0
        %3365 = vmatpush1.xpose.msra.mxu0 0.0
        %3366 = vmatprep.subr.mxu0 0.0
        %3367 = vmatpush1.xpose.msra.mxu0 0.0
        %3368 = vmatprep.subr.mxu0 0.0
        %3369 = vmatpush1.xpose.msra.mxu0 0.0
        %3370 = vmatprep.subr.mxu0 0.0
        %3371 = vmatpush1.xpose.msra.mxu0 0.0
        %3372 = vmatprep.subr.mxu0 0.0
        %3373 = vmatpush1.xpose.msra.mxu0 0.0
        %3374 = vmatprep.subr.mxu0 0.0
        %3375 = vmatpush1.xpose.msra.mxu0 0.0
        %3376 = vmatprep.subr.mxu0 0.0
        %3377 = vmatpush1.xpose.msra.mxu0 0.0
        %3378 = vmatprep.subr.mxu0 0.0
        %3379 = vmatpush1.xpose.msra.mxu0 %v3360
        %3380 = vmatprep.subr.mxu0 0.0
        %3381 = vmatpush1.xpose.msra.mxu0 %v3358
        %3382 = vmatprep.subr.mxu0 0.0
        %3383 = vmatpush1.xpose.msra.mxu0 %v3356
        %3384 = vmatprep.subr.mxu0 0.0
        %3385 = vmatpush1.xpose.msra.mxu0 %v3354
        %3386 = vmatprep.subr.mxu0 0.0
        %3387 = vmatpush1.xpose.msra.mxu0 %v3352
        %3388 = vmatprep.subr.mxu0 0.0
        %3389 = vmatpush1.xpose.msra.mxu0 %v3350
        %3390 = vmatprep.subr.mxu0 0.0
        %3391 = vmatpush1.xpose.msra.mxu0 %v3348
        %3392 = vmatprep.subr.mxu0 0.0
        %3393 = vmatpush1.xpose.msra.mxu0 %v3346
        %3394 = vmatprep.subr.mxu0 0.0
        %3395 = vmatpush2.xpose.msra.mxu0 0.0
        %3396 = vmatprep.subr.mxu0 0.0
        %3397 = vmatpush2.xpose.msra.mxu0 0.0
        %3398 = vmatprep.subr.mxu0 0.0
        %3399 = vmatpush2.xpose.msra.mxu0 0.0
        %3400 = vmatprep.subr.mxu0 0.0
        %3401 = vmatpush2.xpose.msra.mxu0 0.0
        %3402 = vmatprep.subr.mxu0 0.0
        %3403 = vmatpush2.xpose.msra.mxu0 0.0
        %3404 = vmatprep.subr.mxu0 0.0
        %3405 = vmatpush2.xpose.msra.mxu0 0.0
        %3406 = vmatprep.subr.mxu0 0.0
        %3407 = vmatpush2.xpose.msra.mxu0 0.0
        %3408 = vmatprep.subr.mxu0 0.0
        %3409 = vmatpush2.xpose.msra.mxu0 0.0
        %3410 = vmatprep.subr.mxu0 0.0
        %3411 = vmatpush2.xpose.msra.mxu0 0.0
        %3412 = vmatprep.subr.mxu0 0.0
        %3413 = vmatpush2.xpose.msra.mxu0 0.0
        %3414 = vmatprep.subr.mxu0 0.0
        %3415 = vmatpush2.xpose.msra.mxu0 0.0
        %3416 = vmatprep.subr.mxu0 0.0
        %3417 = vmatpush2.xpose.msra.mxu0 0.0
        %3418 = vmatprep.subr.mxu0 0.0
        %3419 = vmatpush2.xpose.msra.mxu0 0.0
        %3420 = vmatprep.subr.mxu0 0.0
        %3421 = vmatpush2.xpose.msra.mxu0 0.0
        %3422 = vmatprep.subr.mxu0 0.0
        %3423 = vmatpush2.xpose.msra.mxu0 0.0
        %3424 = vmatprep.subr.mxu0 0.0
        %3425 = vmatpush2.xpose.msra.mxu0 0.0
        %3426 = vmatprep.mubr.f32.mxu0 0.0
        %3427 = vmatmul.mubr.f32.gmra.mxu0 %v3330
        %v3428 = vpop.f32.mrf.mxu0
        %v3429 = vadd.f32 0.0, %v3428
        %v3430 = vpop.f32.mrf.mxu0
        %3431 = vmatprep.mubr.f32.mxu0 0.0
        %3432 = vmatmul.mubr.f32.gmra.mxu0 %v3332
        %v3433 = vpop.f32.mrf.mxu0
        %v3434 = vadd.f32 0.0, %v3433
        %v3435 = vpop.f32.mrf.mxu0
        %3436 = vmatprep.mubr.f32.mxu0 0.0
        %3437 = vmatmul.mubr.f32.gmra.mxu0 %v3334
        %v3438 = vpop.f32.mrf.mxu0
        %v3439 = vadd.f32 0.0, %v3438
        %v3440 = vpop.f32.mrf.mxu0
        %3441 = vmatprep.mubr.f32.mxu0 0.0
        %3442 = vmatmul.mubr.f32.gmra.mxu0 %v3336
        %v3443 = vpop.f32.mrf.mxu0
        %v3444 = vadd.f32 0.0, %v3443
        %v3445 = vpop.f32.mrf.mxu0
        %3446 = vmatprep.mubr.f32.mxu0 0.0
        %3447 = vmatmul.mubr.f32.gmra.mxu0 %v3338
        %v3448 = vpop.f32.mrf.mxu0
        %v3449 = vadd.f32 0.0, %v3448
        %v3450 = vpop.f32.mrf.mxu0
        %3451 = vmatprep.mubr.f32.mxu0 0.0
        %3452 = vmatmul.mubr.f32.gmra.mxu0 %v3340
        %v3453 = vpop.f32.mrf.mxu0
        %v3454 = vadd.f32 0.0, %v3453
        %v3455 = vpop.f32.mrf.mxu0
        %3456 = vmatprep.mubr.f32.mxu0 0.0
        %3457 = vmatmul.mubr.f32.gmra.mxu0 %v3342
        %v3458 = vpop.f32.mrf.mxu0
        %v3459 = vadd.f32 0.0, %v3458
        %v3460 = vpop.f32.mrf.mxu0
        %3461 = vmatprep.mubr.f32.mxu0 0.0
        %3462 = vmatmul.mubr.f32.gmra.mxu0 %v3344
        %v3463 = vpop.f32.mrf.mxu0
        %v3464 = vadd.f32 0.0, %v3463
        %v3465 = vpop.f32.mrf.mxu0
        %3466 = vdwg.mxu0
        %v3467 = vsel %vm894, %v3260, -inf
        %3468 = vmax.xlane.f32.xlu0 %v3467
        %v3469 = vpop.xlane.xlu0 %3468
        %v3470 = vsel %vm894, %v3265, -inf
        %3471 = vmax.xlane.f32.xlu0 %v3470
        %v3472 = vpop.xlane.xlu0 %3471
        %v3473 = vsel %vm894, %v3270, -inf
        %3474 = vmax.xlane.f32.xlu0 %v3473
        %v3475 = vpop.xlane.xlu0 %3474
        %v3476 = vsel %vm894, %v3275, -inf
        %3477 = vmax.xlane.f32.xlu0 %v3476
        %v3478 = vpop.xlane.xlu0 %3477
        %v3479 = vsel %vm894, %v3280, -inf
        %3480 = vmax.xlane.f32.xlu0 %v3479
        %v3481 = vpop.xlane.xlu0 %3480
        %v3482 = vsel %vm894, %v3285, -inf
        %3483 = vmax.xlane.f32.xlu0 %v3482
        %v3484 = vpop.xlane.xlu0 %3483
        %v3485 = vsel %vm894, %v3290, -inf
        %3486 = vmax.xlane.f32.xlu0 %v3485
        %v3487 = vpop.xlane.xlu0 %3486
        %v3488 = vsel %vm894, %v3295, -inf
        %3489 = vmax.xlane.f32.xlu0 %v3488
        %v3490 = vpop.xlane.xlu0 %3489
        %v3491 = vsel %vm894, %v3429, -inf
        %3492 = vmax.xlane.f32.xlu0 %v3491
        %v3493 = vpop.xlane.xlu0 %3492
        %v3494 = vsel %vm894, %v3434, -inf
        %3495 = vmax.xlane.f32.xlu0 %v3494
        %v3496 = vpop.xlane.xlu0 %3495
        %v3497 = vsel %vm894, %v3439, -inf
        %3498 = vmax.xlane.f32.xlu0 %v3497
        %v3499 = vpop.xlane.xlu0 %3498
        %v3500 = vsel %vm894, %v3444, -inf
        %3501 = vmax.xlane.f32.xlu0 %v3500
        %v3502 = vpop.xlane.xlu0 %3501
        %v3503 = vsel %vm894, %v3449, -inf
        %3504 = vmax.xlane.f32.xlu0 %v3503
        %v3505 = vpop.xlane.xlu0 %3504
        %v3506 = vsel %vm894, %v3454, -inf
        %3507 = vmax.xlane.f32.xlu0 %v3506
        %v3508 = vpop.xlane.xlu0 %3507
        %v3509 = vsel %vm894, %v3459, -inf
        %3510 = vmax.xlane.f32.xlu0 %v3509
        %v3511 = vpop.xlane.xlu0 %3510
        %v3512 = vsel %vm894, %v3464, -inf
        %3513 = vmax.xlane.f32.xlu0 %v3512
        %v3514 = vpop.xlane.xlu0 %3513
        %v3515 = vsub.f32 %v3260, %v3469
        %v3516 = vsub.f32 %v3265, %v3472
        %v3517 = vsub.f32 %v3270, %v3475
        %v3518 = vsub.f32 %v3275, %v3478
        %v3519 = vsub.f32 %v3280, %v3481
        %v3520 = vsub.f32 %v3285, %v3484
        %v3521 = vsub.f32 %v3290, %v3487
        %v3522 = vsub.f32 %v3295, %v3490
        %v3523 = vsub.f32 %v3429, %v3493
        %v3524 = vsub.f32 %v3434, %v3496
        %v3525 = vsub.f32 %v3439, %v3499
        %v3526 = vsub.f32 %v3444, %v3502
        %v3527 = vsub.f32 %v3449, %v3505
        %v3528 = vsub.f32 %v3454, %v3508
        %v3529 = vsub.f32 %v3459, %v3511
        %v3530 = vsub.f32 %v3464, %v3514
        %v3531 = vmul.f32 %v3515, 1.442695
        %v3532 = vpow.pop %v3531
        %v3533 = vmul.f32 %v3516, 1.442695
        %v3534 = vpow.pop %v3533
        %v3535 = vmul.f32 %v3517, 1.442695
        %v3536 = vpow.pop %v3535
        %v3537 = vmul.f32 %v3518, 1.442695
        %v3538 = vpow.pop %v3537
        %v3539 = vmul.f32 %v3519, 1.442695
        %v3540 = vpow.pop %v3539
        %v3541 = vmul.f32 %v3520, 1.442695
        %v3542 = vpow.pop %v3541
        %v3543 = vmul.f32 %v3521, 1.442695
        %v3544 = vpow.pop %v3543
        %v3545 = vmul.f32 %v3522, 1.442695
        %v3546 = vpow.pop %v3545
        %v3547 = vmul.f32 %v3523, 1.442695
        %v3548 = vpow.pop %v3547
        %v3549 = vmul.f32 %v3524, 1.442695
        %v3550 = vpow.pop %v3549
        %v3551 = vmul.f32 %v3525, 1.442695
        %v3552 = vpow.pop %v3551
        %v3553 = vmul.f32 %v3526, 1.442695
        %v3554 = vpow.pop %v3553
        %v3555 = vmul.f32 %v3527, 1.442695
        %v3556 = vpow.pop %v3555
        %v3557 = vmul.f32 %v3528, 1.442695
        %v3558 = vpow.pop %v3557
        %v3559 = vmul.f32 %v3529, 1.442695
        %v3560 = vpow.pop %v3559
        %v3561 = vmul.f32 %v3530, 1.442695
        %v3562 = vpow.pop %v3561
        %v3563 = vsel %vm894, %v3532, 0.0
        %3564 = vadd.xlane.f32.xlu0 %v3563
        %v3565 = vpop.xlane.xlu0 %3564
        %v3566 = vsel %vm894, %v3534, 0.0
        %3567 = vadd.xlane.f32.xlu0 %v3566
        %v3568 = vpop.xlane.xlu0 %3567
        %v3569 = vsel %vm894, %v3536, 0.0
        %3570 = vadd.xlane.f32.xlu0 %v3569
        %v3571 = vpop.xlane.xlu0 %3570
        %v3572 = vsel %vm894, %v3538, 0.0
        %3573 = vadd.xlane.f32.xlu0 %v3572
        %v3574 = vpop.xlane.xlu0 %3573
        %v3575 = vsel %vm894, %v3540, 0.0
        %3576 = vadd.xlane.f32.xlu0 %v3575
        %v3577 = vpop.xlane.xlu0 %3576
        %v3578 = vsel %vm894, %v3542, 0.0
        %3579 = vadd.xlane.f32.xlu0 %v3578
        %v3580 = vpop.xlane.xlu0 %3579
        %v3581 = vsel %vm894, %v3544, 0.0
        %3582 = vadd.xlane.f32.xlu0 %v3581
        %v3583 = vpop.xlane.xlu0 %3582
        %v3584 = vsel %vm894, %v3546, 0.0
        %3585 = vadd.xlane.f32.xlu0 %v3584
        %v3586 = vpop.xlane.xlu0 %3585
        %v3587 = vsel %vm894, %v3548, 0.0
        %3588 = vadd.xlane.f32.xlu0 %v3587
        %v3589 = vpop.xlane.xlu0 %3588
        %v3590 = vsel %vm894, %v3550, 0.0
        %3591 = vadd.xlane.f32.xlu0 %v3590
        %v3592 = vpop.xlane.xlu0 %3591
        %v3593 = vsel %vm894, %v3552, 0.0
        %3594 = vadd.xlane.f32.xlu0 %v3593
        %v3595 = vpop.xlane.xlu0 %3594
        %v3596 = vsel %vm894, %v3554, 0.0
        %3597 = vadd.xlane.f32.xlu0 %v3596
        %v3598 = vpop.xlane.xlu0 %3597
        %v3599 = vsel %vm894, %v3556, 0.0
        %3600 = vadd.xlane.f32.xlu0 %v3599
        %v3601 = vpop.xlane.xlu0 %3600
        %v3602 = vsel %vm894, %v3558, 0.0
        %3603 = vadd.xlane.f32.xlu0 %v3602
        %v3604 = vpop.xlane.xlu0 %3603
        %v3605 = vsel %vm894, %v3560, 0.0
        %3606 = vadd.xlane.f32.xlu0 %v3605
        %v3607 = vpop.xlane.xlu0 %3606
        %v3608 = vsel %vm894, %v3562, 0.0
        %3609 = vadd.xlane.f32.xlu0 %v3608
        %v3610 = vpop.xlane.xlu0 %3609
        %v3611 = vrcp.pop %v3565
        %v3612 = vrcp.pop %v3568
        %v3613 = vrcp.pop %v3571
        %v3614 = vrcp.pop %v3574
        %v3615 = vrcp.pop %v3577
        %v3616 = vrcp.pop %v3580
        %v3617 = vrcp.pop %v3583
        %v3618 = vrcp.pop %v3586
        %v3619 = vrcp.pop %v3589
        %v3620 = vrcp.pop %v3592
        %v3621 = vrcp.pop %v3595
        %v3622 = vrcp.pop %v3598
        %v3623 = vrcp.pop %v3601
        %v3624 = vrcp.pop %v3604
        %v3625 = vrcp.pop %v3607
        %v3626 = vrcp.pop %v3610
        %v3627 = vmul.f32 %v3565, %v3611
        %v3628 = vmul.f32 %v3568, %v3612
        %v3629 = vmul.f32 %v3571, %v3613
        %v3630 = vmul.f32 %v3574, %v3614
        %v3631 = vmul.f32 %v3577, %v3615
        %v3632 = vmul.f32 %v3580, %v3616
        %v3633 = vmul.f32 %v3583, %v3617
        %v3634 = vmul.f32 %v3586, %v3618
        %v3635 = vmul.f32 %v3589, %v3619
        %v3636 = vmul.f32 %v3592, %v3620
        %v3637 = vmul.f32 %v3595, %v3621
        %v3638 = vmul.f32 %v3598, %v3622
        %v3639 = vmul.f32 %v3601, %v3623
        %v3640 = vmul.f32 %v3604, %v3624
        %v3641 = vmul.f32 %v3607, %v3625
        %v3642 = vmul.f32 %v3610, %v3626
        %v3643 = vsub.f32 2.0, %v3627
        %v3644 = vsub.f32 2.0, %v3628
        %v3645 = vsub.f32 2.0, %v3629
        %v3646 = vsub.f32 2.0, %v3630
        %v3647 = vsub.f32 2.0, %v3631
        %v3648 = vsub.f32 2.0, %v3632
        %v3649 = vsub.f32 2.0, %v3633
        %v3650 = vsub.f32 2.0, %v3634
        %v3651 = vsub.f32 2.0, %v3635
        %v3652 = vsub.f32 2.0, %v3636
        %v3653 = vsub.f32 2.0, %v3637
        %v3654 = vsub.f32 2.0, %v3638
        %v3655 = vsub.f32 2.0, %v3639
        %v3656 = vsub.f32 2.0, %v3640
        %v3657 = vsub.f32 2.0, %v3641
        %v3658 = vsub.f32 2.0, %v3642
        %v3659 = vmul.f32 %v3611, %v3643
        %v3660 = vmul.f32 %v3612, %v3644
        %v3661 = vmul.f32 %v3613, %v3645
        %v3662 = vmul.f32 %v3614, %v3646
        %v3663 = vmul.f32 %v3615, %v3647
        %v3664 = vmul.f32 %v3616, %v3648
        %v3665 = vmul.f32 %v3617, %v3649
        %v3666 = vmul.f32 %v3618, %v3650
        %v3667 = vmul.f32 %v3619, %v3651
        %v3668 = vmul.f32 %v3620, %v3652
        %v3669 = vmul.f32 %v3621, %v3653
        %v3670 = vmul.f32 %v3622, %v3654
        %v3671 = vmul.f32 %v3623, %v3655
        %v3672 = vmul.f32 %v3624, %v3656
        %v3673 = vmul.f32 %v3625, %v3657
        %v3674 = vmul.f32 %v3626, %v3658
        %3675 = vrot.lane.b32.xlu0 %v555, 104
        %v3676 = vpop.permute.xlu0 %3675
        %3677 = vrot.lane.b32.xlu0 %v556, 104
        %v3678 = vpop.permute.xlu0 %3677
        %3679 = vrot.lane.b32.xlu0 %v557, 104
        %v3680 = vpop.permute.xlu0 %3679
        %3681 = vrot.lane.b32.xlu0 %v558, 104
        %v3682 = vpop.permute.xlu0 %3681
        %3683 = vrot.lane.b32.xlu0 %v559, 104
        %v3684 = vpop.permute.xlu0 %3683
        %3685 = vrot.lane.b32.xlu0 %v560, 104
        %v3686 = vpop.permute.xlu0 %3685
        %3687 = vrot.lane.b32.xlu0 %v561, 104
        %v3688 = vpop.permute.xlu0 %3687
        %3689 = vrot.lane.b32.xlu0 %v562, 104
        %v3690 = vpop.permute.xlu0 %3689
        %v3700 = vsel %vm894, %v3532, 0
        %v3703 = vsel %vm894, %v3534, 0
        %v3706 = vsel %vm894, %v3536, 0
        %v3709 = vsel %vm894, %v3538, 0
        %v3712 = vsel %vm894, %v3540, 0
        %v3715 = vsel %vm894, %v3542, 0
        %v3718 = vsel %vm894, %v3544, 0
        %v3721 = vsel %vm894, %v3546, 0
        %3723 = vmatprep.subr.mxu0 0.0
        %3724 = vmatpush1.msra.mxu0 0.0
        %3725 = vmatprep.subr.mxu0 0.0
        %3726 = vmatpush1.msra.mxu0 0.0
        %3727 = vmatprep.subr.mxu0 0.0
        %3728 = vmatpush1.msra.mxu0 0.0
        %3729 = vmatprep.subr.mxu0 0.0
        %3730 = vmatpush1.msra.mxu0 0.0
        %3731 = vmatprep.subr.mxu0 0.0
        %3732 = vmatpush1.msra.mxu0 0.0
        %3733 = vmatprep.subr.mxu0 0.0
        %3734 = vmatpush1.msra.mxu0 0.0
        %3735 = vmatprep.subr.mxu0 0.0
        %3736 = vmatpush1.msra.mxu0 0.0
        %3737 = vmatprep.subr.mxu0 0.0
        %3738 = vmatpush1.msra.mxu0 0.0
        %3739 = vmatprep.subr.mxu0 0.0
        %3740 = vmatpush1.msra.mxu0 %v3690
        %3741 = vmatprep.subr.mxu0 0.0
        %3742 = vmatpush1.msra.mxu0 %v3688
        %3743 = vmatprep.subr.mxu0 0.0
        %3744 = vmatpush1.msra.mxu0 %v3686
        %3745 = vmatprep.subr.mxu0 0.0
        %3746 = vmatpush1.msra.mxu0 %v3684
        %3747 = vmatprep.subr.mxu0 0.0
        %3748 = vmatpush1.msra.mxu0 %v3682
        %3749 = vmatprep.subr.mxu0 0.0
        %3750 = vmatpush1.msra.mxu0 %v3680
        %3751 = vmatprep.subr.mxu0 0.0
        %3752 = vmatpush1.msra.mxu0 %v3678
        %3753 = vmatprep.subr.mxu0 0.0
        %3754 = vmatpush1.msra.mxu0 %v3676
        %3755 = vmatprep.subr.mxu0 0.0
        %3756 = vmatpush2.msra.mxu0 0.0
        %3757 = vmatprep.subr.mxu0 0.0
        %3758 = vmatpush2.msra.mxu0 0.0
        %3759 = vmatprep.subr.mxu0 0.0
        %3760 = vmatpush2.msra.mxu0 0.0
        %3761 = vmatprep.subr.mxu0 0.0
        %3762 = vmatpush2.msra.mxu0 0.0
        %3763 = vmatprep.subr.mxu0 0.0
        %3764 = vmatpush2.msra.mxu0 0.0
        %3765 = vmatprep.subr.mxu0 0.0
        %3766 = vmatpush2.msra.mxu0 0.0
        %3767 = vmatprep.subr.mxu0 0.0
        %3768 = vmatpush2.msra.mxu0 0.0
        %3769 = vmatprep.subr.mxu0 0.0
        %3770 = vmatpush2.msra.mxu0 0.0
        %3771 = vmatprep.subr.mxu0 0.0
        %3772 = vmatpush2.msra.mxu0 0.0
        %3773 = vmatprep.subr.mxu0 0.0
        %3774 = vmatpush2.msra.mxu0 0.0
        %3775 = vmatprep.subr.mxu0 0.0
        %3776 = vmatpush2.msra.mxu0 0.0
        %3777 = vmatprep.subr.mxu0 0.0
        %3778 = vmatpush2.msra.mxu0 0.0
        %3779 = vmatprep.subr.mxu0 0.0
        %3780 = vmatpush2.msra.mxu0 0.0
        %3781 = vmatprep.subr.mxu0 0.0
        %3782 = vmatpush2.msra.mxu0 0.0
        %3783 = vmatprep.subr.mxu0 0.0
        %3784 = vmatpush2.msra.mxu0 0.0
        %3785 = vmatprep.subr.mxu0 0.0
        %3786 = vmatpush2.msra.mxu0 0.0
        %3787 = vmatprep.mubr.f32.mxu0 0.0
        %3788 = vmatmul.mubr.f32.gmra.mxu0 %v3700
        %v3789 = vpop.f32.mrf.mxu0
        %v3790 = vadd.f32 0.0, %v3789
        %v3791 = vpop.f32.mrf.mxu0
        %3792 = vmatprep.mubr.f32.mxu0 0.0
        %3793 = vmatmul.mubr.f32.gmra.mxu0 %v3703
        %v3794 = vpop.f32.mrf.mxu0
        %v3795 = vadd.f32 0.0, %v3794
        %v3796 = vpop.f32.mrf.mxu0
        %3797 = vmatprep.mubr.f32.mxu0 0.0
        %3798 = vmatmul.mubr.f32.gmra.mxu0 %v3706
        %v3799 = vpop.f32.mrf.mxu0
        %v3800 = vadd.f32 0.0, %v3799
        %v3801 = vpop.f32.mrf.mxu0
        %3802 = vmatprep.mubr.f32.mxu0 0.0
        %3803 = vmatmul.mubr.f32.gmra.mxu0 %v3709
        %v3804 = vpop.f32.mrf.mxu0
        %v3805 = vadd.f32 0.0, %v3804
        %v3806 = vpop.f32.mrf.mxu0
        %3807 = vmatprep.mubr.f32.mxu0 0.0
        %3808 = vmatmul.mubr.f32.gmra.mxu0 %v3712
        %v3809 = vpop.f32.mrf.mxu0
        %v3810 = vadd.f32 0.0, %v3809
        %v3811 = vpop.f32.mrf.mxu0
        %3812 = vmatprep.mubr.f32.mxu0 0.0
        %3813 = vmatmul.mubr.f32.gmra.mxu0 %v3715
        %v3814 = vpop.f32.mrf.mxu0
        %v3815 = vadd.f32 0.0, %v3814
        %v3816 = vpop.f32.mrf.mxu0
        %3817 = vmatprep.mubr.f32.mxu0 0.0
        %3818 = vmatmul.mubr.f32.gmra.mxu0 %v3718
        %v3819 = vpop.f32.mrf.mxu0
        %v3820 = vadd.f32 0.0, %v3819
        %v3821 = vpop.f32.mrf.mxu0
        %3822 = vmatprep.mubr.f32.mxu0 0.0
        %3823 = vmatmul.mubr.f32.gmra.mxu0 %v3721
        %v3824 = vpop.f32.mrf.mxu0
        %v3825 = vadd.f32 0.0, %v3824
        %v3826 = vpop.f32.mrf.mxu0
        %3827 = vdwg.mxu0
        %3828 = vrot.lane.b32.xlu0 %v563, 104
        %v3829 = vpop.permute.xlu0 %3828
        %3830 = vrot.lane.b32.xlu0 %v564, 104
        %v3831 = vpop.permute.xlu0 %3830
        %3832 = vrot.lane.b32.xlu0 %v565, 104
        %v3833 = vpop.permute.xlu0 %3832
        %3834 = vrot.lane.b32.xlu0 %v566, 104
        %v3835 = vpop.permute.xlu0 %3834
        %3836 = vrot.lane.b32.xlu0 %v567, 104
        %v3837 = vpop.permute.xlu0 %3836
        %3838 = vrot.lane.b32.xlu0 %v568, 104
        %v3839 = vpop.permute.xlu0 %3838
        %3840 = vrot.lane.b32.xlu0 %v569, 104
        %v3841 = vpop.permute.xlu0 %3840
        %3842 = vrot.lane.b32.xlu0 %v570, 104
        %v3843 = vpop.permute.xlu0 %3842
        %v3853 = vsel %vm894, %v3548, 0
        %v3856 = vsel %vm894, %v3550, 0
        %v3859 = vsel %vm894, %v3552, 0
        %v3862 = vsel %vm894, %v3554, 0
        %v3865 = vsel %vm894, %v3556, 0
        %v3868 = vsel %vm894, %v3558, 0
        %v3871 = vsel %vm894, %v3560, 0
        %v3874 = vsel %vm894, %v3562, 0
        %3876 = vmatprep.subr.mxu0 0.0
        %3877 = vmatpush1.msra.mxu0 0.0
        %3878 = vmatprep.subr.mxu0 0.0
        %3879 = vmatpush1.msra.mxu0 0.0
        %3880 = vmatprep.subr.mxu0 0.0
        %3881 = vmatpush1.msra.mxu0 0.0
        %3882 = vmatprep.subr.mxu0 0.0
        %3883 = vmatpush1.msra.mxu0 0.0
        %3884 = vmatprep.subr.mxu0 0.0
        %3885 = vmatpush1.msra.mxu0 0.0
        %3886 = vmatprep.subr.mxu0 0.0
        %3887 = vmatpush1.msra.mxu0 0.0
        %3888 = vmatprep.subr.mxu0 0.0
        %3889 = vmatpush1.msra.mxu0 0.0
        %3890 = vmatprep.subr.mxu0 0.0
        %3891 = vmatpush1.msra.mxu0 0.0
        %3892 = vmatprep.subr.mxu0 0.0
        %3893 = vmatpush1.msra.mxu0 %v3843
        %3894 = vmatprep.subr.mxu0 0.0
        %3895 = vmatpush1.msra.mxu0 %v3841
        %3896 = vmatprep.subr.mxu0 0.0
        %3897 = vmatpush1.msra.mxu0 %v3839
        %3898 = vmatprep.subr.mxu0 0.0
        %3899 = vmatpush1.msra.mxu0 %v3837
        %3900 = vmatprep.subr.mxu0 0.0
        %3901 = vmatpush1.msra.mxu0 %v3835
        %3902 = vmatprep.subr.mxu0 0.0
        %3903 = vmatpush1.msra.mxu0 %v3833
        %3904 = vmatprep.subr.mxu0 0.0
        %3905 = vmatpush1.msra.mxu0 %v3831
        %3906 = vmatprep.subr.mxu0 0.0
        %3907 = vmatpush1.msra.mxu0 %v3829
        %3908 = vmatprep.subr.mxu0 0.0
        %3909 = vmatpush2.msra.mxu0 0.0
        %3910 = vmatprep.subr.mxu0 0.0
        %3911 = vmatpush2.msra.mxu0 0.0
        %3912 = vmatprep.subr.mxu0 0.0
        %3913 = vmatpush2.msra.mxu0 0.0
        %3914 = vmatprep.subr.mxu0 0.0
        %3915 = vmatpush2.msra.mxu0 0.0
        %3916 = vmatprep.subr.mxu0 0.0
        %3917 = vmatpush2.msra.mxu0 0.0
        %3918 = vmatprep.subr.mxu0 0.0
        %3919 = vmatpush2.msra.mxu0 0.0
        %3920 = vmatprep.subr.mxu0 0.0
        %3921 = vmatpush2.msra.mxu0 0.0
        %3922 = vmatprep.subr.mxu0 0.0
        %3923 = vmatpush2.msra.mxu0 0.0
        %3924 = vmatprep.subr.mxu0 0.0
        %3925 = vmatpush2.msra.mxu0 0.0
        %3926 = vmatprep.subr.mxu0 0.0
        %3927 = vmatpush2.msra.mxu0 0.0
        %3928 = vmatprep.subr.mxu0 0.0
        %3929 = vmatpush2.msra.mxu0 0.0
        %3930 = vmatprep.subr.mxu0 0.0
        %3931 = vmatpush2.msra.mxu0 0.0
        %3932 = vmatprep.subr.mxu0 0.0
        %3933 = vmatpush2.msra.mxu0 0.0
        %3934 = vmatprep.subr.mxu0 0.0
        %3935 = vmatpush2.msra.mxu0 0.0
        %3936 = vmatprep.subr.mxu0 0.0
        %3937 = vmatpush2.msra.mxu0 0.0
        %3938 = vmatprep.subr.mxu0 0.0
        %3939 = vmatpush2.msra.mxu0 0.0
        %3940 = vmatprep.mubr.f32.mxu0 0.0
        %3941 = vmatmul.mubr.f32.gmra.mxu0 %v3853
        %v3942 = vpop.f32.mrf.mxu0
        %v3943 = vadd.f32 0.0, %v3942
        %v3944 = vpop.f32.mrf.mxu0
        %3945 = vmatprep.mubr.f32.mxu0 0.0
        %3946 = vmatmul.mubr.f32.gmra.mxu0 %v3856
        %v3947 = vpop.f32.mrf.mxu0
        %v3948 = vadd.f32 0.0, %v3947
        %v3949 = vpop.f32.mrf.mxu0
        %3950 = vmatprep.mubr.f32.mxu0 0.0
        %3951 = vmatmul.mubr.f32.gmra.mxu0 %v3859
        %v3952 = vpop.f32.mrf.mxu0
        %v3953 = vadd.f32 0.0, %v3952
        %v3954 = vpop.f32.mrf.mxu0
        %3955 = vmatprep.mubr.f32.mxu0 0.0
        %3956 = vmatmul.mubr.f32.gmra.mxu0 %v3862
        %v3957 = vpop.f32.mrf.mxu0
        %v3958 = vadd.f32 0.0, %v3957
        %v3959 = vpop.f32.mrf.mxu0
        %3960 = vmatprep.mubr.f32.mxu0 0.0
        %3961 = vmatmul.mubr.f32.gmra.mxu0 %v3865
        %v3962 = vpop.f32.mrf.mxu0
        %v3963 = vadd.f32 0.0, %v3962
        %v3964 = vpop.f32.mrf.mxu0
        %3965 = vmatprep.mubr.f32.mxu0 0.0
        %3966 = vmatmul.mubr.f32.gmra.mxu0 %v3868
        %v3967 = vpop.f32.mrf.mxu0
        %v3968 = vadd.f32 0.0, %v3967
        %v3969 = vpop.f32.mrf.mxu0
        %3970 = vmatprep.mubr.f32.mxu0 0.0
        %3971 = vmatmul.mubr.f32.gmra.mxu0 %v3871
        %v3972 = vpop.f32.mrf.mxu0
        %v3973 = vadd.f32 0.0, %v3972
        %v3974 = vpop.f32.mrf.mxu0
        %3975 = vmatprep.mubr.f32.mxu0 0.0
        %3976 = vmatmul.mubr.f32.gmra.mxu0 %v3874
        %v3977 = vpop.f32.mrf.mxu0
        %v3978 = vadd.f32 0.0, %v3977
        %v3979 = vpop.f32.mrf.mxu0
        %3980 = vdwg.mxu0
        %v3981 = vmul.f32 %v3790, %v3659
        %v3982 = vmul.f32 %v3795, %v3660
        %v3983 = vmul.f32 %v3800, %v3661
        %v3984 = vmul.f32 %v3805, %v3662
        %v3985 = vmul.f32 %v3810, %v3663
        %v3986 = vmul.f32 %v3815, %v3664
        %v3987 = vmul.f32 %v3820, %v3665
        %v3988 = vmul.f32 %v3825, %v3666
        %v3989 = vmul.f32 %v3943, %v3667
        %v3990 = vmul.f32 %v3948, %v3668
        %v3991 = vmul.f32 %v3953, %v3669
        %v3992 = vmul.f32 %v3958, %v3670
        %v3993 = vmul.f32 %v3963, %v3671
        %v3994 = vmul.f32 %v3968, %v3672
        %v3995 = vmul.f32 %v3973, %v3673
        %v3996 = vmul.f32 %v3978, %v3674
        %4013 = vrot.lane.b32.xlu0 %v2245, 8
        %v4014 = vpop.permute.xlu0 %4013
        %4015 = vrot.lane.b32.xlu0 %v2246, 8
        %v4016 = vpop.permute.xlu0 %4015
        %4017 = vrot.lane.b32.xlu0 %v2247, 8
        %v4018 = vpop.permute.xlu0 %4017
        %4019 = vrot.lane.b32.xlu0 %v2248, 8
        %v4020 = vpop.permute.xlu0 %4019
        %4021 = vrot.lane.b32.xlu0 %v2249, 8
        %v4022 = vpop.permute.xlu0 %4021
        %4023 = vrot.lane.b32.xlu0 %v2250, 8
        %v4024 = vpop.permute.xlu0 %4023
        %4025 = vrot.lane.b32.xlu0 %v2251, 8
        %v4026 = vpop.permute.xlu0 %4025
        %4027 = vrot.lane.b32.xlu0 %v2252, 8
        %v4028 = vpop.permute.xlu0 %4027
        %4029 = vrot.lane.b32.xlu0 %v2253, 8
        %v4030 = vpop.permute.xlu0 %4029
        %4031 = vrot.lane.b32.xlu0 %v2254, 8
        %v4032 = vpop.permute.xlu0 %4031
        %4033 = vrot.lane.b32.xlu0 %v2255, 8
        %v4034 = vpop.permute.xlu0 %4033
        %4035 = vrot.lane.b32.xlu0 %v2256, 8
        %v4036 = vpop.permute.xlu0 %4035
        %4037 = vrot.lane.b32.xlu0 %v2257, 8
        %v4038 = vpop.permute.xlu0 %4037
        %4039 = vrot.lane.b32.xlu0 %v2258, 8
        %v4040 = vpop.permute.xlu0 %4039
        %4041 = vrot.lane.b32.xlu0 %v2259, 8
        %v4042 = vpop.permute.xlu0 %4041
        %4043 = vrot.lane.b32.xlu0 %v2260, 8
        %v4044 = vpop.permute.xlu0 %4043
        %4077 = vrot.lane.b32.xlu0 %v3113, 16
        %v4078 = vpop.permute.xlu0 %4077
        %4079 = vrot.lane.b32.xlu0 %v3114, 16
        %v4080 = vpop.permute.xlu0 %4079
        %4081 = vrot.lane.b32.xlu0 %v3115, 16
        %v4082 = vpop.permute.xlu0 %4081
        %4083 = vrot.lane.b32.xlu0 %v3116, 16
        %v4084 = vpop.permute.xlu0 %4083
        %4085 = vrot.lane.b32.xlu0 %v3117, 16
        %v4086 = vpop.permute.xlu0 %4085
        %4087 = vrot.lane.b32.xlu0 %v3118, 16
        %v4088 = vpop.permute.xlu0 %4087
        %4089 = vrot.lane.b32.xlu0 %v3119, 16
        %v4090 = vpop.permute.xlu0 %4089
        %4091 = vrot.lane.b32.xlu0 %v3120, 16
        %v4092 = vpop.permute.xlu0 %4091
        %4093 = vrot.lane.b32.xlu0 %v3121, 16
        %v4094 = vpop.permute.xlu0 %4093
        %4095 = vrot.lane.b32.xlu0 %v3122, 16
        %v4096 = vpop.permute.xlu0 %4095
        %4097 = vrot.lane.b32.xlu0 %v3123, 16
        %v4098 = vpop.permute.xlu0 %4097
        %4099 = vrot.lane.b32.xlu0 %v3124, 16
        %v4100 = vpop.permute.xlu0 %4099
        %4101 = vrot.lane.b32.xlu0 %v3125, 16
        %v4102 = vpop.permute.xlu0 %4101
        %4103 = vrot.lane.b32.xlu0 %v3126, 16
        %v4104 = vpop.permute.xlu0 %4103
        %4105 = vrot.lane.b32.xlu0 %v3127, 16
        %v4106 = vpop.permute.xlu0 %4105
        %4107 = vrot.lane.b32.xlu0 %v3128, 16
        %v4108 = vpop.permute.xlu0 %4107
        %4141 = vrot.lane.b32.xlu0 %v3981, 24
        %v4142 = vpop.permute.xlu0 %4141
        %4143 = vrot.lane.b32.xlu0 %v3982, 24
        %v4144 = vpop.permute.xlu0 %4143
        %4145 = vrot.lane.b32.xlu0 %v3983, 24
        %v4146 = vpop.permute.xlu0 %4145
        %4147 = vrot.lane.b32.xlu0 %v3984, 24
        %v4148 = vpop.permute.xlu0 %4147
        %4149 = vrot.lane.b32.xlu0 %v3985, 24
        %v4150 = vpop.permute.xlu0 %4149
        %4151 = vrot.lane.b32.xlu0 %v3986, 24
        %v4152 = vpop.permute.xlu0 %4151
        %4153 = vrot.lane.b32.xlu0 %v3987, 24
        %v4154 = vpop.permute.xlu0 %4153
        %4155 = vrot.lane.b32.xlu0 %v3988, 24
        %v4156 = vpop.permute.xlu0 %4155
        %4157 = vrot.lane.b32.xlu0 %v3989, 24
        %v4158 = vpop.permute.xlu0 %4157
        %4159 = vrot.lane.b32.xlu0 %v3990, 24
        %v4160 = vpop.permute.xlu0 %4159
        %4161 = vrot.lane.b32.xlu0 %v3991, 24
        %v4162 = vpop.permute.xlu0 %4161
        %4163 = vrot.lane.b32.xlu0 %v3992, 24
        %v4164 = vpop.permute.xlu0 %4163
        %4165 = vrot.lane.b32.xlu0 %v3993, 24
        %v4166 = vpop.permute.xlu0 %4165
        %4167 = vrot.lane.b32.xlu0 %v3994, 24
        %v4168 = vpop.permute.xlu0 %4167
        %4169 = vrot.lane.b32.xlu0 %v3995, 24
        %v4170 = vpop.permute.xlu0 %4169
        %4171 = vrot.lane.b32.xlu0 %v3996, 24
        %v4172 = vpop.permute.xlu0 %4171
        %v4189 = vsel %vm587, %v1361, %v4014
        %v4190 = vsel %vm587, %v1362, %v4016
        %v4191 = vsel %vm587, %v1363, %v4018
        %v4192 = vsel %vm587, %v1364, %v4020
        %v4193 = vsel %vm587, %v1365, %v4022
        %v4194 = vsel %vm587, %v1366, %v4024
        %v4195 = vsel %vm587, %v1367, %v4026
        %v4196 = vsel %vm587, %v1368, %v4028
        %v4197 = vsel %vm587, %v1369, %v4030
        %v4198 = vsel %vm587, %v1370, %v4032
        %v4199 = vsel %vm587, %v1371, %v4034
        %v4200 = vsel %vm587, %v1372, %v4036
        %v4201 = vsel %vm587, %v1373, %v4038
        %v4202 = vsel %vm587, %v1374, %v4040
        %v4203 = vsel %vm587, %v1375, %v4042
        %v4204 = vsel %vm587, %v1376, %v4044
        %vm4205 = vcmask 130048
        %v4206 = vsel %vm4205, %v4189, %v4078
        %v4207 = vsel %vm4205, %v4190, %v4080
        %v4208 = vsel %vm4205, %v4191, %v4082
        %v4209 = vsel %vm4205, %v4192, %v4084
        %v4210 = vsel %vm4205, %v4193, %v4086
        %v4211 = vsel %vm4205, %v4194, %v4088
        %v4212 = vsel %vm4205, %v4195, %v4090
        %v4213 = vsel %vm4205, %v4196, %v4092
        %v4214 = vsel %vm4205, %v4197, %v4094
        %v4215 = vsel %vm4205, %v4198, %v4096
        %v4216 = vsel %vm4205, %v4199, %v4098
        %v4217 = vsel %vm4205, %v4200, %v4100
        %v4218 = vsel %vm4205, %v4201, %v4102
        %v4219 = vsel %vm4205, %v4202, %v4104
        %v4220 = vsel %vm4205, %v4203, %v4106
        %v4221 = vsel %vm4205, %v4204, %v4108
        %vm4222 = vcmask 195584
        %v4223 = vsel %vm4222, %v4206, %v4142
        %v4224 = vsel %vm4222, %v4207, %v4144
        %v4225 = vsel %vm4222, %v4208, %v4146
        %v4226 = vsel %vm4222, %v4209, %v4148
        %v4227 = vsel %vm4222, %v4210, %v4150
        %v4228 = vsel %vm4222, %v4211, %v4152
        %v4229 = vsel %vm4222, %v4212, %v4154
        %v4230 = vsel %vm4222, %v4213, %v4156
        %v4231 = vsel %vm4222, %v4214, %v4158
        %v4232 = vsel %vm4222, %v4215, %v4160
        %v4233 = vsel %vm4222, %v4216, %v4162
        %v4234 = vsel %vm4222, %v4217, %v4164
        %v4235 = vsel %vm4222, %v4218, %v4166
        %v4236 = vsel %vm4222, %v4219, %v4168
        %v4237 = vsel %vm4222, %v4220, %v4170
        %v4238 = vsel %vm4222, %v4221, %v4172
        %vm4239 = vcmask 261120
        %4240 = vst.msk [vmem:[%s518] sm:$0xff] %vm4239, %v4223
        %4241 = vst.msk [vmem:[%s518 + $0x8] sm:$0xff] %vm4239, %v4224
        %4242 = vst.msk [vmem:[%s518 + $0x10] sm:$0xff] %vm4239, %v4225
        %4243 = vst.msk [vmem:[%s518 + $0x18] sm:$0xff] %vm4239, %v4226
        %4244 = vst.msk [vmem:[%s518 + $0x20] sm:$0xff] %vm4239, %v4227
        %4245 = vst.msk [vmem:[%s518 + $0x28] sm:$0xff] %vm4239, %v4228
        %4246 = vst.msk [vmem:[%s518 + $0x30] sm:$0xff] %vm4239, %v4229
        %4247 = vst.msk [vmem:[%s518 + $0x38] sm:$0xff] %vm4239, %v4230
        %4248 = vst.msk [vmem:[%s518 + $0x40] sm:$0xff] %vm4239, %v4231
        %4249 = vst.msk [vmem:[%s518 + $0x48] sm:$0xff] %vm4239, %v4232
        %4250 = vst.msk [vmem:[%s518 + $0x50] sm:$0xff] %vm4239, %v4233
        %4251 = vst.msk [vmem:[%s518 + $0x58] sm:$0xff] %vm4239, %v4234
        %4252 = vst.msk [vmem:[%s518 + $0x60] sm:$0xff] %vm4239, %v4235
        %4253 = vst.msk [vmem:[%s518 + $0x68] sm:$0xff] %vm4239, %v4236
        %4254 = vst.msk [vmem:[%s518 + $0x70] sm:$0xff] %vm4239, %v4237
        %4255 = vst.msk [vmem:[%s518 + $0x78] sm:$0xff] %vm4239, %v4238
        %s4256 = sand.u32 %s120, 1
        %s4257 = sand.u32 %s120, 1
        %s4258 = smul.addr %s4257, 128
        %s4259 = scalar_lea.vmem [#allocation5], %s4258
        // Predicated region
        $region147: #{fwd.9} parent=133 // pred_check
          %p4260 = pneg %p130
        $region148: #{fwd.9} parent=133 // pred_check_branch
          %4262 = sbr.rel (%p4260) target = $region150
        $region149: #{fwd.9} parent=133 // pred_region
          %s4263 = smul.u32 8, %s18
          %s4264 = smul.addr %s4263, 2
          %s4265 = sadd.s32 %s19, %s4264
          %s4266 = smul.addr %s4265, 8
          %s4267 = scalar_lea.vmem %s3, %s4266
          // Predicated region
          $region151: #{fwd.9} parent=149 // pred_check
            _
          $region152: #{fwd.9} parent=149 // pred_check_branch
            %4269 = sbr.rel (0) target = $region154
          $region153: #{fwd.9} parent=149 // pred_region
            // Predicated region
            $region155: #{fwd.9} parent=153 // pred_check
              _
            $region156: #{fwd.9} parent=153 // pred_check_branch
              %4271 = sbr.rel (0) target = $region158
            $region157: #{fwd.9} parent=153 // pred_region
              // Predicated region
              $region170: #{fwd.9} parent=157 // pred_check
                _
              $region171: #{fwd.9} parent=157 // pred_check_branch
                %4317 = sbr.rel (0) target = $region173
              $region172: #{fwd.9} parent=157 // pred_region
                loop: start=0, step=1, limit=1
                $region174: #{fwd.9} parent=172 // loop_pre_header
                  _
                $region175: #{fwd.9} parent=172 // loop_header
                  %s4319 = sphi 0, %s4323
                  %p4320 = scmp.ge.s32.totalorder %s4319, 1
                  %s4324 = sphi %s4259, %s4259
                  %s4325 = sphi %s4267, %s4267
                $region176: #{fwd.9} parent=172 // loop_header_branch
                  %4322 = sbr.rel (%p4320) target = $region180
                $region177: #{fwd.9} parent=172 // loop_body
                  %v4326 = vld [vmem:[%s4324] sm:$0xff]
                  %4327 = vst [vmem:[%s4325] sm:$0xff] %v4326
                  %v4328 = vld [vmem:[%s4324 + $0x8] sm:$0xff]
                  %4329 = vst [vmem:[%s4325 + $0x10] sm:$0xff] %v4328
                  %v4330 = vld [vmem:[%s4324 + $0x10] sm:$0xff]
                  %4331 = vst [vmem:[%s4325 + $0x20] sm:$0xff] %v4330
                  %v4332 = vld [vmem:[%s4324 + $0x18] sm:$0xff]
                  %4333 = vst [vmem:[%s4325 + $0x30] sm:$0xff] %v4332
                  %v4334 = vld [vmem:[%s4324 + $0x20] sm:$0xff]
                  %4335 = vst [vmem:[%s4325 + $0x40] sm:$0xff] %v4334
                  %v4336 = vld [vmem:[%s4324 + $0x28] sm:$0xff]
                  %4337 = vst [vmem:[%s4325 + $0x50] sm:$0xff] %v4336
                  %v4338 = vld [vmem:[%s4324 + $0x30] sm:$0xff]
                  %4339 = vst [vmem:[%s4325 + $0x60] sm:$0xff] %v4338
                  %v4340 = vld [vmem:[%s4324 + $0x38] sm:$0xff]
                  %4341 = vst [vmem:[%s4325 + $0x70] sm:$0xff] %v4340
                  %v4342 = vld [vmem:[%s4324 + $0x40] sm:$0xff]
                  %4343 = vst [vmem:[%s4325 + $0x100] sm:$0xff] %v4342
                  %v4344 = vld [vmem:[%s4324 + $0x48] sm:$0xff]
                  %4345 = vst [vmem:[%s4325 + $0x110] sm:$0xff] %v4344
                  %v4346 = vld [vmem:[%s4324 + $0x50] sm:$0xff]
                  %4347 = vst [vmem:[%s4325 + $0x120] sm:$0xff] %v4346
                  %v4348 = vld [vmem:[%s4324 + $0x58] sm:$0xff]
                  %4349 = vst [vmem:[%s4325 + $0x130] sm:$0xff] %v4348
                  %v4350 = vld [vmem:[%s4324 + $0x60] sm:$0xff]
                  %4351 = vst [vmem:[%s4325 + $0x140] sm:$0xff] %v4350
                  %v4352 = vld [vmem:[%s4324 + $0x68] sm:$0xff]
                  %4353 = vst [vmem:[%s4325 + $0x150] sm:$0xff] %v4352
                  %v4354 = vld [vmem:[%s4324 + $0x70] sm:$0xff]
                  %4355 = vst [vmem:[%s4325 + $0x160] sm:$0xff] %v4354
                  %v4356 = vld [vmem:[%s4324 + $0x78] sm:$0xff]
                  %4357 = vst [vmem:[%s4325 + $0x170] sm:$0xff] %v4356
                $region178: #{fwd.9} parent=172 // loop_footer
                  %s4323 = sadd.s32 1, %s4319
                $region179: #{fwd.9} parent=172 // loop_footer_branch
                  %4318 = sbr.rel target = $region175
                $region180: #{fwd.9} parent=172 // loop_exit
                  _
              $region173: #{fwd.9} parent=157 // pred_fallthru
                _
              // Predicated region
              $region181: #{fwd.9} parent=157 // pred_check
                _
              $region182: #{fwd.9} parent=157 // pred_check_branch
                %4359 = sbr.rel target = $region184
              $region183: #{fwd.9} parent=157 // pred_region
                _
              $region184: #{fwd.9} parent=157 // pred_fallthru
                _
            $region158: #{fwd.9} parent=153 // pred_fallthru
              _
            // Predicated region
            $region159: #{fwd.9} parent=153 // pred_check
              _
            $region160: #{fwd.9} parent=153 // pred_check_branch
              %4273 = sbr.rel target = $region162
            $region161: #{fwd.9} parent=153 // pred_region
              %s4275 = ssub.s32 256, 1
              loop: start=0, step=1, limit=1
              $region163: #{fwd.9} parent=161 // loop_pre_header
                _
              $region164: #{fwd.9} parent=161 // loop_header
                %s4277 = sphi 0, %s4281
                %p4278 = scmp.ge.s32.totalorder %s4277, 1
                %s4282 = sphi %s4259, %s4259
                %s4283 = sphi %s4267, %s4267
              $region165: #{fwd.9} parent=161 // loop_header_branch
                %4280 = sbr.rel (%p4278) target = $region169
              $region166: #{fwd.9} parent=161 // loop_body
                %v4284 = vld [vmem:[%s4282] sm:%s4275]
                %4285 = vst [vmem:[%s4283] sm:%s4275] %v4284
                %v4286 = vld [vmem:[%s4282 + $0x8] sm:%s4275]
                %4287 = vst [vmem:[%s4283 + $0x10] sm:%s4275] %v4286
                %v4288 = vld [vmem:[%s4282 + $0x10] sm:%s4275]
                %4289 = vst [vmem:[%s4283 + $0x20] sm:%s4275] %v4288
                %v4290 = vld [vmem:[%s4282 + $0x18] sm:%s4275]
                %4291 = vst [vmem:[%s4283 + $0x30] sm:%s4275] %v4290
                %v4292 = vld [vmem:[%s4282 + $0x20] sm:%s4275]
                %4293 = vst [vmem:[%s4283 + $0x40] sm:%s4275] %v4292
                %v4294 = vld [vmem:[%s4282 + $0x28] sm:%s4275]
                %4295 = vst [vmem:[%s4283 + $0x50] sm:%s4275] %v4294
                %v4296 = vld [vmem:[%s4282 + $0x30] sm:%s4275]
                %4297 = vst [vmem:[%s4283 + $0x60] sm:%s4275] %v4296
                %v4298 = vld [vmem:[%s4282 + $0x38] sm:%s4275]
                %4299 = vst [vmem:[%s4283 + $0x70] sm:%s4275] %v4298
                %v4300 = vld [vmem:[%s4282 + $0x40] sm:%s4275]
                %4301 = vst [vmem:[%s4283 + $0x100] sm:%s4275] %v4300
                %v4302 = vld [vmem:[%s4282 + $0x48] sm:%s4275]
                %4303 = vst [vmem:[%s4283 + $0x110] sm:%s4275] %v4302
                %v4304 = vld [vmem:[%s4282 + $0x50] sm:%s4275]
                %4305 = vst [vmem:[%s4283 + $0x120] sm:%s4275] %v4304
                %v4306 = vld [vmem:[%s4282 + $0x58] sm:%s4275]
                %4307 = vst [vmem:[%s4283 + $0x130] sm:%s4275] %v4306
                %v4308 = vld [vmem:[%s4282 + $0x60] sm:%s4275]
                %4309 = vst [vmem:[%s4283 + $0x140] sm:%s4275] %v4308
                %v4310 = vld [vmem:[%s4282 + $0x68] sm:%s4275]
                %4311 = vst [vmem:[%s4283 + $0x150] sm:%s4275] %v4310
                %v4312 = vld [vmem:[%s4282 + $0x70] sm:%s4275]
                %4313 = vst [vmem:[%s4283 + $0x160] sm:%s4275] %v4312
                %v4314 = vld [vmem:[%s4282 + $0x78] sm:%s4275]
                %4315 = vst [vmem:[%s4283 + $0x170] sm:%s4275] %v4314
              $region167: #{fwd.9} parent=161 // loop_footer
                %s4281 = sadd.s32 1, %s4277
              $region168: #{fwd.9} parent=161 // loop_footer_branch
                %4276 = sbr.rel target = $region164
              $region169: #{fwd.9} parent=161 // loop_exit
                _
            $region162: #{fwd.9} parent=153 // pred_fallthru
              _
          $region154: #{fwd.9} parent=149 // pred_fallthru
            _
          %4360 = vnop
        $region150: #{fwd.9} parent=133 // pred_fallthru
          _
      $region134: #{fwd.9} parent=5 // pred_fallthru
        _
      %p4361 = scmp.le.s32.totalorder 2, %s9
      // Predicated region
      $region185: #{fwd.9} parent=5 // pred_check
        %p4362 = pneg %p4361
      $region186: #{fwd.9} parent=5 // pred_check_branch
        %4364 = sbr.rel (%p4362) target = $region188
      $region187: #{fwd.9} parent=5 // pred_region
        %s4365 = ssub.s32 %s9, 2
        // Predicated region
        $region189: #{fwd.9} parent=187 // pred_check
          %p4366 = pneg %p136
        $region190: #{fwd.9} parent=187 // pred_check_branch
          %4368 = sbr.rel (%p4366) target = $region192
        $region191: #{fwd.9} parent=187 // pred_region
          %s4369 = sand.u32 %s121, 1
          %s4370 = sand.u32 %s121, 1
          %s4371 = smul.addr %s4370, 128
          %s4372 = scalar_lea.vmem [#allocation5], %s4371
        $region192: #{fwd.9} parent=187 // pred_fallthru
          _
      $region188: #{fwd.9} parent=5 // pred_fallthru
        _
    $region6: #{fwd.9} parent=1 // loop_footer
      %s13 = sadd.s32 1, %s9
    $region7: #{fwd.9} parent=1 // loop_footer_branch
      %8 = sbr.rel target = $region3
    $region8: #{fwd.9} parent=1 // loop_exit
      _

// kernel: fwd.11
$region0: #{fwd.11}
  #allocation0 [shape = 'u32[]', space=smem, size = 0x4, offset = 0x4, fixed_abs, tag = 'smem constant byte address 0x4 - core index']
  #allocation1 [shape = 'u32[144,128]{1,0:T(1,128)}', space=vmem, size = 0x12000, scoped, tag = 'internal scratch']
  %s0 = inlined_call_operand.vmem [shape: f32[512,128], index: 0, kind: input, shape index: {}]
  %s1 = inlined_call_operand.vmem [shape: f32[128,128], index: 1, kind: input, shape index: {}]
  %s2 = inlined_call_operand.vmem [shape: f32[1,128], index: 2, kind: input, shape index: {}]
  %s3 = inlined_call_operand.vmem [shape: f32[512,128], index: 3, kind: output, shape index: {}]
  %s4 = sld [smem:[#allocation0]]
  $region53: #{fwd.11} parent=0
    _
  %s6 = ssub.s32 1, %s4
  %s7 = scalar_select 0, %s6, %s4
  loop: start=0, step=1, limit=4
  $region2: #{fwd.11} parent=0 // loop_pre_header
    _
  $region3: #{fwd.11} parent=0 // loop_header
    %s9 = sphi 0, %s13
    %p10 = scmp.ge.s32.totalorder %s9, 4
    %s16 = sphi 0, %s35
    %s17 = sphi 0, %s31
    %s18 = sphi 0, %s27
    %s19 = sphi 0, %s16
    %s20 = sphi 0, %s17
    %s21 = sphi 0, %s18
    %s22 = sphi 0, %s19
    %s23 = sphi 0, %s20
    %s24 = sphi 0, %s21
    %s40 = sphi 0, %s42
    %s43 = sphi 0, %s40
    %s44 = sphi 0, %s43
    %s60 = sphi 0, %s44
    %s68 = sphi 0, %s70
    %s71 = sphi 0, %s68
    %s72 = sphi 0, %s71
    %s88 = sphi 0, %s72
    %s94 = sphi 0, %s96
    %s97 = sphi 0, %s94
    %s98 = sphi 0, %s97
    %s114 = sphi 0, %s98
    %s122 = sphi 0, %s124
    %s125 = sphi 0, %s122
    %s126 = sphi 0, %s125
    %s142 = sphi 0, %s126
  $region4: #{fwd.11} parent=0 // loop_header_branch
    %12 = sbr.rel (%p10) target = $region8
  $region5: #{fwd.11} parent=0 // loop_body
    %s14 = ssub.s32 %s9, 1
    %s15 = ssub.s32 %s9, 2
    %s25 = sadd.s32 1, %s18
    %p26 = scmp.ge.s32.totalorder %s25, 1
    %s27 = scalar_select %p26, 0, %s25
    %s28 = sadd.s32 1, %s17
    %s29 = scalar_select %p26, %s28, %s17
    %p30 = scmp.ge.s32.totalorder %s29, 1
    %s31 = scalar_select %p30, 0, %s29
    %s32 = sadd.s32 1, %s16
    %s33 = scalar_select %p30, %s32, %s16
    %p34 = scmp.ge.s32.totalorder %s33, 2
    %s35 = scalar_select %p34, 0, %s33
    %s36 = ssub.s32 %s16, %s35
    %s37 = ssub.s32 %s18, %s27
    %s38 = sor.u32 %s36, %s37
    %p39 = scmp.eq.s32.totalorder %s38, 0
    %s41 = sadd.s32 %s40, 1
    %s42 = scalar_select %p39, %s40, %s41
    %p45 = pneg %p39
    %p46 = scmp.eq.s32.totalorder %s9, 1
    %p47 = por %p45, %p46
    %p48 = scmp.ne.s32.totalorder %s40, %s43
    %p49 = scmp.eq.s32.totalorder %s9, 0
    %p50 = por %p48, %p49
    %p51 = scmp.ne.s32.totalorder %s40, %s43
    %p52 = scmp.eq.s32.totalorder %s14, 1
    %p53 = por %p51, %p52
    %p54 = scmp.ne.s32.totalorder %s43, %s44
    %p55 = scmp.eq.s32.totalorder %s14, 0
    %p56 = por %p54, %p55
    %p57 = scmp.ne.s32.totalorder %s43, %s44
    %p58 = scmp.eq.s32.totalorder %s15, 1
    %p59 = por %p57, %p58
    %p61 = scmp.ne.s32.totalorder %s44, %s60
    %p62 = scmp.eq.s32.totalorder %s15, 0
    %p63 = por %p61, %p62
    %s64 = ssub.s32 %s18, %s27
    %s65 = ssub.s32 %s17, %s31
    %s66 = sor.u32 %s64, %s65
    %p67 = scmp.eq.s32.totalorder %s66, 0
    %s69 = sadd.s32 %s68, 1
    %s70 = scalar_select %p67, %s68, %s69
    %p73 = pneg %p67
    %p74 = scmp.eq.s32.totalorder %s9, 1
    %p75 = por %p73, %p74
    %p76 = scmp.ne.s32.totalorder %s68, %s71
    %p77 = scmp.eq.s32.totalorder %s9, 0
    %p78 = por %p76, %p77
    %p79 = scmp.ne.s32.totalorder %s68, %s71
    %p80 = scmp.eq.s32.totalorder %s14, 1
    %p81 = por %p79, %p80
    %p82 = scmp.ne.s32.totalorder %s71, %s72
    %p83 = scmp.eq.s32.totalorder %s14, 0
    %p84 = por %p82, %p83
    %p85 = scmp.ne.s32.totalorder %s71, %s72
    %p86 = scmp.eq.s32.totalorder %s15, 1
    %p87 = por %p85, %p86
    %p89 = scmp.ne.s32.totalorder %s72, %s88
    %p90 = scmp.eq.s32.totalorder %s15, 0
    %p91 = por %p89, %p90
    %s92 = ssub.s32 %s17, %s31
    %p93 = scmp.eq.s32.totalorder %s92, 0
    %s95 = sadd.s32 %s94, 1
    %s96 = scalar_select %p93, %s94, %s95
    %p99 = pneg %p93
    %p100 = scmp.eq.s32.totalorder %s9, 1
    %p101 = por %p99, %p100
    %p102 = scmp.ne.s32.totalorder %s94, %s97
    %p103 = scmp.eq.s32.totalorder %s9, 0
    %p104 = por %p102, %p103
    %p105 = scmp.ne.s32.totalorder %s94, %s97
    %p106 = scmp.eq.s32.totalorder %s14, 1
    %p107 = por %p105, %p106
    %p108 = scmp.ne.s32.totalorder %s97, %s98
    %p109 = scmp.eq.s32.totalorder %s14, 0
    %p110 = por %p108, %p109
    %p111 = scmp.ne.s32.totalorder %s97, %s98
    %p112 = scmp.eq.s32.totalorder %s15, 1
    %p113 = por %p111, %p112
    %p115 = scmp.ne.s32.totalorder %s98, %s114
    %p116 = scmp.eq.s32.totalorder %s15, 0
    %p117 = por %p115, %p116
    %s118 = ssub.s32 %s16, %s35
    %s119 = ssub.s32 %s17, %s31
    %s120 = sor.u32 %s118, %s119
    %p121 = scmp.eq.s32.totalorder %s120, 0
    %s123 = sadd.s32 %s122, 1
    %s124 = scalar_select %p121, %s122, %s123
    %p127 = pneg %p121
    %p128 = scmp.eq.s32.totalorder %s9, 1
    %p129 = por %p127, %p128
    %p130 = scmp.ne.s32.totalorder %s122, %s125
    %p131 = scmp.eq.s32.totalorder %s9, 0
    %p132 = por %p130, %p131
    %p133 = scmp.ne.s32.totalorder %s122, %s125
    %p134 = scmp.eq.s32.totalorder %s14, 1
    %p135 = por %p133, %p134
    %p136 = scmp.ne.s32.totalorder %s125, %s126
    %p137 = scmp.eq.s32.totalorder %s14, 0
    %p138 = por %p136, %p137
    %p139 = scmp.ne.s32.totalorder %s125, %s126
    %p140 = scmp.eq.s32.totalorder %s15, 1
    %p141 = por %p139, %p140
    %p143 = scmp.ne.s32.totalorder %s126, %s142
    %p144 = scmp.eq.s32.totalorder %s15, 0
    %p145 = por %p143, %p144
    %p146 = scmp.le.s32.totalorder 1, %s9
    %p147 = scmp.lt.s32.totalorder %s9, 3
    %p148 = pnand %p146, %p147
    %p149 = pneg %p148
    // Predicated region
    $region9: #{fwd.11} parent=5 // pred_check
      _
    $region10: #{fwd.11} parent=5 // pred_check_branch
      %151 = sbr.rel (%p148) target = $region12
    $region11: #{fwd.11} parent=5 // pred_region
      %s152 = ssub.s32 %s9, 1
      // Predicated region
      $region13: #{fwd.11} parent=11 // pred_check
        %p153 = pneg %p84
      $region14: #{fwd.11} parent=11 // pred_check_branch
        %155 = sbr.rel (%p153) target = $region16
      $region15: #{fwd.11} parent=11 // pred_region
        %s156 = smul.u32 16, %s21
        %p157 = scmp.lt.s32.totalorder %s156, 15
        %s158 = scalar_select %p157, %s156, 15
        %p159 = scmp.lt.s32.totalorder %s20, 0
        %s160 = scalar_select %p159, %s20, 0
        %s161 = sadd.s32 %s160, %s158
        %s162 = smul.addr %s161, 8
        %s163 = scalar_lea.vmem %s1, %s162
        %s164 = smul.u32 16, %s21
      $region16: #{fwd.11} parent=11 // pred_fallthru
        _
      // Predicated region
      $region17: #{fwd.11} parent=11 // pred_check
        %p165 = pneg %p110
      $region18: #{fwd.11} parent=11 // pred_check_branch
        %167 = sbr.rel (%p165) target = $region20
      $region19: #{fwd.11} parent=11 // pred_region
        %p168 = scmp.lt.s32.totalorder %s20, 0
        %s169 = scalar_select %p168, %s20, 0
        %s170 = scalar_lea.vmem %s2, %s169
      $region20: #{fwd.11} parent=11 // pred_fallthru
        _
    $region12: #{fwd.11} parent=5 // pred_fallthru
      _
    %p171 = scmp.lt.s32.totalorder %s9, 2
    // Predicated region
    $region21: #{fwd.11} parent=5 // pred_check
      %p172 = pneg %p171
    $region22: #{fwd.11} parent=5 // pred_check_branch
      %174 = sbr.rel (%p172) target = $region24
    $region23: #{fwd.11} parent=5 // pred_region
      // Predicated region
      $region25: #{fwd.11} parent=23 // pred_check
        %p175 = pneg %p50
      $region26: #{fwd.11} parent=23 // pred_check_branch
        %177 = sbr.rel (%p175) target = $region28
      $region27: #{fwd.11} parent=23 // pred_region
        %s178 = smul.u32 32, %s16
        %p179 = scmp.lt.s32.totalorder %s178, 63
        %s180 = scalar_select %p179, %s178, 63
        %p181 = scmp.lt.s32.totalorder %s18, 0
        %s182 = scalar_select %p181, %s18, 0
        %s183 = sadd.s32 %s182, %s180
        %s184 = smul.addr %s183, 8
        %s185 = scalar_lea.vmem %s0, %s184
        %s186 = smul.u32 32, %s16
      $region28: #{fwd.11} parent=23 // pred_fallthru
        _
    $region24: #{fwd.11} parent=5 // pred_fallthru
      _
    %p187 = scmp.le.s32.totalorder 1, %s9
    %p188 = scmp.lt.s32.totalorder %s9, 3
    %p189 = pnand %p187, %p188
    %p190 = pneg %p189
    // Predicated region
    $region29: #{fwd.11} parent=5 // pred_check
      _
    $region30: #{fwd.11} parent=5 // pred_check_branch
      %192 = sbr.rel (%p189) target = $region32
    $region31: #{fwd.11} parent=5 // pred_region
      %s193 = ssub.s32 %s9, 1
      %s194 = smul.u32 32, %s19
      %p195 = scmp.lt.s32.totalorder %s194, 63
      %s196 = scalar_select %p195, %s194, 63
      %p197 = scmp.lt.s32.totalorder %s21, 0
      %s198 = scalar_select %p197, %s21, 0
      %s199 = sadd.s32 %s198, %s196
      %s200 = smul.addr %s199, 8
      %s201 = scalar_lea.vmem %s0, %s200
      %p202 = pneg %p56
      %p203 = pneg %p53
      %s204 = smul.u32 16, %s21
      %p205 = scmp.lt.s32.totalorder %s204, 15
      %s206 = scalar_select %p205, %s204, 15
      %p207 = scmp.lt.s32.totalorder %s20, 0
      %s208 = scalar_select %p207, %s20, 0
      %s209 = sadd.s32 %s208, %s206
      %s210 = smul.addr %s209, 8
      %s211 = scalar_lea.vmem %s1, %s210
      %p212 = pneg %p84
      %p213 = pneg %p81
      %p214 = scmp.lt.s32.totalorder %s20, 0
      %s215 = scalar_select %p214, %s20, 0
      %s216 = scalar_lea.vmem %s2, %s215
      %p217 = pneg %p110
      %p218 = pneg %p107
      %p219 = pneg %p138
      %p220 = pneg %p135
      %s221 = smul.u32 32, %s19
      %p222 = scmp.lt.s32.totalorder %s221, 63
      %s223 = scalar_select %p222, %s221, 63
      %p224 = scmp.lt.s32.totalorder %s20, 0
      %s225 = scalar_select %p224, %s20, 0
      %s226 = sadd.s32 %s225, %s223
      %s227 = smul.addr %s226, 8
      %s228 = scalar_lea.vmem %s3, %s227
      %s229 = smul.u32 32, %s19
      %p230 = scmp.lt.s32.totalorder %s229, 63
      %s231 = scalar_select %p230, %s229, 63
      %p232 = scmp.lt.s32.totalorder %s21, 0
      %s233 = scalar_select %p232, %s21, 0
      %s234 = sadd.s32 %s233, %s231
      %s235 = smul.addr %s234, 8
      %s236 = scalar_lea.vmem %s0, %s235
      %s237 = smul.u32 32, %s19
      %s238 = smul.u32 16, %s21
      %p239 = scmp.lt.s32.totalorder %s238, 15
      %s240 = scalar_select %p239, %s238, 15
      %p241 = scmp.lt.s32.totalorder %s20, 0
      %s242 = scalar_select %p241, %s20, 0
      %s243 = sadd.s32 %s242, %s240
      %s244 = smul.addr %s243, 8
      %s245 = scalar_lea.vmem %s1, %s244
      %s246 = smul.u32 16, %s21
      %p247 = scmp.lt.s32.totalorder %s20, 0
      %s248 = scalar_select %p247, %s20, 0
      %s249 = scalar_lea.vmem %s2, %s248
      %s250 = smul.u32 32, %s19
      %p251 = scmp.lt.s32.totalorder %s250, 63
      %s252 = scalar_select %p251, %s250, 63
      %p253 = scmp.lt.s32.totalorder %s20, 0
      %s254 = scalar_select %p253, %s20, 0
      %s255 = sadd.s32 %s254, %s252
      %s256 = smul.addr %s255, 8
      %s257 = scalar_lea.vmem %s3, %s256
      %s258 = smul.u32 32, %s19
      %v259 = vld [vmem:[%s236] sm:$0xff]
      %v260 = vld [vmem:[%s236 + $0x8] sm:$0xff]
      %v261 = vld [vmem:[%s236 + $0x10] sm:$0xff]
      %v262 = vld [vmem:[%s236 + $0x18] sm:$0xff]
      %v263 = vld [vmem:[%s236 + $0x20] sm:$0xff]
      %v264 = vld [vmem:[%s236 + $0x28] sm:$0xff]
      %v265 = vld [vmem:[%s236 + $0x30] sm:$0xff]
      %v266 = vld [vmem:[%s236 + $0x38] sm:$0xff]
      %v267 = vld [vmem:[%s236 + $0x40] sm:$0xff]
      %v268 = vld [vmem:[%s236 + $0x48] sm:$0xff]
      %v269 = vld [vmem:[%s236 + $0x50] sm:$0xff]
      %v270 = vld [vmem:[%s236 + $0x58] sm:$0xff]
      %v271 = vld [vmem:[%s236 + $0x60] sm:$0xff]
      %v272 = vld [vmem:[%s236 + $0x68] sm:$0xff]
      %v273 = vld [vmem:[%s236 + $0x70] sm:$0xff]
      %v274 = vld [vmem:[%s236 + $0x78] sm:$0xff]
      %v275 = vld [vmem:[%s236 + $0x80] sm:$0xff]
      %v276 = vld [vmem:[%s236 + $0x88] sm:$0xff]
      %v277 = vld [vmem:[%s236 + $0x90] sm:$0xff]
      %v278 = vld [vmem:[%s236 + $0x98] sm:$0xff]
      %v279 = vld [vmem:[%s236 + $0xa0] sm:$0xff]
      %v280 = vld [vmem:[%s236 + $0xa8] sm:$0xff]
      %v281 = vld [vmem:[%s236 + $0xb0] sm:$0xff]
      %v282 = vld [vmem:[%s236 + $0xb8] sm:$0xff]
      %v283 = vld [vmem:[%s236 + $0xc0] sm:$0xff]
      %v284 = vld [vmem:[%s236 + $0xc8] sm:$0xff]
      %v285 = vld [vmem:[%s236 + $0xd0] sm:$0xff]
      %v286 = vld [vmem:[%s236 + $0xd8] sm:$0xff]
      %v287 = vld [vmem:[%s236 + $0xe0] sm:$0xff]
      %v288 = vld [vmem:[%s236 + $0xe8] sm:$0xff]
      %v289 = vld [vmem:[%s236 + $0xf0] sm:$0xff]
      %v290 = vld [vmem:[%s236 + $0xf8] sm:$0xff]
      %p291 = scmp.eq.s32.totalorder %s21, 0
      // Predicated region
      $region33: #{fwd.11} parent=31 // pred_check
        %p292 = pneg %p291
      $region34: #{fwd.11} parent=31 // pred_check_branch
        %294 = sbr.rel (%p292) target = $region36
      $region35: #{fwd.11} parent=31 // pred_region
        %295 = vst [vmem:[%s257] sm:$0xff] 0.0
        %296 = vst [vmem:[%s257 + $0x8] sm:$0xff] 0.0
        %297 = vst [vmem:[%s257 + $0x10] sm:$0xff] 0.0
        %298 = vst [vmem:[%s257 + $0x18] sm:$0xff] 0.0
        %299 = vst [vmem:[%s257 + $0x20] sm:$0xff] 0.0
        %300 = vst [vmem:[%s257 + $0x28] sm:$0xff] 0.0
        %301 = vst [vmem:[%s257 + $0x30] sm:$0xff] 0.0
        %302 = vst [vmem:[%s257 + $0x38] sm:$0xff] 0.0
        %303 = vst [vmem:[%s257 + $0x40] sm:$0xff] 0.0
        %304 = vst [vmem:[%s257 + $0x48] sm:$0xff] 0.0
        %305 = vst [vmem:[%s257 + $0x50] sm:$0xff] 0.0
        %306 = vst [vmem:[%s257 + $0x58] sm:$0xff] 0.0
        %307 = vst [vmem:[%s257 + $0x60] sm:$0xff] 0.0
        %308 = vst [vmem:[%s257 + $0x68] sm:$0xff] 0.0
        %309 = vst [vmem:[%s257 + $0x70] sm:$0xff] 0.0
        %310 = vst [vmem:[%s257 + $0x78] sm:$0xff] 0.0
        %311 = vst [vmem:[%s257 + $0x80] sm:$0xff] 0.0
        %312 = vst [vmem:[%s257 + $0x88] sm:$0xff] 0.0
        %313 = vst [vmem:[%s257 + $0x90] sm:$0xff] 0.0
        %314 = vst [vmem:[%s257 + $0x98] sm:$0xff] 0.0
        %315 = vst [vmem:[%s257 + $0xa0] sm:$0xff] 0.0
        %316 = vst [vmem:[%s257 + $0xa8] sm:$0xff] 0.0
        %317 = vst [vmem:[%s257 + $0xb0] sm:$0xff] 0.0
        %318 = vst [vmem:[%s257 + $0xb8] sm:$0xff] 0.0
        %319 = vst [vmem:[%s257 + $0xc0] sm:$0xff] 0.0
        %320 = vst [vmem:[%s257 + $0xc8] sm:$0xff] 0.0
        %321 = vst [vmem:[%s257 + $0xd0] sm:$0xff] 0.0
        %322 = vst [vmem:[%s257 + $0xd8] sm:$0xff] 0.0
        %323 = vst [vmem:[%s257 + $0xe0] sm:$0xff] 0.0
        %324 = vst [vmem:[%s257 + $0xe8] sm:$0xff] 0.0
        %325 = vst [vmem:[%s257 + $0xf0] sm:$0xff] 0.0
        %326 = vst [vmem:[%s257 + $0xf8] sm:$0xff] 0.0
      $region36: #{fwd.11} parent=31 // pred_fallthru
        _
      %v327 = vld [vmem:[%s257] sm:$0xff]
      %v328 = vld [vmem:[%s257 + $0x8] sm:$0xff]
      %v329 = vld [vmem:[%s257 + $0x10] sm:$0xff]
      %v330 = vld [vmem:[%s257 + $0x18] sm:$0xff]
      %v331 = vld [vmem:[%s257 + $0x20] sm:$0xff]
      %v332 = vld [vmem:[%s257 + $0x28] sm:$0xff]
      %v333 = vld [vmem:[%s257 + $0x30] sm:$0xff]
      %v334 = vld [vmem:[%s257 + $0x38] sm:$0xff]
      %v335 = vld [vmem:[%s257 + $0x40] sm:$0xff]
      %v336 = vld [vmem:[%s257 + $0x48] sm:$0xff]
      %v337 = vld [vmem:[%s257 + $0x50] sm:$0xff]
      %v338 = vld [vmem:[%s257 + $0x58] sm:$0xff]
      %v339 = vld [vmem:[%s257 + $0x60] sm:$0xff]
      %v340 = vld [vmem:[%s257 + $0x68] sm:$0xff]
      %v341 = vld [vmem:[%s257 + $0x70] sm:$0xff]
      %v342 = vld [vmem:[%s257 + $0x78] sm:$0xff]
      %v343 = vld [vmem:[%s257 + $0x80] sm:$0xff]
      %v344 = vld [vmem:[%s257 + $0x88] sm:$0xff]
      %v345 = vld [vmem:[%s257 + $0x90] sm:$0xff]
      %v346 = vld [vmem:[%s257 + $0x98] sm:$0xff]
      %v347 = vld [vmem:[%s257 + $0xa0] sm:$0xff]
      %v348 = vld [vmem:[%s257 + $0xa8] sm:$0xff]
      %v349 = vld [vmem:[%s257 + $0xb0] sm:$0xff]
      %v350 = vld [vmem:[%s257 + $0xb8] sm:$0xff]
      %v351 = vld [vmem:[%s257 + $0xc0] sm:$0xff]
      %v352 = vld [vmem:[%s257 + $0xc8] sm:$0xff]
      %v353 = vld [vmem:[%s257 + $0xd0] sm:$0xff]
      %v354 = vld [vmem:[%s257 + $0xd8] sm:$0xff]
      %v355 = vld [vmem:[%s257 + $0xe0] sm:$0xff]
      %v356 = vld [vmem:[%s257 + $0xe8] sm:$0xff]
      %v357 = vld [vmem:[%s257 + $0xf0] sm:$0xff]
      %v358 = vld [vmem:[%s257 + $0xf8] sm:$0xff]
      %v359 = vld [vmem:[%s245] sm:$0xff]
      %v360 = vld [vmem:[%s245 + $0x8] sm:$0xff]
      %v361 = vld [vmem:[%s245 + $0x10] sm:$0xff]
      %v362 = vld [vmem:[%s245 + $0x18] sm:$0xff]
      %v363 = vld [vmem:[%s245 + $0x20] sm:$0xff]
      %v364 = vld [vmem:[%s245 + $0x28] sm:$0xff]
      %v365 = vld [vmem:[%s245 + $0x30] sm:$0xff]
      %v366 = vld [vmem:[%s245 + $0x38] sm:$0xff]
      %v367 = vld [vmem:[%s245 + $0x40] sm:$0xff]
      %v368 = vld [vmem:[%s245 + $0x48] sm:$0xff]
      %v369 = vld [vmem:[%s245 + $0x50] sm:$0xff]
      %v370 = vld [vmem:[%s245 + $0x58] sm:$0xff]
      %v371 = vld [vmem:[%s245 + $0x60] sm:$0xff]
      %v372 = vld [vmem:[%s245 + $0x68] sm:$0xff]
      %v373 = vld [vmem:[%s245 + $0x70] sm:$0xff]
      %v374 = vld [vmem:[%s245 + $0x78] sm:$0xff]
      %375 = vmatprep.subr.mxu0 0.0
      %376 = vmatpush1.msra.mxu0 %v374
      %377 = vmatprep.subr.mxu0 0.0
      %378 = vmatpush1.msra.mxu0 %v373
      %379 = vmatprep.subr.mxu0 0.0
      %380 = vmatpush1.msra.mxu0 %v372
      %381 = vmatprep.subr.mxu0 0.0
      %382 = vmatpush1.msra.mxu0 %v371
      %383 = vmatprep.subr.mxu0 0.0
      %384 = vmatpush1.msra.mxu0 %v370
      %385 = vmatprep.subr.mxu0 0.0
      %386 = vmatpush1.msra.mxu0 %v369
      %387 = vmatprep.subr.mxu0 0.0
      %388 = vmatpush1.msra.mxu0 %v368
      %389 = vmatprep.subr.mxu0 0.0
      %390 = vmatpush1.msra.mxu0 %v367
      %391 = vmatprep.subr.mxu0 0.0
      %392 = vmatpush1.msra.mxu0 %v366
      %393 = vmatprep.subr.mxu0 0.0
      %394 = vmatpush1.msra.mxu0 %v365
      %395 = vmatprep.subr.mxu0 0.0
      %396 = vmatpush1.msra.mxu0 %v364
      %397 = vmatprep.subr.mxu0 0.0
      %398 = vmatpush1.msra.mxu0 %v363
      %399 = vmatprep.subr.mxu0 0.0
      %400 = vmatpush1.msra.mxu0 %v362
      %401 = vmatprep.subr.mxu0 0.0
      %402 = vmatpush1.msra.mxu0 %v361
      %403 = vmatprep.subr.mxu0 0.0
      %404 = vmatpush1.msra.mxu0 %v360
      %405 = vmatprep.subr.mxu0 0.0
      %406 = vmatpush1.msra.mxu0 %v359
      %407 = vmatprep.subr.mxu0 0.0
      %408 = vmatpush2.msra.mxu0 0.0
      %409 = vmatprep.subr.mxu0 0.0
      %410 = vmatpush2.msra.mxu0 0.0
      %411 = vmatprep.subr.mxu0 0.0
      %412 = vmatpush2.msra.mxu0 0.0
      %413 = vmatprep.subr.mxu0 0.0
      %414 = vmatpush2.msra.mxu0 0.0
      %415 = vmatprep.subr.mxu0 0.0
      %416 = vmatpush2.msra.mxu0 0.0
      %417 = vmatprep.subr.mxu0 0.0
      %418 = vmatpush2.msra.mxu0 0.0
      %419 = vmatprep.subr.mxu0 0.0
      %420 = vmatpush2.msra.mxu0 0.0
      %421 = vmatprep.subr.mxu0 0.0
      %422 = vmatpush2.msra.mxu0 0.0
      %423 = vmatprep.subr.mxu0 0.0
      %424 = vmatpush2.msra.mxu0 0.0
      %425 = vmatprep.subr.mxu0 0.0
      %426 = vmatpush2.msra.mxu0 0.0
      %427 = vmatprep.subr.mxu0 0.0
      %428 = vmatpush2.msra.mxu0 0.0
      %429 = vmatprep.subr.mxu0 0.0
      %430 = vmatpush2.msra.mxu0 0.0
      %431 = vmatprep.subr.mxu0 0.0
      %432 = vmatpush2.msra.mxu0 0.0
      %433 = vmatprep.subr.mxu0 0.0
      %434 = vmatpush2.msra.mxu0 0.0
      %435 = vmatprep.subr.mxu0 0.0
      %436 = vmatpush2.msra.mxu0 0.0
      %437 = vmatprep.subr.mxu0 0.0
      %438 = vmatpush2.msra.mxu0 0.0
      %439 = vmatprep.mubr.f32.mxu0 0.0
      %440 = vmatmul.mubr.f32.gmra.mxu0 %v259
      %v441 = vpop.f32.mrf.mxu0
      %v442 = vadd.f32 0.0, %v441
      %v443 = vpop.f32.mrf.mxu0
      %444 = vmatprep.mubr.f32.mxu0 0.0
      %445 = vmatmul.mubr.f32.gmra.mxu0 %v260
      %v446 = vpop.f32.mrf.mxu0
      %v447 = vadd.f32 0.0, %v446
      %v448 = vpop.f32.mrf.mxu0
      %449 = vmatprep.mubr.f32.mxu0 0.0
      %450 = vmatmul.mubr.f32.gmra.mxu0 %v261
      %v451 = vpop.f32.mrf.mxu0
      %v452 = vadd.f32 0.0, %v451
      %v453 = vpop.f32.mrf.mxu0
      %454 = vmatprep.mubr.f32.mxu0 0.0
      %455 = vmatmul.mubr.f32.gmra.mxu0 %v262
      %v456 = vpop.f32.mrf.mxu0
      %v457 = vadd.f32 0.0, %v456
      %v458 = vpop.f32.mrf.mxu0
      %459 = vmatprep.mubr.f32.mxu0 0.0
      %460 = vmatmul.mubr.f32.gmra.mxu0 %v263
      %v461 = vpop.f32.mrf.mxu0
      %v462 = vadd.f32 0.0, %v461
      %v463 = vpop.f32.mrf.mxu0
      %464 = vmatprep.mubr.f32.mxu0 0.0
      %465 = vmatmul.mubr.f32.gmra.mxu0 %v264
      %v466 = vpop.f32.mrf.mxu0
      %v467 = vadd.f32 0.0, %v466
      %v468 = vpop.f32.mrf.mxu0
      %469 = vmatprep.mubr.f32.mxu0 0.0
      %470 = vmatmul.mubr.f32.gmra.mxu0 %v265
      %v471 = vpop.f32.mrf.mxu0
      %v472 = vadd.f32 0.0, %v471
      %v473 = vpop.f32.mrf.mxu0
      %474 = vmatprep.mubr.f32.mxu0 0.0
      %475 = vmatmul.mubr.f32.gmra.mxu0 %v266
      %v476 = vpop.f32.mrf.mxu0
      %v477 = vadd.f32 0.0, %v476
      %v478 = vpop.f32.mrf.mxu0
      %479 = vmatprep.mubr.f32.mxu0 0.0
      %480 = vmatmul.mubr.f32.gmra.mxu0 %v267
      %v481 = vpop.f32.mrf.mxu0
      %v482 = vadd.f32 0.0, %v481
      %v483 = vpop.f32.mrf.mxu0
      %484 = vmatprep.mubr.f32.mxu0 0.0
      %485 = vmatmul.mubr.f32.gmra.mxu0 %v268
      %v486 = vpop.f32.mrf.mxu0
      %v487 = vadd.f32 0.0, %v486
      %v488 = vpop.f32.mrf.mxu0
      %489 = vmatprep.mubr.f32.mxu0 0.0
      %490 = vmatmul.mubr.f32.gmra.mxu0 %v269
      %v491 = vpop.f32.mrf.mxu0
      %v492 = vadd.f32 0.0, %v491
      %v493 = vpop.f32.mrf.mxu0
      %494 = vmatprep.mubr.f32.mxu0 0.0
      %495 = vmatmul.mubr.f32.gmra.mxu0 %v270
      %v496 = vpop.f32.mrf.mxu0
      %v497 = vadd.f32 0.0, %v496
      %v498 = vpop.f32.mrf.mxu0
      %499 = vmatprep.mubr.f32.mxu0 0.0
      %500 = vmatmul.mubr.f32.gmra.mxu0 %v271
      %v501 = vpop.f32.mrf.mxu0
      %v502 = vadd.f32 0.0, %v501
      %v503 = vpop.f32.mrf.mxu0
      %504 = vmatprep.mubr.f32.mxu0 0.0
      %505 = vmatmul.mubr.f32.gmra.mxu0 %v272
      %v506 = vpop.f32.mrf.mxu0
      %v507 = vadd.f32 0.0, %v506
      %v508 = vpop.f32.mrf.mxu0
      %509 = vmatprep.mubr.f32.mxu0 0.0
      %510 = vmatmul.mubr.f32.gmra.mxu0 %v273
      %v511 = vpop.f32.mrf.mxu0
      %v512 = vadd.f32 0.0, %v511
      %v513 = vpop.f32.mrf.mxu0
      %514 = vmatprep.mubr.f32.mxu0 0.0
      %515 = vmatmul.mubr.f32.gmra.mxu0 %v274
      %v516 = vpop.f32.mrf.mxu0
      %v517 = vadd.f32 0.0, %v516
      %v518 = vpop.f32.mrf.mxu0
      %519 = vmatprep.mubr.f32.mxu0 0.0
      %520 = vmatmul.mubr.f32.gmra.mxu0 %v275
      %v521 = vpop.f32.mrf.mxu0
      %v522 = vadd.f32 0.0, %v521
      %v523 = vpop.f32.mrf.mxu0
      %524 = vmatprep.mubr.f32.mxu0 0.0
      %525 = vmatmul.mubr.f32.gmra.mxu0 %v276
      %v526 = vpop.f32.mrf.mxu0
      %v527 = vadd.f32 0.0, %v526
      %v528 = vpop.f32.mrf.mxu0
      %529 = vmatprep.mubr.f32.mxu0 0.0
      %530 = vmatmul.mubr.f32.gmra.mxu0 %v277
      %v531 = vpop.f32.mrf.mxu0
      %v532 = vadd.f32 0.0, %v531
      %v533 = vpop.f32.mrf.mxu0
      %534 = vmatprep.mubr.f32.mxu0 0.0
      %535 = vmatmul.mubr.f32.gmra.mxu0 %v278
      %v536 = vpop.f32.mrf.mxu0
      %v537 = vadd.f32 0.0, %v536
      %v538 = vpop.f32.mrf.mxu0
      %539 = vmatprep.mubr.f32.mxu0 0.0
      %540 = vmatmul.mubr.f32.gmra.mxu0 %v279
      %v541 = vpop.f32.mrf.mxu0
      %v542 = vadd.f32 0.0, %v541
      %v543 = vpop.f32.mrf.mxu0
      %544 = vmatprep.mubr.f32.mxu0 0.0
      %545 = vmatmul.mubr.f32.gmra.mxu0 %v280
      %v546 = vpop.f32.mrf.mxu0
      %v547 = vadd.f32 0.0, %v546
      %v548 = vpop.f32.mrf.mxu0
      %549 = vmatprep.mubr.f32.mxu0 0.0
      %550 = vmatmul.mubr.f32.gmra.mxu0 %v281
      %v551 = vpop.f32.mrf.mxu0
      %v552 = vadd.f32 0.0, %v551
      %v553 = vpop.f32.mrf.mxu0
      %554 = vmatprep.mubr.f32.mxu0 0.0
      %555 = vmatmul.mubr.f32.gmra.mxu0 %v282
      %v556 = vpop.f32.mrf.mxu0
      %v557 = vadd.f32 0.0, %v556
      %v558 = vpop.f32.mrf.mxu0
      %559 = vmatprep.mubr.f32.mxu0 0.0
      %560 = vmatmul.mubr.f32.gmra.mxu0 %v283
      %v561 = vpop.f32.mrf.mxu0
      %v562 = vadd.f32 0.0, %v561
      %v563 = vpop.f32.mrf.mxu0
      %564 = vmatprep.mubr.f32.mxu0 0.0
      %565 = vmatmul.mubr.f32.gmra.mxu0 %v284
      %v566 = vpop.f32.mrf.mxu0
      %v567 = vadd.f32 0.0, %v566
      %v568 = vpop.f32.mrf.mxu0
      %569 = vmatprep.mubr.f32.mxu0 0.0
      %570 = vmatmul.mubr.f32.gmra.mxu0 %v285
      %v571 = vpop.f32.mrf.mxu0
      %v572 = vadd.f32 0.0, %v571
      %v573 = vpop.f32.mrf.mxu0
      %574 = vmatprep.mubr.f32.mxu0 0.0
      %575 = vmatmul.mubr.f32.gmra.mxu0 %v286
      %v576 = vpop.f32.mrf.mxu0
      %v577 = vadd.f32 0.0, %v576
      %v578 = vpop.f32.mrf.mxu0
      %579 = vmatprep.mubr.f32.mxu0 0.0
      %580 = vmatmul.mubr.f32.gmra.mxu0 %v287
      %v581 = vpop.f32.mrf.mxu0
      %v582 = vadd.f32 0.0, %v581
      %v583 = vpop.f32.mrf.mxu0
      %584 = vmatprep.mubr.f32.mxu0 0.0
      %585 = vmatmul.mubr.f32.gmra.mxu0 %v288
      %v586 = vpop.f32.mrf.mxu0
      %v587 = vadd.f32 0.0, %v586
      %v588 = vpop.f32.mrf.mxu0
      %589 = vmatprep.mubr.f32.mxu0 0.0
      %590 = vmatmul.mubr.f32.gmra.mxu0 %v289
      %v591 = vpop.f32.mrf.mxu0
      %v592 = vadd.f32 0.0, %v591
      %v593 = vpop.f32.mrf.mxu0
      %594 = vmatprep.mubr.f32.mxu0 0.0
      %595 = vmatmul.mubr.f32.gmra.mxu0 %v290
      %v596 = vpop.f32.mrf.mxu0
      %v597 = vadd.f32 0.0, %v596
      %v598 = vpop.f32.mrf.mxu0
      %599 = vdwg.mxu0
      %v600 = vadd.f32 %v327, %v442
      %v601 = vadd.f32 %v328, %v447
      %v602 = vadd.f32 %v329, %v452
      %v603 = vadd.f32 %v330, %v457
      %v604 = vadd.f32 %v331, %v462
      %v605 = vadd.f32 %v332, %v467
      %v606 = vadd.f32 %v333, %v472
      %v607 = vadd.f32 %v334, %v477
      %v608 = vadd.f32 %v335, %v482
      %v609 = vadd.f32 %v336, %v487
      %v610 = vadd.f32 %v337, %v492
      %v611 = vadd.f32 %v338, %v497
      %v612 = vadd.f32 %v339, %v502
      %v613 = vadd.f32 %v340, %v507
      %v614 = vadd.f32 %v341, %v512
      %v615 = vadd.f32 %v342, %v517
      %v616 = vadd.f32 %v343, %v522
      %v617 = vadd.f32 %v344, %v527
      %v618 = vadd.f32 %v345, %v532
      %v619 = vadd.f32 %v346, %v537
      %v620 = vadd.f32 %v347, %v542
      %v621 = vadd.f32 %v348, %v547
      %v622 = vadd.f32 %v349, %v552
      %v623 = vadd.f32 %v350, %v557
      %v624 = vadd.f32 %v351, %v562
      %v625 = vadd.f32 %v352, %v567
      %v626 = vadd.f32 %v353, %v572
      %v627 = vadd.f32 %v354, %v577
      %v628 = vadd.f32 %v355, %v582
      %v629 = vadd.f32 %v356, %v587
      %v630 = vadd.f32 %v357, %v592
      %v631 = vadd.f32 %v358, %v597
      %632 = vst [vmem:[%s257] sm:$0xff] %v600
      %633 = vst [vmem:[%s257 + $0x8] sm:$0xff] %v601
      %634 = vst [vmem:[%s257 + $0x10] sm:$0xff] %v602
      %635 = vst [vmem:[%s257 + $0x18] sm:$0xff] %v603
      %636 = vst [vmem:[%s257 + $0x20] sm:$0xff] %v604
      %637 = vst [vmem:[%s257 + $0x28] sm:$0xff] %v605
      %638 = vst [vmem:[%s257 + $0x30] sm:$0xff] %v606
      %639 = vst [vmem:[%s257 + $0x38] sm:$0xff] %v607
      %640 = vst [vmem:[%s257 + $0x40] sm:$0xff] %v608
      %641 = vst [vmem:[%s257 + $0x48] sm:$0xff] %v609
      %642 = vst [vmem:[%s257 + $0x50] sm:$0xff] %v610
      %643 = vst [vmem:[%s257 + $0x58] sm:$0xff] %v611
      %644 = vst [vmem:[%s257 + $0x60] sm:$0xff] %v612
      %645 = vst [vmem:[%s257 + $0x68] sm:$0xff] %v613
      %646 = vst [vmem:[%s257 + $0x70] sm:$0xff] %v614
      %647 = vst [vmem:[%s257 + $0x78] sm:$0xff] %v615
      %648 = vst [vmem:[%s257 + $0x80] sm:$0xff] %v616
      %649 = vst [vmem:[%s257 + $0x88] sm:$0xff] %v617
      %650 = vst [vmem:[%s257 + $0x90] sm:$0xff] %v618
      %651 = vst [vmem:[%s257 + $0x98] sm:$0xff] %v619
      %652 = vst [vmem:[%s257 + $0xa0] sm:$0xff] %v620
      %653 = vst [vmem:[%s257 + $0xa8] sm:$0xff] %v621
      %654 = vst [vmem:[%s257 + $0xb0] sm:$0xff] %v622
      %655 = vst [vmem:[%s257 + $0xb8] sm:$0xff] %v623
      %656 = vst [vmem:[%s257 + $0xc0] sm:$0xff] %v624
      %657 = vst [vmem:[%s257 + $0xc8] sm:$0xff] %v625
      %658 = vst [vmem:[%s257 + $0xd0] sm:$0xff] %v626
      %659 = vst [vmem:[%s257 + $0xd8] sm:$0xff] %v627
      %660 = vst [vmem:[%s257 + $0xe0] sm:$0xff] %v628
      %661 = vst [vmem:[%s257 + $0xe8] sm:$0xff] %v629
      %662 = vst [vmem:[%s257 + $0xf0] sm:$0xff] %v630
      %663 = vst [vmem:[%s257 + $0xf8] sm:$0xff] %v631
      // Predicated region
      $region37: #{fwd.11} parent=31 // pred_check
        %p664 = pneg %p291
      $region38: #{fwd.11} parent=31 // pred_check_branch
        %666 = sbr.rel (%p664) target = $region40
      $region39: #{fwd.11} parent=31 // pred_region
        %v667 = vld [vmem:[%s257] sm:$0xff]
        %v668 = vld [vmem:[%s257 + $0x8] sm:$0xff]
        %v669 = vld [vmem:[%s257 + $0x10] sm:$0xff]
        %v670 = vld [vmem:[%s257 + $0x18] sm:$0xff]
        %v671 = vld [vmem:[%s257 + $0x20] sm:$0xff]
        %v672 = vld [vmem:[%s257 + $0x28] sm:$0xff]
        %v673 = vld [vmem:[%s257 + $0x30] sm:$0xff]
        %v674 = vld [vmem:[%s257 + $0x38] sm:$0xff]
        %v675 = vld [vmem:[%s257 + $0x40] sm:$0xff]
        %v676 = vld [vmem:[%s257 + $0x48] sm:$0xff]
        %v677 = vld [vmem:[%s257 + $0x50] sm:$0xff]
        %v678 = vld [vmem:[%s257 + $0x58] sm:$0xff]
        %v679 = vld [vmem:[%s257 + $0x60] sm:$0xff]
        %v680 = vld [vmem:[%s257 + $0x68] sm:$0xff]
        %v681 = vld [vmem:[%s257 + $0x70] sm:$0xff]
        %v682 = vld [vmem:[%s257 + $0x78] sm:$0xff]
        %v683 = vld [vmem:[%s257 + $0x80] sm:$0xff]
        %v684 = vld [vmem:[%s257 + $0x88] sm:$0xff]
        %v685 = vld [vmem:[%s257 + $0x90] sm:$0xff]
        %v686 = vld [vmem:[%s257 + $0x98] sm:$0xff]
        %v687 = vld [vmem:[%s257 + $0xa0] sm:$0xff]
        %v688 = vld [vmem:[%s257 + $0xa8] sm:$0xff]
        %v689 = vld [vmem:[%s257 + $0xb0] sm:$0xff]
        %v690 = vld [vmem:[%s257 + $0xb8] sm:$0xff]
        %v691 = vld [vmem:[%s257 + $0xc0] sm:$0xff]
        %v692 = vld [vmem:[%s257 + $0xc8] sm:$0xff]
        %v693 = vld [vmem:[%s257 + $0xd0] sm:$0xff]
        %v694 = vld [vmem:[%s257 + $0xd8] sm:$0xff]
        %v695 = vld [vmem:[%s257 + $0xe0] sm:$0xff]
        %v696 = vld [vmem:[%s257 + $0xe8] sm:$0xff]
        %v697 = vld [vmem:[%s257 + $0xf0] sm:$0xff]
        %v698 = vld [vmem:[%s257 + $0xf8] sm:$0xff]
        %v699 = vmul.f32 %v667, 0.125
        %v700 = vmul.f32 %v668, 0.125
        %v701 = vmul.f32 %v669, 0.125
        %v702 = vmul.f32 %v670, 0.125
        %v703 = vmul.f32 %v671, 0.125
        %v704 = vmul.f32 %v672, 0.125
        %v705 = vmul.f32 %v673, 0.125
        %v706 = vmul.f32 %v674, 0.125
        %v707 = vmul.f32 %v675, 0.125
        %v708 = vmul.f32 %v676, 0.125
        %v709 = vmul.f32 %v677, 0.125
        %v710 = vmul.f32 %v678, 0.125
        %v711 = vmul.f32 %v679, 0.125
        %v712 = vmul.f32 %v680, 0.125
        %v713 = vmul.f32 %v681, 0.125
        %v714 = vmul.f32 %v682, 0.125
        %v715 = vmul.f32 %v683, 0.125
        %v716 = vmul.f32 %v684, 0.125
        %v717 = vmul.f32 %v685, 0.125
        %v718 = vmul.f32 %v686, 0.125
        %v719 = vmul.f32 %v687, 0.125
        %v720 = vmul.f32 %v688, 0.125
        %v721 = vmul.f32 %v689, 0.125
        %v722 = vmul.f32 %v690, 0.125
        %v723 = vmul.f32 %v691, 0.125
        %v724 = vmul.f32 %v692, 0.125
        %v725 = vmul.f32 %v693, 0.125
        %v726 = vmul.f32 %v694, 0.125
        %v727 = vmul.f32 %v695, 0.125
        %v728 = vmul.f32 %v696, 0.125
        %v729 = vmul.f32 %v697, 0.125
        %v730 = vmul.f32 %v698, 0.125
        %v731 = vld [vmem:[%s249] sm:$0x1]
        %v733 = vlaneseq
        %v734 = vshrl.u32 %v733, 7
        %v735 = vsub.s32 0, %v734
        %v736 = vrot.slane %v731, %v735
        %v738 = vadd.f32 %v699, %v736
        %v739 = vadd.f32 %v700, %v736
        %v740 = vadd.f32 %v701, %v736
        %v741 = vadd.f32 %v702, %v736
        %v742 = vadd.f32 %v703, %v736
        %v743 = vadd.f32 %v704, %v736
        %v744 = vadd.f32 %v705, %v736
        %v745 = vadd.f32 %v706, %v736
        %v746 = vadd.f32 %v707, %v736
        %v747 = vadd.f32 %v708, %v736
        %v748 = vadd.f32 %v709, %v736
        %v749 = vadd.f32 %v710, %v736
        %v750 = vadd.f32 %v711, %v736
        %v751 = vadd.f32 %v712, %v736
        %v752 = vadd.f32 %v713, %v736
        %v753 = vadd.f32 %v714, %v736
        %v754 = vadd.f32 %v715, %v736
        %v755 = vadd.f32 %v716, %v736
        %v756 = vadd.f32 %v717, %v736
        %v757 = vadd.f32 %v718, %v736
        %v758 = vadd.f32 %v719, %v736
        %v759 = vadd.f32 %v720, %v736
        %v760 = vadd.f32 %v721, %v736
        %v761 = vadd.f32 %v722, %v736
        %v762 = vadd.f32 %v723, %v736
        %v763 = vadd.f32 %v724, %v736
        %v764 = vadd.f32 %v725, %v736
        %v765 = vadd.f32 %v726, %v736
        %v766 = vadd.f32 %v727, %v736
        %v767 = vadd.f32 %v728, %v736
        %v768 = vadd.f32 %v729, %v736
        %v769 = vadd.f32 %v730, %v736
        %vm770 = vcmp.ge.f32.partialorder %v738, 0.0
        %vm771 = vcmp.ge.f32.partialorder %v739, 0.0
        %vm772 = vcmp.ge.f32.partialorder %v740, 0.0
        %vm773 = vcmp.ge.f32.partialorder %v741, 0.0
        %vm774 = vcmp.ge.f32.partialorder %v742, 0.0
        %vm775 = vcmp.ge.f32.partialorder %v743, 0.0
        %vm776 = vcmp.ge.f32.partialorder %v744, 0.0
        %vm777 = vcmp.ge.f32.partialorder %v745, 0.0
        %vm778 = vcmp.ge.f32.partialorder %v746, 0.0
        %vm779 = vcmp.ge.f32.partialorder %v747, 0.0
        %vm780 = vcmp.ge.f32.partialorder %v748, 0.0
        %vm781 = vcmp.ge.f32.partialorder %v749, 0.0
        %vm782 = vcmp.ge.f32.partialorder %v750, 0.0
        %vm783 = vcmp.ge.f32.partialorder %v751, 0.0
        %vm784 = vcmp.ge.f32.partialorder %v752, 0.0
        %vm785 = vcmp.ge.f32.partialorder %v753, 0.0
        %vm786 = vcmp.ge.f32.partialorder %v754, 0.0
        %vm787 = vcmp.ge.f32.partialorder %v755, 0.0
        %vm788 = vcmp.ge.f32.partialorder %v756, 0.0
        %vm789 = vcmp.ge.f32.partialorder %v757, 0.0
        %vm790 = vcmp.ge.f32.partialorder %v758, 0.0
        %vm791 = vcmp.ge.f32.partialorder %v759, 0.0
        %vm792 = vcmp.ge.f32.partialorder %v760, 0.0
        %vm793 = vcmp.ge.f32.partialorder %v761, 0.0
        %vm794 = vcmp.ge.f32.partialorder %v762, 0.0
        %vm795 = vcmp.ge.f32.partialorder %v763, 0.0
        %vm796 = vcmp.ge.f32.partialorder %v764, 0.0
        %vm797 = vcmp.ge.f32.partialorder %v765, 0.0
        %vm798 = vcmp.ge.f32.partialorder %v766, 0.0
        %vm799 = vcmp.ge.f32.partialorder %v767, 0.0
        %vm800 = vcmp.ge.f32.partialorder %v768, 0.0
        %vm801 = vcmp.ge.f32.partialorder %v769, 0.0
        %v802 = vmul.f32 %v738, 0.2
        %v803 = vmul.f32 %v739, 0.2
        %v804 = vmul.f32 %v740, 0.2
        %v805 = vmul.f32 %v741, 0.2
        %v806 = vmul.f32 %v742, 0.2
        %v807 = vmul.f32 %v743, 0.2
        %v808 = vmul.f32 %v744, 0.2
        %v809 = vmul.f32 %v745, 0.2
        %v810 = vmul.f32 %v746, 0.2
        %v811 = vmul.f32 %v747, 0.2
        %v812 = vmul.f32 %v748, 0.2
        %v813 = vmul.f32 %v749, 0.2
        %v814 = vmul.f32 %v750, 0.2
        %v815 = vmul.f32 %v751, 0.2
        %v816 = vmul.f32 %v752, 0.2
        %v817 = vmul.f32 %v753, 0.2
        %v818 = vmul.f32 %v754, 0.2
        %v819 = vmul.f32 %v755, 0.2
        %v820 = vmul.f32 %v756, 0.2
        %v821 = vmul.f32 %v757, 0.2
        %v822 = vmul.f32 %v758, 0.2
        %v823 = vmul.f32 %v759, 0.2
        %v824 = vmul.f32 %v760, 0.2
        %v825 = vmul.f32 %v761, 0.2
        %v826 = vmul.f32 %v762, 0.2
        %v827 = vmul.f32 %v763, 0.2
        %v828 = vmul.f32 %v764, 0.2
        %v829 = vmul.f32 %v765, 0.2
        %v830 = vmul.f32 %v766, 0.2
        %v831 = vmul.f32 %v767, 0.2
        %v832 = vmul.f32 %v768, 0.2
        %v833 = vmul.f32 %v769, 0.2
        %v834 = vsel %vm770, %v738, %v802
        %v835 = vsel %vm771, %v739, %v803
        %v836 = vsel %vm772, %v740, %v804
        %v837 = vsel %vm773, %v741, %v805
        %v838 = vsel %vm774, %v742, %v806
        %v839 = vsel %vm775, %v743, %v807
        %v840 = vsel %vm776, %v744, %v808
        %v841 = vsel %vm777, %v745, %v809
        %v842 = vsel %vm778, %v746, %v810
        %v843 = vsel %vm779, %v747, %v811
        %v844 = vsel %vm780, %v748, %v812
        %v845 = vsel %vm781, %v749, %v813
        %v846 = vsel %vm782, %v750, %v814
        %v847 = vsel %vm783, %v751, %v815
        %v848 = vsel %vm784, %v752, %v816
        %v849 = vsel %vm785, %v753, %v817
        %v850 = vsel %vm786, %v754, %v818
        %v851 = vsel %vm787, %v755, %v819
        %v852 = vsel %vm788, %v756, %v820
        %v853 = vsel %vm789, %v757, %v821
        %v854 = vsel %vm790, %v758, %v822
        %v855 = vsel %vm791, %v759, %v823
        %v856 = vsel %vm792, %v760, %v824
        %v857 = vsel %vm793, %v761, %v825
        %v858 = vsel %vm794, %v762, %v826
        %v859 = vsel %vm795, %v763, %v827
        %v860 = vsel %vm796, %v764, %v828
        %v861 = vsel %vm797, %v765, %v829
        %v862 = vsel %vm798, %v766, %v830
        %v863 = vsel %vm799, %v767, %v831
        %v864 = vsel %vm800, %v768, %v832
        %v865 = vsel %vm801, %v769, %v833
        %v866 = vmul.f32 %v834, 1.4142135
        %v867 = vmul.f32 %v835, 1.4142135
        %v868 = vmul.f32 %v836, 1.4142135
        %v869 = vmul.f32 %v837, 1.4142135
        %v870 = vmul.f32 %v838, 1.4142135
        %v871 = vmul.f32 %v839, 1.4142135
        %v872 = vmul.f32 %v840, 1.4142135
        %v873 = vmul.f32 %v841, 1.4142135
        %v874 = vmul.f32 %v842, 1.4142135
        %v875 = vmul.f32 %v843, 1.4142135
        %v876 = vmul.f32 %v844, 1.4142135
        %v877 = vmul.f32 %v845, 1.4142135
        %v878 = vmul.f32 %v846, 1.4142135
        %v879 = vmul.f32 %v847, 1.4142135
        %v880 = vmul.f32 %v848, 1.4142135
        %v881 = vmul.f32 %v849, 1.4142135
        %v882 = vmul.f32 %v850, 1.4142135
        %v883 = vmul.f32 %v851, 1.4142135
        %v884 = vmul.f32 %v852, 1.4142135
        %v885 = vmul.f32 %v853, 1.4142135
        %v886 = vmul.f32 %v854, 1.4142135
        %v887 = vmul.f32 %v855, 1.4142135
        %v888 = vmul.f32 %v856, 1.4142135
        %v889 = vmul.f32 %v857, 1.4142135
        %v890 = vmul.f32 %v858, 1.4142135
        %v891 = vmul.f32 %v859, 1.4142135
        %v892 = vmul.f32 %v860, 1.4142135
        %v893 = vmul.f32 %v861, 1.4142135
        %v894 = vmul.f32 %v862, 1.4142135
        %v895 = vmul.f32 %v863, 1.4142135
        %v896 = vmul.f32 %v864, 1.4142135
        %v897 = vmul.f32 %v865, 1.4142135
        %898 = vst [vmem:[%s257] sm:$0xff] %v866
        %899 = vst [vmem:[%s257 + $0x8] sm:$0xff] %v867
        %900 = vst [vmem:[%s257 + $0x10] sm:$0xff] %v868
        %901 = vst [vmem:[%s257 + $0x18] sm:$0xff] %v869
        %902 = vst [vmem:[%s257 + $0x20] sm:$0xff] %v870
        %903 = vst [vmem:[%s257 + $0x28] sm:$0xff] %v871
        %904 = vst [vmem:[%s257 + $0x30] sm:$0xff] %v872
        %905 = vst [vmem:[%s257 + $0x38] sm:$0xff] %v873
        %906 = vst [vmem:[%s257 + $0x40] sm:$0xff] %v874
        %907 = vst [vmem:[%s257 + $0x48] sm:$0xff] %v875
        %908 = vst [vmem:[%s257 + $0x50] sm:$0xff] %v876
        %909 = vst [vmem:[%s257 + $0x58] sm:$0xff] %v877
        %910 = vst [vmem:[%s257 + $0x60] sm:$0xff] %v878
        %911 = vst [vmem:[%s257 + $0x68] sm:$0xff] %v879
        %912 = vst [vmem:[%s257 + $0x70] sm:$0xff] %v880
        %913 = vst [vmem:[%s257 + $0x78] sm:$0xff] %v881
        %914 = vst [vmem:[%s257 + $0x80] sm:$0xff] %v882
        %915 = vst [vmem:[%s257 + $0x88] sm:$0xff] %v883
        %916 = vst [vmem:[%s257 + $0x90] sm:$0xff] %v884
        %917 = vst [vmem:[%s257 + $0x98] sm:$0xff] %v885
        %918 = vst [vmem:[%s257 + $0xa0] sm:$0xff] %v886
        %919 = vst [vmem:[%s257 + $0xa8] sm:$0xff] %v887
        %920 = vst [vmem:[%s257 + $0xb0] sm:$0xff] %v888
        %921 = vst [vmem:[%s257 + $0xb8] sm:$0xff] %v889
        %922 = vst [vmem:[%s257 + $0xc0] sm:$0xff] %v890
        %923 = vst [vmem:[%s257 + $0xc8] sm:$0xff] %v891
        %924 = vst [vmem:[%s257 + $0xd0] sm:$0xff] %v892
        %925 = vst [vmem:[%s257 + $0xd8] sm:$0xff] %v893
        %926 = vst [vmem:[%s257 + $0xe0] sm:$0xff] %v894
        %927 = vst [vmem:[%s257 + $0xe8] sm:$0xff] %v895
        %928 = vst [vmem:[%s257 + $0xf0] sm:$0xff] %v896
        %929 = vst [vmem:[%s257 + $0xf8] sm:$0xff] %v897
      $region40: #{fwd.11} parent=31 // pred_fallthru
        _
      %s930 = smul.u32 32, %s19
      %p931 = scmp.lt.s32.totalorder %s930, 63
      %s932 = scalar_select %p931, %s930, 63
      %p933 = scmp.lt.s32.totalorder %s20, 0
      %s934 = scalar_select %p933, %s20, 0
      %s935 = sadd.s32 %s934, %s932
      %s936 = smul.addr %s935, 8
      %s937 = scalar_lea.vmem %s3, %s936
      // Predicated region
      $region41: #{fwd.11} parent=31 // pred_check
        %p938 = pneg %p135
      $region42: #{fwd.11} parent=31 // pred_check_branch
        %940 = sbr.rel (%p938) target = $region44
      $region43: #{fwd.11} parent=31 // pred_region
        %s941 = smul.u32 32, %s19
      $region44: #{fwd.11} parent=31 // pred_fallthru
        _
    $region32: #{fwd.11} parent=5 // pred_fallthru
      _
    %p942 = scmp.le.s32.totalorder 2, %s9
    // Predicated region
    $region45: #{fwd.11} parent=5 // pred_check
      %p943 = pneg %p942
    $region46: #{fwd.11} parent=5 // pred_check_branch
      %945 = sbr.rel (%p943) target = $region48
    $region47: #{fwd.11} parent=5 // pred_region
      %s946 = ssub.s32 %s9, 2
      // Predicated region
      $region49: #{fwd.11} parent=47 // pred_check
        %p947 = pneg %p141
      $region50: #{fwd.11} parent=47 // pred_check_branch
        %949 = sbr.rel (%p947) target = $region52
      $region51: #{fwd.11} parent=47 // pred_region
        %s950 = smul.u32 32, %s22
        %p951 = scmp.lt.s32.totalorder %s950, 63
        %s952 = scalar_select %p951, %s950, 63
        %p953 = scmp.lt.s32.totalorder %s23, 0
        %s954 = scalar_select %p953, %s23, 0
        %s955 = sadd.s32 %s954, %s952
        %s956 = smul.addr %s955, 8
        %s957 = scalar_lea.vmem %s3, %s956
      $region52: #{fwd.11} parent=47 // pred_fallthru
        _
    $region48: #{fwd.11} parent=5 // pred_fallthru
      _
  $region6: #{fwd.11} parent=0 // loop_footer
    %s13 = sadd.s32 1, %s9
  $region7: #{fwd.11} parent=0 // loop_footer_branch
    %8 = sbr.rel target = $region3
  $region8: #{fwd.11} parent=0 // loop_exit
    _

// kernel: fwd.12
$region0: #{fwd.12}
  #allocation0 [shape = 'u32[]', space=smem, size = 0x4, offset = 0x4, fixed_abs, tag = 'smem constant byte address 0x4 - core index']
  #allocation1 [shape = 'u32[144,128]{1,0:T(1,128)}', space=vmem, size = 0x12000, scoped, tag = 'internal scratch']
  %s0 = inlined_call_operand.vmem [shape: f32[512,128], index: 0, kind: input, shape index: {}]
  %s1 = inlined_call_operand.vmem [shape: f32[128,128], index: 1, kind: input, shape index: {}]
  %s2 = inlined_call_operand.vmem [shape: f32[1,128], index: 2, kind: input, shape index: {}]
  %s3 = inlined_call_operand.vmem [shape: f32[512,128], index: 3, kind: output, shape index: {}]
  %s4 = sld [smem:[#allocation0]]
  $region53: #{fwd.12} parent=0
    _
  %s6 = ssub.s32 1, %s4
  %s7 = scalar_select 0, %s6, %s4
  loop: start=0, step=1, limit=4
  $region2: #{fwd.12} parent=0 // loop_pre_header
    _
  $region3: #{fwd.12} parent=0 // loop_header
    %s9 = sphi 0, %s13
    %p10 = scmp.ge.s32.totalorder %s9, 4
    %s16 = sphi 0, %s35
    %s17 = sphi 0, %s31
    %s18 = sphi 0, %s27
    %s19 = sphi 0, %s16
    %s20 = sphi 0, %s17
    %s21 = sphi 0, %s18
    %s22 = sphi 0, %s19
    %s23 = sphi 0, %s20
    %s24 = sphi 0, %s21
    %s40 = sphi 0, %s42
    %s43 = sphi 0, %s40
    %s44 = sphi 0, %s43
    %s60 = sphi 0, %s44
    %s68 = sphi 0, %s70
    %s71 = sphi 0, %s68
    %s72 = sphi 0, %s71
    %s88 = sphi 0, %s72
    %s94 = sphi 0, %s96
    %s97 = sphi 0, %s94
    %s98 = sphi 0, %s97
    %s114 = sphi 0, %s98
    %s122 = sphi 0, %s124
    %s125 = sphi 0, %s122
    %s126 = sphi 0, %s125
    %s142 = sphi 0, %s126
  $region4: #{fwd.12} parent=0 // loop_header_branch
    %12 = sbr.rel (%p10) target = $region8
  $region5: #{fwd.12} parent=0 // loop_body
    %s14 = ssub.s32 %s9, 1
    %s15 = ssub.s32 %s9, 2
    %s25 = sadd.s32 1, %s18
    %p26 = scmp.ge.s32.totalorder %s25, 1
    %s27 = scalar_select %p26, 0, %s25
    %s28 = sadd.s32 1, %s17
    %s29 = scalar_select %p26, %s28, %s17
    %p30 = scmp.ge.s32.totalorder %s29, 1
    %s31 = scalar_select %p30, 0, %s29
    %s32 = sadd.s32 1, %s16
    %s33 = scalar_select %p30, %s32, %s16
    %p34 = scmp.ge.s32.totalorder %s33, 2
    %s35 = scalar_select %p34, 0, %s33
    %s36 = ssub.s32 %s16, %s35
    %s37 = ssub.s32 %s18, %s27
    %s38 = sor.u32 %s36, %s37
    %p39 = scmp.eq.s32.totalorder %s38, 0
    %s41 = sadd.s32 %s40, 1
    %s42 = scalar_select %p39, %s40, %s41
    %p45 = pneg %p39
    %p46 = scmp.eq.s32.totalorder %s9, 1
    %p47 = por %p45, %p46
    %p48 = scmp.ne.s32.totalorder %s40, %s43
    %p49 = scmp.eq.s32.totalorder %s9, 0
    %p50 = por %p48, %p49
    %p51 = scmp.ne.s32.totalorder %s40, %s43
    %p52 = scmp.eq.s32.totalorder %s14, 1
    %p53 = por %p51, %p52
    %p54 = scmp.ne.s32.totalorder %s43, %s44
    %p55 = scmp.eq.s32.totalorder %s14, 0
    %p56 = por %p54, %p55
    %p57 = scmp.ne.s32.totalorder %s43, %s44
    %p58 = scmp.eq.s32.totalorder %s15, 1
    %p59 = por %p57, %p58
    %p61 = scmp.ne.s32.totalorder %s44, %s60
    %p62 = scmp.eq.s32.totalorder %s15, 0
    %p63 = por %p61, %p62
    %s64 = ssub.s32 %s18, %s27
    %s65 = ssub.s32 %s17, %s31
    %s66 = sor.u32 %s64, %s65
    %p67 = scmp.eq.s32.totalorder %s66, 0
    %s69 = sadd.s32 %s68, 1
    %s70 = scalar_select %p67, %s68, %s69
    %p73 = pneg %p67
    %p74 = scmp.eq.s32.totalorder %s9, 1
    %p75 = por %p73, %p74
    %p76 = scmp.ne.s32.totalorder %s68, %s71
    %p77 = scmp.eq.s32.totalorder %s9, 0
    %p78 = por %p76, %p77
    %p79 = scmp.ne.s32.totalorder %s68, %s71
    %p80 = scmp.eq.s32.totalorder %s14, 1
    %p81 = por %p79, %p80
    %p82 = scmp.ne.s32.totalorder %s71, %s72
    %p83 = scmp.eq.s32.totalorder %s14, 0
    %p84 = por %p82, %p83
    %p85 = scmp.ne.s32.totalorder %s71, %s72
    %p86 = scmp.eq.s32.totalorder %s15, 1
    %p87 = por %p85, %p86
    %p89 = scmp.ne.s32.totalorder %s72, %s88
    %p90 = scmp.eq.s32.totalorder %s15, 0
    %p91 = por %p89, %p90
    %s92 = ssub.s32 %s17, %s31
    %p93 = scmp.eq.s32.totalorder %s92, 0
    %s95 = sadd.s32 %s94, 1
    %s96 = scalar_select %p93, %s94, %s95
    %p99 = pneg %p93
    %p100 = scmp.eq.s32.totalorder %s9, 1
    %p101 = por %p99, %p100
    %p102 = scmp.ne.s32.totalorder %s94, %s97
    %p103 = scmp.eq.s32.totalorder %s9, 0
    %p104 = por %p102, %p103
    %p105 = scmp.ne.s32.totalorder %s94, %s97
    %p106 = scmp.eq.s32.totalorder %s14, 1
    %p107 = por %p105, %p106
    %p108 = scmp.ne.s32.totalorder %s97, %s98
    %p109 = scmp.eq.s32.totalorder %s14, 0
    %p110 = por %p108, %p109
    %p111 = scmp.ne.s32.totalorder %s97, %s98
    %p112 = scmp.eq.s32.totalorder %s15, 1
    %p113 = por %p111, %p112
    %p115 = scmp.ne.s32.totalorder %s98, %s114
    %p116 = scmp.eq.s32.totalorder %s15, 0
    %p117 = por %p115, %p116
    %s118 = ssub.s32 %s16, %s35
    %s119 = ssub.s32 %s17, %s31
    %s120 = sor.u32 %s118, %s119
    %p121 = scmp.eq.s32.totalorder %s120, 0
    %s123 = sadd.s32 %s122, 1
    %s124 = scalar_select %p121, %s122, %s123
    %p127 = pneg %p121
    %p128 = scmp.eq.s32.totalorder %s9, 1
    %p129 = por %p127, %p128
    %p130 = scmp.ne.s32.totalorder %s122, %s125
    %p131 = scmp.eq.s32.totalorder %s9, 0
    %p132 = por %p130, %p131
    %p133 = scmp.ne.s32.totalorder %s122, %s125
    %p134 = scmp.eq.s32.totalorder %s14, 1
    %p135 = por %p133, %p134
    %p136 = scmp.ne.s32.totalorder %s125, %s126
    %p137 = scmp.eq.s32.totalorder %s14, 0
    %p138 = por %p136, %p137
    %p139 = scmp.ne.s32.totalorder %s125, %s126
    %p140 = scmp.eq.s32.totalorder %s15, 1
    %p141 = por %p139, %p140
    %p143 = scmp.ne.s32.totalorder %s126, %s142
    %p144 = scmp.eq.s32.totalorder %s15, 0
    %p145 = por %p143, %p144
    %p146 = scmp.le.s32.totalorder 1, %s9
    %p147 = scmp.lt.s32.totalorder %s9, 3
    %p148 = pnand %p146, %p147
    %p149 = pneg %p148
    // Predicated region
    $region9: #{fwd.12} parent=5 // pred_check
      _
    $region10: #{fwd.12} parent=5 // pred_check_branch
      %151 = sbr.rel (%p148) target = $region12
    $region11: #{fwd.12} parent=5 // pred_region
      %s152 = ssub.s32 %s9, 1
      // Predicated region
      $region13: #{fwd.12} parent=11 // pred_check
        %p153 = pneg %p84
      $region14: #{fwd.12} parent=11 // pred_check_branch
        %155 = sbr.rel (%p153) target = $region16
      $region15: #{fwd.12} parent=11 // pred_region
        %s156 = smul.u32 16, %s21
        %p157 = scmp.lt.s32.totalorder %s156, 15
        %s158 = scalar_select %p157, %s156, 15
        %p159 = scmp.lt.s32.totalorder %s20, 0
        %s160 = scalar_select %p159, %s20, 0
        %s161 = sadd.s32 %s160, %s158
        %s162 = smul.addr %s161, 8
        %s163 = scalar_lea.vmem %s1, %s162
        %s164 = smul.u32 16, %s21
      $region16: #{fwd.12} parent=11 // pred_fallthru
        _
      // Predicated region
      $region17: #{fwd.12} parent=11 // pred_check
        %p165 = pneg %p110
      $region18: #{fwd.12} parent=11 // pred_check_branch
        %167 = sbr.rel (%p165) target = $region20
      $region19: #{fwd.12} parent=11 // pred_region
        %p168 = scmp.lt.s32.totalorder %s20, 0
        %s169 = scalar_select %p168, %s20, 0
        %s170 = scalar_lea.vmem %s2, %s169
      $region20: #{fwd.12} parent=11 // pred_fallthru
        _
    $region12: #{fwd.12} parent=5 // pred_fallthru
      _
    %p171 = scmp.lt.s32.totalorder %s9, 2
    // Predicated region
    $region21: #{fwd.12} parent=5 // pred_check
      %p172 = pneg %p171
    $region22: #{fwd.12} parent=5 // pred_check_branch
      %174 = sbr.rel (%p172) target = $region24
    $region23: #{fwd.12} parent=5 // pred_region
      // Predicated region
      $region25: #{fwd.12} parent=23 // pred_check
        %p175 = pneg %p50
      $region26: #{fwd.12} parent=23 // pred_check_branch
        %177 = sbr.rel (%p175) target = $region28
      $region27: #{fwd.12} parent=23 // pred_region
        %s178 = smul.u32 32, %s16
        %p179 = scmp.lt.s32.totalorder %s178, 63
        %s180 = scalar_select %p179, %s178, 63
        %p181 = scmp.lt.s32.totalorder %s18, 0
        %s182 = scalar_select %p181, %s18, 0
        %s183 = sadd.s32 %s182, %s180
        %s184 = smul.addr %s183, 8
        %s185 = scalar_lea.vmem %s0, %s184
        %s186 = smul.u32 32, %s16
      $region28: #{fwd.12} parent=23 // pred_fallthru
        _
    $region24: #{fwd.12} parent=5 // pred_fallthru
      _
    %p187 = scmp.le.s32.totalorder 1, %s9
    %p188 = scmp.lt.s32.totalorder %s9, 3
    %p189 = pnand %p187, %p188
    %p190 = pneg %p189
    // Predicated region
    $region29: #{fwd.12} parent=5 // pred_check
      _
    $region30: #{fwd.12} parent=5 // pred_check_branch
      %192 = sbr.rel (%p189) target = $region32
    $region31: #{fwd.12} parent=5 // pred_region
      %s193 = ssub.s32 %s9, 1
      %s194 = smul.u32 32, %s19
      %p195 = scmp.lt.s32.totalorder %s194, 63
      %s196 = scalar_select %p195, %s194, 63
      %p197 = scmp.lt.s32.totalorder %s21, 0
      %s198 = scalar_select %p197, %s21, 0
      %s199 = sadd.s32 %s198, %s196
      %s200 = smul.addr %s199, 8
      %s201 = scalar_lea.vmem %s0, %s200
      %p202 = pneg %p56
      %p203 = pneg %p53
      %s204 = smul.u32 16, %s21
      %p205 = scmp.lt.s32.totalorder %s204, 15
      %s206 = scalar_select %p205, %s204, 15
      %p207 = scmp.lt.s32.totalorder %s20, 0
      %s208 = scalar_select %p207, %s20, 0
      %s209 = sadd.s32 %s208, %s206
      %s210 = smul.addr %s209, 8
      %s211 = scalar_lea.vmem %s1, %s210
      %p212 = pneg %p84
      %p213 = pneg %p81
      %p214 = scmp.lt.s32.totalorder %s20, 0
      %s215 = scalar_select %p214, %s20, 0
      %s216 = scalar_lea.vmem %s2, %s215
      %p217 = pneg %p110
      %p218 = pneg %p107
      %p219 = pneg %p138
      %p220 = pneg %p135
      %s221 = smul.u32 32, %s19
      %p222 = scmp.lt.s32.totalorder %s221, 63
      %s223 = scalar_select %p222, %s221, 63
      %p224 = scmp.lt.s32.totalorder %s20, 0
      %s225 = scalar_select %p224, %s20, 0
      %s226 = sadd.s32 %s225, %s223
      %s227 = smul.addr %s226, 8
      %s228 = scalar_lea.vmem %s3, %s227
      %s229 = smul.u32 32, %s19
      %p230 = scmp.lt.s32.totalorder %s229, 63
      %s231 = scalar_select %p230, %s229, 63
      %p232 = scmp.lt.s32.totalorder %s21, 0
      %s233 = scalar_select %p232, %s21, 0
      %s234 = sadd.s32 %s233, %s231
      %s235 = smul.addr %s234, 8
      %s236 = scalar_lea.vmem %s0, %s235
      %s237 = smul.u32 32, %s19
      %s238 = smul.u32 16, %s21
      %p239 = scmp.lt.s32.totalorder %s238, 15
      %s240 = scalar_select %p239, %s238, 15
      %p241 = scmp.lt.s32.totalorder %s20, 0
      %s242 = scalar_select %p241, %s20, 0
      %s243 = sadd.s32 %s242, %s240
      %s244 = smul.addr %s243, 8
      %s245 = scalar_lea.vmem %s1, %s244
      %s246 = smul.u32 16, %s21
      %p247 = scmp.lt.s32.totalorder %s20, 0
      %s248 = scalar_select %p247, %s20, 0
      %s249 = scalar_lea.vmem %s2, %s248
      %s250 = smul.u32 32, %s19
      %p251 = scmp.lt.s32.totalorder %s250, 63
      %s252 = scalar_select %p251, %s250, 63
      %p253 = scmp.lt.s32.totalorder %s20, 0
      %s254 = scalar_select %p253, %s20, 0
      %s255 = sadd.s32 %s254, %s252
      %s256 = smul.addr %s255, 8
      %s257 = scalar_lea.vmem %s3, %s256
      %s258 = smul.u32 32, %s19
      %v259 = vld [vmem:[%s236] sm:$0xff]
      %v260 = vld [vmem:[%s236 + $0x8] sm:$0xff]
      %v261 = vld [vmem:[%s236 + $0x10] sm:$0xff]
      %v262 = vld [vmem:[%s236 + $0x18] sm:$0xff]
      %v263 = vld [vmem:[%s236 + $0x20] sm:$0xff]
      %v264 = vld [vmem:[%s236 + $0x28] sm:$0xff]
      %v265 = vld [vmem:[%s236 + $0x30] sm:$0xff]
      %v266 = vld [vmem:[%s236 + $0x38] sm:$0xff]
      %v267 = vld [vmem:[%s236 + $0x40] sm:$0xff]
      %v268 = vld [vmem:[%s236 + $0x48] sm:$0xff]
      %v269 = vld [vmem:[%s236 + $0x50] sm:$0xff]
      %v270 = vld [vmem:[%s236 + $0x58] sm:$0xff]
      %v271 = vld [vmem:[%s236 + $0x60] sm:$0xff]
      %v272 = vld [vmem:[%s236 + $0x68] sm:$0xff]
      %v273 = vld [vmem:[%s236 + $0x70] sm:$0xff]
      %v274 = vld [vmem:[%s236 + $0x78] sm:$0xff]
      %v275 = vld [vmem:[%s236 + $0x80] sm:$0xff]
      %v276 = vld [vmem:[%s236 + $0x88] sm:$0xff]
      %v277 = vld [vmem:[%s236 + $0x90] sm:$0xff]
      %v278 = vld [vmem:[%s236 + $0x98] sm:$0xff]
      %v279 = vld [vmem:[%s236 + $0xa0] sm:$0xff]
      %v280 = vld [vmem:[%s236 + $0xa8] sm:$0xff]
      %v281 = vld [vmem:[%s236 + $0xb0] sm:$0xff]
      %v282 = vld [vmem:[%s236 + $0xb8] sm:$0xff]
      %v283 = vld [vmem:[%s236 + $0xc0] sm:$0xff]
      %v284 = vld [vmem:[%s236 + $0xc8] sm:$0xff]
      %v285 = vld [vmem:[%s236 + $0xd0] sm:$0xff]
      %v286 = vld [vmem:[%s236 + $0xd8] sm:$0xff]
      %v287 = vld [vmem:[%s236 + $0xe0] sm:$0xff]
      %v288 = vld [vmem:[%s236 + $0xe8] sm:$0xff]
      %v289 = vld [vmem:[%s236 + $0xf0] sm:$0xff]
      %v290 = vld [vmem:[%s236 + $0xf8] sm:$0xff]
      %p291 = scmp.eq.s32.totalorder %s21, 0
      // Predicated region
      $region33: #{fwd.12} parent=31 // pred_check
        %p292 = pneg %p291
      $region34: #{fwd.12} parent=31 // pred_check_branch
        %294 = sbr.rel (%p292) target = $region36
      $region35: #{fwd.12} parent=31 // pred_region
        %295 = vst [vmem:[%s257] sm:$0xff] 0.0
        %296 = vst [vmem:[%s257 + $0x8] sm:$0xff] 0.0
        %297 = vst [vmem:[%s257 + $0x10] sm:$0xff] 0.0
        %298 = vst [vmem:[%s257 + $0x18] sm:$0xff] 0.0
        %299 = vst [vmem:[%s257 + $0x20] sm:$0xff] 0.0
        %300 = vst [vmem:[%s257 + $0x28] sm:$0xff] 0.0
        %301 = vst [vmem:[%s257 + $0x30] sm:$0xff] 0.0
        %302 = vst [vmem:[%s257 + $0x38] sm:$0xff] 0.0
        %303 = vst [vmem:[%s257 + $0x40] sm:$0xff] 0.0
        %304 = vst [vmem:[%s257 + $0x48] sm:$0xff] 0.0
        %305 = vst [vmem:[%s257 + $0x50] sm:$0xff] 0.0
        %306 = vst [vmem:[%s257 + $0x58] sm:$0xff] 0.0
        %307 = vst [vmem:[%s257 + $0x60] sm:$0xff] 0.0
        %308 = vst [vmem:[%s257 + $0x68] sm:$0xff] 0.0
        %309 = vst [vmem:[%s257 + $0x70] sm:$0xff] 0.0
        %310 = vst [vmem:[%s257 + $0x78] sm:$0xff] 0.0
        %311 = vst [vmem:[%s257 + $0x80] sm:$0xff] 0.0
        %312 = vst [vmem:[%s257 + $0x88] sm:$0xff] 0.0
        %313 = vst [vmem:[%s257 + $0x90] sm:$0xff] 0.0
        %314 = vst [vmem:[%s257 + $0x98] sm:$0xff] 0.0
        %315 = vst [vmem:[%s257 + $0xa0] sm:$0xff] 0.0
        %316 = vst [vmem:[%s257 + $0xa8] sm:$0xff] 0.0
        %317 = vst [vmem:[%s257 + $0xb0] sm:$0xff] 0.0
        %318 = vst [vmem:[%s257 + $0xb8] sm:$0xff] 0.0
        %319 = vst [vmem:[%s257 + $0xc0] sm:$0xff] 0.0
        %320 = vst [vmem:[%s257 + $0xc8] sm:$0xff] 0.0
        %321 = vst [vmem:[%s257 + $0xd0] sm:$0xff] 0.0
        %322 = vst [vmem:[%s257 + $0xd8] sm:$0xff] 0.0
        %323 = vst [vmem:[%s257 + $0xe0] sm:$0xff] 0.0
        %324 = vst [vmem:[%s257 + $0xe8] sm:$0xff] 0.0
        %325 = vst [vmem:[%s257 + $0xf0] sm:$0xff] 0.0
        %326 = vst [vmem:[%s257 + $0xf8] sm:$0xff] 0.0
      $region36: #{fwd.12} parent=31 // pred_fallthru
        _
      %v327 = vld [vmem:[%s257] sm:$0xff]
      %v328 = vld [vmem:[%s257 + $0x8] sm:$0xff]
      %v329 = vld [vmem:[%s257 + $0x10] sm:$0xff]
      %v330 = vld [vmem:[%s257 + $0x18] sm:$0xff]
      %v331 = vld [vmem:[%s257 + $0x20] sm:$0xff]
      %v332 = vld [vmem:[%s257 + $0x28] sm:$0xff]
      %v333 = vld [vmem:[%s257 + $0x30] sm:$0xff]
      %v334 = vld [vmem:[%s257 + $0x38] sm:$0xff]
      %v335 = vld [vmem:[%s257 + $0x40] sm:$0xff]
      %v336 = vld [vmem:[%s257 + $0x48] sm:$0xff]
      %v337 = vld [vmem:[%s257 + $0x50] sm:$0xff]
      %v338 = vld [vmem:[%s257 + $0x58] sm:$0xff]
      %v339 = vld [vmem:[%s257 + $0x60] sm:$0xff]
      %v340 = vld [vmem:[%s257 + $0x68] sm:$0xff]
      %v341 = vld [vmem:[%s257 + $0x70] sm:$0xff]
      %v342 = vld [vmem:[%s257 + $0x78] sm:$0xff]
      %v343 = vld [vmem:[%s257 + $0x80] sm:$0xff]
      %v344 = vld [vmem:[%s257 + $0x88] sm:$0xff]
      %v345 = vld [vmem:[%s257 + $0x90] sm:$0xff]
      %v346 = vld [vmem:[%s257 + $0x98] sm:$0xff]
      %v347 = vld [vmem:[%s257 + $0xa0] sm:$0xff]
      %v348 = vld [vmem:[%s257 + $0xa8] sm:$0xff]
      %v349 = vld [vmem:[%s257 + $0xb0] sm:$0xff]
      %v350 = vld [vmem:[%s257 + $0xb8] sm:$0xff]
      %v351 = vld [vmem:[%s257 + $0xc0] sm:$0xff]
      %v352 = vld [vmem:[%s257 + $0xc8] sm:$0xff]
      %v353 = vld [vmem:[%s257 + $0xd0] sm:$0xff]
      %v354 = vld [vmem:[%s257 + $0xd8] sm:$0xff]
      %v355 = vld [vmem:[%s257 + $0xe0] sm:$0xff]
      %v356 = vld [vmem:[%s257 + $0xe8] sm:$0xff]
      %v357 = vld [vmem:[%s257 + $0xf0] sm:$0xff]
      %v358 = vld [vmem:[%s257 + $0xf8] sm:$0xff]
      %v359 = vld [vmem:[%s245] sm:$0xff]
      %v360 = vld [vmem:[%s245 + $0x8] sm:$0xff]
      %v361 = vld [vmem:[%s245 + $0x10] sm:$0xff]
      %v362 = vld [vmem:[%s245 + $0x18] sm:$0xff]
      %v363 = vld [vmem:[%s245 + $0x20] sm:$0xff]
      %v364 = vld [vmem:[%s245 + $0x28] sm:$0xff]
      %v365 = vld [vmem:[%s245 + $0x30] sm:$0xff]
      %v366 = vld [vmem:[%s245 + $0x38] sm:$0xff]
      %v367 = vld [vmem:[%s245 + $0x40] sm:$0xff]
      %v368 = vld [vmem:[%s245 + $0x48] sm:$0xff]
      %v369 = vld [vmem:[%s245 + $0x50] sm:$0xff]
      %v370 = vld [vmem:[%s245 + $0x58] sm:$0xff]
      %v371 = vld [vmem:[%s245 + $0x60] sm:$0xff]
      %v372 = vld [vmem:[%s245 + $0x68] sm:$0xff]
      %v373 = vld [vmem:[%s245 + $0x70] sm:$0xff]
      %v374 = vld [vmem:[%s245 + $0x78] sm:$0xff]
      %375 = vmatprep.subr.mxu0 0.0
      %376 = vmatpush1.msra.mxu0 %v374
      %377 = vmatprep.subr.mxu0 0.0
      %378 = vmatpush1.msra.mxu0 %v373
      %379 = vmatprep.subr.mxu0 0.0
      %380 = vmatpush1.msra.mxu0 %v372
      %381 = vmatprep.subr.mxu0 0.0
      %382 = vmatpush1.msra.mxu0 %v371
      %383 = vmatprep.subr.mxu0 0.0
      %384 = vmatpush1.msra.mxu0 %v370
      %385 = vmatprep.subr.mxu0 0.0
      %386 = vmatpush1.msra.mxu0 %v369
      %387 = vmatprep.subr.mxu0 0.0
      %388 = vmatpush1.msra.mxu0 %v368
      %389 = vmatprep.subr.mxu0 0.0
      %390 = vmatpush1.msra.mxu0 %v367
      %391 = vmatprep.subr.mxu0 0.0
      %392 = vmatpush1.msra.mxu0 %v366
      %393 = vmatprep.subr.mxu0 0.0
      %394 = vmatpush1.msra.mxu0 %v365
      %395 = vmatprep.subr.mxu0 0.0
      %396 = vmatpush1.msra.mxu0 %v364
      %397 = vmatprep.subr.mxu0 0.0
      %398 = vmatpush1.msra.mxu0 %v363
      %399 = vmatprep.subr.mxu0 0.0
      %400 = vmatpush1.msra.mxu0 %v362
      %401 = vmatprep.subr.mxu0 0.0
      %402 = vmatpush1.msra.mxu0 %v361
      %403 = vmatprep.subr.mxu0 0.0
      %404 = vmatpush1.msra.mxu0 %v360
      %405 = vmatprep.subr.mxu0 0.0
      %406 = vmatpush1.msra.mxu0 %v359
      %407 = vmatprep.subr.mxu0 0.0
      %408 = vmatpush2.msra.mxu0 0.0
      %409 = vmatprep.subr.mxu0 0.0
      %410 = vmatpush2.msra.mxu0 0.0
      %411 = vmatprep.subr.mxu0 0.0
      %412 = vmatpush2.msra.mxu0 0.0
      %413 = vmatprep.subr.mxu0 0.0
      %414 = vmatpush2.msra.mxu0 0.0
      %415 = vmatprep.subr.mxu0 0.0
      %416 = vmatpush2.msra.mxu0 0.0
      %417 = vmatprep.subr.mxu0 0.0
      %418 = vmatpush2.msra.mxu0 0.0
      %419 = vmatprep.subr.mxu0 0.0
      %420 = vmatpush2.msra.mxu0 0.0
      %421 = vmatprep.subr.mxu0 0.0
      %422 = vmatpush2.msra.mxu0 0.0
      %423 = vmatprep.subr.mxu0 0.0
      %424 = vmatpush2.msra.mxu0 0.0
      %425 = vmatprep.subr.mxu0 0.0
      %426 = vmatpush2.msra.mxu0 0.0
      %427 = vmatprep.subr.mxu0 0.0
      %428 = vmatpush2.msra.mxu0 0.0
      %429 = vmatprep.subr.mxu0 0.0
      %430 = vmatpush2.msra.mxu0 0.0
      %431 = vmatprep.subr.mxu0 0.0
      %432 = vmatpush2.msra.mxu0 0.0
      %433 = vmatprep.subr.mxu0 0.0
      %434 = vmatpush2.msra.mxu0 0.0
      %435 = vmatprep.subr.mxu0 0.0
      %436 = vmatpush2.msra.mxu0 0.0
      %437 = vmatprep.subr.mxu0 0.0
      %438 = vmatpush2.msra.mxu0 0.0
      %439 = vmatprep.mubr.f32.mxu0 0.0
      %440 = vmatmul.mubr.f32.gmra.mxu0 %v259
      %v441 = vpop.f32.mrf.mxu0
      %v442 = vadd.f32 0.0, %v441
      %v443 = vpop.f32.mrf.mxu0
      %444 = vmatprep.mubr.f32.mxu0 0.0
      %445 = vmatmul.mubr.f32.gmra.mxu0 %v260
      %v446 = vpop.f32.mrf.mxu0
      %v447 = vadd.f32 0.0, %v446
      %v448 = vpop.f32.mrf.mxu0
      %449 = vmatprep.mubr.f32.mxu0 0.0
      %450 = vmatmul.mubr.f32.gmra.mxu0 %v261
      %v451 = vpop.f32.mrf.mxu0
      %v452 = vadd.f32 0.0, %v451
      %v453 = vpop.f32.mrf.mxu0
      %454 = vmatprep.mubr.f32.mxu0 0.0
      %455 = vmatmul.mubr.f32.gmra.mxu0 %v262
      %v456 = vpop.f32.mrf.mxu0
      %v457 = vadd.f32 0.0, %v456
      %v458 = vpop.f32.mrf.mxu0
      %459 = vmatprep.mubr.f32.mxu0 0.0
      %460 = vmatmul.mubr.f32.gmra.mxu0 %v263
      %v461 = vpop.f32.mrf.mxu0
      %v462 = vadd.f32 0.0, %v461
      %v463 = vpop.f32.mrf.mxu0
      %464 = vmatprep.mubr.f32.mxu0 0.0
      %465 = vmatmul.mubr.f32.gmra.mxu0 %v264
      %v466 = vpop.f32.mrf.mxu0
      %v467 = vadd.f32 0.0, %v466
      %v468 = vpop.f32.mrf.mxu0
      %469 = vmatprep.mubr.f32.mxu0 0.0
      %470 = vmatmul.mubr.f32.gmra.mxu0 %v265
      %v471 = vpop.f32.mrf.mxu0
      %v472 = vadd.f32 0.0, %v471
      %v473 = vpop.f32.mrf.mxu0
      %474 = vmatprep.mubr.f32.mxu0 0.0
      %475 = vmatmul.mubr.f32.gmra.mxu0 %v266
      %v476 = vpop.f32.mrf.mxu0
      %v477 = vadd.f32 0.0, %v476
      %v478 = vpop.f32.mrf.mxu0
      %479 = vmatprep.mubr.f32.mxu0 0.0
      %480 = vmatmul.mubr.f32.gmra.mxu0 %v267
      %v481 = vpop.f32.mrf.mxu0
      %v482 = vadd.f32 0.0, %v481
      %v483 = vpop.f32.mrf.mxu0
      %484 = vmatprep.mubr.f32.mxu0 0.0
      %485 = vmatmul.mubr.f32.gmra.mxu0 %v268
      %v486 = vpop.f32.mrf.mxu0
      %v487 = vadd.f32 0.0, %v486
      %v488 = vpop.f32.mrf.mxu0
      %489 = vmatprep.mubr.f32.mxu0 0.0
      %490 = vmatmul.mubr.f32.gmra.mxu0 %v269
      %v491 = vpop.f32.mrf.mxu0
      %v492 = vadd.f32 0.0, %v491
      %v493 = vpop.f32.mrf.mxu0
      %494 = vmatprep.mubr.f32.mxu0 0.0
      %495 = vmatmul.mubr.f32.gmra.mxu0 %v270
      %v496 = vpop.f32.mrf.mxu0
      %v497 = vadd.f32 0.0, %v496
      %v498 = vpop.f32.mrf.mxu0
      %499 = vmatprep.mubr.f32.mxu0 0.0
      %500 = vmatmul.mubr.f32.gmra.mxu0 %v271
      %v501 = vpop.f32.mrf.mxu0
      %v502 = vadd.f32 0.0, %v501
      %v503 = vpop.f32.mrf.mxu0
      %504 = vmatprep.mubr.f32.mxu0 0.0
      %505 = vmatmul.mubr.f32.gmra.mxu0 %v272
      %v506 = vpop.f32.mrf.mxu0
      %v507 = vadd.f32 0.0, %v506
      %v508 = vpop.f32.mrf.mxu0
      %509 = vmatprep.mubr.f32.mxu0 0.0
      %510 = vmatmul.mubr.f32.gmra.mxu0 %v273
      %v511 = vpop.f32.mrf.mxu0
      %v512 = vadd.f32 0.0, %v511
      %v513 = vpop.f32.mrf.mxu0
      %514 = vmatprep.mubr.f32.mxu0 0.0
      %515 = vmatmul.mubr.f32.gmra.mxu0 %v274
      %v516 = vpop.f32.mrf.mxu0
      %v517 = vadd.f32 0.0, %v516
      %v518 = vpop.f32.mrf.mxu0
      %519 = vmatprep.mubr.f32.mxu0 0.0
      %520 = vmatmul.mubr.f32.gmra.mxu0 %v275
      %v521 = vpop.f32.mrf.mxu0
      %v522 = vadd.f32 0.0, %v521
      %v523 = vpop.f32.mrf.mxu0
      %524 = vmatprep.mubr.f32.mxu0 0.0
      %525 = vmatmul.mubr.f32.gmra.mxu0 %v276
      %v526 = vpop.f32.mrf.mxu0
      %v527 = vadd.f32 0.0, %v526
      %v528 = vpop.f32.mrf.mxu0
      %529 = vmatprep.mubr.f32.mxu0 0.0
      %530 = vmatmul.mubr.f32.gmra.mxu0 %v277
      %v531 = vpop.f32.mrf.mxu0
      %v532 = vadd.f32 0.0, %v531
      %v533 = vpop.f32.mrf.mxu0
      %534 = vmatprep.mubr.f32.mxu0 0.0
      %535 = vmatmul.mubr.f32.gmra.mxu0 %v278
      %v536 = vpop.f32.mrf.mxu0
      %v537 = vadd.f32 0.0, %v536
      %v538 = vpop.f32.mrf.mxu0
      %539 = vmatprep.mubr.f32.mxu0 0.0
      %540 = vmatmul.mubr.f32.gmra.mxu0 %v279
      %v541 = vpop.f32.mrf.mxu0
      %v542 = vadd.f32 0.0, %v541
      %v543 = vpop.f32.mrf.mxu0
      %544 = vmatprep.mubr.f32.mxu0 0.0
      %545 = vmatmul.mubr.f32.gmra.mxu0 %v280
      %v546 = vpop.f32.mrf.mxu0
      %v547 = vadd.f32 0.0, %v546
      %v548 = vpop.f32.mrf.mxu0
      %549 = vmatprep.mubr.f32.mxu0 0.0
      %550 = vmatmul.mubr.f32.gmra.mxu0 %v281
      %v551 = vpop.f32.mrf.mxu0
      %v552 = vadd.f32 0.0, %v551
      %v553 = vpop.f32.mrf.mxu0
      %554 = vmatprep.mubr.f32.mxu0 0.0
      %555 = vmatmul.mubr.f32.gmra.mxu0 %v282
      %v556 = vpop.f32.mrf.mxu0
      %v557 = vadd.f32 0.0, %v556
      %v558 = vpop.f32.mrf.mxu0
      %559 = vmatprep.mubr.f32.mxu0 0.0
      %560 = vmatmul.mubr.f32.gmra.mxu0 %v283
      %v561 = vpop.f32.mrf.mxu0
      %v562 = vadd.f32 0.0, %v561
      %v563 = vpop.f32.mrf.mxu0
      %564 = vmatprep.mubr.f32.mxu0 0.0
      %565 = vmatmul.mubr.f32.gmra.mxu0 %v284
      %v566 = vpop.f32.mrf.mxu0
      %v567 = vadd.f32 0.0, %v566
      %v568 = vpop.f32.mrf.mxu0
      %569 = vmatprep.mubr.f32.mxu0 0.0
      %570 = vmatmul.mubr.f32.gmra.mxu0 %v285
      %v571 = vpop.f32.mrf.mxu0
      %v572 = vadd.f32 0.0, %v571
      %v573 = vpop.f32.mrf.mxu0
      %574 = vmatprep.mubr.f32.mxu0 0.0
      %575 = vmatmul.mubr.f32.gmra.mxu0 %v286
      %v576 = vpop.f32.mrf.mxu0
      %v577 = vadd.f32 0.0, %v576
      %v578 = vpop.f32.mrf.mxu0
      %579 = vmatprep.mubr.f32.mxu0 0.0
      %580 = vmatmul.mubr.f32.gmra.mxu0 %v287
      %v581 = vpop.f32.mrf.mxu0
      %v582 = vadd.f32 0.0, %v581
      %v583 = vpop.f32.mrf.mxu0
      %584 = vmatprep.mubr.f32.mxu0 0.0
      %585 = vmatmul.mubr.f32.gmra.mxu0 %v288
      %v586 = vpop.f32.mrf.mxu0
      %v587 = vadd.f32 0.0, %v586
      %v588 = vpop.f32.mrf.mxu0
      %589 = vmatprep.mubr.f32.mxu0 0.0
      %590 = vmatmul.mubr.f32.gmra.mxu0 %v289
      %v591 = vpop.f32.mrf.mxu0
      %v592 = vadd.f32 0.0, %v591
      %v593 = vpop.f32.mrf.mxu0
      %594 = vmatprep.mubr.f32.mxu0 0.0
      %595 = vmatmul.mubr.f32.gmra.mxu0 %v290
      %v596 = vpop.f32.mrf.mxu0
      %v597 = vadd.f32 0.0, %v596
      %v598 = vpop.f32.mrf.mxu0
      %599 = vdwg.mxu0
      %v600 = vadd.f32 %v327, %v442
      %v601 = vadd.f32 %v328, %v447
      %v602 = vadd.f32 %v329, %v452
      %v603 = vadd.f32 %v330, %v457
      %v604 = vadd.f32 %v331, %v462
      %v605 = vadd.f32 %v332, %v467
      %v606 = vadd.f32 %v333, %v472
      %v607 = vadd.f32 %v334, %v477
      %v608 = vadd.f32 %v335, %v482
      %v609 = vadd.f32 %v336, %v487
      %v610 = vadd.f32 %v337, %v492
      %v611 = vadd.f32 %v338, %v497
      %v612 = vadd.f32 %v339, %v502
      %v613 = vadd.f32 %v340, %v507
      %v614 = vadd.f32 %v341, %v512
      %v615 = vadd.f32 %v342, %v517
      %v616 = vadd.f32 %v343, %v522
      %v617 = vadd.f32 %v344, %v527
      %v618 = vadd.f32 %v345, %v532
      %v619 = vadd.f32 %v346, %v537
      %v620 = vadd.f32 %v347, %v542
      %v621 = vadd.f32 %v348, %v547
      %v622 = vadd.f32 %v349, %v552
      %v623 = vadd.f32 %v350, %v557
      %v624 = vadd.f32 %v351, %v562
      %v625 = vadd.f32 %v352, %v567
      %v626 = vadd.f32 %v353, %v572
      %v627 = vadd.f32 %v354, %v577
      %v628 = vadd.f32 %v355, %v582
      %v629 = vadd.f32 %v356, %v587
      %v630 = vadd.f32 %v357, %v592
      %v631 = vadd.f32 %v358, %v597
      %632 = vst [vmem:[%s257] sm:$0xff] %v600
      %633 = vst [vmem:[%s257 + $0x8] sm:$0xff] %v601
      %634 = vst [vmem:[%s257 + $0x10] sm:$0xff] %v602
      %635 = vst [vmem:[%s257 + $0x18] sm:$0xff] %v603
      %636 = vst [vmem:[%s257 + $0x20] sm:$0xff] %v604
      %637 = vst [vmem:[%s257 + $0x28] sm:$0xff] %v605
      %638 = vst [vmem:[%s257 + $0x30] sm:$0xff] %v606
      %639 = vst [vmem:[%s257 + $0x38] sm:$0xff] %v607
      %640 = vst [vmem:[%s257 + $0x40] sm:$0xff] %v608
      %641 = vst [vmem:[%s257 + $0x48] sm:$0xff] %v609
      %642 = vst [vmem:[%s257 + $0x50] sm:$0xff] %v610
      %643 = vst [vmem:[%s257 + $0x58] sm:$0xff] %v611
      %644 = vst [vmem:[%s257 + $0x60] sm:$0xff] %v612
      %645 = vst [vmem:[%s257 + $0x68] sm:$0xff] %v613
      %646 = vst [vmem:[%s257 + $0x70] sm:$0xff] %v614
      %647 = vst [vmem:[%s257 + $0x78] sm:$0xff] %v615
      %648 = vst [vmem:[%s257 + $0x80] sm:$0xff] %v616
      %649 = vst [vmem:[%s257 + $0x88] sm:$0xff] %v617
      %650 = vst [vmem:[%s257 + $0x90] sm:$0xff] %v618
      %651 = vst [vmem:[%s257 + $0x98] sm:$0xff] %v619
      %652 = vst [vmem:[%s257 + $0xa0] sm:$0xff] %v620
      %653 = vst [vmem:[%s257 + $0xa8] sm:$0xff] %v621
      %654 = vst [vmem:[%s257 + $0xb0] sm:$0xff] %v622
      %655 = vst [vmem:[%s257 + $0xb8] sm:$0xff] %v623
      %656 = vst [vmem:[%s257 + $0xc0] sm:$0xff] %v624
      %657 = vst [vmem:[%s257 + $0xc8] sm:$0xff] %v625
      %658 = vst [vmem:[%s257 + $0xd0] sm:$0xff] %v626
      %659 = vst [vmem:[%s257 + $0xd8] sm:$0xff] %v627
      %660 = vst [vmem:[%s257 + $0xe0] sm:$0xff] %v628
      %661 = vst [vmem:[%s257 + $0xe8] sm:$0xff] %v629
      %662 = vst [vmem:[%s257 + $0xf0] sm:$0xff] %v630
      %663 = vst [vmem:[%s257 + $0xf8] sm:$0xff] %v631
      // Predicated region
      $region37: #{fwd.12} parent=31 // pred_check
        %p664 = pneg %p291
      $region38: #{fwd.12} parent=31 // pred_check_branch
        %666 = sbr.rel (%p664) target = $region40
      $region39: #{fwd.12} parent=31 // pred_region
        %v667 = vld [vmem:[%s257] sm:$0xff]
        %v668 = vld [vmem:[%s257 + $0x8] sm:$0xff]
        %v669 = vld [vmem:[%s257 + $0x10] sm:$0xff]
        %v670 = vld [vmem:[%s257 + $0x18] sm:$0xff]
        %v671 = vld [vmem:[%s257 + $0x20] sm:$0xff]
        %v672 = vld [vmem:[%s257 + $0x28] sm:$0xff]
        %v673 = vld [vmem:[%s257 + $0x30] sm:$0xff]
        %v674 = vld [vmem:[%s257 + $0x38] sm:$0xff]
        %v675 = vld [vmem:[%s257 + $0x40] sm:$0xff]
        %v676 = vld [vmem:[%s257 + $0x48] sm:$0xff]
        %v677 = vld [vmem:[%s257 + $0x50] sm:$0xff]
        %v678 = vld [vmem:[%s257 + $0x58] sm:$0xff]
        %v679 = vld [vmem:[%s257 + $0x60] sm:$0xff]
        %v680 = vld [vmem:[%s257 + $0x68] sm:$0xff]
        %v681 = vld [vmem:[%s257 + $0x70] sm:$0xff]
        %v682 = vld [vmem:[%s257 + $0x78] sm:$0xff]
        %v683 = vld [vmem:[%s257 + $0x80] sm:$0xff]
        %v684 = vld [vmem:[%s257 + $0x88] sm:$0xff]
        %v685 = vld [vmem:[%s257 + $0x90] sm:$0xff]
        %v686 = vld [vmem:[%s257 + $0x98] sm:$0xff]
        %v687 = vld [vmem:[%s257 + $0xa0] sm:$0xff]
        %v688 = vld [vmem:[%s257 + $0xa8] sm:$0xff]
        %v689 = vld [vmem:[%s257 + $0xb0] sm:$0xff]
        %v690 = vld [vmem:[%s257 + $0xb8] sm:$0xff]
        %v691 = vld [vmem:[%s257 + $0xc0] sm:$0xff]
        %v692 = vld [vmem:[%s257 + $0xc8] sm:$0xff]
        %v693 = vld [vmem:[%s257 + $0xd0] sm:$0xff]
        %v694 = vld [vmem:[%s257 + $0xd8] sm:$0xff]
        %v695 = vld [vmem:[%s257 + $0xe0] sm:$0xff]
        %v696 = vld [vmem:[%s257 + $0xe8] sm:$0xff]
        %v697 = vld [vmem:[%s257 + $0xf0] sm:$0xff]
        %v698 = vld [vmem:[%s257 + $0xf8] sm:$0xff]
        %v699 = vmul.f32 %v667, 0.17677669
        %v700 = vmul.f32 %v668, 0.17677669
        %v701 = vmul.f32 %v669, 0.17677669
        %v702 = vmul.f32 %v670, 0.17677669
        %v703 = vmul.f32 %v671, 0.17677669
        %v704 = vmul.f32 %v672, 0.17677669
        %v705 = vmul.f32 %v673, 0.17677669
        %v706 = vmul.f32 %v674, 0.17677669
        %v707 = vmul.f32 %v675, 0.17677669
        %v708 = vmul.f32 %v676, 0.17677669
        %v709 = vmul.f32 %v677, 0.17677669
        %v710 = vmul.f32 %v678, 0.17677669
        %v711 = vmul.f32 %v679, 0.17677669
        %v712 = vmul.f32 %v680, 0.17677669
        %v713 = vmul.f32 %v681, 0.17677669
        %v714 = vmul.f32 %v682, 0.17677669
        %v715 = vmul.f32 %v683, 0.17677669
        %v716 = vmul.f32 %v684, 0.17677669
        %v717 = vmul.f32 %v685, 0.17677669
        %v718 = vmul.f32 %v686, 0.17677669
        %v719 = vmul.f32 %v687, 0.17677669
        %v720 = vmul.f32 %v688, 0.17677669
        %v721 = vmul.f32 %v689, 0.17677669
        %v722 = vmul.f32 %v690, 0.17677669
        %v723 = vmul.f32 %v691, 0.17677669
        %v724 = vmul.f32 %v692, 0.17677669
        %v725 = vmul.f32 %v693, 0.17677669
        %v726 = vmul.f32 %v694, 0.17677669
        %v727 = vmul.f32 %v695, 0.17677669
        %v728 = vmul.f32 %v696, 0.17677669
        %v729 = vmul.f32 %v697, 0.17677669
        %v730 = vmul.f32 %v698, 0.17677669
        %v731 = vld [vmem:[%s249] sm:$0x1]
        %v733 = vlaneseq
        %v734 = vshrl.u32 %v733, 7
        %v735 = vsub.s32 0, %v734
        %v736 = vrot.slane %v731, %v735
        %v738 = vadd.f32 %v699, %v736
        %v739 = vadd.f32 %v700, %v736
        %v740 = vadd.f32 %v701, %v736
        %v741 = vadd.f32 %v702, %v736
        %v742 = vadd.f32 %v703, %v736
        %v743 = vadd.f32 %v704, %v736
        %v744 = vadd.f32 %v705, %v736
        %v745 = vadd.f32 %v706, %v736
        %v746 = vadd.f32 %v707, %v736
        %v747 = vadd.f32 %v708, %v736
        %v748 = vadd.f32 %v709, %v736
        %v749 = vadd.f32 %v710, %v736
        %v750 = vadd.f32 %v711, %v736
        %v751 = vadd.f32 %v712, %v736
        %v752 = vadd.f32 %v713, %v736
        %v753 = vadd.f32 %v714, %v736
        %v754 = vadd.f32 %v715, %v736
        %v755 = vadd.f32 %v716, %v736
        %v756 = vadd.f32 %v717, %v736
        %v757 = vadd.f32 %v718, %v736
        %v758 = vadd.f32 %v719, %v736
        %v759 = vadd.f32 %v720, %v736
        %v760 = vadd.f32 %v721, %v736
        %v761 = vadd.f32 %v722, %v736
        %v762 = vadd.f32 %v723, %v736
        %v763 = vadd.f32 %v724, %v736
        %v764 = vadd.f32 %v725, %v736
        %v765 = vadd.f32 %v726, %v736
        %v766 = vadd.f32 %v727, %v736
        %v767 = vadd.f32 %v728, %v736
        %v768 = vadd.f32 %v729, %v736
        %v769 = vadd.f32 %v730, %v736
        %vm770 = vcmp.ge.f32.partialorder %v738, 0.0
        %vm771 = vcmp.ge.f32.partialorder %v739, 0.0
        %vm772 = vcmp.ge.f32.partialorder %v740, 0.0
        %vm773 = vcmp.ge.f32.partialorder %v741, 0.0
        %vm774 = vcmp.ge.f32.partialorder %v742, 0.0
        %vm775 = vcmp.ge.f32.partialorder %v743, 0.0
        %vm776 = vcmp.ge.f32.partialorder %v744, 0.0
        %vm777 = vcmp.ge.f32.partialorder %v745, 0.0
        %vm778 = vcmp.ge.f32.partialorder %v746, 0.0
        %vm779 = vcmp.ge.f32.partialorder %v747, 0.0
        %vm780 = vcmp.ge.f32.partialorder %v748, 0.0
        %vm781 = vcmp.ge.f32.partialorder %v749, 0.0
        %vm782 = vcmp.ge.f32.partialorder %v750, 0.0
        %vm783 = vcmp.ge.f32.partialorder %v751, 0.0
        %vm784 = vcmp.ge.f32.partialorder %v752, 0.0
        %vm785 = vcmp.ge.f32.partialorder %v753, 0.0
        %vm786 = vcmp.ge.f32.partialorder %v754, 0.0
        %vm787 = vcmp.ge.f32.partialorder %v755, 0.0
        %vm788 = vcmp.ge.f32.partialorder %v756, 0.0
        %vm789 = vcmp.ge.f32.partialorder %v757, 0.0
        %vm790 = vcmp.ge.f32.partialorder %v758, 0.0
        %vm791 = vcmp.ge.f32.partialorder %v759, 0.0
        %vm792 = vcmp.ge.f32.partialorder %v760, 0.0
        %vm793 = vcmp.ge.f32.partialorder %v761, 0.0
        %vm794 = vcmp.ge.f32.partialorder %v762, 0.0
        %vm795 = vcmp.ge.f32.partialorder %v763, 0.0
        %vm796 = vcmp.ge.f32.partialorder %v764, 0.0
        %vm797 = vcmp.ge.f32.partialorder %v765, 0.0
        %vm798 = vcmp.ge.f32.partialorder %v766, 0.0
        %vm799 = vcmp.ge.f32.partialorder %v767, 0.0
        %vm800 = vcmp.ge.f32.partialorder %v768, 0.0
        %vm801 = vcmp.ge.f32.partialorder %v769, 0.0
        %v802 = vmul.f32 %v738, 0.2
        %v803 = vmul.f32 %v739, 0.2
        %v804 = vmul.f32 %v740, 0.2
        %v805 = vmul.f32 %v741, 0.2
        %v806 = vmul.f32 %v742, 0.2
        %v807 = vmul.f32 %v743, 0.2
        %v808 = vmul.f32 %v744, 0.2
        %v809 = vmul.f32 %v745, 0.2
        %v810 = vmul.f32 %v746, 0.2
        %v811 = vmul.f32 %v747, 0.2
        %v812 = vmul.f32 %v748, 0.2
        %v813 = vmul.f32 %v749, 0.2
        %v814 = vmul.f32 %v750, 0.2
        %v815 = vmul.f32 %v751, 0.2
        %v816 = vmul.f32 %v752, 0.2
        %v817 = vmul.f32 %v753, 0.2
        %v818 = vmul.f32 %v754, 0.2
        %v819 = vmul.f32 %v755, 0.2
        %v820 = vmul.f32 %v756, 0.2
        %v821 = vmul.f32 %v757, 0.2
        %v822 = vmul.f32 %v758, 0.2
        %v823 = vmul.f32 %v759, 0.2
        %v824 = vmul.f32 %v760, 0.2
        %v825 = vmul.f32 %v761, 0.2
        %v826 = vmul.f32 %v762, 0.2
        %v827 = vmul.f32 %v763, 0.2
        %v828 = vmul.f32 %v764, 0.2
        %v829 = vmul.f32 %v765, 0.2
        %v830 = vmul.f32 %v766, 0.2
        %v831 = vmul.f32 %v767, 0.2
        %v832 = vmul.f32 %v768, 0.2
        %v833 = vmul.f32 %v769, 0.2
        %v834 = vsel %vm770, %v738, %v802
        %v835 = vsel %vm771, %v739, %v803
        %v836 = vsel %vm772, %v740, %v804
        %v837 = vsel %vm773, %v741, %v805
        %v838 = vsel %vm774, %v742, %v806
        %v839 = vsel %vm775, %v743, %v807
        %v840 = vsel %vm776, %v744, %v808
        %v841 = vsel %vm777, %v745, %v809
        %v842 = vsel %vm778, %v746, %v810
        %v843 = vsel %vm779, %v747, %v811
        %v844 = vsel %vm780, %v748, %v812
        %v845 = vsel %vm781, %v749, %v813
        %v846 = vsel %vm782, %v750, %v814
        %v847 = vsel %vm783, %v751, %v815
        %v848 = vsel %vm784, %v752, %v816
        %v849 = vsel %vm785, %v753, %v817
        %v850 = vsel %vm786, %v754, %v818
        %v851 = vsel %vm787, %v755, %v819
        %v852 = vsel %vm788, %v756, %v820
        %v853 = vsel %vm789, %v757, %v821
        %v854 = vsel %vm790, %v758, %v822
        %v855 = vsel %vm791, %v759, %v823
        %v856 = vsel %vm792, %v760, %v824
        %v857 = vsel %vm793, %v761, %v825
        %v858 = vsel %vm794, %v762, %v826
        %v859 = vsel %vm795, %v763, %v827
        %v860 = vsel %vm796, %v764, %v828
        %v861 = vsel %vm797, %v765, %v829
        %v862 = vsel %vm798, %v766, %v830
        %v863 = vsel %vm799, %v767, %v831
        %v864 = vsel %vm800, %v768, %v832
        %v865 = vsel %vm801, %v769, %v833
        %v866 = vmul.f32 %v834, 1.4142135
        %v867 = vmul.f32 %v835, 1.4142135
        %v868 = vmul.f32 %v836, 1.4142135
        %v869 = vmul.f32 %v837, 1.4142135
        %v870 = vmul.f32 %v838, 1.4142135
        %v871 = vmul.f32 %v839, 1.4142135
        %v872 = vmul.f32 %v840, 1.4142135
        %v873 = vmul.f32 %v841, 1.4142135
        %v874 = vmul.f32 %v842, 1.4142135
        %v875 = vmul.f32 %v843, 1.4142135
        %v876 = vmul.f32 %v844, 1.4142135
        %v877 = vmul.f32 %v845, 1.4142135
        %v878 = vmul.f32 %v846, 1.4142135
        %v879 = vmul.f32 %v847, 1.4142135
        %v880 = vmul.f32 %v848, 1.4142135
        %v881 = vmul.f32 %v849, 1.4142135
        %v882 = vmul.f32 %v850, 1.4142135
        %v883 = vmul.f32 %v851, 1.4142135
        %v884 = vmul.f32 %v852, 1.4142135
        %v885 = vmul.f32 %v853, 1.4142135
        %v886 = vmul.f32 %v854, 1.4142135
        %v887 = vmul.f32 %v855, 1.4142135
        %v888 = vmul.f32 %v856, 1.4142135
        %v889 = vmul.f32 %v857, 1.4142135
        %v890 = vmul.f32 %v858, 1.4142135
        %v891 = vmul.f32 %v859, 1.4142135
        %v892 = vmul.f32 %v860, 1.4142135
        %v893 = vmul.f32 %v861, 1.4142135
        %v894 = vmul.f32 %v862, 1.4142135
        %v895 = vmul.f32 %v863, 1.4142135
        %v896 = vmul.f32 %v864, 1.4142135
        %v897 = vmul.f32 %v865, 1.4142135
        %898 = vst [vmem:[%s257] sm:$0xff] %v866
        %899 = vst [vmem:[%s257 + $0x8] sm:$0xff] %v867
        %900 = vst [vmem:[%s257 + $0x10] sm:$0xff] %v868
        %901 = vst [vmem:[%s257 + $0x18] sm:$0xff] %v869
        %902 = vst [vmem:[%s257 + $0x20] sm:$0xff] %v870
        %903 = vst [vmem:[%s257 + $0x28] sm:$0xff] %v871
        %904 = vst [vmem:[%s257 + $0x30] sm:$0xff] %v872
        %905 = vst [vmem:[%s257 + $0x38] sm:$0xff] %v873
        %906 = vst [vmem:[%s257 + $0x40] sm:$0xff] %v874
        %907 = vst [vmem:[%s257 + $0x48] sm:$0xff] %v875
        %908 = vst [vmem:[%s257 + $0x50] sm:$0xff] %v876
        %909 = vst [vmem:[%s257 + $0x58] sm:$0xff] %v877
        %910 = vst [vmem:[%s257 + $0x60] sm:$0xff] %v878
        %911 = vst [vmem:[%s257 + $0x68] sm:$0xff] %v879
        %912 = vst [vmem:[%s257 + $0x70] sm:$0xff] %v880
        %913 = vst [vmem:[%s257 + $0x78] sm:$0xff] %v881
        %914 = vst [vmem:[%s257 + $0x80] sm:$0xff] %v882
        %915 = vst [vmem:[%s257 + $0x88] sm:$0xff] %v883
        %916 = vst [vmem:[%s257 + $0x90] sm:$0xff] %v884
        %917 = vst [vmem:[%s257 + $0x98] sm:$0xff] %v885
        %918 = vst [vmem:[%s257 + $0xa0] sm:$0xff] %v886
        %919 = vst [vmem:[%s257 + $0xa8] sm:$0xff] %v887
        %920 = vst [vmem:[%s257 + $0xb0] sm:$0xff] %v888
        %921 = vst [vmem:[%s257 + $0xb8] sm:$0xff] %v889
        %922 = vst [vmem:[%s257 + $0xc0] sm:$0xff] %v890
        %923 = vst [vmem:[%s257 + $0xc8] sm:$0xff] %v891
        %924 = vst [vmem:[%s257 + $0xd0] sm:$0xff] %v892
        %925 = vst [vmem:[%s257 + $0xd8] sm:$0xff] %v893
        %926 = vst [vmem:[%s257 + $0xe0] sm:$0xff] %v894
        %927 = vst [vmem:[%s257 + $0xe8] sm:$0xff] %v895
        %928 = vst [vmem:[%s257 + $0xf0] sm:$0xff] %v896
        %929 = vst [vmem:[%s257 + $0xf8] sm:$0xff] %v897
      $region40: #{fwd.12} parent=31 // pred_fallthru
        _
      %s930 = smul.u32 32, %s19
      %p931 = scmp.lt.s32.totalorder %s930, 63
      %s932 = scalar_select %p931, %s930, 63
      %p933 = scmp.lt.s32.totalorder %s20, 0
      %s934 = scalar_select %p933, %s20, 0
      %s935 = sadd.s32 %s934, %s932
      %s936 = smul.addr %s935, 8
      %s937 = scalar_lea.vmem %s3, %s936
      // Predicated region
      $region41: #{fwd.12} parent=31 // pred_check
        %p938 = pneg %p135
      $region42: #{fwd.12} parent=31 // pred_check_branch
        %940 = sbr.rel (%p938) target = $region44
      $region43: #{fwd.12} parent=31 // pred_region
        %s941 = smul.u32 32, %s19
      $region44: #{fwd.12} parent=31 // pred_fallthru
        _
    $region32: #{fwd.12} parent=5 // pred_fallthru
      _
    %p942 = scmp.le.s32.totalorder 2, %s9
    // Predicated region
    $region45: #{fwd.12} parent=5 // pred_check
      %p943 = pneg %p942
    $region46: #{fwd.12} parent=5 // pred_check_branch
      %945 = sbr.rel (%p943) target = $region48
    $region47: #{fwd.12} parent=5 // pred_region
      %s946 = ssub.s32 %s9, 2
      // Predicated region
      $region49: #{fwd.12} parent=47 // pred_check
        %p947 = pneg %p141
      $region50: #{fwd.12} parent=47 // pred_check_branch
        %949 = sbr.rel (%p947) target = $region52
      $region51: #{fwd.12} parent=47 // pred_region
        %s950 = smul.u32 32, %s22
        %p951 = scmp.lt.s32.totalorder %s950, 63
        %s952 = scalar_select %p951, %s950, 63
        %p953 = scmp.lt.s32.totalorder %s23, 0
        %s954 = scalar_select %p953, %s23, 0
        %s955 = sadd.s32 %s954, %s952
        %s956 = smul.addr %s955, 8
        %s957 = scalar_lea.vmem %s3, %s956
      $region52: #{fwd.12} parent=47 // pred_fallthru
        _
    $region48: #{fwd.12} parent=5 // pred_fallthru
      _
  $region6: #{fwd.12} parent=0 // loop_footer
    %s13 = sadd.s32 1, %s9
  $region7: #{fwd.12} parent=0 // loop_footer_branch
    %8 = sbr.rel target = $region3
  $region8: #{fwd.12} parent=0 // loop_exit
    _

// kernel: fwd.13
$region0: #{fwd.13}
  #allocation0 [shape = 'u32[]', space=smem, size = 0x4, offset = 0x4, fixed_abs, tag = 'smem constant byte address 0x4 - core index']
  #allocation1 [shape = 'u32[144,128]{1,0:T(1,128)}', space=vmem, size = 0x12000, scoped, tag = 'internal scratch']
  %s0 = inlined_call_operand.vmem [shape: f32[512,128], index: 0, kind: input, shape index: {}]
  %s1 = inlined_call_operand.vmem [shape: f32[128,128], index: 1, kind: input, shape index: {}]
  %s2 = inlined_call_operand.vmem [shape: f32[1,128], index: 2, kind: input, shape index: {}]
  %s3 = inlined_call_operand.vmem [shape: f32[512,128], index: 3, kind: output, shape index: {}]
  %s4 = sld [smem:[#allocation0]]
  $region53: #{fwd.13} parent=0
    _
  %s6 = ssub.s32 1, %s4
  %s7 = scalar_select 0, %s6, %s4
  loop: start=0, step=1, limit=4
  $region2: #{fwd.13} parent=0 // loop_pre_header
    _
  $region3: #{fwd.13} parent=0 // loop_header
    %s9 = sphi 0, %s13
    %p10 = scmp.ge.s32.totalorder %s9, 4
    %s16 = sphi 0, %s35
    %s17 = sphi 0, %s31
    %s18 = sphi 0, %s27
    %s19 = sphi 0, %s16
    %s20 = sphi 0, %s17
    %s21 = sphi 0, %s18
    %s22 = sphi 0, %s19
    %s23 = sphi 0, %s20
    %s24 = sphi 0, %s21
    %s40 = sphi 0, %s42
    %s43 = sphi 0, %s40
    %s44 = sphi 0, %s43
    %s60 = sphi 0, %s44
    %s68 = sphi 0, %s70
    %s71 = sphi 0, %s68
    %s72 = sphi 0, %s71
    %s88 = sphi 0, %s72
    %s94 = sphi 0, %s96
    %s97 = sphi 0, %s94
    %s98 = sphi 0, %s97
    %s114 = sphi 0, %s98
    %s122 = sphi 0, %s124
    %s125 = sphi 0, %s122
    %s126 = sphi 0, %s125
    %s142 = sphi 0, %s126
  $region4: #{fwd.13} parent=0 // loop_header_branch
    %12 = sbr.rel (%p10) target = $region8
  $region5: #{fwd.13} parent=0 // loop_body
    %s14 = ssub.s32 %s9, 1
    %s15 = ssub.s32 %s9, 2
    %s25 = sadd.s32 1, %s18
    %p26 = scmp.ge.s32.totalorder %s25, 1
    %s27 = scalar_select %p26, 0, %s25
    %s28 = sadd.s32 1, %s17
    %s29 = scalar_select %p26, %s28, %s17
    %p30 = scmp.ge.s32.totalorder %s29, 1
    %s31 = scalar_select %p30, 0, %s29
    %s32 = sadd.s32 1, %s16
    %s33 = scalar_select %p30, %s32, %s16
    %p34 = scmp.ge.s32.totalorder %s33, 2
    %s35 = scalar_select %p34, 0, %s33
    %s36 = ssub.s32 %s16, %s35
    %s37 = ssub.s32 %s18, %s27
    %s38 = sor.u32 %s36, %s37
    %p39 = scmp.eq.s32.totalorder %s38, 0
    %s41 = sadd.s32 %s40, 1
    %s42 = scalar_select %p39, %s40, %s41
    %p45 = pneg %p39
    %p46 = scmp.eq.s32.totalorder %s9, 1
    %p47 = por %p45, %p46
    %p48 = scmp.ne.s32.totalorder %s40, %s43
    %p49 = scmp.eq.s32.totalorder %s9, 0
    %p50 = por %p48, %p49
    %p51 = scmp.ne.s32.totalorder %s40, %s43
    %p52 = scmp.eq.s32.totalorder %s14, 1
    %p53 = por %p51, %p52
    %p54 = scmp.ne.s32.totalorder %s43, %s44
    %p55 = scmp.eq.s32.totalorder %s14, 0
    %p56 = por %p54, %p55
    %p57 = scmp.ne.s32.totalorder %s43, %s44
    %p58 = scmp.eq.s32.totalorder %s15, 1
    %p59 = por %p57, %p58
    %p61 = scmp.ne.s32.totalorder %s44, %s60
    %p62 = scmp.eq.s32.totalorder %s15, 0
    %p63 = por %p61, %p62
    %s64 = ssub.s32 %s18, %s27
    %s65 = ssub.s32 %s17, %s31
    %s66 = sor.u32 %s64, %s65
    %p67 = scmp.eq.s32.totalorder %s66, 0
    %s69 = sadd.s32 %s68, 1
    %s70 = scalar_select %p67, %s68, %s69
    %p73 = pneg %p67
    %p74 = scmp.eq.s32.totalorder %s9, 1
    %p75 = por %p73, %p74
    %p76 = scmp.ne.s32.totalorder %s68, %s71
    %p77 = scmp.eq.s32.totalorder %s9, 0
    %p78 = por %p76, %p77
    %p79 = scmp.ne.s32.totalorder %s68, %s71
    %p80 = scmp.eq.s32.totalorder %s14, 1
    %p81 = por %p79, %p80
    %p82 = scmp.ne.s32.totalorder %s71, %s72
    %p83 = scmp.eq.s32.totalorder %s14, 0
    %p84 = por %p82, %p83
    %p85 = scmp.ne.s32.totalorder %s71, %s72
    %p86 = scmp.eq.s32.totalorder %s15, 1
    %p87 = por %p85, %p86
    %p89 = scmp.ne.s32.totalorder %s72, %s88
    %p90 = scmp.eq.s32.totalorder %s15, 0
    %p91 = por %p89, %p90
    %s92 = ssub.s32 %s17, %s31
    %p93 = scmp.eq.s32.totalorder %s92, 0
    %s95 = sadd.s32 %s94, 1
    %s96 = scalar_select %p93, %s94, %s95
    %p99 = pneg %p93
    %p100 = scmp.eq.s32.totalorder %s9, 1
    %p101 = por %p99, %p100
    %p102 = scmp.ne.s32.totalorder %s94, %s97
    %p103 = scmp.eq.s32.totalorder %s9, 0
    %p104 = por %p102, %p103
    %p105 = scmp.ne.s32.totalorder %s94, %s97
    %p106 = scmp.eq.s32.totalorder %s14, 1
    %p107 = por %p105, %p106
    %p108 = scmp.ne.s32.totalorder %s97, %s98
    %p109 = scmp.eq.s32.totalorder %s14, 0
    %p110 = por %p108, %p109
    %p111 = scmp.ne.s32.totalorder %s97, %s98
    %p112 = scmp.eq.s32.totalorder %s15, 1
    %p113 = por %p111, %p112
    %p115 = scmp.ne.s32.totalorder %s98, %s114
    %p116 = scmp.eq.s32.totalorder %s15, 0
    %p117 = por %p115, %p116
    %s118 = ssub.s32 %s16, %s35
    %s119 = ssub.s32 %s17, %s31
    %s120 = sor.u32 %s118, %s119
    %p121 = scmp.eq.s32.totalorder %s120, 0
    %s123 = sadd.s32 %s122, 1
    %s124 = scalar_select %p121, %s122, %s123
    %p127 = pneg %p121
    %p128 = scmp.eq.s32.totalorder %s9, 1
    %p129 = por %p127, %p128
    %p130 = scmp.ne.s32.totalorder %s122, %s125
    %p131 = scmp.eq.s32.totalorder %s9, 0
    %p132 = por %p130, %p131
    %p133 = scmp.ne.s32.totalorder %s122, %s125
    %p134 = scmp.eq.s32.totalorder %s14, 1
    %p135 = por %p133, %p134
    %p136 = scmp.ne.s32.totalorder %s125, %s126
    %p137 = scmp.eq.s32.totalorder %s14, 0
    %p138 = por %p136, %p137
    %p139 = scmp.ne.s32.totalorder %s125, %s126
    %p140 = scmp.eq.s32.totalorder %s15, 1
    %p141 = por %p139, %p140
    %p143 = scmp.ne.s32.totalorder %s126, %s142
    %p144 = scmp.eq.s32.totalorder %s15, 0
    %p145 = por %p143, %p144
    %p146 = scmp.le.s32.totalorder 1, %s9
    %p147 = scmp.lt.s32.totalorder %s9, 3
    %p148 = pnand %p146, %p147
    %p149 = pneg %p148
    // Predicated region
    $region9: #{fwd.13} parent=5 // pred_check
      _
    $region10: #{fwd.13} parent=5 // pred_check_branch
      %151 = sbr.rel (%p148) target = $region12
    $region11: #{fwd.13} parent=5 // pred_region
      %s152 = ssub.s32 %s9, 1
      // Predicated region
      $region13: #{fwd.13} parent=11 // pred_check
        %p153 = pneg %p84
      $region14: #{fwd.13} parent=11 // pred_check_branch
        %155 = sbr.rel (%p153) target = $region16
      $region15: #{fwd.13} parent=11 // pred_region
        %s156 = smul.u32 16, %s21
        %p157 = scmp.lt.s32.totalorder %s156, 15
        %s158 = scalar_select %p157, %s156, 15
        %p159 = scmp.lt.s32.totalorder %s20, 0
        %s160 = scalar_select %p159, %s20, 0
        %s161 = sadd.s32 %s160, %s158
        %s162 = smul.addr %s161, 8
        %s163 = scalar_lea.vmem %s1, %s162
        %s164 = smul.u32 16, %s21
      $region16: #{fwd.13} parent=11 // pred_fallthru
        _
      // Predicated region
      $region17: #{fwd.13} parent=11 // pred_check
        %p165 = pneg %p110
      $region18: #{fwd.13} parent=11 // pred_check_branch
        %167 = sbr.rel (%p165) target = $region20
      $region19: #{fwd.13} parent=11 // pred_region
        %p168 = scmp.lt.s32.totalorder %s20, 0
        %s169 = scalar_select %p168, %s20, 0
        %s170 = scalar_lea.vmem %s2, %s169
      $region20: #{fwd.13} parent=11 // pred_fallthru
        _
    $region12: #{fwd.13} parent=5 // pred_fallthru
      _
    %p171 = scmp.lt.s32.totalorder %s9, 2
    // Predicated region
    $region21: #{fwd.13} parent=5 // pred_check
      %p172 = pneg %p171
    $region22: #{fwd.13} parent=5 // pred_check_branch
      %174 = sbr.rel (%p172) target = $region24
    $region23: #{fwd.13} parent=5 // pred_region
      // Predicated region
      $region25: #{fwd.13} parent=23 // pred_check
        %p175 = pneg %p50
      $region26: #{fwd.13} parent=23 // pred_check_branch
        %177 = sbr.rel (%p175) target = $region28
      $region27: #{fwd.13} parent=23 // pred_region
        %s178 = smul.u32 32, %s16
        %p179 = scmp.lt.s32.totalorder %s178, 63
        %s180 = scalar_select %p179, %s178, 63
        %p181 = scmp.lt.s32.totalorder %s18, 0
        %s182 = scalar_select %p181, %s18, 0
        %s183 = sadd.s32 %s182, %s180
        %s184 = smul.addr %s183, 8
        %s185 = scalar_lea.vmem %s0, %s184
        %s186 = smul.u32 32, %s16
      $region28: #{fwd.13} parent=23 // pred_fallthru
        _
    $region24: #{fwd.13} parent=5 // pred_fallthru
      _
    %p187 = scmp.le.s32.totalorder 1, %s9
    %p188 = scmp.lt.s32.totalorder %s9, 3
    %p189 = pnand %p187, %p188
    %p190 = pneg %p189
    // Predicated region
    $region29: #{fwd.13} parent=5 // pred_check
      _
    $region30: #{fwd.13} parent=5 // pred_check_branch
      %192 = sbr.rel (%p189) target = $region32
    $region31: #{fwd.13} parent=5 // pred_region
      %s193 = ssub.s32 %s9, 1
      %s194 = smul.u32 32, %s19
      %p195 = scmp.lt.s32.totalorder %s194, 63
      %s196 = scalar_select %p195, %s194, 63
      %p197 = scmp.lt.s32.totalorder %s21, 0
      %s198 = scalar_select %p197, %s21, 0
      %s199 = sadd.s32 %s198, %s196
      %s200 = smul.addr %s199, 8
      %s201 = scalar_lea.vmem %s0, %s200
      %p202 = pneg %p56
      %p203 = pneg %p53
      %s204 = smul.u32 16, %s21
      %p205 = scmp.lt.s32.totalorder %s204, 15
      %s206 = scalar_select %p205, %s204, 15
      %p207 = scmp.lt.s32.totalorder %s20, 0
      %s208 = scalar_select %p207, %s20, 0
      %s209 = sadd.s32 %s208, %s206
      %s210 = smul.addr %s209, 8
      %s211 = scalar_lea.vmem %s1, %s210
      %p212 = pneg %p84
      %p213 = pneg %p81
      %p214 = scmp.lt.s32.totalorder %s20, 0
      %s215 = scalar_select %p214, %s20, 0
      %s216 = scalar_lea.vmem %s2, %s215
      %p217 = pneg %p110
      %p218 = pneg %p107
      %p219 = pneg %p138
      %p220 = pneg %p135
      %s221 = smul.u32 32, %s19
      %p222 = scmp.lt.s32.totalorder %s221, 63
      %s223 = scalar_select %p222, %s221, 63
      %p224 = scmp.lt.s32.totalorder %s20, 0
      %s225 = scalar_select %p224, %s20, 0
      %s226 = sadd.s32 %s225, %s223
      %s227 = smul.addr %s226, 8
      %s228 = scalar_lea.vmem %s3, %s227
      %s229 = smul.u32 32, %s19
      %p230 = scmp.lt.s32.totalorder %s229, 63
      %s231 = scalar_select %p230, %s229, 63
      %p232 = scmp.lt.s32.totalorder %s21, 0
      %s233 = scalar_select %p232, %s21, 0
      %s234 = sadd.s32 %s233, %s231
      %s235 = smul.addr %s234, 8
      %s236 = scalar_lea.vmem %s0, %s235
      %s237 = smul.u32 32, %s19
      %s238 = smul.u32 16, %s21
      %p239 = scmp.lt.s32.totalorder %s238, 15
      %s240 = scalar_select %p239, %s238, 15
      %p241 = scmp.lt.s32.totalorder %s20, 0
      %s242 = scalar_select %p241, %s20, 0
      %s243 = sadd.s32 %s242, %s240
      %s244 = smul.addr %s243, 8
      %s245 = scalar_lea.vmem %s1, %s244
      %s246 = smul.u32 16, %s21
      %p247 = scmp.lt.s32.totalorder %s20, 0
      %s248 = scalar_select %p247, %s20, 0
      %s249 = scalar_lea.vmem %s2, %s248
      %s250 = smul.u32 32, %s19
      %p251 = scmp.lt.s32.totalorder %s250, 63
      %s252 = scalar_select %p251, %s250, 63
      %p253 = scmp.lt.s32.totalorder %s20, 0
      %s254 = scalar_select %p253, %s20, 0
      %s255 = sadd.s32 %s254, %s252
      %s256 = smul.addr %s255, 8
      %s257 = scalar_lea.vmem %s3, %s256
      %s258 = smul.u32 32, %s19
      %v259 = vld [vmem:[%s236] sm:$0xff]
      %v260 = vld [vmem:[%s236 + $0x8] sm:$0xff]
      %v261 = vld [vmem:[%s236 + $0x10] sm:$0xff]
      %v262 = vld [vmem:[%s236 + $0x18] sm:$0xff]
      %v263 = vld [vmem:[%s236 + $0x20] sm:$0xff]
      %v264 = vld [vmem:[%s236 + $0x28] sm:$0xff]
      %v265 = vld [vmem:[%s236 + $0x30] sm:$0xff]
      %v266 = vld [vmem:[%s236 + $0x38] sm:$0xff]
      %v267 = vld [vmem:[%s236 + $0x40] sm:$0xff]
      %v268 = vld [vmem:[%s236 + $0x48] sm:$0xff]
      %v269 = vld [vmem:[%s236 + $0x50] sm:$0xff]
      %v270 = vld [vmem:[%s236 + $0x58] sm:$0xff]
      %v271 = vld [vmem:[%s236 + $0x60] sm:$0xff]
      %v272 = vld [vmem:[%s236 + $0x68] sm:$0xff]
      %v273 = vld [vmem:[%s236 + $0x70] sm:$0xff]
      %v274 = vld [vmem:[%s236 + $0x78] sm:$0xff]
      %v275 = vld [vmem:[%s236 + $0x80] sm:$0xff]
      %v276 = vld [vmem:[%s236 + $0x88] sm:$0xff]
      %v277 = vld [vmem:[%s236 + $0x90] sm:$0xff]
      %v278 = vld [vmem:[%s236 + $0x98] sm:$0xff]
      %v279 = vld [vmem:[%s236 + $0xa0] sm:$0xff]
      %v280 = vld [vmem:[%s236 + $0xa8] sm:$0xff]
      %v281 = vld [vmem:[%s236 + $0xb0] sm:$0xff]
      %v282 = vld [vmem:[%s236 + $0xb8] sm:$0xff]
      %v283 = vld [vmem:[%s236 + $0xc0] sm:$0xff]
      %v284 = vld [vmem:[%s236 + $0xc8] sm:$0xff]
      %v285 = vld [vmem:[%s236 + $0xd0] sm:$0xff]
      %v286 = vld [vmem:[%s236 + $0xd8] sm:$0xff]
      %v287 = vld [vmem:[%s236 + $0xe0] sm:$0xff]
      %v288 = vld [vmem:[%s236 + $0xe8] sm:$0xff]
      %v289 = vld [vmem:[%s236 + $0xf0] sm:$0xff]
      %v290 = vld [vmem:[%s236 + $0xf8] sm:$0xff]
      %p291 = scmp.eq.s32.totalorder %s21, 0
      // Predicated region
      $region33: #{fwd.13} parent=31 // pred_check
        %p292 = pneg %p291
      $region34: #{fwd.13} parent=31 // pred_check_branch
        %294 = sbr.rel (%p292) target = $region36
      $region35: #{fwd.13} parent=31 // pred_region
        %295 = vst [vmem:[%s257] sm:$0xff] 0.0
        %296 = vst [vmem:[%s257 + $0x8] sm:$0xff] 0.0
        %297 = vst [vmem:[%s257 + $0x10] sm:$0xff] 0.0
        %298 = vst [vmem:[%s257 + $0x18] sm:$0xff] 0.0
        %299 = vst [vmem:[%s257 + $0x20] sm:$0xff] 0.0
        %300 = vst [vmem:[%s257 + $0x28] sm:$0xff] 0.0
        %301 = vst [vmem:[%s257 + $0x30] sm:$0xff] 0.0
        %302 = vst [vmem:[%s257 + $0x38] sm:$0xff] 0.0
        %303 = vst [vmem:[%s257 + $0x40] sm:$0xff] 0.0
        %304 = vst [vmem:[%s257 + $0x48] sm:$0xff] 0.0
        %305 = vst [vmem:[%s257 + $0x50] sm:$0xff] 0.0
        %306 = vst [vmem:[%s257 + $0x58] sm:$0xff] 0.0
        %307 = vst [vmem:[%s257 + $0x60] sm:$0xff] 0.0
        %308 = vst [vmem:[%s257 + $0x68] sm:$0xff] 0.0
        %309 = vst [vmem:[%s257 + $0x70] sm:$0xff] 0.0
        %310 = vst [vmem:[%s257 + $0x78] sm:$0xff] 0.0
        %311 = vst [vmem:[%s257 + $0x80] sm:$0xff] 0.0
        %312 = vst [vmem:[%s257 + $0x88] sm:$0xff] 0.0
        %313 = vst [vmem:[%s257 + $0x90] sm:$0xff] 0.0
        %314 = vst [vmem:[%s257 + $0x98] sm:$0xff] 0.0
        %315 = vst [vmem:[%s257 + $0xa0] sm:$0xff] 0.0
        %316 = vst [vmem:[%s257 + $0xa8] sm:$0xff] 0.0
        %317 = vst [vmem:[%s257 + $0xb0] sm:$0xff] 0.0
        %318 = vst [vmem:[%s257 + $0xb8] sm:$0xff] 0.0
        %319 = vst [vmem:[%s257 + $0xc0] sm:$0xff] 0.0
        %320 = vst [vmem:[%s257 + $0xc8] sm:$0xff] 0.0
        %321 = vst [vmem:[%s257 + $0xd0] sm:$0xff] 0.0
        %322 = vst [vmem:[%s257 + $0xd8] sm:$0xff] 0.0
        %323 = vst [vmem:[%s257 + $0xe0] sm:$0xff] 0.0
        %324 = vst [vmem:[%s257 + $0xe8] sm:$0xff] 0.0
        %325 = vst [vmem:[%s257 + $0xf0] sm:$0xff] 0.0
        %326 = vst [vmem:[%s257 + $0xf8] sm:$0xff] 0.0
      $region36: #{fwd.13} parent=31 // pred_fallthru
        _
      %v327 = vld [vmem:[%s257] sm:$0xff]
      %v328 = vld [vmem:[%s257 + $0x8] sm:$0xff]
      %v329 = vld [vmem:[%s257 + $0x10] sm:$0xff]
      %v330 = vld [vmem:[%s257 + $0x18] sm:$0xff]
      %v331 = vld [vmem:[%s257 + $0x20] sm:$0xff]
      %v332 = vld [vmem:[%s257 + $0x28] sm:$0xff]
      %v333 = vld [vmem:[%s257 + $0x30] sm:$0xff]
      %v334 = vld [vmem:[%s257 + $0x38] sm:$0xff]
      %v335 = vld [vmem:[%s257 + $0x40] sm:$0xff]
      %v336 = vld [vmem:[%s257 + $0x48] sm:$0xff]
      %v337 = vld [vmem:[%s257 + $0x50] sm:$0xff]
      %v338 = vld [vmem:[%s257 + $0x58] sm:$0xff]
      %v339 = vld [vmem:[%s257 + $0x60] sm:$0xff]
      %v340 = vld [vmem:[%s257 + $0x68] sm:$0xff]
      %v341 = vld [vmem:[%s257 + $0x70] sm:$0xff]
      %v342 = vld [vmem:[%s257 + $0x78] sm:$0xff]
      %v343 = vld [vmem:[%s257 + $0x80] sm:$0xff]
      %v344 = vld [vmem:[%s257 + $0x88] sm:$0xff]
      %v345 = vld [vmem:[%s257 + $0x90] sm:$0xff]
      %v346 = vld [vmem:[%s257 + $0x98] sm:$0xff]
      %v347 = vld [vmem:[%s257 + $0xa0] sm:$0xff]
      %v348 = vld [vmem:[%s257 + $0xa8] sm:$0xff]
      %v349 = vld [vmem:[%s257 + $0xb0] sm:$0xff]
      %v350 = vld [vmem:[%s257 + $0xb8] sm:$0xff]
      %v351 = vld [vmem:[%s257 + $0xc0] sm:$0xff]
      %v352 = vld [vmem:[%s257 + $0xc8] sm:$0xff]
      %v353 = vld [vmem:[%s257 + $0xd0] sm:$0xff]
      %v354 = vld [vmem:[%s257 + $0xd8] sm:$0xff]
      %v355 = vld [vmem:[%s257 + $0xe0] sm:$0xff]
      %v356 = vld [vmem:[%s257 + $0xe8] sm:$0xff]
      %v357 = vld [vmem:[%s257 + $0xf0] sm:$0xff]
      %v358 = vld [vmem:[%s257 + $0xf8] sm:$0xff]
      %v359 = vld [vmem:[%s245] sm:$0xff]
      %v360 = vld [vmem:[%s245 + $0x8] sm:$0xff]
      %v361 = vld [vmem:[%s245 + $0x10] sm:$0xff]
      %v362 = vld [vmem:[%s245 + $0x18] sm:$0xff]
      %v363 = vld [vmem:[%s245 + $0x20] sm:$0xff]
      %v364 = vld [vmem:[%s245 + $0x28] sm:$0xff]
      %v365 = vld [vmem:[%s245 + $0x30] sm:$0xff]
      %v366 = vld [vmem:[%s245 + $0x38] sm:$0xff]
      %v367 = vld [vmem:[%s245 + $0x40] sm:$0xff]
      %v368 = vld [vmem:[%s245 + $0x48] sm:$0xff]
      %v369 = vld [vmem:[%s245 + $0x50] sm:$0xff]
      %v370 = vld [vmem:[%s245 + $0x58] sm:$0xff]
      %v371 = vld [vmem:[%s245 + $0x60] sm:$0xff]
      %v372 = vld [vmem:[%s245 + $0x68] sm:$0xff]
      %v373 = vld [vmem:[%s245 + $0x70] sm:$0xff]
      %v374 = vld [vmem:[%s245 + $0x78] sm:$0xff]
      %375 = vmatprep.subr.mxu0 0.0
      %376 = vmatpush1.msra.mxu0 %v374
      %377 = vmatprep.subr.mxu0 0.0
      %378 = vmatpush1.msra.mxu0 %v373
      %379 = vmatprep.subr.mxu0 0.0
      %380 = vmatpush1.msra.mxu0 %v372
      %381 = vmatprep.subr.mxu0 0.0
      %382 = vmatpush1.msra.mxu0 %v371
      %383 = vmatprep.subr.mxu0 0.0
      %384 = vmatpush1.msra.mxu0 %v370
      %385 = vmatprep.subr.mxu0 0.0
      %386 = vmatpush1.msra.mxu0 %v369
      %387 = vmatprep.subr.mxu0 0.0
      %388 = vmatpush1.msra.mxu0 %v368
      %389 = vmatprep.subr.mxu0 0.0
      %390 = vmatpush1.msra.mxu0 %v367
      %391 = vmatprep.subr.mxu0 0.0
      %392 = vmatpush1.msra.mxu0 %v366
      %393 = vmatprep.subr.mxu0 0.0
      %394 = vmatpush1.msra.mxu0 %v365
      %395 = vmatprep.subr.mxu0 0.0
      %396 = vmatpush1.msra.mxu0 %v364
      %397 = vmatprep.subr.mxu0 0.0
      %398 = vmatpush1.msra.mxu0 %v363
      %399 = vmatprep.subr.mxu0 0.0
      %400 = vmatpush1.msra.mxu0 %v362
      %401 = vmatprep.subr.mxu0 0.0
      %402 = vmatpush1.msra.mxu0 %v361
      %403 = vmatprep.subr.mxu0 0.0
      %404 = vmatpush1.msra.mxu0 %v360
      %405 = vmatprep.subr.mxu0 0.0
      %406 = vmatpush1.msra.mxu0 %v359
      %407 = vmatprep.subr.mxu0 0.0
      %408 = vmatpush2.msra.mxu0 0.0
      %409 = vmatprep.subr.mxu0 0.0
      %410 = vmatpush2.msra.mxu0 0.0
      %411 = vmatprep.subr.mxu0 0.0
      %412 = vmatpush2.msra.mxu0 0.0
      %413 = vmatprep.subr.mxu0 0.0
      %414 = vmatpush2.msra.mxu0 0.0
      %415 = vmatprep.subr.mxu0 0.0
      %416 = vmatpush2.msra.mxu0 0.0
      %417 = vmatprep.subr.mxu0 0.0
      %418 = vmatpush2.msra.mxu0 0.0
      %419 = vmatprep.subr.mxu0 0.0
      %420 = vmatpush2.msra.mxu0 0.0
      %421 = vmatprep.subr.mxu0 0.0
      %422 = vmatpush2.msra.mxu0 0.0
      %423 = vmatprep.subr.mxu0 0.0
      %424 = vmatpush2.msra.mxu0 0.0
      %425 = vmatprep.subr.mxu0 0.0
      %426 = vmatpush2.msra.mxu0 0.0
      %427 = vmatprep.subr.mxu0 0.0
      %428 = vmatpush2.msra.mxu0 0.0
      %429 = vmatprep.subr.mxu0 0.0
      %430 = vmatpush2.msra.mxu0 0.0
      %431 = vmatprep.subr.mxu0 0.0
      %432 = vmatpush2.msra.mxu0 0.0
      %433 = vmatprep.subr.mxu0 0.0
      %434 = vmatpush2.msra.mxu0 0.0
      %435 = vmatprep.subr.mxu0 0.0
      %436 = vmatpush2.msra.mxu0 0.0
      %437 = vmatprep.subr.mxu0 0.0
      %438 = vmatpush2.msra.mxu0 0.0
      %439 = vmatprep.mubr.f32.mxu0 0.0
      %440 = vmatmul.mubr.f32.gmra.mxu0 %v259
      %v441 = vpop.f32.mrf.mxu0
      %v442 = vadd.f32 0.0, %v441
      %v443 = vpop.f32.mrf.mxu0
      %444 = vmatprep.mubr.f32.mxu0 0.0
      %445 = vmatmul.mubr.f32.gmra.mxu0 %v260
      %v446 = vpop.f32.mrf.mxu0
      %v447 = vadd.f32 0.0, %v446
      %v448 = vpop.f32.mrf.mxu0
      %449 = vmatprep.mubr.f32.mxu0 0.0
      %450 = vmatmul.mubr.f32.gmra.mxu0 %v261
      %v451 = vpop.f32.mrf.mxu0
      %v452 = vadd.f32 0.0, %v451
      %v453 = vpop.f32.mrf.mxu0
      %454 = vmatprep.mubr.f32.mxu0 0.0
      %455 = vmatmul.mubr.f32.gmra.mxu0 %v262
      %v456 = vpop.f32.mrf.mxu0
      %v457 = vadd.f32 0.0, %v456
      %v458 = vpop.f32.mrf.mxu0
      %459 = vmatprep.mubr.f32.mxu0 0.0
      %460 = vmatmul.mubr.f32.gmra.mxu0 %v263
      %v461 = vpop.f32.mrf.mxu0
      %v462 = vadd.f32 0.0, %v461
      %v463 = vpop.f32.mrf.mxu0
      %464 = vmatprep.mubr.f32.mxu0 0.0
      %465 = vmatmul.mubr.f32.gmra.mxu0 %v264
      %v466 = vpop.f32.mrf.mxu0
      %v467 = vadd.f32 0.0, %v466
      %v468 = vpop.f32.mrf.mxu0
      %469 = vmatprep.mubr.f32.mxu0 0.0
      %470 = vmatmul.mubr.f32.gmra.mxu0 %v265
      %v471 = vpop.f32.mrf.mxu0
      %v472 = vadd.f32 0.0, %v471
      %v473 = vpop.f32.mrf.mxu0
      %474 = vmatprep.mubr.f32.mxu0 0.0
      %475 = vmatmul.mubr.f32.gmra.mxu0 %v266
      %v476 = vpop.f32.mrf.mxu0
      %v477 = vadd.f32 0.0, %v476
      %v478 = vpop.f32.mrf.mxu0
      %479 = vmatprep.mubr.f32.mxu0 0.0
      %480 = vmatmul.mubr.f32.gmra.mxu0 %v267
      %v481 = vpop.f32.mrf.mxu0
      %v482 = vadd.f32 0.0, %v481
      %v483 = vpop.f32.mrf.mxu0
      %484 = vmatprep.mubr.f32.mxu0 0.0
      %485 = vmatmul.mubr.f32.gmra.mxu0 %v268
      %v486 = vpop.f32.mrf.mxu0
      %v487 = vadd.f32 0.0, %v486
      %v488 = vpop.f32.mrf.mxu0
      %489 = vmatprep.mubr.f32.mxu0 0.0
      %490 = vmatmul.mubr.f32.gmra.mxu0 %v269
      %v491 = vpop.f32.mrf.mxu0
      %v492 = vadd.f32 0.0, %v491
      %v493 = vpop.f32.mrf.mxu0
      %494 = vmatprep.mubr.f32.mxu0 0.0
      %495 = vmatmul.mubr.f32.gmra.mxu0 %v270
      %v496 = vpop.f32.mrf.mxu0
      %v497 = vadd.f32 0.0, %v496
      %v498 = vpop.f32.mrf.mxu0
      %499 = vmatprep.mubr.f32.mxu0 0.0
      %500 = vmatmul.mubr.f32.gmra.mxu0 %v271
      %v501 = vpop.f32.mrf.mxu0
      %v502 = vadd.f32 0.0, %v501
      %v503 = vpop.f32.mrf.mxu0
      %504 = vmatprep.mubr.f32.mxu0 0.0
      %505 = vmatmul.mubr.f32.gmra.mxu0 %v272
      %v506 = vpop.f32.mrf.mxu0
      %v507 = vadd.f32 0.0, %v506
      %v508 = vpop.f32.mrf.mxu0
      %509 = vmatprep.mubr.f32.mxu0 0.0
      %510 = vmatmul.mubr.f32.gmra.mxu0 %v273
      %v511 = vpop.f32.mrf.mxu0
      %v512 = vadd.f32 0.0, %v511
      %v513 = vpop.f32.mrf.mxu0
      %514 = vmatprep.mubr.f32.mxu0 0.0
      %515 = vmatmul.mubr.f32.gmra.mxu0 %v274
      %v516 = vpop.f32.mrf.mxu0
      %v517 = vadd.f32 0.0, %v516
      %v518 = vpop.f32.mrf.mxu0
      %519 = vmatprep.mubr.f32.mxu0 0.0
      %520 = vmatmul.mubr.f32.gmra.mxu0 %v275
      %v521 = vpop.f32.mrf.mxu0
      %v522 = vadd.f32 0.0, %v521
      %v523 = vpop.f32.mrf.mxu0
      %524 = vmatprep.mubr.f32.mxu0 0.0
      %525 = vmatmul.mubr.f32.gmra.mxu0 %v276
      %v526 = vpop.f32.mrf.mxu0
      %v527 = vadd.f32 0.0, %v526
      %v528 = vpop.f32.mrf.mxu0
      %529 = vmatprep.mubr.f32.mxu0 0.0
      %530 = vmatmul.mubr.f32.gmra.mxu0 %v277
      %v531 = vpop.f32.mrf.mxu0
      %v532 = vadd.f32 0.0, %v531
      %v533 = vpop.f32.mrf.mxu0
      %534 = vmatprep.mubr.f32.mxu0 0.0
      %535 = vmatmul.mubr.f32.gmra.mxu0 %v278
      %v536 = vpop.f32.mrf.mxu0
      %v537 = vadd.f32 0.0, %v536
      %v538 = vpop.f32.mrf.mxu0
      %539 = vmatprep.mubr.f32.mxu0 0.0
      %540 = vmatmul.mubr.f32.gmra.mxu0 %v279
      %v541 = vpop.f32.mrf.mxu0
      %v542 = vadd.f32 0.0, %v541
      %v543 = vpop.f32.mrf.mxu0
      %544 = vmatprep.mubr.f32.mxu0 0.0
      %545 = vmatmul.mubr.f32.gmra.mxu0 %v280
      %v546 = vpop.f32.mrf.mxu0
      %v547 = vadd.f32 0.0, %v546
      %v548 = vpop.f32.mrf.mxu0
      %549 = vmatprep.mubr.f32.mxu0 0.0
      %550 = vmatmul.mubr.f32.gmra.mxu0 %v281
      %v551 = vpop.f32.mrf.mxu0
      %v552 = vadd.f32 0.0, %v551
      %v553 = vpop.f32.mrf.mxu0
      %554 = vmatprep.mubr.f32.mxu0 0.0
      %555 = vmatmul.mubr.f32.gmra.mxu0 %v282
      %v556 = vpop.f32.mrf.mxu0
      %v557 = vadd.f32 0.0, %v556
      %v558 = vpop.f32.mrf.mxu0
      %559 = vmatprep.mubr.f32.mxu0 0.0
      %560 = vmatmul.mubr.f32.gmra.mxu0 %v283
      %v561 = vpop.f32.mrf.mxu0
      %v562 = vadd.f32 0.0, %v561
      %v563 = vpop.f32.mrf.mxu0
      %564 = vmatprep.mubr.f32.mxu0 0.0
      %565 = vmatmul.mubr.f32.gmra.mxu0 %v284
      %v566 = vpop.f32.mrf.mxu0
      %v567 = vadd.f32 0.0, %v566
      %v568 = vpop.f32.mrf.mxu0
      %569 = vmatprep.mubr.f32.mxu0 0.0
      %570 = vmatmul.mubr.f32.gmra.mxu0 %v285
      %v571 = vpop.f32.mrf.mxu0
      %v572 = vadd.f32 0.0, %v571
      %v573 = vpop.f32.mrf.mxu0
      %574 = vmatprep.mubr.f32.mxu0 0.0
      %575 = vmatmul.mubr.f32.gmra.mxu0 %v286
      %v576 = vpop.f32.mrf.mxu0
      %v577 = vadd.f32 0.0, %v576
      %v578 = vpop.f32.mrf.mxu0
      %579 = vmatprep.mubr.f32.mxu0 0.0
      %580 = vmatmul.mubr.f32.gmra.mxu0 %v287
      %v581 = vpop.f32.mrf.mxu0
      %v582 = vadd.f32 0.0, %v581
      %v583 = vpop.f32.mrf.mxu0
      %584 = vmatprep.mubr.f32.mxu0 0.0
      %585 = vmatmul.mubr.f32.gmra.mxu0 %v288
      %v586 = vpop.f32.mrf.mxu0
      %v587 = vadd.f32 0.0, %v586
      %v588 = vpop.f32.mrf.mxu0
      %589 = vmatprep.mubr.f32.mxu0 0.0
      %590 = vmatmul.mubr.f32.gmra.mxu0 %v289
      %v591 = vpop.f32.mrf.mxu0
      %v592 = vadd.f32 0.0, %v591
      %v593 = vpop.f32.mrf.mxu0
      %594 = vmatprep.mubr.f32.mxu0 0.0
      %595 = vmatmul.mubr.f32.gmra.mxu0 %v290
      %v596 = vpop.f32.mrf.mxu0
      %v597 = vadd.f32 0.0, %v596
      %v598 = vpop.f32.mrf.mxu0
      %599 = vdwg.mxu0
      %v600 = vadd.f32 %v327, %v442
      %v601 = vadd.f32 %v328, %v447
      %v602 = vadd.f32 %v329, %v452
      %v603 = vadd.f32 %v330, %v457
      %v604 = vadd.f32 %v331, %v462
      %v605 = vadd.f32 %v332, %v467
      %v606 = vadd.f32 %v333, %v472
      %v607 = vadd.f32 %v334, %v477
      %v608 = vadd.f32 %v335, %v482
      %v609 = vadd.f32 %v336, %v487
      %v610 = vadd.f32 %v337, %v492
      %v611 = vadd.f32 %v338, %v497
      %v612 = vadd.f32 %v339, %v502
      %v613 = vadd.f32 %v340, %v507
      %v614 = vadd.f32 %v341, %v512
      %v615 = vadd.f32 %v342, %v517
      %v616 = vadd.f32 %v343, %v522
      %v617 = vadd.f32 %v344, %v527
      %v618 = vadd.f32 %v345, %v532
      %v619 = vadd.f32 %v346, %v537
      %v620 = vadd.f32 %v347, %v542
      %v621 = vadd.f32 %v348, %v547
      %v622 = vadd.f32 %v349, %v552
      %v623 = vadd.f32 %v350, %v557
      %v624 = vadd.f32 %v351, %v562
      %v625 = vadd.f32 %v352, %v567
      %v626 = vadd.f32 %v353, %v572
      %v627 = vadd.f32 %v354, %v577
      %v628 = vadd.f32 %v355, %v582
      %v629 = vadd.f32 %v356, %v587
      %v630 = vadd.f32 %v357, %v592
      %v631 = vadd.f32 %v358, %v597
      %632 = vst [vmem:[%s257] sm:$0xff] %v600
      %633 = vst [vmem:[%s257 + $0x8] sm:$0xff] %v601
      %634 = vst [vmem:[%s257 + $0x10] sm:$0xff] %v602
      %635 = vst [vmem:[%s257 + $0x18] sm:$0xff] %v603
      %636 = vst [vmem:[%s257 + $0x20] sm:$0xff] %v604
      %637 = vst [vmem:[%s257 + $0x28] sm:$0xff] %v605
      %638 = vst [vmem:[%s257 + $0x30] sm:$0xff] %v606
      %639 = vst [vmem:[%s257 + $0x38] sm:$0xff] %v607
      %640 = vst [vmem:[%s257 + $0x40] sm:$0xff] %v608
      %641 = vst [vmem:[%s257 + $0x48] sm:$0xff] %v609
      %642 = vst [vmem:[%s257 + $0x50] sm:$0xff] %v610
      %643 = vst [vmem:[%s257 + $0x58] sm:$0xff] %v611
      %644 = vst [vmem:[%s257 + $0x60] sm:$0xff] %v612
      %645 = vst [vmem:[%s257 + $0x68] sm:$0xff] %v613
      %646 = vst [vmem:[%s257 + $0x70] sm:$0xff] %v614
      %647 = vst [vmem:[%s257 + $0x78] sm:$0xff] %v615
      %648 = vst [vmem:[%s257 + $0x80] sm:$0xff] %v616
      %649 = vst [vmem:[%s257 + $0x88] sm:$0xff] %v617
      %650 = vst [vmem:[%s257 + $0x90] sm:$0xff] %v618
      %651 = vst [vmem:[%s257 + $0x98] sm:$0xff] %v619
      %652 = vst [vmem:[%s257 + $0xa0] sm:$0xff] %v620
      %653 = vst [vmem:[%s257 + $0xa8] sm:$0xff] %v621
      %654 = vst [vmem:[%s257 + $0xb0] sm:$0xff] %v622
      %655 = vst [vmem:[%s257 + $0xb8] sm:$0xff] %v623
      %656 = vst [vmem:[%s257 + $0xc0] sm:$0xff] %v624
      %657 = vst [vmem:[%s257 + $0xc8] sm:$0xff] %v625
      %658 = vst [vmem:[%s257 + $0xd0] sm:$0xff] %v626
      %659 = vst [vmem:[%s257 + $0xd8] sm:$0xff] %v627
      %660 = vst [vmem:[%s257 + $0xe0] sm:$0xff] %v628
      %661 = vst [vmem:[%s257 + $0xe8] sm:$0xff] %v629
      %662 = vst [vmem:[%s257 + $0xf0] sm:$0xff] %v630
      %663 = vst [vmem:[%s257 + $0xf8] sm:$0xff] %v631
      // Predicated region
      $region37: #{fwd.13} parent=31 // pred_check
        %p664 = pneg %p291
      $region38: #{fwd.13} parent=31 // pred_check_branch
        %666 = sbr.rel (%p664) target = $region40
      $region39: #{fwd.13} parent=31 // pred_region
        %v667 = vld [vmem:[%s257] sm:$0xff]
        %v668 = vld [vmem:[%s257 + $0x8] sm:$0xff]
        %v669 = vld [vmem:[%s257 + $0x10] sm:$0xff]
        %v670 = vld [vmem:[%s257 + $0x18] sm:$0xff]
        %v671 = vld [vmem:[%s257 + $0x20] sm:$0xff]
        %v672 = vld [vmem:[%s257 + $0x28] sm:$0xff]
        %v673 = vld [vmem:[%s257 + $0x30] sm:$0xff]
        %v674 = vld [vmem:[%s257 + $0x38] sm:$0xff]
        %v675 = vld [vmem:[%s257 + $0x40] sm:$0xff]
        %v676 = vld [vmem:[%s257 + $0x48] sm:$0xff]
        %v677 = vld [vmem:[%s257 + $0x50] sm:$0xff]
        %v678 = vld [vmem:[%s257 + $0x58] sm:$0xff]
        %v679 = vld [vmem:[%s257 + $0x60] sm:$0xff]
        %v680 = vld [vmem:[%s257 + $0x68] sm:$0xff]
        %v681 = vld [vmem:[%s257 + $0x70] sm:$0xff]
        %v682 = vld [vmem:[%s257 + $0x78] sm:$0xff]
        %v683 = vld [vmem:[%s257 + $0x80] sm:$0xff]
        %v684 = vld [vmem:[%s257 + $0x88] sm:$0xff]
        %v685 = vld [vmem:[%s257 + $0x90] sm:$0xff]
        %v686 = vld [vmem:[%s257 + $0x98] sm:$0xff]
        %v687 = vld [vmem:[%s257 + $0xa0] sm:$0xff]
        %v688 = vld [vmem:[%s257 + $0xa8] sm:$0xff]
        %v689 = vld [vmem:[%s257 + $0xb0] sm:$0xff]
        %v690 = vld [vmem:[%s257 + $0xb8] sm:$0xff]
        %v691 = vld [vmem:[%s257 + $0xc0] sm:$0xff]
        %v692 = vld [vmem:[%s257 + $0xc8] sm:$0xff]
        %v693 = vld [vmem:[%s257 + $0xd0] sm:$0xff]
        %v694 = vld [vmem:[%s257 + $0xd8] sm:$0xff]
        %v695 = vld [vmem:[%s257 + $0xe0] sm:$0xff]
        %v696 = vld [vmem:[%s257 + $0xe8] sm:$0xff]
        %v697 = vld [vmem:[%s257 + $0xf0] sm:$0xff]
        %v698 = vld [vmem:[%s257 + $0xf8] sm:$0xff]
        %v699 = vmul.f32 %v667, 0.088388346
        %v700 = vmul.f32 %v668, 0.088388346
        %v701 = vmul.f32 %v669, 0.088388346
        %v702 = vmul.f32 %v670, 0.088388346
        %v703 = vmul.f32 %v671, 0.088388346
        %v704 = vmul.f32 %v672, 0.088388346
        %v705 = vmul.f32 %v673, 0.088388346
        %v706 = vmul.f32 %v674, 0.088388346
        %v707 = vmul.f32 %v675, 0.088388346
        %v708 = vmul.f32 %v676, 0.088388346
        %v709 = vmul.f32 %v677, 0.088388346
        %v710 = vmul.f32 %v678, 0.088388346
        %v711 = vmul.f32 %v679, 0.088388346
        %v712 = vmul.f32 %v680, 0.088388346
        %v713 = vmul.f32 %v681, 0.088388346
        %v714 = vmul.f32 %v682, 0.088388346
        %v715 = vmul.f32 %v683, 0.088388346
        %v716 = vmul.f32 %v684, 0.088388346
        %v717 = vmul.f32 %v685, 0.088388346
        %v718 = vmul.f32 %v686, 0.088388346
        %v719 = vmul.f32 %v687, 0.088388346
        %v720 = vmul.f32 %v688, 0.088388346
        %v721 = vmul.f32 %v689, 0.088388346
        %v722 = vmul.f32 %v690, 0.088388346
        %v723 = vmul.f32 %v691, 0.088388346
        %v724 = vmul.f32 %v692, 0.088388346
        %v725 = vmul.f32 %v693, 0.088388346
        %v726 = vmul.f32 %v694, 0.088388346
        %v727 = vmul.f32 %v695, 0.088388346
        %v728 = vmul.f32 %v696, 0.088388346
        %v729 = vmul.f32 %v697, 0.088388346
        %v730 = vmul.f32 %v698, 0.088388346
        %v731 = vld [vmem:[%s249] sm:$0x1]
        %v733 = vlaneseq
        %v734 = vshrl.u32 %v733, 7
        %v735 = vsub.s32 0, %v734
        %v736 = vrot.slane %v731, %v735
        %v738 = vadd.f32 %v699, %v736
        %v739 = vadd.f32 %v700, %v736
        %v740 = vadd.f32 %v701, %v736
        %v741 = vadd.f32 %v702, %v736
        %v742 = vadd.f32 %v703, %v736
        %v743 = vadd.f32 %v704, %v736
        %v744 = vadd.f32 %v705, %v736
        %v745 = vadd.f32 %v706, %v736
        %v746 = vadd.f32 %v707, %v736
        %v747 = vadd.f32 %v708, %v736
        %v748 = vadd.f32 %v709, %v736
        %v749 = vadd.f32 %v710, %v736
        %v750 = vadd.f32 %v711, %v736
        %v751 = vadd.f32 %v712, %v736
        %v752 = vadd.f32 %v713, %v736
        %v753 = vadd.f32 %v714, %v736
        %v754 = vadd.f32 %v715, %v736
        %v755 = vadd.f32 %v716, %v736
        %v756 = vadd.f32 %v717, %v736
        %v757 = vadd.f32 %v718, %v736
        %v758 = vadd.f32 %v719, %v736
        %v759 = vadd.f32 %v720, %v736
        %v760 = vadd.f32 %v721, %v736
        %v761 = vadd.f32 %v722, %v736
        %v762 = vadd.f32 %v723, %v736
        %v763 = vadd.f32 %v724, %v736
        %v764 = vadd.f32 %v725, %v736
        %v765 = vadd.f32 %v726, %v736
        %v766 = vadd.f32 %v727, %v736
        %v767 = vadd.f32 %v728, %v736
        %v768 = vadd.f32 %v729, %v736
        %v769 = vadd.f32 %v730, %v736
        %770 = vst [vmem:[%s257] sm:$0xff] %v738
        %771 = vst [vmem:[%s257 + $0x8] sm:$0xff] %v739
        %772 = vst [vmem:[%s257 + $0x10] sm:$0xff] %v740
        %773 = vst [vmem:[%s257 + $0x18] sm:$0xff] %v741
        %774 = vst [vmem:[%s257 + $0x20] sm:$0xff] %v742
        %775 = vst [vmem:[%s257 + $0x28] sm:$0xff] %v743
        %776 = vst [vmem:[%s257 + $0x30] sm:$0xff] %v744
        %777 = vst [vmem:[%s257 + $0x38] sm:$0xff] %v745
        %778 = vst [vmem:[%s257 + $0x40] sm:$0xff] %v746
        %779 = vst [vmem:[%s257 + $0x48] sm:$0xff] %v747
        %780 = vst [vmem:[%s257 + $0x50] sm:$0xff] %v748
        %781 = vst [vmem:[%s257 + $0x58] sm:$0xff] %v749
        %782 = vst [vmem:[%s257 + $0x60] sm:$0xff] %v750
        %783 = vst [vmem:[%s257 + $0x68] sm:$0xff] %v751
        %784 = vst [vmem:[%s257 + $0x70] sm:$0xff] %v752
        %785 = vst [vmem:[%s257 + $0x78] sm:$0xff] %v753
        %786 = vst [vmem:[%s257 + $0x80] sm:$0xff] %v754
        %787 = vst [vmem:[%s257 + $0x88] sm:$0xff] %v755
        %788 = vst [vmem:[%s257 + $0x90] sm:$0xff] %v756
        %789 = vst [vmem:[%s257 + $0x98] sm:$0xff] %v757
        %790 = vst [vmem:[%s257 + $0xa0] sm:$0xff] %v758
        %791 = vst [vmem:[%s257 + $0xa8] sm:$0xff] %v759
        %792 = vst [vmem:[%s257 + $0xb0] sm:$0xff] %v760
        %793 = vst [vmem:[%s257 + $0xb8] sm:$0xff] %v761
        %794 = vst [vmem:[%s257 + $0xc0] sm:$0xff] %v762
        %795 = vst [vmem:[%s257 + $0xc8] sm:$0xff] %v763
        %796 = vst [vmem:[%s257 + $0xd0] sm:$0xff] %v764
        %797 = vst [vmem:[%s257 + $0xd8] sm:$0xff] %v765
        %798 = vst [vmem:[%s257 + $0xe0] sm:$0xff] %v766
        %799 = vst [vmem:[%s257 + $0xe8] sm:$0xff] %v767
        %800 = vst [vmem:[%s257 + $0xf0] sm:$0xff] %v768
        %801 = vst [vmem:[%s257 + $0xf8] sm:$0xff] %v769
      $region40: #{fwd.13} parent=31 // pred_fallthru
        _
      %s802 = smul.u32 32, %s19
      %p803 = scmp.lt.s32.totalorder %s802, 63
      %s804 = scalar_select %p803, %s802, 63
      %p805 = scmp.lt.s32.totalorder %s20, 0
      %s806 = scalar_select %p805, %s20, 0
      %s807 = sadd.s32 %s806, %s804
      %s808 = smul.addr %s807, 8
      %s809 = scalar_lea.vmem %s3, %s808
      // Predicated region
      $region41: #{fwd.13} parent=31 // pred_check
        %p810 = pneg %p135
      $region42: #{fwd.13} parent=31 // pred_check_branch
        %812 = sbr.rel (%p810) target = $region44
      $region43: #{fwd.13} parent=31 // pred_region
        %s813 = smul.u32 32, %s19
      $region44: #{fwd.13} parent=31 // pred_fallthru
        _
    $region32: #{fwd.13} parent=5 // pred_fallthru
      _
    %p814 = scmp.le.s32.totalorder 2, %s9
    // Predicated region
    $region45: #{fwd.13} parent=5 // pred_check
      %p815 = pneg %p814
    $region46: #{fwd.13} parent=5 // pred_check_branch
      %817 = sbr.rel (%p815) target = $region48
    $region47: #{fwd.13} parent=5 // pred_region
      %s818 = ssub.s32 %s9, 2
      // Predicated region
      $region49: #{fwd.13} parent=47 // pred_check
        %p819 = pneg %p141
      $region50: #{fwd.13} parent=47 // pred_check_branch
        %821 = sbr.rel (%p819) target = $region52
      $region51: #{fwd.13} parent=47 // pred_region
        %s822 = smul.u32 32, %s22
        %p823 = scmp.lt.s32.totalorder %s822, 63
        %s824 = scalar_select %p823, %s822, 63
        %p825 = scmp.lt.s32.totalorder %s23, 0
        %s826 = scalar_select %p825, %s23, 0
        %s827 = sadd.s32 %s826, %s824
        %s828 = smul.addr %s827, 8
        %s829 = scalar_lea.vmem %s3, %s828
      $region52: #{fwd.13} parent=47 // pred_fallthru
        _
    $region48: #{fwd.13} parent=5 // pred_fallthru
      _
  $region6: #{fwd.13} parent=0 // loop_footer
    %s13 = sadd.s32 1, %s9
  $region7: #{fwd.13} parent=0 // loop_footer_branch
    %8 = sbr.rel target = $region3
  $region8: #{fwd.13} parent=0 // loop_exit
    _

</llo_original>
